<compile_context>
chip_gen: v6e
topology: v6e:2x2x1
jax: 0.10.0
libtpu: 0.0.40
codegen_flags: <defaults>
</compile_context>

<pallas_src>
import functools

import jax
import jax.numpy as jnp
from jax.experimental import pallas as pl
from jax.experimental.pallas import tpu as pltpu


# ---------------------------------------------------------------------------
# Pallas kernels
# ---------------------------------------------------------------------------
def _conv_bn_act_kernel(x_ref, w_ref, gamma_ref, beta_ref, o_ref):
    """Fused layer: K-folded conv matmul + exact batch BN + LeakyReLU(0.2).

    x_ref:     (m, kpad)   bf16  -- im2col rows (n, oh, ow)-major, K=(tap, cin)
    w_ref:     (kpad, cpad) bf16 -- tap-major, channel-padded conv weights
    gamma_ref: (1, cpad)   f32
    beta_ref:  (1, cpad)   f32
    o_ref:     (m, cpad)   bf16  -- post-BN, post-activation output
    """
    acc = jnp.dot(x_ref[...], w_ref[...],
                  preferred_element_type=jnp.float32)          # (m, cpad) f32
    inv_m = 1.0 / acc.shape[0]
    mean = jnp.sum(acc, axis=0, keepdims=True) * inv_m
    var = jnp.sum(acc * acc, axis=0, keepdims=True) * inv_m - mean * mean
    var = jnp.maximum(var, 0.0)                                # biased (training BN)
    scale = gamma_ref[...] * jax.lax.rsqrt(var + 1e-5)
    shift = beta_ref[...] - mean * scale
    v = acc * scale + shift
    o_ref[...] = jnp.where(v > 0, v, 0.2 * v).astype(o_ref.dtype)


def _tail_kernel(x_ref, w_ref, gamma_ref, beta_ref, wl_ref, bl_ref, o_ref,
                 *, n, ohw):
    """Last layer fully fused: conv + BN + LeakyReLU + flatten + Linear(out=1).

    x_ref rows are ordered (oh*ow)-major / batch-minor so the per-sample
    reduction below only needs static contiguous slices.
    wl_ref: (ohw*n, cpad) f32 -- linear weight in NHWC order, repeated per row.
    """
    acc = jnp.dot(x_ref[...], w_ref[...],
                  preferred_element_type=jnp.float32)          # (m, cpad)
    inv_m = 1.0 / acc.shape[0]
    mean = jnp.sum(acc, axis=0, keepdims=True) * inv_m
    var = jnp.sum(acc * acc, axis=0, keepdims=True) * inv_m - mean * mean
    var = jnp.maximum(var, 0.0)
    scale = gamma_ref[...] * jax.lax.rsqrt(var + 1e-5)
    shift = beta_ref[...] - mean * scale
    v = acc * scale + shift
    act = jnp.where(v > 0, v, 0.2 * v)                         # (m, cpad) f32
    rc = jnp.sum(act * wl_ref[...], axis=1, keepdims=True)     # (m, 1)
    total = jnp.broadcast_to(bl_ref[...], (n, 1))
    for p in range(ohw):                                       # static unroll
        total = total + rc[p * n:(p + 1) * n, :]
    o_ref[...] = total


# ---------------------------------------------------------------------------
# Layer wrappers
# ---------------------------------------------------------------------------
def conv_bn_act(cols, w, gamma, beta):
    m = cols.shape[0]
    cpad = w.shape[1]
    vmem = pl.BlockSpec(memory_space=pltpu.MemorySpace.VMEM)
    return pl.pallas_call(
        _conv_bn_act_kernel,
        out_shape=jax.ShapeDtypeStruct((m, cpad), jnp.bfloat16),
        in_specs=[vmem] * 4,
        out_specs=vmem,
    )(cols, w, gamma, beta)


def tail_conv_bn_act_linear(cols, w, gamma, beta, wl_rows, bl, *, n, ohw):
    vmem = pl.BlockSpec(memory_space=pltpu.MemorySpace.VMEM)
    kernel = functools.partial(_tail_kernel, n=n, ohw=ohw)
    return pl.pallas_call(
        kernel,
        out_shape=jax.ShapeDtypeStruct((n, 1), jnp.float32),
        in_specs=[vmem] * 6,
        out_specs=vmem,
    )(cols, w, gamma, beta, wl_rows, bl)


def _im2col_stride2(x_nhwc, p_major=False):
    """Plain-JAX im2col for the 5x5 / stride-2 / pad-2 conv (tiny at these shapes).

    Returns (N*OH*OW, 25*C) with K ordered (kh, kw, c); rows are batch-major
    unless p_major=True (then spatial-major, batch-minor, for the tail kernel).
    """
    n, h, w, c = x_nhwc.shape
    oh, ow = h // 2, w // 2
    xp = jnp.pad(x_nhwc, ((0, 0), (2, 2), (2, 2), (0, 0)))
    taps = [xp[:, kh:kh + 2 * oh:2, kw:kw + 2 * ow:2, :]
            for kh in range(5) for kw in range(5)]
    pat = jnp.stack(taps, axis=3)                     # (N, OH, OW, 25, C)
    if p_major:
        pat = pat.transpose(1, 2, 0, 3, 4)            # (OH, OW, N, 25, C)
    return pat.reshape(n * oh * ow, 25 * c)


# ---------------------------------------------------------------------------
# Parameter setup (deterministic, synthetic)
# ---------------------------------------------------------------------------
def _round_up(x, m):
    return ((x + m - 1) // m) * m


def _spectral_normalize(w_oihw):
    # TODO(synk): PyTorch spectral_norm uses one power-iteration step with a
    # persistent u vector; this exact SVD differs slightly in the constant.
    cout = w_oihw.shape[0]
    sigma = jnp.linalg.svd(w_oihw.reshape(cout, -1), compute_uv=False)[0]
    return w_oihw / sigma


def init_params(key, hidden_channels=8, patch_size=16):
    chans = [3, hidden_channels, hidden_channels * 2, hidden_channels * 4,
             hidden_channels * 8]
    cpads = [3] + [max(128, _round_up(c, 128)) for c in chans[1:]]
    convs = []
    for i in range(4):
        cin, cout = chans[i], chans[i + 1]
        cin_p = cpads[i]
        cout_p = cpads[i + 1]
        key, k1, k3, k4 = jax.random.split(key, 4)
        w = jax.random.normal(k1, (cout, cin, 5, 5), jnp.float32) * 0.1   # OIHW
        w = _spectral_normalize(w)
        # OIHW -> (KH, KW, Cin, Cout), zero-pad channels, flatten taps into the
        # contraction dim: (25*Cin_pad -> Kpad, Cout_pad), bf16 for the MXU.
        w_t = jnp.transpose(w, (2, 3, 1, 0))
        w_t = jnp.pad(w_t, ((0, 0), (0, 0), (0, cin_p - cin),
                            (0, cout_p - cout)))
        w_mat = w_t.reshape(25 * cin_p, cout_p)
        kpad = _round_up(25 * cin_p, 128)
        w_mat = jnp.pad(w_mat, ((0, kpad - 25 * cin_p), (0, 0)))
        w_mat = w_mat.astype(jnp.bfloat16)
        gamma = 1.0 + 0.1 * jax.random.normal(k3, (cout,), jnp.float32)
        beta = 0.1 * jax.random.normal(k4, (cout,), jnp.float32)
        convs.append(dict(
            w=w_mat,
            gamma=jnp.pad(gamma, (0, cout_p - cout)).reshape(1, cout_p),
            beta=jnp.pad(beta, (0, cout_p - cout)).reshape(1, cout_p),
        ))
        # NOTE: conv bias omitted — exactly cancelled by training-mode BN mean
        # subtraction (every conv in this model is followed by BatchNorm).
    now = patch_size // 2 ** 4
    c_last = 8 * hidden_channels
    in_features = now * now * c_last
    key, k1, k2 = jax.random.split(key, 3)
    lin_w = jax.random.normal(k1, (1, in_features), jnp.float32) * 0.05  # (out,in)
    lin_b = jax.random.normal(k2, (1,), jnp.float32) * 0.05
    # Bake PyTorch's NCHW x.view(N,-1) flatten order into the weight layout:
    # (1, C*H*W) -> (H*W, C), channel-pad to Cpad (padded columns are zero).
    wl = lin_w.reshape(c_last, now, now).transpose(1, 2, 0).reshape(now * now,
                                                                    c_last)
    wl = jnp.pad(wl, ((0, 0), (0, cpads[4] - c_last)))
    return dict(convs=convs, lin_w=wl, lin_b=lin_b.reshape(1, 1))


# ---------------------------------------------------------------------------
# Forward pass
# ---------------------------------------------------------------------------
@jax.jit
def discriminator_forward(params, x_nchw):
    x = jnp.transpose(x_nchw, (0, 2, 3, 1))              # NCHW -> NHWC
    n = x.shape[0]
    convs = params["convs"]
    out = None
    for li, layer in enumerate(convs):
        last = li == len(convs) - 1
        oh, ow = x.shape[1] // 2, x.shape[2] // 2
        cols = _im2col_stride2(x, p_major=last)           # (m, 25*C)
        kpad = layer["w"].shape[0]
        if cols.shape[1] < kpad:                          # layer 1: 75 -> 128
            cols = jnp.pad(cols, ((0, 0), (0, kpad - cols.shape[1])))
        cols = cols.astype(jnp.bfloat16)
        if not last:
            y = conv_bn_act(cols, layer["w"], layer["gamma"], layer["beta"])
            x = y.reshape(n, oh, ow, layer["w"].shape[1])
        else:
            wl_rows = jnp.repeat(params["lin_w"], n, axis=0)   # (ohw*n, cpad)
            out = tail_conv_bn_act_linear(cols, layer["w"], layer["gamma"],
                                          layer["beta"], wl_rows,
                                          params["lin_b"], n=n, ohw=oh * ow)
    return out


if __name__ == "__main__":
    # Small shapes consistent with the module: hidden_channels=8, patch_size=16
    # -> spatial 16 -> 8 -> 4 -> 2 -> 1, linear in_features = 1*1*8*8 = 64.
    hidden_channels = 8
    patch_size = 16
    key = jax.random.PRNGKey(0)
    kx, kp = jax.random.split(key)
    x = jax.random.normal(kx, (2, 3, patch_size, patch_size), jnp.float32)
    params = init_params(kp, hidden_channels, patch_size)

    out = discriminator_forward(params, x)
    jax.block_until_ready(out)
    assert out.shape == (2, 1) and out.dtype == jnp.float32
    # TODO(synk): BatchNorm running-stat (buffer) updates are not reproduced;
    # they do not affect the training-mode forward output.
    print("KERNEL_OK")
</pallas_src>

<mosaic_0001>
module attributes {stable_mosaic.version = 11 : i64} {
  func.func @_conv_bn_act_kernel(%arg0: memref<128x128xbf16, #tpu.memory_space<vmem>>, %arg1: memref<128x128xbf16, #tpu.memory_space<vmem>>, %arg2: memref<1x128xf32, #tpu.memory_space<vmem>>, %arg3: memref<1x128xf32, #tpu.memory_space<vmem>>, %arg4: memref<128x128xbf16, #tpu.memory_space<vmem>>) attributes {dimension_semantics = [], scalar_prefetch = 0 : i64, scratch_operands = 0 : i64, tpu.core_type = #tpu.core_type<tc>} {
    %c0 = arith.constant 0 : index
    %c0_0 = arith.constant 0 : index
    %0 = vector.load %arg0[%c0, %c0_0] : memref<128x128xbf16, #tpu.memory_space<vmem>>, vector<128x128xbf16>
    %c0_1 = arith.constant 0 : index
    %c0_2 = arith.constant 0 : index
    %1 = vector.load %arg1[%c0_1, %c0_2] : memref<128x128xbf16, #tpu.memory_space<vmem>>, vector<128x128xbf16>
    %cst = arith.constant dense<0.000000e+00> : vector<128x128xf32>
    %2 = tpu.matmul %0, %1, %cst {dimension_numbers = #tpu.dot_dimension_numbers<[1], [0], [0], [1], [0, 0, 1, 1], [], []>} : vector<128x128xbf16>, vector<128x128xbf16>, vector<128x128xf32> -> vector<128x128xf32>
    %cst_3 = arith.constant dense<0.000000e+00> : vector<128xf32>
    %3 = vector.multi_reduction <add>, %2, %cst_3 [0] : vector<128x128xf32> to vector<128xf32>
    %4 = vector.shape_cast %3 : vector<128xf32> to vector<1x128xf32>
    %cst_4 = arith.constant 7.812500e-03 : f32
    %5 = vector.broadcast %cst_4 : f32 to vector<1x128xf32>
    %6 = arith.mulf %4, %5 : vector<1x128xf32>
    %7 = arith.mulf %2, %2 : vector<128x128xf32>
    %cst_5 = arith.constant dense<0.000000e+00> : vector<128xf32>
    %8 = vector.multi_reduction <add>, %7, %cst_5 [0] : vector<128x128xf32> to vector<128xf32>
    %9 = vector.shape_cast %8 : vector<128xf32> to vector<1x128xf32>
    %cst_6 = arith.constant 7.812500e-03 : f32
    %10 = vector.broadcast %cst_6 : f32 to vector<1x128xf32>
    %11 = arith.mulf %9, %10 : vector<1x128xf32>
    %12 = arith.mulf %6, %6 : vector<1x128xf32>
    %13 = arith.subf %11, %12 : vector<1x128xf32>
    %cst_7 = arith.constant 0.000000e+00 : f32
    %14 = vector.broadcast %cst_7 : f32 to vector<1x128xf32>
    %15 = arith.maximumf %13, %14 : vector<1x128xf32>
    %c0_8 = arith.constant 0 : index
    %c0_9 = arith.constant 0 : index
    %16 = vector.load %arg2[%c0_8, %c0_9] : memref<1x128xf32, #tpu.memory_space<vmem>>, vector<1x128xf32>
    %cst_10 = arith.constant 9.99999974E-6 : f32
    %17 = vector.broadcast %cst_10 : f32 to vector<1x128xf32>
    %18 = arith.addf %15, %17 : vector<1x128xf32>
    %19 = math.rsqrt %18 : vector<1x128xf32>
    %20 = arith.mulf %16, %19 : vector<1x128xf32>
    %c0_11 = arith.constant 0 : index
    %c0_12 = arith.constant 0 : index
    %21 = vector.load %arg3[%c0_11, %c0_12] : memref<1x128xf32, #tpu.memory_space<vmem>>, vector<1x128xf32>
    %22 = arith.mulf %6, %20 : vector<1x128xf32>
    %23 = arith.subf %21, %22 : vector<1x128xf32>
    %24 = vector.broadcast %20 : vector<1x128xf32> to vector<128x128xf32>
    %25 = arith.mulf %2, %24 : vector<128x128xf32>
    %26 = vector.broadcast %23 : vector<1x128xf32> to vector<128x128xf32>
    %27 = arith.addf %25, %26 : vector<128x128xf32>
    %cst_13 = arith.constant 0.000000e+00 : f32
    %28 = vector.broadcast %cst_13 : f32 to vector<128x128xf32>
    %29 = arith.cmpf ogt, %27, %28 : vector<128x128xf32>
    %cst_14 = arith.constant 2.000000e-01 : f32
    %30 = vector.broadcast %cst_14 : f32 to vector<128x128xf32>
    %31 = arith.mulf %30, %27 : vector<128x128xf32>
    %32 = arith.select %29, %27, %31 : vector<128x128xi1>, vector<128x128xf32>
    %33 = arith.truncf %32 : vector<128x128xf32> to vector<128x128xbf16>
    %c0_15 = arith.constant 0 : index
    %c0_16 = arith.constant 0 : index
    %34 = vector.load %arg4[%c0_15, %c0_16] : memref<128x128xbf16, #tpu.memory_space<vmem>>, vector<128x128xbf16>
    tpu.vector_store %arg4[%c0_15, %c0_16], %33 {strides = array<i32>} : memref<128x128xbf16, #tpu.memory_space<vmem>>, vector<128x128xbf16>,
    return
  }
}

module attributes {stable_mosaic.version = 11 : i64} {
  func.func @_conv_bn_act_kernel(%arg0: memref<32x3200xbf16, #tpu.memory_space<vmem>>, %arg1: memref<3200x128xbf16, #tpu.memory_space<vmem>>, %arg2: memref<1x128xf32, #tpu.memory_space<vmem>>, %arg3: memref<1x128xf32, #tpu.memory_space<vmem>>, %arg4: memref<32x128xbf16, #tpu.memory_space<vmem>>) attributes {dimension_semantics = [], scalar_prefetch = 0 : i64, scratch_operands = 0 : i64, tpu.core_type = #tpu.core_type<tc>} {
    %c0 = arith.constant 0 : index
    %c0_0 = arith.constant 0 : index
    %0 = vector.load %arg0[%c0, %c0_0] : memref<32x3200xbf16, #tpu.memory_space<vmem>>, vector<32x3200xbf16>
    %c0_1 = arith.constant 0 : index
    %c0_2 = arith.constant 0 : index
    %1 = vector.load %arg1[%c0_1, %c0_2] : memref<3200x128xbf16, #tpu.memory_space<vmem>>, vector<3200x128xbf16>
    %cst = arith.constant dense<0.000000e+00> : vector<32x128xf32>
    %2 = tpu.matmul %0, %1, %cst {dimension_numbers = #tpu.dot_dimension_numbers<[1], [0], [0], [1], [0, 0, 1, 1], [], []>} : vector<32x3200xbf16>, vector<3200x128xbf16>, vector<32x128xf32> -> vector<32x128xf32>
    %cst_3 = arith.constant dense<0.000000e+00> : vector<128xf32>
    %3 = vector.multi_reduction <add>, %2, %cst_3 [0] : vector<32x128xf32> to vector<128xf32>
    %4 = vector.shape_cast %3 : vector<128xf32> to vector<1x128xf32>
    %cst_4 = arith.constant 3.125000e-02 : f32
    %5 = vector.broadcast %cst_4 : f32 to vector<1x128xf32>
    %6 = arith.mulf %4, %5 : vector<1x128xf32>
    %7 = arith.mulf %2, %2 : vector<32x128xf32>
    %cst_5 = arith.constant dense<0.000000e+00> : vector<128xf32>
    %8 = vector.multi_reduction <add>, %7, %cst_5 [0] : vector<32x128xf32> to vector<128xf32>
    %9 = vector.shape_cast %8 : vector<128xf32> to vector<1x128xf32>
    %cst_6 = arith.constant 3.125000e-02 : f32
    %10 = vector.broadcast %cst_6 : f32 to vector<1x128xf32>
    %11 = arith.mulf %9, %10 : vector<1x128xf32>
    %12 = arith.mulf %6, %6 : vector<1x128xf32>
    %13 = arith.subf %11, %12 : vector<1x128xf32>
    %cst_7 = arith.constant 0.000000e+00 : f32
    %14 = vector.broadcast %cst_7 : f32 to vector<1x128xf32>
    %15 = arith.maximumf %13, %14 : vector<1x128xf32>
    %c0_8 = arith.constant 0 : index
    %c0_9 = arith.constant 0 : index
    %16 = vector.load %arg2[%c0_8, %c0_9] : memref<1x128xf32, #tpu.memory_space<vmem>>, vector<1x128xf32>
    %cst_10 = arith.constant 9.99999974E-6 : f32
    %17 = vector.broadcast %cst_10 : f32 to vector<1x128xf32>
    %18 = arith.addf %15, %17 : vector<1x128xf32>
    %19 = math.rsqrt %18 : vector<1x128xf32>
    %20 = arith.mulf %16, %19 : vector<1x128xf32>
    %c0_11 = arith.constant 0 : index
    %c0_12 = arith.constant 0 : index
    %21 = vector.load %arg3[%c0_11, %c0_12] : memref<1x128xf32, #tpu.memory_space<vmem>>, vector<1x128xf32>
    %22 = arith.mulf %6, %20 : vector<1x128xf32>
    %23 = arith.subf %21, %22 : vector<1x128xf32>
    %24 = vector.broadcast %20 : vector<1x128xf32> to vector<32x128xf32>
    %25 = arith.mulf %2, %24 : vector<32x128xf32>
    %26 = vector.broadcast %23 : vector<1x128xf32> to vector<32x128xf32>
    %27 = arith.addf %25, %26 : vector<32x128xf32>
    %cst_13 = arith.constant 0.000000e+00 : f32
    %28 = vector.broadcast %cst_13 : f32 to vector<32x128xf32>
    %29 = arith.cmpf ogt, %27, %28 : vector<32x128xf32>
    %cst_14 = arith.constant 2.000000e-01 : f32
    %30 = vector.broadcast %cst_14 : f32 to vector<32x128xf32>
    %31 = arith.mulf %30, %27 : vector<32x128xf32>
    %32 = arith.select %29, %27, %31 : vector<32x128xi1>, vector<32x128xf32>
    %33 = arith.truncf %32 : vector<32x128xf32> to vector<32x128xbf16>
    %c0_15 = arith.constant 0 : index
    %c0_16 = arith.constant 0 : index
    %34 = vector.load %arg4[%c0_15, %c0_16] : memref<32x128xbf16, #tpu.memory_space<vmem>>, vector<32x128xbf16>
    tpu.vector_store %arg4[%c0_15, %c0_16], %33 {strides = array<i32>} : memref<32x128xbf16, #tpu.memory_space<vmem>>, vector<32x128xbf16>,
    return
  }
}

module attributes {stable_mosaic.version = 11 : i64} {
  func.func @_conv_bn_act_kernel(%arg0: memref<8x3200xbf16, #tpu.memory_space<vmem>>, %arg1: memref<3200x128xbf16, #tpu.memory_space<vmem>>, %arg2: memref<1x128xf32, #tpu.memory_space<vmem>>, %arg3: memref<1x128xf32, #tpu.memory_space<vmem>>, %arg4: memref<8x128xbf16, #tpu.memory_space<vmem>>) attributes {dimension_semantics = [], scalar_prefetch = 0 : i64, scratch_operands = 0 : i64, tpu.core_type = #tpu.core_type<tc>} {
    %c0 = arith.constant 0 : index
    %c0_0 = arith.constant 0 : index
    %0 = vector.load %arg0[%c0, %c0_0] : memref<8x3200xbf16, #tpu.memory_space<vmem>>, vector<8x3200xbf16>
    %c0_1 = arith.constant 0 : index
    %c0_2 = arith.constant 0 : index
    %1 = vector.load %arg1[%c0_1, %c0_2] : memref<3200x128xbf16, #tpu.memory_space<vmem>>, vector<3200x128xbf16>
    %cst = arith.constant dense<0.000000e+00> : vector<8x128xf32>
    %2 = tpu.matmul %0, %1, %cst {dimension_numbers = #tpu.dot_dimension_numbers<[1], [0], [0], [1], [0, 0, 1, 1], [], []>} : vector<8x3200xbf16>, vector<3200x128xbf16>, vector<8x128xf32> -> vector<8x128xf32>
    %cst_3 = arith.constant dense<0.000000e+00> : vector<128xf32>
    %3 = vector.multi_reduction <add>, %2, %cst_3 [0] : vector<8x128xf32> to vector<128xf32>
    %4 = vector.shape_cast %3 : vector<128xf32> to vector<1x128xf32>
    %cst_4 = arith.constant 1.250000e-01 : f32
    %5 = vector.broadcast %cst_4 : f32 to vector<1x128xf32>
    %6 = arith.mulf %4, %5 : vector<1x128xf32>
    %7 = arith.mulf %2, %2 : vector<8x128xf32>
    %cst_5 = arith.constant dense<0.000000e+00> : vector<128xf32>
    %8 = vector.multi_reduction <add>, %7, %cst_5 [0] : vector<8x128xf32> to vector<128xf32>
    %9 = vector.shape_cast %8 : vector<128xf32> to vector<1x128xf32>
    %cst_6 = arith.constant 1.250000e-01 : f32
    %10 = vector.broadcast %cst_6 : f32 to vector<1x128xf32>
    %11 = arith.mulf %9, %10 : vector<1x128xf32>
    %12 = arith.mulf %6, %6 : vector<1x128xf32>
    %13 = arith.subf %11, %12 : vector<1x128xf32>
    %cst_7 = arith.constant 0.000000e+00 : f32
    %14 = vector.broadcast %cst_7 : f32 to vector<1x128xf32>
    %15 = arith.maximumf %13, %14 : vector<1x128xf32>
    %c0_8 = arith.constant 0 : index
    %c0_9 = arith.constant 0 : index
    %16 = vector.load %arg2[%c0_8, %c0_9] : memref<1x128xf32, #tpu.memory_space<vmem>>, vector<1x128xf32>
    %cst_10 = arith.constant 9.99999974E-6 : f32
    %17 = vector.broadcast %cst_10 : f32 to vector<1x128xf32>
    %18 = arith.addf %15, %17 : vector<1x128xf32>
    %19 = math.rsqrt %18 : vector<1x128xf32>
    %20 = arith.mulf %16, %19 : vector<1x128xf32>
    %c0_11 = arith.constant 0 : index
    %c0_12 = arith.constant 0 : index
    %21 = vector.load %arg3[%c0_11, %c0_12] : memref<1x128xf32, #tpu.memory_space<vmem>>, vector<1x128xf32>
    %22 = arith.mulf %6, %20 : vector<1x128xf32>
    %23 = arith.subf %21, %22 : vector<1x128xf32>
    %24 = vector.broadcast %20 : vector<1x128xf32> to vector<8x128xf32>
    %25 = arith.mulf %2, %24 : vector<8x128xf32>
    %26 = vector.broadcast %23 : vector<1x128xf32> to vector<8x128xf32>
    %27 = arith.addf %25, %26 : vector<8x128xf32>
    %cst_13 = arith.constant 0.000000e+00 : f32
    %28 = vector.broadcast %cst_13 : f32 to vector<8x128xf32>
    %29 = arith.cmpf ogt, %27, %28 : vector<8x128xf32>
    %cst_14 = arith.constant 2.000000e-01 : f32
    %30 = vector.broadcast %cst_14 : f32 to vector<8x128xf32>
    %31 = arith.mulf %30, %27 : vector<8x128xf32>
    %32 = arith.select %29, %27, %31 : vector<8x128xi1>, vector<8x128xf32>
    %33 = arith.truncf %32 : vector<8x128xf32> to vector<8x128xbf16>
    %c0_15 = arith.constant 0 : index
    %c0_16 = arith.constant 0 : index
    %34 = vector.load %arg4[%c0_15, %c0_16] : memref<8x128xbf16, #tpu.memory_space<vmem>>, vector<8x128xbf16>
    tpu.vector_store %arg4[%c0_15, %c0_16], %33 {strides = array<i32>} : memref<8x128xbf16, #tpu.memory_space<vmem>>, vector<8x128xbf16>,
    return
  }
}

module attributes {stable_mosaic.version = 11 : i64} {
  func.func @_tail_kernel(%arg0: memref<2x3200xbf16, #tpu.memory_space<vmem>>, %arg1: memref<3200x128xbf16, #tpu.memory_space<vmem>>, %arg2: memref<1x128xf32, #tpu.memory_space<vmem>>, %arg3: memref<1x128xf32, #tpu.memory_space<vmem>>, %arg4: memref<2x128xf32, #tpu.memory_space<vmem>>, %arg5: memref<1x1xf32, #tpu.memory_space<vmem>>, %arg6: memref<2x1xf32, #tpu.memory_space<vmem>>) attributes {dimension_semantics = [], scalar_prefetch = 0 : i64, scratch_operands = 0 : i64, tpu.core_type = #tpu.core_type<tc>} {
    %c0 = arith.constant 0 : index
    %c0_0 = arith.constant 0 : index
    %0 = vector.load %arg0[%c0, %c0_0] : memref<2x3200xbf16, #tpu.memory_space<vmem>>, vector<2x3200xbf16>
    %c0_1 = arith.constant 0 : index
    %c0_2 = arith.constant 0 : index
    %1 = vector.load %arg1[%c0_1, %c0_2] : memref<3200x128xbf16, #tpu.memory_space<vmem>>, vector<3200x128xbf16>
    %cst = arith.constant dense<0.000000e+00> : vector<2x128xf32>
    %2 = tpu.matmul %0, %1, %cst {dimension_numbers = #tpu.dot_dimension_numbers<[1], [0], [0], [1], [0, 0, 1, 1], [], []>} : vector<2x3200xbf16>, vector<3200x128xbf16>, vector<2x128xf32> -> vector<2x128xf32>
    %cst_3 = arith.constant dense<0.000000e+00> : vector<128xf32>
    %3 = vector.multi_reduction <add>, %2, %cst_3 [0] : vector<2x128xf32> to vector<128xf32>
    %4 = vector.shape_cast %3 : vector<128xf32> to vector<1x128xf32>
    %cst_4 = arith.constant 5.000000e-01 : f32
    %5 = vector.broadcast %cst_4 : f32 to vector<1x128xf32>
    %6 = arith.mulf %4, %5 : vector<1x128xf32>
    %7 = arith.mulf %2, %2 : vector<2x128xf32>
    %cst_5 = arith.constant dense<0.000000e+00> : vector<128xf32>
    %8 = vector.multi_reduction <add>, %7, %cst_5 [0] : vector<2x128xf32> to vector<128xf32>
    %9 = vector.shape_cast %8 : vector<128xf32> to vector<1x128xf32>
    %cst_6 = arith.constant 5.000000e-01 : f32
    %10 = vector.broadcast %cst_6 : f32 to vector<1x128xf32>
    %11 = arith.mulf %9, %10 : vector<1x128xf32>
    %12 = arith.mulf %6, %6 : vector<1x128xf32>
    %13 = arith.subf %11, %12 : vector<1x128xf32>
    %cst_7 = arith.constant 0.000000e+00 : f32
    %14 = vector.broadcast %cst_7 : f32 to vector<1x128xf32>
    %15 = arith.maximumf %13, %14 : vector<1x128xf32>
    %c0_8 = arith.constant 0 : index
    %c0_9 = arith.constant 0 : index
    %16 = vector.load %arg2[%c0_8, %c0_9] : memref<1x128xf32, #tpu.memory_space<vmem>>, vector<1x128xf32>
    %cst_10 = arith.constant 9.99999974E-6 : f32
    %17 = vector.broadcast %cst_10 : f32 to vector<1x128xf32>
    %18 = arith.addf %15, %17 : vector<1x128xf32>
    %19 = math.rsqrt %18 : vector<1x128xf32>
    %20 = arith.mulf %16, %19 : vector<1x128xf32>
    %c0_11 = arith.constant 0 : index
    %c0_12 = arith.constant 0 : index
    %21 = vector.load %arg3[%c0_11, %c0_12] : memref<1x128xf32, #tpu.memory_space<vmem>>, vector<1x128xf32>
    %22 = arith.mulf %6, %20 : vector<1x128xf32>
    %23 = arith.subf %21, %22 : vector<1x128xf32>
    %24 = vector.broadcast %20 : vector<1x128xf32> to vector<2x128xf32>
    %25 = arith.mulf %2, %24 : vector<2x128xf32>
    %26 = vector.broadcast %23 : vector<1x128xf32> to vector<2x128xf32>
    %27 = arith.addf %25, %26 : vector<2x128xf32>
    %cst_13 = arith.constant 0.000000e+00 : f32
    %28 = vector.broadcast %cst_13 : f32 to vector<2x128xf32>
    %29 = arith.cmpf ogt, %27, %28 : vector<2x128xf32>
    %cst_14 = arith.constant 2.000000e-01 : f32
    %30 = vector.broadcast %cst_14 : f32 to vector<2x128xf32>
    %31 = arith.mulf %30, %27 : vector<2x128xf32>
    %32 = arith.select %29, %27, %31 : vector<2x128xi1>, vector<2x128xf32>
    %c0_15 = arith.constant 0 : index
    %c0_16 = arith.constant 0 : index
    %33 = vector.load %arg4[%c0_15, %c0_16] : memref<2x128xf32, #tpu.memory_space<vmem>>, vector<2x128xf32>
    %34 = arith.mulf %32, %33 : vector<2x128xf32>
    %cst_17 = arith.constant dense<0.000000e+00> : vector<2xf32>
    %35 = vector.multi_reduction <add>, %34, %cst_17 [1] : vector<2x128xf32> to vector<2xf32>
    %36 = vector.shape_cast %35 : vector<2xf32> to vector<2x1xf32>
    %c0_18 = arith.constant 0 : index
    %c0_19 = arith.constant 0 : index
    %37 = vector.load %arg5[%c0_18, %c0_19] : memref<1x1xf32, #tpu.memory_space<vmem>>, vector<1x1xf32>
    %38 = vector.shape_cast %37 : vector<1x1xf32> to vector<1x1xf32>
    %39 = vector.broadcast %38 : vector<1x1xf32> to vector<2x1xf32>
    %40 = arith.addf %39, %36 : vector<2x1xf32>
    %c0_20 = arith.constant 0 : index
    %c0_21 = arith.constant 0 : index
    %41 = vector.load %arg6[%c0_20, %c0_21] : memref<2x1xf32, #tpu.memory_space<vmem>>, vector<2x1xf32>
    tpu.vector_store %arg6[%c0_20, %c0_21], %40 {strides = array<i32>} : memref<2x1xf32, #tpu.memory_space<vmem>>, vector<2x1xf32>,
    return
  }
}

</mosaic_0001>

<llo_original>
// kernel: discriminator_forward.4
$region0: #{discriminator_forward.4}
  #allocation0 [shape = 'u32[]', space=smem, size = 0x4, offset = 0x4, fixed_abs, tag = 'smem constant byte address 0x4 - core index']
  #allocation1 [shape = 'u32[144,128]{1,0:T(1,128)}', space=vmem, size = 0x12000, scoped, tag = 'internal scratch']
  %s0 = inlined_call_operand.vmem [shape: bf16[128,128], index: 0, kind: input, shape index: {}]
  %s1 = inlined_call_operand.vmem [shape: bf16[128,128], index: 1, kind: input, shape index: {}]
  %s2 = inlined_call_operand.vmem [shape: f32[1,128], index: 2, kind: input, shape index: {}]
  %s3 = inlined_call_operand.vmem [shape: f32[1,128], index: 3, kind: input, shape index: {}]
  %s4 = inlined_call_operand.vmem [shape: bf16[128,128], index: 4, kind: output, shape index: {}]
  %s5 = sld [smem:[#allocation0]]
  $region26: #{discriminator_forward.4} parent=0
    _
  %s7 = ssub.s32 1, %s5
  %s8 = scalar_select 0, %s7, %s5
  // Predicated region
  $region2: #{discriminator_forward.4} parent=0 // pred_check
    _
  $region3: #{discriminator_forward.4} parent=0 // pred_check_branch
    %10 = sbr.rel (0) target = $region5
  $region4: #{discriminator_forward.4} parent=0 // pred_region
    _
  $region5: #{discriminator_forward.4} parent=0 // pred_fallthru
    _
  // Predicated region
  $region6: #{discriminator_forward.4} parent=0 // pred_check
    _
  $region7: #{discriminator_forward.4} parent=0 // pred_check_branch
    %12 = sbr.rel (0) target = $region9
  $region8: #{discriminator_forward.4} parent=0 // pred_region
    _
  $region9: #{discriminator_forward.4} parent=0 // pred_fallthru
    _
  // Predicated region
  $region10: #{discriminator_forward.4} parent=0 // pred_check
    _
  $region11: #{discriminator_forward.4} parent=0 // pred_check_branch
    %14 = sbr.rel (0) target = $region13
  $region12: #{discriminator_forward.4} parent=0 // pred_region
    _
  $region13: #{discriminator_forward.4} parent=0 // pred_fallthru
    _
  // Predicated region
  $region14: #{discriminator_forward.4} parent=0 // pred_check
    _
  $region15: #{discriminator_forward.4} parent=0 // pred_check_branch
    %16 = sbr.rel (0) target = $region17
  $region16: #{discriminator_forward.4} parent=0 // pred_region
    _
  $region17: #{discriminator_forward.4} parent=0 // pred_fallthru
    _
  %v18 = vld [vmem:[%s0] sm:$0xf]
  %v19 = vld [vmem:[%s0 + $0x4] sm:$0xf]
  %v20 = vld [vmem:[%s0 + $0x8] sm:$0xf]
  %v21 = vld [vmem:[%s0 + $0xc] sm:$0xf]
  %v22 = vld [vmem:[%s0 + $0x10] sm:$0xf]
  %v23 = vld [vmem:[%s0 + $0x14] sm:$0xf]
  %v24 = vld [vmem:[%s0 + $0x18] sm:$0xf]
  %v25 = vld [vmem:[%s0 + $0x1c] sm:$0xf]
  %v26 = vld [vmem:[%s0 + $0x20] sm:$0xf]
  %v27 = vld [vmem:[%s0 + $0x24] sm:$0xf]
  %v28 = vld [vmem:[%s0 + $0x28] sm:$0xf]
  %v29 = vld [vmem:[%s0 + $0x2c] sm:$0xf]
  %v30 = vld [vmem:[%s0 + $0x30] sm:$0xf]
  %v31 = vld [vmem:[%s0 + $0x34] sm:$0xf]
  %v32 = vld [vmem:[%s0 + $0x38] sm:$0xf]
  %v33 = vld [vmem:[%s0 + $0x3c] sm:$0xf]
  %v34 = vld [vmem:[%s1] sm:$0xf]
  %v35 = vld [vmem:[%s1 + $0x4] sm:$0xf]
  %v36 = vld [vmem:[%s1 + $0x8] sm:$0xf]
  %v37 = vld [vmem:[%s1 + $0xc] sm:$0xf]
  %v38 = vld [vmem:[%s1 + $0x10] sm:$0xf]
  %v39 = vld [vmem:[%s1 + $0x14] sm:$0xf]
  %v40 = vld [vmem:[%s1 + $0x18] sm:$0xf]
  %v41 = vld [vmem:[%s1 + $0x1c] sm:$0xf]
  %v42 = vld [vmem:[%s1 + $0x20] sm:$0xf]
  %v43 = vld [vmem:[%s1 + $0x24] sm:$0xf]
  %v44 = vld [vmem:[%s1 + $0x28] sm:$0xf]
  %v45 = vld [vmem:[%s1 + $0x2c] sm:$0xf]
  %v46 = vld [vmem:[%s1 + $0x30] sm:$0xf]
  %v47 = vld [vmem:[%s1 + $0x34] sm:$0xf]
  %v48 = vld [vmem:[%s1 + $0x38] sm:$0xf]
  %v49 = vld [vmem:[%s1 + $0x3c] sm:$0xf]
  %v66 = vunpack.c.l.b16 %v18
  %v67 = vunpack.c.l.b16 %v19
  %v68 = vunpack.c.l.b16 %v20
  %v69 = vunpack.c.l.b16 %v21
  %v70 = vunpack.c.l.b16 %v22
  %v71 = vunpack.c.l.b16 %v23
  %v72 = vunpack.c.l.b16 %v24
  %v73 = vunpack.c.l.b16 %v25
  %v74 = vunpack.c.l.b16 %v26
  %v75 = vunpack.c.l.b16 %v27
  %v76 = vunpack.c.l.b16 %v28
  %v77 = vunpack.c.l.b16 %v29
  %v78 = vunpack.c.l.b16 %v30
  %v79 = vunpack.c.l.b16 %v31
  %v80 = vunpack.c.l.b16 %v32
  %v81 = vunpack.c.l.b16 %v33
  %v82 = vpack.c.b16 %v67, %v66
  %v83 = vpack.c.b16 %v69, %v68
  %v84 = vpack.c.b16 %v71, %v70
  %v85 = vpack.c.b16 %v73, %v72
  %v86 = vpack.c.b16 %v75, %v74
  %v87 = vpack.c.b16 %v77, %v76
  %v88 = vpack.c.b16 %v79, %v78
  %v89 = vpack.c.b16 %v81, %v80
  %v114 = vunpack.c.l.b16 %v34
  %v115 = vunpack.c.l.b16 %v35
  %v116 = vunpack.c.l.b16 %v36
  %v117 = vunpack.c.l.b16 %v37
  %v118 = vunpack.c.l.b16 %v38
  %v119 = vunpack.c.l.b16 %v39
  %v120 = vunpack.c.l.b16 %v40
  %v121 = vunpack.c.l.b16 %v41
  %v122 = vunpack.c.l.b16 %v42
  %v123 = vunpack.c.l.b16 %v43
  %v124 = vunpack.c.l.b16 %v44
  %v125 = vunpack.c.l.b16 %v45
  %v126 = vunpack.c.l.b16 %v46
  %v127 = vunpack.c.l.b16 %v47
  %v128 = vunpack.c.l.b16 %v48
  %v129 = vunpack.c.l.b16 %v49
  %v130 = vpack.c.b16 %v115, %v114
  %v131 = vpack.c.b16 %v117, %v116
  %v132 = vpack.c.b16 %v119, %v118
  %v133 = vpack.c.b16 %v121, %v120
  %v134 = vpack.c.b16 %v123, %v122
  %v135 = vpack.c.b16 %v125, %v124
  %v136 = vpack.c.b16 %v127, %v126
  %v137 = vpack.c.b16 %v129, %v128
  %146 = vmatprep.subr.bf16.mxu0 0
  %147 = vmatpush1.bf16.msra.mxu0 %v137
  %148 = vmatprep.subr.bf16.mxu0 0
  %149 = vmatpush1.bf16.msra.mxu0 %v136
  %150 = vmatprep.subr.bf16.mxu0 0
  %151 = vmatpush1.bf16.msra.mxu0 %v135
  %152 = vmatprep.subr.bf16.mxu0 0
  %153 = vmatpush1.bf16.msra.mxu0 %v134
  %154 = vmatprep.subr.bf16.mxu0 0
  %155 = vmatpush1.bf16.msra.mxu0 %v133
  %156 = vmatprep.subr.bf16.mxu0 0
  %157 = vmatpush1.bf16.msra.mxu0 %v132
  %158 = vmatprep.subr.bf16.mxu0 0
  %159 = vmatpush1.bf16.msra.mxu0 %v131
  %160 = vmatprep.subr.bf16.mxu0 0
  %161 = vmatpush1.bf16.msra.mxu0 %v130
  %162 = vmatprep.subr.bf16.mxu0 0
  %163 = vmatpush2.bf16.msra.mxu0 0
  %164 = vmatprep.subr.bf16.mxu0 0
  %165 = vmatpush2.bf16.msra.mxu0 0
  %166 = vmatprep.subr.bf16.mxu0 0
  %167 = vmatpush2.bf16.msra.mxu0 0
  %168 = vmatprep.subr.bf16.mxu0 0
  %169 = vmatpush2.bf16.msra.mxu0 0
  %170 = vmatprep.subr.bf16.mxu0 0
  %171 = vmatpush2.bf16.msra.mxu0 0
  %172 = vmatprep.subr.bf16.mxu0 0
  %173 = vmatpush2.bf16.msra.mxu0 0
  %174 = vmatprep.subr.bf16.mxu0 0
  %175 = vmatpush2.bf16.msra.mxu0 0
  %176 = vmatprep.subr.bf16.mxu0 0
  %177 = vmatpush2.bf16.msra.mxu0 0
  %178 = vmatprep.mubr.bf16.mxu0 0
  %179 = vmatmul.mubr.bf16.gmra.mxu0 %v82
  %v180 = vpop.f32.mrf.mxu0
  %v181 = vadd.f32 0.0, %v180
  %v182 = vpop.f32.mrf.mxu0
  %v183 = vpop.f32.mrf.mxu0
  %v184 = vadd.f32 0.0, %v183
  %v185 = vpop.f32.mrf.mxu0
  %186 = vmatprep.mubr.bf16.mxu0 0
  %187 = vmatmul.mubr.bf16.gmra.mxu0 %v83
  %v188 = vpop.f32.mrf.mxu0
  %v189 = vadd.f32 0.0, %v188
  %v190 = vpop.f32.mrf.mxu0
  %v191 = vpop.f32.mrf.mxu0
  %v192 = vadd.f32 0.0, %v191
  %v193 = vpop.f32.mrf.mxu0
  %194 = vmatprep.mubr.bf16.mxu0 0
  %195 = vmatmul.mubr.bf16.gmra.mxu0 %v84
  %v196 = vpop.f32.mrf.mxu0
  %v197 = vadd.f32 0.0, %v196
  %v198 = vpop.f32.mrf.mxu0
  %v199 = vpop.f32.mrf.mxu0
  %v200 = vadd.f32 0.0, %v199
  %v201 = vpop.f32.mrf.mxu0
  %202 = vmatprep.mubr.bf16.mxu0 0
  %203 = vmatmul.mubr.bf16.gmra.mxu0 %v85
  %v204 = vpop.f32.mrf.mxu0
  %v205 = vadd.f32 0.0, %v204
  %v206 = vpop.f32.mrf.mxu0
  %v207 = vpop.f32.mrf.mxu0
  %v208 = vadd.f32 0.0, %v207
  %v209 = vpop.f32.mrf.mxu0
  %210 = vmatprep.mubr.bf16.mxu0 0
  %211 = vmatmul.mubr.bf16.gmra.mxu0 %v86
  %v212 = vpop.f32.mrf.mxu0
  %v213 = vadd.f32 0.0, %v212
  %v214 = vpop.f32.mrf.mxu0
  %v215 = vpop.f32.mrf.mxu0
  %v216 = vadd.f32 0.0, %v215
  %v217 = vpop.f32.mrf.mxu0
  %218 = vmatprep.mubr.bf16.mxu0 0
  %219 = vmatmul.mubr.bf16.gmra.mxu0 %v87
  %v220 = vpop.f32.mrf.mxu0
  %v221 = vadd.f32 0.0, %v220
  %v222 = vpop.f32.mrf.mxu0
  %v223 = vpop.f32.mrf.mxu0
  %v224 = vadd.f32 0.0, %v223
  %v225 = vpop.f32.mrf.mxu0
  %226 = vmatprep.mubr.bf16.mxu0 0
  %227 = vmatmul.mubr.bf16.gmra.mxu0 %v88
  %v228 = vpop.f32.mrf.mxu0
  %v229 = vadd.f32 0.0, %v228
  %v230 = vpop.f32.mrf.mxu0
  %v231 = vpop.f32.mrf.mxu0
  %v232 = vadd.f32 0.0, %v231
  %v233 = vpop.f32.mrf.mxu0
  %234 = vmatprep.mubr.bf16.mxu0 0
  %235 = vmatmul.mubr.bf16.gmra.mxu0 %v89
  %v236 = vpop.f32.mrf.mxu0
  %v237 = vadd.f32 0.0, %v236
  %v238 = vpop.f32.mrf.mxu0
  %v239 = vpop.f32.mrf.mxu0
  %v240 = vadd.f32 0.0, %v239
  %v241 = vpop.f32.mrf.mxu0
  %242 = vdwg.mxu0
  %v243 = vadd.f32 %v181, %v184
  %v244 = vadd.f32 %v243, %v189
  %v245 = vadd.f32 %v244, %v192
  %v246 = vadd.f32 %v245, %v197
  %v247 = vadd.f32 %v246, %v200
  %v248 = vadd.f32 %v247, %v205
  %v249 = vadd.f32 %v248, %v208
  %v250 = vadd.f32 %v249, %v213
  %v251 = vadd.f32 %v250, %v216
  %v252 = vadd.f32 %v251, %v221
  %v253 = vadd.f32 %v252, %v224
  %v254 = vadd.f32 %v253, %v229
  %v255 = vadd.f32 %v254, %v232
  %v256 = vadd.f32 %v255, %v237
  %v257 = vadd.f32 %v256, %v240
  %v258 = vrot.slane %v257, 4
  %v259 = vadd.f32 %v257, %v258
  %v260 = vrot.slane %v259, 2
  %v261 = vadd.f32 %v259, %v260
  %v262 = vrot.slane %v261, 1
  %v263 = vadd.f32 %v261, %v262
  %v264 = vmul.f32 %v263, 0.0078125
  %v265 = vmul.f32 %v181, %v181
  %v266 = vmul.f32 %v184, %v184
  %v267 = vmul.f32 %v189, %v189
  %v268 = vmul.f32 %v192, %v192
  %v269 = vmul.f32 %v197, %v197
  %v270 = vmul.f32 %v200, %v200
  %v271 = vmul.f32 %v205, %v205
  %v272 = vmul.f32 %v208, %v208
  %v273 = vmul.f32 %v213, %v213
  %v274 = vmul.f32 %v216, %v216
  %v275 = vmul.f32 %v221, %v221
  %v276 = vmul.f32 %v224, %v224
  %v277 = vmul.f32 %v229, %v229
  %v278 = vmul.f32 %v232, %v232
  %v279 = vmul.f32 %v237, %v237
  %v280 = vmul.f32 %v240, %v240
  %v281 = vadd.f32 %v265, %v266
  %v282 = vadd.f32 %v281, %v267
  %v283 = vadd.f32 %v282, %v268
  %v284 = vadd.f32 %v283, %v269
  %v285 = vadd.f32 %v284, %v270
  %v286 = vadd.f32 %v285, %v271
  %v287 = vadd.f32 %v286, %v272
  %v288 = vadd.f32 %v287, %v273
  %v289 = vadd.f32 %v288, %v274
  %v290 = vadd.f32 %v289, %v275
  %v291 = vadd.f32 %v290, %v276
  %v292 = vadd.f32 %v291, %v277
  %v293 = vadd.f32 %v292, %v278
  %v294 = vadd.f32 %v293, %v279
  %v295 = vadd.f32 %v294, %v280
  %v296 = vrot.slane %v295, 4
  %v297 = vadd.f32 %v295, %v296
  %v298 = vrot.slane %v297, 2
  %v299 = vadd.f32 %v297, %v298
  %v300 = vrot.slane %v299, 1
  %v301 = vadd.f32 %v299, %v300
  %v302 = vmul.f32 %v301, 0.0078125
  %v303 = vmul.f32 %v264, %v264
  %v304 = vsub.f32 %v302, %v303
  %v305 = vmax.f32 %v304, 0.0
  %v306 = vld [vmem:[%s2] sm:$0x1]
  %v307 = vadd.f32 %v305, 1e-05
  %v308 = vrsqrt.pop %v307
  %v309 = vmul.f32 %v306, %v308
  %v310 = vld [vmem:[%s3] sm:$0x1]
  %v311 = vmul.f32 %v264, %v309
  %v312 = vsub.f32 %v310, %v311
  %v314 = vlaneseq
  %v315 = vshrl.u32 %v314, 7
  %v316 = vsub.s32 0, %v315
  %v317 = vrot.slane %v309, %v316
  %v319 = vmul.f32 %v181, %v317
  %v320 = vmul.f32 %v184, %v317
  %v321 = vmul.f32 %v189, %v317
  %v322 = vmul.f32 %v192, %v317
  %v323 = vmul.f32 %v197, %v317
  %v324 = vmul.f32 %v200, %v317
  %v325 = vmul.f32 %v205, %v317
  %v326 = vmul.f32 %v208, %v317
  %v327 = vmul.f32 %v213, %v317
  %v328 = vmul.f32 %v216, %v317
  %v329 = vmul.f32 %v221, %v317
  %v330 = vmul.f32 %v224, %v317
  %v331 = vmul.f32 %v229, %v317
  %v332 = vmul.f32 %v232, %v317
  %v333 = vmul.f32 %v237, %v317
  %v334 = vmul.f32 %v240, %v317
  %v336 = vlaneseq
  %v337 = vshrl.u32 %v336, 7
  %v338 = vsub.s32 0, %v337
  %v339 = vrot.slane %v312, %v338
  %v341 = vadd.f32 %v319, %v339
  %v342 = vadd.f32 %v320, %v339
  %v343 = vadd.f32 %v321, %v339
  %v344 = vadd.f32 %v322, %v339
  %v345 = vadd.f32 %v323, %v339
  %v346 = vadd.f32 %v324, %v339
  %v347 = vadd.f32 %v325, %v339
  %v348 = vadd.f32 %v326, %v339
  %v349 = vadd.f32 %v327, %v339
  %v350 = vadd.f32 %v328, %v339
  %v351 = vadd.f32 %v329, %v339
  %v352 = vadd.f32 %v330, %v339
  %v353 = vadd.f32 %v331, %v339
  %v354 = vadd.f32 %v332, %v339
  %v355 = vadd.f32 %v333, %v339
  %v356 = vadd.f32 %v334, %v339
  %vm357 = vcmp.gt.f32.partialorder %v341, 0.0
  %vm358 = vcmp.gt.f32.partialorder %v342, 0.0
  %vm359 = vcmp.gt.f32.partialorder %v343, 0.0
  %vm360 = vcmp.gt.f32.partialorder %v344, 0.0
  %vm361 = vcmp.gt.f32.partialorder %v345, 0.0
  %vm362 = vcmp.gt.f32.partialorder %v346, 0.0
  %vm363 = vcmp.gt.f32.partialorder %v347, 0.0
  %vm364 = vcmp.gt.f32.partialorder %v348, 0.0
  %vm365 = vcmp.gt.f32.partialorder %v349, 0.0
  %vm366 = vcmp.gt.f32.partialorder %v350, 0.0
  %vm367 = vcmp.gt.f32.partialorder %v351, 0.0
  %vm368 = vcmp.gt.f32.partialorder %v352, 0.0
  %vm369 = vcmp.gt.f32.partialorder %v353, 0.0
  %vm370 = vcmp.gt.f32.partialorder %v354, 0.0
  %vm371 = vcmp.gt.f32.partialorder %v355, 0.0
  %vm372 = vcmp.gt.f32.partialorder %v356, 0.0
  %v373 = vmul.f32 %v341, 0.2
  %v374 = vmul.f32 %v342, 0.2
  %v375 = vmul.f32 %v343, 0.2
  %v376 = vmul.f32 %v344, 0.2
  %v377 = vmul.f32 %v345, 0.2
  %v378 = vmul.f32 %v346, 0.2
  %v379 = vmul.f32 %v347, 0.2
  %v380 = vmul.f32 %v348, 0.2
  %v381 = vmul.f32 %v349, 0.2
  %v382 = vmul.f32 %v350, 0.2
  %v383 = vmul.f32 %v351, 0.2
  %v384 = vmul.f32 %v352, 0.2
  %v385 = vmul.f32 %v353, 0.2
  %v386 = vmul.f32 %v354, 0.2
  %v387 = vmul.f32 %v355, 0.2
  %v388 = vmul.f32 %v356, 0.2
  %v389 = vsel %vm357, %v341, %v373
  %v390 = vsel %vm358, %v342, %v374
  %v391 = vsel %vm359, %v343, %v375
  %v392 = vsel %vm360, %v344, %v376
  %v393 = vsel %vm361, %v345, %v377
  %v394 = vsel %vm362, %v346, %v378
  %v395 = vsel %vm363, %v347, %v379
  %v396 = vsel %vm364, %v348, %v380
  %v397 = vsel %vm365, %v349, %v381
  %v398 = vsel %vm366, %v350, %v382
  %v399 = vsel %vm367, %v351, %v383
  %v400 = vsel %vm368, %v352, %v384
  %v401 = vsel %vm369, %v353, %v385
  %v402 = vsel %vm370, %v354, %v386
  %v403 = vsel %vm371, %v355, %v387
  %v404 = vsel %vm372, %v356, %v388
  %v405 = vpack.c.bf16 %v390, %v389
  %v406 = vpack.c.bf16 %v392, %v391
  %v407 = vpack.c.bf16 %v394, %v393
  %v408 = vpack.c.bf16 %v396, %v395
  %v409 = vpack.c.bf16 %v398, %v397
  %v410 = vpack.c.bf16 %v400, %v399
  %v411 = vpack.c.bf16 %v402, %v401
  %v412 = vpack.c.bf16 %v404, %v403
  %v421 = vunpack.c.l.b16 %v405
  %v422 = vunpack.c.h.b16 %v405
  %v423 = vunpack.c.l.b16 %v406
  %v424 = vunpack.c.h.b16 %v406
  %v425 = vunpack.c.l.b16 %v407
  %v426 = vunpack.c.h.b16 %v407
  %v427 = vunpack.c.l.b16 %v408
  %v428 = vunpack.c.h.b16 %v408
  %v429 = vunpack.c.l.b16 %v409
  %v430 = vunpack.c.h.b16 %v409
  %v431 = vunpack.c.l.b16 %v410
  %v432 = vunpack.c.h.b16 %v410
  %v433 = vunpack.c.l.b16 %v411
  %v434 = vunpack.c.h.b16 %v411
  %v435 = vunpack.c.l.b16 %v412
  %v436 = vunpack.c.h.b16 %v412
  %v437 = vpack.c.b16 %v421, %v421
  %v438 = vpack.c.b16 %v422, %v422
  %v439 = vpack.c.b16 %v423, %v423
  %v440 = vpack.c.b16 %v424, %v424
  %v441 = vpack.c.b16 %v425, %v425
  %v442 = vpack.c.b16 %v426, %v426
  %v443 = vpack.c.b16 %v427, %v427
  %v444 = vpack.c.b16 %v428, %v428
  %v445 = vpack.c.b16 %v429, %v429
  %v446 = vpack.c.b16 %v430, %v430
  %v447 = vpack.c.b16 %v431, %v431
  %v448 = vpack.c.b16 %v432, %v432
  %v449 = vpack.c.b16 %v433, %v433
  %v450 = vpack.c.b16 %v434, %v434
  %v451 = vpack.c.b16 %v435, %v435
  %v452 = vpack.c.b16 %v436, %v436
  %469 = vst [vmem:[%s4] sm:$0xf] %v437
  %470 = vst [vmem:[%s4 + $0x4] sm:$0xf] %v438
  %471 = vst [vmem:[%s4 + $0x8] sm:$0xf] %v439
  %472 = vst [vmem:[%s4 + $0xc] sm:$0xf] %v440
  %473 = vst [vmem:[%s4 + $0x10] sm:$0xf] %v441
  %474 = vst [vmem:[%s4 + $0x14] sm:$0xf] %v442
  %475 = vst [vmem:[%s4 + $0x18] sm:$0xf] %v443
  %476 = vst [vmem:[%s4 + $0x1c] sm:$0xf] %v444
  %477 = vst [vmem:[%s4 + $0x20] sm:$0xf] %v445
  %478 = vst [vmem:[%s4 + $0x24] sm:$0xf] %v446
  %479 = vst [vmem:[%s4 + $0x28] sm:$0xf] %v447
  %480 = vst [vmem:[%s4 + $0x2c] sm:$0xf] %v448
  %481 = vst [vmem:[%s4 + $0x30] sm:$0xf] %v449
  %482 = vst [vmem:[%s4 + $0x34] sm:$0xf] %v450
  %483 = vst [vmem:[%s4 + $0x38] sm:$0xf] %v451
  %484 = vst [vmem:[%s4 + $0x3c] sm:$0xf] %v452
  // Predicated region
  $region18: #{discriminator_forward.4} parent=0 // pred_check
    _
  $region19: #{discriminator_forward.4} parent=0 // pred_check_branch
    %486 = sbr.rel (0) target = $region21
  $region20: #{discriminator_forward.4} parent=0 // pred_region
    _
  $region21: #{discriminator_forward.4} parent=0 // pred_fallthru
    _
  // Predicated region
  $region22: #{discriminator_forward.4} parent=0 // pred_check
    _
  $region23: #{discriminator_forward.4} parent=0 // pred_check_branch
    %488 = sbr.rel (0) target = $region25
  $region24: #{discriminator_forward.4} parent=0 // pred_region
    _
  $region25: #{discriminator_forward.4} parent=0 // pred_fallthru
    _

// kernel: discriminator_forward.5
$region0: #{discriminator_forward.5}
  #allocation0 [shape = 'u32[]', space=smem, size = 0x4, offset = 0x4, fixed_abs, tag = 'smem constant byte address 0x4 - core index']
  #allocation1 [shape = 'u32[144,128]{1,0:T(1,128)}', space=vmem, size = 0x12000, scoped, tag = 'internal scratch']
  %s0 = inlined_call_operand.vmem [shape: bf16[32,3200], index: 0, kind: input, shape index: {}]
  %s1 = inlined_call_operand.vmem [shape: bf16[3200,128], index: 1, kind: input, shape index: {}]
  %s2 = inlined_call_operand.vmem [shape: f32[1,128], index: 2, kind: input, shape index: {}]
  %s3 = inlined_call_operand.vmem [shape: f32[1,128], index: 3, kind: input, shape index: {}]
  %s4 = inlined_call_operand.vmem [shape: bf16[32,128], index: 4, kind: output, shape index: {}]
  %s5 = sld [smem:[#allocation0]]
  $region26: #{discriminator_forward.5} parent=0
    _
  %s7 = ssub.s32 1, %s5
  %s8 = scalar_select 0, %s7, %s5
  // Predicated region
  $region2: #{discriminator_forward.5} parent=0 // pred_check
    _
  $region3: #{discriminator_forward.5} parent=0 // pred_check_branch
    %10 = sbr.rel (0) target = $region5
  $region4: #{discriminator_forward.5} parent=0 // pred_region
    _
  $region5: #{discriminator_forward.5} parent=0 // pred_fallthru
    _
  // Predicated region
  $region6: #{discriminator_forward.5} parent=0 // pred_check
    _
  $region7: #{discriminator_forward.5} parent=0 // pred_check_branch
    %12 = sbr.rel (0) target = $region9
  $region8: #{discriminator_forward.5} parent=0 // pred_region
    _
  $region9: #{discriminator_forward.5} parent=0 // pred_fallthru
    _
  // Predicated region
  $region10: #{discriminator_forward.5} parent=0 // pred_check
    _
  $region11: #{discriminator_forward.5} parent=0 // pred_check_branch
    %14 = sbr.rel (0) target = $region13
  $region12: #{discriminator_forward.5} parent=0 // pred_region
    _
  $region13: #{discriminator_forward.5} parent=0 // pred_fallthru
    _
  // Predicated region
  $region14: #{discriminator_forward.5} parent=0 // pred_check
    _
  $region15: #{discriminator_forward.5} parent=0 // pred_check_branch
    %16 = sbr.rel (0) target = $region17
  $region16: #{discriminator_forward.5} parent=0 // pred_region
    _
  $region17: #{discriminator_forward.5} parent=0 // pred_fallthru
    _
  %v18 = vld [vmem:[%s0] sm:$0xff]
  %v19 = vld [vmem:[%s0 + $0x8] sm:$0xff]
  %v20 = vld [vmem:[%s0 + $0x10] sm:$0xff]
  %v21 = vld [vmem:[%s0 + $0x18] sm:$0xff]
  %v22 = vld [vmem:[%s0 + $0x20] sm:$0xff]
  %v23 = vld [vmem:[%s0 + $0x28] sm:$0xff]
  %v24 = vld [vmem:[%s0 + $0x30] sm:$0xff]
  %v25 = vld [vmem:[%s0 + $0x38] sm:$0xff]
  %v26 = vld [vmem:[%s0 + $0x40] sm:$0xff]
  %v27 = vld [vmem:[%s0 + $0x48] sm:$0xff]
  %v28 = vld [vmem:[%s0 + $0x50] sm:$0xff]
  %v29 = vld [vmem:[%s0 + $0x58] sm:$0xff]
  %v30 = vld [vmem:[%s0 + $0x60] sm:$0xf]
  %v31 = vld [vmem:[%s0 + $0x64] sm:$0xff]
  %v32 = vld [vmem:[%s0 + $0x6c] sm:$0xff]
  %v33 = vld [vmem:[%s0 + $0x74] sm:$0xff]
  %v34 = vld [vmem:[%s0 + $0x7c] sm:$0xff]
  %v35 = vld [vmem:[%s0 + $0x84] sm:$0xff]
  %v36 = vld [vmem:[%s0 + $0x8c] sm:$0xff]
  %v37 = vld [vmem:[%s0 + $0x94] sm:$0xff]
  %v38 = vld [vmem:[%s0 + $0x9c] sm:$0xff]
  %v39 = vld [vmem:[%s0 + $0xa4] sm:$0xff]
  %v40 = vld [vmem:[%s0 + $0xac] sm:$0xff]
  %v41 = vld [vmem:[%s0 + $0xb4] sm:$0xff]
  %v42 = vld [vmem:[%s0 + $0xbc] sm:$0xff]
  %v43 = vld [vmem:[%s0 + $0xc4] sm:$0xf]
  %v44 = vld [vmem:[%s0 + $0xc8] sm:$0xff]
  %v45 = vld [vmem:[%s0 + $0xd0] sm:$0xff]
  %v46 = vld [vmem:[%s0 + $0xd8] sm:$0xff]
  %v47 = vld [vmem:[%s0 + $0xe0] sm:$0xff]
  %v48 = vld [vmem:[%s0 + $0xe8] sm:$0xff]
  %v49 = vld [vmem:[%s0 + $0xf0] sm:$0xff]
  %v50 = vld [vmem:[%s0 + $0xf8] sm:$0xff]
  %v51 = vld [vmem:[%s0 + $0x100] sm:$0xff]
  %v52 = vld [vmem:[%s0 + $0x108] sm:$0xff]
  %v53 = vld [vmem:[%s0 + $0x110] sm:$0xff]
  %v54 = vld [vmem:[%s0 + $0x118] sm:$0xff]
  %v55 = vld [vmem:[%s0 + $0x120] sm:$0xff]
  %v56 = vld [vmem:[%s0 + $0x128] sm:$0xf]
  %v57 = vld [vmem:[%s0 + $0x12c] sm:$0xff]
  %v58 = vld [vmem:[%s0 + $0x134] sm:$0xff]
  %v59 = vld [vmem:[%s0 + $0x13c] sm:$0xff]
  %v60 = vld [vmem:[%s0 + $0x144] sm:$0xff]
  %v61 = vld [vmem:[%s0 + $0x14c] sm:$0xff]
  %v62 = vld [vmem:[%s0 + $0x154] sm:$0xff]
  %v63 = vld [vmem:[%s0 + $0x15c] sm:$0xff]
  %v64 = vld [vmem:[%s0 + $0x164] sm:$0xff]
  %v65 = vld [vmem:[%s0 + $0x16c] sm:$0xff]
  %v66 = vld [vmem:[%s0 + $0x174] sm:$0xff]
  %v67 = vld [vmem:[%s0 + $0x17c] sm:$0xff]
  %v68 = vld [vmem:[%s0 + $0x184] sm:$0xff]
  %v69 = vld [vmem:[%s0 + $0x18c] sm:$0xf]
  %v70 = vld [vmem:[%s1] sm:$0xf]
  %v71 = vld [vmem:[%s1 + $0x4] sm:$0xf]
  %v72 = vld [vmem:[%s1 + $0x8] sm:$0xf]
  %v73 = vld [vmem:[%s1 + $0xc] sm:$0xf]
  %v74 = vld [vmem:[%s1 + $0x10] sm:$0xf]
  %v75 = vld [vmem:[%s1 + $0x14] sm:$0xf]
  %v76 = vld [vmem:[%s1 + $0x18] sm:$0xf]
  %v77 = vld [vmem:[%s1 + $0x1c] sm:$0xf]
  %v78 = vld [vmem:[%s1 + $0x20] sm:$0xf]
  %v79 = vld [vmem:[%s1 + $0x24] sm:$0xf]
  %v80 = vld [vmem:[%s1 + $0x28] sm:$0xf]
  %v81 = vld [vmem:[%s1 + $0x2c] sm:$0xf]
  %v82 = vld [vmem:[%s1 + $0x30] sm:$0xf]
  %v83 = vld [vmem:[%s1 + $0x34] sm:$0xf]
  %v84 = vld [vmem:[%s1 + $0x38] sm:$0xf]
  %v85 = vld [vmem:[%s1 + $0x3c] sm:$0xf]
  %v86 = vld [vmem:[%s1 + $0x40] sm:$0xf]
  %v87 = vld [vmem:[%s1 + $0x44] sm:$0xf]
  %v88 = vld [vmem:[%s1 + $0x48] sm:$0xf]
  %v89 = vld [vmem:[%s1 + $0x4c] sm:$0xf]
  %v90 = vld [vmem:[%s1 + $0x50] sm:$0xf]
  %v91 = vld [vmem:[%s1 + $0x54] sm:$0xf]
  %v92 = vld [vmem:[%s1 + $0x58] sm:$0xf]
  %v93 = vld [vmem:[%s1 + $0x5c] sm:$0xf]
  %v94 = vld [vmem:[%s1 + $0x60] sm:$0xf]
  %v95 = vld [vmem:[%s1 + $0x64] sm:$0xf]
  %v96 = vld [vmem:[%s1 + $0x68] sm:$0xf]
  %v97 = vld [vmem:[%s1 + $0x6c] sm:$0xf]
  %v98 = vld [vmem:[%s1 + $0x70] sm:$0xf]
  %v99 = vld [vmem:[%s1 + $0x74] sm:$0xf]
  %v100 = vld [vmem:[%s1 + $0x78] sm:$0xf]
  %v101 = vld [vmem:[%s1 + $0x7c] sm:$0xf]
  %v102 = vld [vmem:[%s1 + $0x80] sm:$0xf]
  %v103 = vld [vmem:[%s1 + $0x84] sm:$0xf]
  %v104 = vld [vmem:[%s1 + $0x88] sm:$0xf]
  %v105 = vld [vmem:[%s1 + $0x8c] sm:$0xf]
  %v106 = vld [vmem:[%s1 + $0x90] sm:$0xf]
  %v107 = vld [vmem:[%s1 + $0x94] sm:$0xf]
  %v108 = vld [vmem:[%s1 + $0x98] sm:$0xf]
  %v109 = vld [vmem:[%s1 + $0x9c] sm:$0xf]
  %v110 = vld [vmem:[%s1 + $0xa0] sm:$0xf]
  %v111 = vld [vmem:[%s1 + $0xa4] sm:$0xf]
  %v112 = vld [vmem:[%s1 + $0xa8] sm:$0xf]
  %v113 = vld [vmem:[%s1 + $0xac] sm:$0xf]
  %v114 = vld [vmem:[%s1 + $0xb0] sm:$0xf]
  %v115 = vld [vmem:[%s1 + $0xb4] sm:$0xf]
  %v116 = vld [vmem:[%s1 + $0xb8] sm:$0xf]
  %v117 = vld [vmem:[%s1 + $0xbc] sm:$0xf]
  %v118 = vld [vmem:[%s1 + $0xc0] sm:$0xf]
  %v119 = vld [vmem:[%s1 + $0xc4] sm:$0xf]
  %v120 = vld [vmem:[%s1 + $0xc8] sm:$0xf]
  %v121 = vld [vmem:[%s1 + $0xcc] sm:$0xf]
  %v122 = vld [vmem:[%s1 + $0xd0] sm:$0xf]
  %v123 = vld [vmem:[%s1 + $0xd4] sm:$0xf]
  %v124 = vld [vmem:[%s1 + $0xd8] sm:$0xf]
  %v125 = vld [vmem:[%s1 + $0xdc] sm:$0xf]
  %v126 = vld [vmem:[%s1 + $0xe0] sm:$0xf]
  %v127 = vld [vmem:[%s1 + $0xe4] sm:$0xf]
  %v128 = vld [vmem:[%s1 + $0xe8] sm:$0xf]
  %v129 = vld [vmem:[%s1 + $0xec] sm:$0xf]
  %v130 = vld [vmem:[%s1 + $0xf0] sm:$0xf]
  %v131 = vld [vmem:[%s1 + $0xf4] sm:$0xf]
  %v132 = vld [vmem:[%s1 + $0xf8] sm:$0xf]
  %v133 = vld [vmem:[%s1 + $0xfc] sm:$0xf]
  %v134 = vld [vmem:[%s1 + $0x100] sm:$0xf]
  %v135 = vld [vmem:[%s1 + $0x104] sm:$0xf]
  %v136 = vld [vmem:[%s1 + $0x108] sm:$0xf]
  %v137 = vld [vmem:[%s1 + $0x10c] sm:$0xf]
  %v138 = vld [vmem:[%s1 + $0x110] sm:$0xf]
  %v139 = vld [vmem:[%s1 + $0x114] sm:$0xf]
  %v140 = vld [vmem:[%s1 + $0x118] sm:$0xf]
  %v141 = vld [vmem:[%s1 + $0x11c] sm:$0xf]
  %v142 = vld [vmem:[%s1 + $0x120] sm:$0xf]
  %v143 = vld [vmem:[%s1 + $0x124] sm:$0xf]
  %v144 = vld [vmem:[%s1 + $0x128] sm:$0xf]
  %v145 = vld [vmem:[%s1 + $0x12c] sm:$0xf]
  %v146 = vld [vmem:[%s1 + $0x130] sm:$0xf]
  %v147 = vld [vmem:[%s1 + $0x134] sm:$0xf]
  %v148 = vld [vmem:[%s1 + $0x138] sm:$0xf]
  %v149 = vld [vmem:[%s1 + $0x13c] sm:$0xf]
  %v150 = vld [vmem:[%s1 + $0x140] sm:$0xf]
  %v151 = vld [vmem:[%s1 + $0x144] sm:$0xf]
  %v152 = vld [vmem:[%s1 + $0x148] sm:$0xf]
  %v153 = vld [vmem:[%s1 + $0x14c] sm:$0xf]
  %v154 = vld [vmem:[%s1 + $0x150] sm:$0xf]
  %v155 = vld [vmem:[%s1 + $0x154] sm:$0xf]
  %v156 = vld [vmem:[%s1 + $0x158] sm:$0xf]
  %v157 = vld [vmem:[%s1 + $0x15c] sm:$0xf]
  %v158 = vld [vmem:[%s1 + $0x160] sm:$0xf]
  %v159 = vld [vmem:[%s1 + $0x164] sm:$0xf]
  %v160 = vld [vmem:[%s1 + $0x168] sm:$0xf]
  %v161 = vld [vmem:[%s1 + $0x16c] sm:$0xf]
  %v162 = vld [vmem:[%s1 + $0x170] sm:$0xf]
  %v163 = vld [vmem:[%s1 + $0x174] sm:$0xf]
  %v164 = vld [vmem:[%s1 + $0x178] sm:$0xf]
  %v165 = vld [vmem:[%s1 + $0x17c] sm:$0xf]
  %v166 = vld [vmem:[%s1 + $0x180] sm:$0xf]
  %v167 = vld [vmem:[%s1 + $0x184] sm:$0xf]
  %v168 = vld [vmem:[%s1 + $0x188] sm:$0xf]
  %v169 = vld [vmem:[%s1 + $0x18c] sm:$0xf]
  %v170 = vld [vmem:[%s1 + $0x190] sm:$0xf]
  %v171 = vld [vmem:[%s1 + $0x194] sm:$0xf]
  %v172 = vld [vmem:[%s1 + $0x198] sm:$0xf]
  %v173 = vld [vmem:[%s1 + $0x19c] sm:$0xf]
  %v174 = vld [vmem:[%s1 + $0x1a0] sm:$0xf]
  %v175 = vld [vmem:[%s1 + $0x1a4] sm:$0xf]
  %v176 = vld [vmem:[%s1 + $0x1a8] sm:$0xf]
  %v177 = vld [vmem:[%s1 + $0x1ac] sm:$0xf]
  %v178 = vld [vmem:[%s1 + $0x1b0] sm:$0xf]
  %v179 = vld [vmem:[%s1 + $0x1b4] sm:$0xf]
  %v180 = vld [vmem:[%s1 + $0x1b8] sm:$0xf]
  %v181 = vld [vmem:[%s1 + $0x1bc] sm:$0xf]
  %v182 = vld [vmem:[%s1 + $0x1c0] sm:$0xf]
  %v183 = vld [vmem:[%s1 + $0x1c4] sm:$0xf]
  %v184 = vld [vmem:[%s1 + $0x1c8] sm:$0xf]
  %v185 = vld [vmem:[%s1 + $0x1cc] sm:$0xf]
  %v186 = vld [vmem:[%s1 + $0x1d0] sm:$0xf]
  %v187 = vld [vmem:[%s1 + $0x1d4] sm:$0xf]
  %v188 = vld [vmem:[%s1 + $0x1d8] sm:$0xf]
  %v189 = vld [vmem:[%s1 + $0x1dc] sm:$0xf]
  %v190 = vld [vmem:[%s1 + $0x1e0] sm:$0xf]
  %v191 = vld [vmem:[%s1 + $0x1e4] sm:$0xf]
  %v192 = vld [vmem:[%s1 + $0x1e8] sm:$0xf]
  %v193 = vld [vmem:[%s1 + $0x1ec] sm:$0xf]
  %v194 = vld [vmem:[%s1 + $0x1f0] sm:$0xf]
  %v195 = vld [vmem:[%s1 + $0x1f4] sm:$0xf]
  %v196 = vld [vmem:[%s1 + $0x1f8] sm:$0xf]
  %v197 = vld [vmem:[%s1 + $0x1fc] sm:$0xf]
  %v198 = vld [vmem:[%s1 + $0x200] sm:$0xf]
  %v199 = vld [vmem:[%s1 + $0x204] sm:$0xf]
  %v200 = vld [vmem:[%s1 + $0x208] sm:$0xf]
  %v201 = vld [vmem:[%s1 + $0x20c] sm:$0xf]
  %v202 = vld [vmem:[%s1 + $0x210] sm:$0xf]
  %v203 = vld [vmem:[%s1 + $0x214] sm:$0xf]
  %v204 = vld [vmem:[%s1 + $0x218] sm:$0xf]
  %v205 = vld [vmem:[%s1 + $0x21c] sm:$0xf]
  %v206 = vld [vmem:[%s1 + $0x220] sm:$0xf]
  %v207 = vld [vmem:[%s1 + $0x224] sm:$0xf]
  %v208 = vld [vmem:[%s1 + $0x228] sm:$0xf]
  %v209 = vld [vmem:[%s1 + $0x22c] sm:$0xf]
  %v210 = vld [vmem:[%s1 + $0x230] sm:$0xf]
  %v211 = vld [vmem:[%s1 + $0x234] sm:$0xf]
  %v212 = vld [vmem:[%s1 + $0x238] sm:$0xf]
  %v213 = vld [vmem:[%s1 + $0x23c] sm:$0xf]
  %v214 = vld [vmem:[%s1 + $0x240] sm:$0xf]
  %v215 = vld [vmem:[%s1 + $0x244] sm:$0xf]
  %v216 = vld [vmem:[%s1 + $0x248] sm:$0xf]
  %v217 = vld [vmem:[%s1 + $0x24c] sm:$0xf]
  %v218 = vld [vmem:[%s1 + $0x250] sm:$0xf]
  %v219 = vld [vmem:[%s1 + $0x254] sm:$0xf]
  %v220 = vld [vmem:[%s1 + $0x258] sm:$0xf]
  %v221 = vld [vmem:[%s1 + $0x25c] sm:$0xf]
  %v222 = vld [vmem:[%s1 + $0x260] sm:$0xf]
  %v223 = vld [vmem:[%s1 + $0x264] sm:$0xf]
  %v224 = vld [vmem:[%s1 + $0x268] sm:$0xf]
  %v225 = vld [vmem:[%s1 + $0x26c] sm:$0xf]
  %v226 = vld [vmem:[%s1 + $0x270] sm:$0xf]
  %v227 = vld [vmem:[%s1 + $0x274] sm:$0xf]
  %v228 = vld [vmem:[%s1 + $0x278] sm:$0xf]
  %v229 = vld [vmem:[%s1 + $0x27c] sm:$0xf]
  %v230 = vld [vmem:[%s1 + $0x280] sm:$0xf]
  %v231 = vld [vmem:[%s1 + $0x284] sm:$0xf]
  %v232 = vld [vmem:[%s1 + $0x288] sm:$0xf]
  %v233 = vld [vmem:[%s1 + $0x28c] sm:$0xf]
  %v234 = vld [vmem:[%s1 + $0x290] sm:$0xf]
  %v235 = vld [vmem:[%s1 + $0x294] sm:$0xf]
  %v236 = vld [vmem:[%s1 + $0x298] sm:$0xf]
  %v237 = vld [vmem:[%s1 + $0x29c] sm:$0xf]
  %v238 = vld [vmem:[%s1 + $0x2a0] sm:$0xf]
  %v239 = vld [vmem:[%s1 + $0x2a4] sm:$0xf]
  %v240 = vld [vmem:[%s1 + $0x2a8] sm:$0xf]
  %v241 = vld [vmem:[%s1 + $0x2ac] sm:$0xf]
  %v242 = vld [vmem:[%s1 + $0x2b0] sm:$0xf]
  %v243 = vld [vmem:[%s1 + $0x2b4] sm:$0xf]
  %v244 = vld [vmem:[%s1 + $0x2b8] sm:$0xf]
  %v245 = vld [vmem:[%s1 + $0x2bc] sm:$0xf]
  %v246 = vld [vmem:[%s1 + $0x2c0] sm:$0xf]
  %v247 = vld [vmem:[%s1 + $0x2c4] sm:$0xf]
  %v248 = vld [vmem:[%s1 + $0x2c8] sm:$0xf]
  %v249 = vld [vmem:[%s1 + $0x2cc] sm:$0xf]
  %v250 = vld [vmem:[%s1 + $0x2d0] sm:$0xf]
  %v251 = vld [vmem:[%s1 + $0x2d4] sm:$0xf]
  %v252 = vld [vmem:[%s1 + $0x2d8] sm:$0xf]
  %v253 = vld [vmem:[%s1 + $0x2dc] sm:$0xf]
  %v254 = vld [vmem:[%s1 + $0x2e0] sm:$0xf]
  %v255 = vld [vmem:[%s1 + $0x2e4] sm:$0xf]
  %v256 = vld [vmem:[%s1 + $0x2e8] sm:$0xf]
  %v257 = vld [vmem:[%s1 + $0x2ec] sm:$0xf]
  %v258 = vld [vmem:[%s1 + $0x2f0] sm:$0xf]
  %v259 = vld [vmem:[%s1 + $0x2f4] sm:$0xf]
  %v260 = vld [vmem:[%s1 + $0x2f8] sm:$0xf]
  %v261 = vld [vmem:[%s1 + $0x2fc] sm:$0xf]
  %v262 = vld [vmem:[%s1 + $0x300] sm:$0xf]
  %v263 = vld [vmem:[%s1 + $0x304] sm:$0xf]
  %v264 = vld [vmem:[%s1 + $0x308] sm:$0xf]
  %v265 = vld [vmem:[%s1 + $0x30c] sm:$0xf]
  %v266 = vld [vmem:[%s1 + $0x310] sm:$0xf]
  %v267 = vld [vmem:[%s1 + $0x314] sm:$0xf]
  %v268 = vld [vmem:[%s1 + $0x318] sm:$0xf]
  %v269 = vld [vmem:[%s1 + $0x31c] sm:$0xf]
  %v270 = vld [vmem:[%s1 + $0x320] sm:$0xf]
  %v271 = vld [vmem:[%s1 + $0x324] sm:$0xf]
  %v272 = vld [vmem:[%s1 + $0x328] sm:$0xf]
  %v273 = vld [vmem:[%s1 + $0x32c] sm:$0xf]
  %v274 = vld [vmem:[%s1 + $0x330] sm:$0xf]
  %v275 = vld [vmem:[%s1 + $0x334] sm:$0xf]
  %v276 = vld [vmem:[%s1 + $0x338] sm:$0xf]
  %v277 = vld [vmem:[%s1 + $0x33c] sm:$0xf]
  %v278 = vld [vmem:[%s1 + $0x340] sm:$0xf]
  %v279 = vld [vmem:[%s1 + $0x344] sm:$0xf]
  %v280 = vld [vmem:[%s1 + $0x348] sm:$0xf]
  %v281 = vld [vmem:[%s1 + $0x34c] sm:$0xf]
  %v282 = vld [vmem:[%s1 + $0x350] sm:$0xf]
  %v283 = vld [vmem:[%s1 + $0x354] sm:$0xf]
  %v284 = vld [vmem:[%s1 + $0x358] sm:$0xf]
  %v285 = vld [vmem:[%s1 + $0x35c] sm:$0xf]
  %v286 = vld [vmem:[%s1 + $0x360] sm:$0xf]
  %v287 = vld [vmem:[%s1 + $0x364] sm:$0xf]
  %v288 = vld [vmem:[%s1 + $0x368] sm:$0xf]
  %v289 = vld [vmem:[%s1 + $0x36c] sm:$0xf]
  %v290 = vld [vmem:[%s1 + $0x370] sm:$0xf]
  %v291 = vld [vmem:[%s1 + $0x374] sm:$0xf]
  %v292 = vld [vmem:[%s1 + $0x378] sm:$0xf]
  %v293 = vld [vmem:[%s1 + $0x37c] sm:$0xf]
  %v294 = vld [vmem:[%s1 + $0x380] sm:$0xf]
  %v295 = vld [vmem:[%s1 + $0x384] sm:$0xf]
  %v296 = vld [vmem:[%s1 + $0x388] sm:$0xf]
  %v297 = vld [vmem:[%s1 + $0x38c] sm:$0xf]
  %v298 = vld [vmem:[%s1 + $0x390] sm:$0xf]
  %v299 = vld [vmem:[%s1 + $0x394] sm:$0xf]
  %v300 = vld [vmem:[%s1 + $0x398] sm:$0xf]
  %v301 = vld [vmem:[%s1 + $0x39c] sm:$0xf]
  %v302 = vld [vmem:[%s1 + $0x3a0] sm:$0xf]
  %v303 = vld [vmem:[%s1 + $0x3a4] sm:$0xf]
  %v304 = vld [vmem:[%s1 + $0x3a8] sm:$0xf]
  %v305 = vld [vmem:[%s1 + $0x3ac] sm:$0xf]
  %v306 = vld [vmem:[%s1 + $0x3b0] sm:$0xf]
  %v307 = vld [vmem:[%s1 + $0x3b4] sm:$0xf]
  %v308 = vld [vmem:[%s1 + $0x3b8] sm:$0xf]
  %v309 = vld [vmem:[%s1 + $0x3bc] sm:$0xf]
  %v310 = vld [vmem:[%s1 + $0x3c0] sm:$0xf]
  %v311 = vld [vmem:[%s1 + $0x3c4] sm:$0xf]
  %v312 = vld [vmem:[%s1 + $0x3c8] sm:$0xf]
  %v313 = vld [vmem:[%s1 + $0x3cc] sm:$0xf]
  %v314 = vld [vmem:[%s1 + $0x3d0] sm:$0xf]
  %v315 = vld [vmem:[%s1 + $0x3d4] sm:$0xf]
  %v316 = vld [vmem:[%s1 + $0x3d8] sm:$0xf]
  %v317 = vld [vmem:[%s1 + $0x3dc] sm:$0xf]
  %v318 = vld [vmem:[%s1 + $0x3e0] sm:$0xf]
  %v319 = vld [vmem:[%s1 + $0x3e4] sm:$0xf]
  %v320 = vld [vmem:[%s1 + $0x3e8] sm:$0xf]
  %v321 = vld [vmem:[%s1 + $0x3ec] sm:$0xf]
  %v322 = vld [vmem:[%s1 + $0x3f0] sm:$0xf]
  %v323 = vld [vmem:[%s1 + $0x3f4] sm:$0xf]
  %v324 = vld [vmem:[%s1 + $0x3f8] sm:$0xf]
  %v325 = vld [vmem:[%s1 + $0x3fc] sm:$0xf]
  %v326 = vld [vmem:[%s1 + $0x400] sm:$0xf]
  %v327 = vld [vmem:[%s1 + $0x404] sm:$0xf]
  %v328 = vld [vmem:[%s1 + $0x408] sm:$0xf]
  %v329 = vld [vmem:[%s1 + $0x40c] sm:$0xf]
  %v330 = vld [vmem:[%s1 + $0x410] sm:$0xf]
  %v331 = vld [vmem:[%s1 + $0x414] sm:$0xf]
  %v332 = vld [vmem:[%s1 + $0x418] sm:$0xf]
  %v333 = vld [vmem:[%s1 + $0x41c] sm:$0xf]
  %v334 = vld [vmem:[%s1 + $0x420] sm:$0xf]
  %v335 = vld [vmem:[%s1 + $0x424] sm:$0xf]
  %v336 = vld [vmem:[%s1 + $0x428] sm:$0xf]
  %v337 = vld [vmem:[%s1 + $0x42c] sm:$0xf]
  %v338 = vld [vmem:[%s1 + $0x430] sm:$0xf]
  %v339 = vld [vmem:[%s1 + $0x434] sm:$0xf]
  %v340 = vld [vmem:[%s1 + $0x438] sm:$0xf]
  %v341 = vld [vmem:[%s1 + $0x43c] sm:$0xf]
  %v342 = vld [vmem:[%s1 + $0x440] sm:$0xf]
  %v343 = vld [vmem:[%s1 + $0x444] sm:$0xf]
  %v344 = vld [vmem:[%s1 + $0x448] sm:$0xf]
  %v345 = vld [vmem:[%s1 + $0x44c] sm:$0xf]
  %v346 = vld [vmem:[%s1 + $0x450] sm:$0xf]
  %v347 = vld [vmem:[%s1 + $0x454] sm:$0xf]
  %v348 = vld [vmem:[%s1 + $0x458] sm:$0xf]
  %v349 = vld [vmem:[%s1 + $0x45c] sm:$0xf]
  %v350 = vld [vmem:[%s1 + $0x460] sm:$0xf]
  %v351 = vld [vmem:[%s1 + $0x464] sm:$0xf]
  %v352 = vld [vmem:[%s1 + $0x468] sm:$0xf]
  %v353 = vld [vmem:[%s1 + $0x46c] sm:$0xf]
  %v354 = vld [vmem:[%s1 + $0x470] sm:$0xf]
  %v355 = vld [vmem:[%s1 + $0x474] sm:$0xf]
  %v356 = vld [vmem:[%s1 + $0x478] sm:$0xf]
  %v357 = vld [vmem:[%s1 + $0x47c] sm:$0xf]
  %v358 = vld [vmem:[%s1 + $0x480] sm:$0xf]
  %v359 = vld [vmem:[%s1 + $0x484] sm:$0xf]
  %v360 = vld [vmem:[%s1 + $0x488] sm:$0xf]
  %v361 = vld [vmem:[%s1 + $0x48c] sm:$0xf]
  %v362 = vld [vmem:[%s1 + $0x490] sm:$0xf]
  %v363 = vld [vmem:[%s1 + $0x494] sm:$0xf]
  %v364 = vld [vmem:[%s1 + $0x498] sm:$0xf]
  %v365 = vld [vmem:[%s1 + $0x49c] sm:$0xf]
  %v366 = vld [vmem:[%s1 + $0x4a0] sm:$0xf]
  %v367 = vld [vmem:[%s1 + $0x4a4] sm:$0xf]
  %v368 = vld [vmem:[%s1 + $0x4a8] sm:$0xf]
  %v369 = vld [vmem:[%s1 + $0x4ac] sm:$0xf]
  %v370 = vld [vmem:[%s1 + $0x4b0] sm:$0xf]
  %v371 = vld [vmem:[%s1 + $0x4b4] sm:$0xf]
  %v372 = vld [vmem:[%s1 + $0x4b8] sm:$0xf]
  %v373 = vld [vmem:[%s1 + $0x4bc] sm:$0xf]
  %v374 = vld [vmem:[%s1 + $0x4c0] sm:$0xf]
  %v375 = vld [vmem:[%s1 + $0x4c4] sm:$0xf]
  %v376 = vld [vmem:[%s1 + $0x4c8] sm:$0xf]
  %v377 = vld [vmem:[%s1 + $0x4cc] sm:$0xf]
  %v378 = vld [vmem:[%s1 + $0x4d0] sm:$0xf]
  %v379 = vld [vmem:[%s1 + $0x4d4] sm:$0xf]
  %v380 = vld [vmem:[%s1 + $0x4d8] sm:$0xf]
  %v381 = vld [vmem:[%s1 + $0x4dc] sm:$0xf]
  %v382 = vld [vmem:[%s1 + $0x4e0] sm:$0xf]
  %v383 = vld [vmem:[%s1 + $0x4e4] sm:$0xf]
  %v384 = vld [vmem:[%s1 + $0x4e8] sm:$0xf]
  %v385 = vld [vmem:[%s1 + $0x4ec] sm:$0xf]
  %v386 = vld [vmem:[%s1 + $0x4f0] sm:$0xf]
  %v387 = vld [vmem:[%s1 + $0x4f4] sm:$0xf]
  %v388 = vld [vmem:[%s1 + $0x4f8] sm:$0xf]
  %v389 = vld [vmem:[%s1 + $0x4fc] sm:$0xf]
  %v390 = vld [vmem:[%s1 + $0x500] sm:$0xf]
  %v391 = vld [vmem:[%s1 + $0x504] sm:$0xf]
  %v392 = vld [vmem:[%s1 + $0x508] sm:$0xf]
  %v393 = vld [vmem:[%s1 + $0x50c] sm:$0xf]
  %v394 = vld [vmem:[%s1 + $0x510] sm:$0xf]
  %v395 = vld [vmem:[%s1 + $0x514] sm:$0xf]
  %v396 = vld [vmem:[%s1 + $0x518] sm:$0xf]
  %v397 = vld [vmem:[%s1 + $0x51c] sm:$0xf]
  %v398 = vld [vmem:[%s1 + $0x520] sm:$0xf]
  %v399 = vld [vmem:[%s1 + $0x524] sm:$0xf]
  %v400 = vld [vmem:[%s1 + $0x528] sm:$0xf]
  %v401 = vld [vmem:[%s1 + $0x52c] sm:$0xf]
  %v402 = vld [vmem:[%s1 + $0x530] sm:$0xf]
  %v403 = vld [vmem:[%s1 + $0x534] sm:$0xf]
  %v404 = vld [vmem:[%s1 + $0x538] sm:$0xf]
  %v405 = vld [vmem:[%s1 + $0x53c] sm:$0xf]
  %v406 = vld [vmem:[%s1 + $0x540] sm:$0xf]
  %v407 = vld [vmem:[%s1 + $0x544] sm:$0xf]
  %v408 = vld [vmem:[%s1 + $0x548] sm:$0xf]
  %v409 = vld [vmem:[%s1 + $0x54c] sm:$0xf]
  %v410 = vld [vmem:[%s1 + $0x550] sm:$0xf]
  %v411 = vld [vmem:[%s1 + $0x554] sm:$0xf]
  %v412 = vld [vmem:[%s1 + $0x558] sm:$0xf]
  %v413 = vld [vmem:[%s1 + $0x55c] sm:$0xf]
  %v414 = vld [vmem:[%s1 + $0x560] sm:$0xf]
  %v415 = vld [vmem:[%s1 + $0x564] sm:$0xf]
  %v416 = vld [vmem:[%s1 + $0x568] sm:$0xf]
  %v417 = vld [vmem:[%s1 + $0x56c] sm:$0xf]
  %v418 = vld [vmem:[%s1 + $0x570] sm:$0xf]
  %v419 = vld [vmem:[%s1 + $0x574] sm:$0xf]
  %v420 = vld [vmem:[%s1 + $0x578] sm:$0xf]
  %v421 = vld [vmem:[%s1 + $0x57c] sm:$0xf]
  %v422 = vld [vmem:[%s1 + $0x580] sm:$0xf]
  %v423 = vld [vmem:[%s1 + $0x584] sm:$0xf]
  %v424 = vld [vmem:[%s1 + $0x588] sm:$0xf]
  %v425 = vld [vmem:[%s1 + $0x58c] sm:$0xf]
  %v426 = vld [vmem:[%s1 + $0x590] sm:$0xf]
  %v427 = vld [vmem:[%s1 + $0x594] sm:$0xf]
  %v428 = vld [vmem:[%s1 + $0x598] sm:$0xf]
  %v429 = vld [vmem:[%s1 + $0x59c] sm:$0xf]
  %v430 = vld [vmem:[%s1 + $0x5a0] sm:$0xf]
  %v431 = vld [vmem:[%s1 + $0x5a4] sm:$0xf]
  %v432 = vld [vmem:[%s1 + $0x5a8] sm:$0xf]
  %v433 = vld [vmem:[%s1 + $0x5ac] sm:$0xf]
  %v434 = vld [vmem:[%s1 + $0x5b0] sm:$0xf]
  %v435 = vld [vmem:[%s1 + $0x5b4] sm:$0xf]
  %v436 = vld [vmem:[%s1 + $0x5b8] sm:$0xf]
  %v437 = vld [vmem:[%s1 + $0x5bc] sm:$0xf]
  %v438 = vld [vmem:[%s1 + $0x5c0] sm:$0xf]
  %v439 = vld [vmem:[%s1 + $0x5c4] sm:$0xf]
  %v440 = vld [vmem:[%s1 + $0x5c8] sm:$0xf]
  %v441 = vld [vmem:[%s1 + $0x5cc] sm:$0xf]
  %v442 = vld [vmem:[%s1 + $0x5d0] sm:$0xf]
  %v443 = vld [vmem:[%s1 + $0x5d4] sm:$0xf]
  %v444 = vld [vmem:[%s1 + $0x5d8] sm:$0xf]
  %v445 = vld [vmem:[%s1 + $0x5dc] sm:$0xf]
  %v446 = vld [vmem:[%s1 + $0x5e0] sm:$0xf]
  %v447 = vld [vmem:[%s1 + $0x5e4] sm:$0xf]
  %v448 = vld [vmem:[%s1 + $0x5e8] sm:$0xf]
  %v449 = vld [vmem:[%s1 + $0x5ec] sm:$0xf]
  %v450 = vld [vmem:[%s1 + $0x5f0] sm:$0xf]
  %v451 = vld [vmem:[%s1 + $0x5f4] sm:$0xf]
  %v452 = vld [vmem:[%s1 + $0x5f8] sm:$0xf]
  %v453 = vld [vmem:[%s1 + $0x5fc] sm:$0xf]
  %v454 = vld [vmem:[%s1 + $0x600] sm:$0xf]
  %v455 = vld [vmem:[%s1 + $0x604] sm:$0xf]
  %v456 = vld [vmem:[%s1 + $0x608] sm:$0xf]
  %v457 = vld [vmem:[%s1 + $0x60c] sm:$0xf]
  %v458 = vld [vmem:[%s1 + $0x610] sm:$0xf]
  %v459 = vld [vmem:[%s1 + $0x614] sm:$0xf]
  %v460 = vld [vmem:[%s1 + $0x618] sm:$0xf]
  %v461 = vld [vmem:[%s1 + $0x61c] sm:$0xf]
  %v462 = vld [vmem:[%s1 + $0x620] sm:$0xf]
  %v463 = vld [vmem:[%s1 + $0x624] sm:$0xf]
  %v464 = vld [vmem:[%s1 + $0x628] sm:$0xf]
  %v465 = vld [vmem:[%s1 + $0x62c] sm:$0xf]
  %v466 = vld [vmem:[%s1 + $0x630] sm:$0xf]
  %v467 = vld [vmem:[%s1 + $0x634] sm:$0xf]
  %v468 = vld [vmem:[%s1 + $0x638] sm:$0xf]
  %v469 = vld [vmem:[%s1 + $0x63c] sm:$0xf]
  %v522 = vunpack.c.l.b16 %v18
  %v523 = vunpack.c.h.b16 %v18
  %v524 = vunpack.c.l.b16 %v19
  %v525 = vunpack.c.h.b16 %v19
  %v526 = vunpack.c.l.b16 %v20
  %v527 = vunpack.c.h.b16 %v20
  %v528 = vunpack.c.l.b16 %v21
  %v529 = vunpack.c.h.b16 %v21
  %v530 = vunpack.c.l.b16 %v22
  %v531 = vunpack.c.h.b16 %v22
  %v532 = vunpack.c.l.b16 %v23
  %v533 = vunpack.c.h.b16 %v23
  %v534 = vunpack.c.l.b16 %v24
  %v535 = vunpack.c.h.b16 %v24
  %v536 = vunpack.c.l.b16 %v25
  %v537 = vunpack.c.h.b16 %v25
  %v538 = vunpack.c.l.b16 %v26
  %v539 = vunpack.c.h.b16 %v26
  %v540 = vunpack.c.l.b16 %v27
  %v541 = vunpack.c.h.b16 %v27
  %v542 = vunpack.c.l.b16 %v28
  %v543 = vunpack.c.h.b16 %v28
  %v544 = vunpack.c.l.b16 %v29
  %v545 = vunpack.c.h.b16 %v29
  %v546 = vunpack.c.l.b16 %v30
  %v547 = vunpack.c.l.b16 %v31
  %v548 = vunpack.c.h.b16 %v31
  %v549 = vunpack.c.l.b16 %v32
  %v550 = vunpack.c.h.b16 %v32
  %v551 = vunpack.c.l.b16 %v33
  %v552 = vunpack.c.h.b16 %v33
  %v553 = vunpack.c.l.b16 %v34
  %v554 = vunpack.c.h.b16 %v34
  %v555 = vunpack.c.l.b16 %v35
  %v556 = vunpack.c.h.b16 %v35
  %v557 = vunpack.c.l.b16 %v36
  %v558 = vunpack.c.h.b16 %v36
  %v559 = vunpack.c.l.b16 %v37
  %v560 = vunpack.c.h.b16 %v37
  %v561 = vunpack.c.l.b16 %v38
  %v562 = vunpack.c.h.b16 %v38
  %v563 = vunpack.c.l.b16 %v39
  %v564 = vunpack.c.h.b16 %v39
  %v565 = vunpack.c.l.b16 %v40
  %v566 = vunpack.c.h.b16 %v40
  %v567 = vunpack.c.l.b16 %v41
  %v568 = vunpack.c.h.b16 %v41
  %v569 = vunpack.c.l.b16 %v42
  %v570 = vunpack.c.h.b16 %v42
  %v571 = vunpack.c.l.b16 %v43
  %v572 = vunpack.c.l.b16 %v44
  %v573 = vunpack.c.h.b16 %v44
  %v574 = vunpack.c.l.b16 %v45
  %v575 = vunpack.c.h.b16 %v45
  %v576 = vunpack.c.l.b16 %v46
  %v577 = vunpack.c.h.b16 %v46
  %v578 = vunpack.c.l.b16 %v47
  %v579 = vunpack.c.h.b16 %v47
  %v580 = vunpack.c.l.b16 %v48
  %v581 = vunpack.c.h.b16 %v48
  %v582 = vunpack.c.l.b16 %v49
  %v583 = vunpack.c.h.b16 %v49
  %v584 = vunpack.c.l.b16 %v50
  %v585 = vunpack.c.h.b16 %v50
  %v586 = vunpack.c.l.b16 %v51
  %v587 = vunpack.c.h.b16 %v51
  %v588 = vunpack.c.l.b16 %v52
  %v589 = vunpack.c.h.b16 %v52
  %v590 = vunpack.c.l.b16 %v53
  %v591 = vunpack.c.h.b16 %v53
  %v592 = vunpack.c.l.b16 %v54
  %v593 = vunpack.c.h.b16 %v54
  %v594 = vunpack.c.l.b16 %v55
  %v595 = vunpack.c.h.b16 %v55
  %v596 = vunpack.c.l.b16 %v56
  %v597 = vunpack.c.l.b16 %v57
  %v598 = vunpack.c.h.b16 %v57
  %v599 = vunpack.c.l.b16 %v58
  %v600 = vunpack.c.h.b16 %v58
  %v601 = vunpack.c.l.b16 %v59
  %v602 = vunpack.c.h.b16 %v59
  %v603 = vunpack.c.l.b16 %v60
  %v604 = vunpack.c.h.b16 %v60
  %v605 = vunpack.c.l.b16 %v61
  %v606 = vunpack.c.h.b16 %v61
  %v607 = vunpack.c.l.b16 %v62
  %v608 = vunpack.c.h.b16 %v62
  %v609 = vunpack.c.l.b16 %v63
  %v610 = vunpack.c.h.b16 %v63
  %v611 = vunpack.c.l.b16 %v64
  %v612 = vunpack.c.h.b16 %v64
  %v613 = vunpack.c.l.b16 %v65
  %v614 = vunpack.c.h.b16 %v65
  %v615 = vunpack.c.l.b16 %v66
  %v616 = vunpack.c.h.b16 %v66
  %v617 = vunpack.c.l.b16 %v67
  %v618 = vunpack.c.h.b16 %v67
  %v619 = vunpack.c.l.b16 %v68
  %v620 = vunpack.c.h.b16 %v68
  %v621 = vunpack.c.l.b16 %v69
  %v622 = vpack.c.b16 %v547, %v522
  %v623 = vpack.c.b16 %v548, %v523
  %v624 = vpack.c.b16 %v549, %v524
  %v625 = vpack.c.b16 %v550, %v525
  %v626 = vpack.c.b16 %v551, %v526
  %v627 = vpack.c.b16 %v552, %v527
  %v628 = vpack.c.b16 %v553, %v528
  %v629 = vpack.c.b16 %v554, %v529
  %v630 = vpack.c.b16 %v555, %v530
  %v631 = vpack.c.b16 %v556, %v531
  %v632 = vpack.c.b16 %v557, %v532
  %v633 = vpack.c.b16 %v558, %v533
  %v634 = vpack.c.b16 %v559, %v534
  %v635 = vpack.c.b16 %v560, %v535
  %v636 = vpack.c.b16 %v561, %v536
  %v637 = vpack.c.b16 %v562, %v537
  %v638 = vpack.c.b16 %v563, %v538
  %v639 = vpack.c.b16 %v564, %v539
  %v640 = vpack.c.b16 %v565, %v540
  %v641 = vpack.c.b16 %v566, %v541
  %v642 = vpack.c.b16 %v567, %v542
  %v643 = vpack.c.b16 %v568, %v543
  %v644 = vpack.c.b16 %v569, %v544
  %v645 = vpack.c.b16 %v570, %v545
  %v646 = vpack.c.b16 %v571, %v546
  %v647 = vpack.c.b16 %v597, %v572
  %v648 = vpack.c.b16 %v598, %v573
  %v649 = vpack.c.b16 %v599, %v574
  %v650 = vpack.c.b16 %v600, %v575
  %v651 = vpack.c.b16 %v601, %v576
  %v652 = vpack.c.b16 %v602, %v577
  %v653 = vpack.c.b16 %v603, %v578
  %v654 = vpack.c.b16 %v604, %v579
  %v655 = vpack.c.b16 %v605, %v580
  %v656 = vpack.c.b16 %v606, %v581
  %v657 = vpack.c.b16 %v607, %v582
  %v658 = vpack.c.b16 %v608, %v583
  %v659 = vpack.c.b16 %v609, %v584
  %v660 = vpack.c.b16 %v610, %v585
  %v661 = vpack.c.b16 %v611, %v586
  %v662 = vpack.c.b16 %v612, %v587
  %v663 = vpack.c.b16 %v613, %v588
  %v664 = vpack.c.b16 %v614, %v589
  %v665 = vpack.c.b16 %v615, %v590
  %v666 = vpack.c.b16 %v616, %v591
  %v667 = vpack.c.b16 %v617, %v592
  %v668 = vpack.c.b16 %v618, %v593
  %v669 = vpack.c.b16 %v619, %v594
  %v670 = vpack.c.b16 %v620, %v595
  %v671 = vpack.c.b16 %v621, %v596
  %v1122 = vunpack.c.l.b16 %v70
  %v1123 = vunpack.c.l.b16 %v71
  %v1124 = vunpack.c.l.b16 %v72
  %v1125 = vunpack.c.l.b16 %v73
  %v1126 = vunpack.c.l.b16 %v74
  %v1127 = vunpack.c.l.b16 %v75
  %v1128 = vunpack.c.l.b16 %v76
  %v1129 = vunpack.c.l.b16 %v77
  %v1130 = vunpack.c.l.b16 %v78
  %v1131 = vunpack.c.l.b16 %v79
  %v1132 = vunpack.c.l.b16 %v80
  %v1133 = vunpack.c.l.b16 %v81
  %v1134 = vunpack.c.l.b16 %v82
  %v1135 = vunpack.c.l.b16 %v83
  %v1136 = vunpack.c.l.b16 %v84
  %v1137 = vunpack.c.l.b16 %v85
  %v1138 = vunpack.c.l.b16 %v86
  %v1139 = vunpack.c.l.b16 %v87
  %v1140 = vunpack.c.l.b16 %v88
  %v1141 = vunpack.c.l.b16 %v89
  %v1142 = vunpack.c.l.b16 %v90
  %v1143 = vunpack.c.l.b16 %v91
  %v1144 = vunpack.c.l.b16 %v92
  %v1145 = vunpack.c.l.b16 %v93
  %v1146 = vunpack.c.l.b16 %v94
  %v1147 = vunpack.c.l.b16 %v95
  %v1148 = vunpack.c.l.b16 %v96
  %v1149 = vunpack.c.l.b16 %v97
  %v1150 = vunpack.c.l.b16 %v98
  %v1151 = vunpack.c.l.b16 %v99
  %v1152 = vunpack.c.l.b16 %v100
  %v1153 = vunpack.c.l.b16 %v101
  %v1154 = vunpack.c.l.b16 %v102
  %v1155 = vunpack.c.l.b16 %v103
  %v1156 = vunpack.c.l.b16 %v104
  %v1157 = vunpack.c.l.b16 %v105
  %v1158 = vunpack.c.l.b16 %v106
  %v1159 = vunpack.c.l.b16 %v107
  %v1160 = vunpack.c.l.b16 %v108
  %v1161 = vunpack.c.l.b16 %v109
  %v1162 = vunpack.c.l.b16 %v110
  %v1163 = vunpack.c.l.b16 %v111
  %v1164 = vunpack.c.l.b16 %v112
  %v1165 = vunpack.c.l.b16 %v113
  %v1166 = vunpack.c.l.b16 %v114
  %v1167 = vunpack.c.l.b16 %v115
  %v1168 = vunpack.c.l.b16 %v116
  %v1169 = vunpack.c.l.b16 %v117
  %v1170 = vunpack.c.l.b16 %v118
  %v1171 = vunpack.c.l.b16 %v119
  %v1172 = vunpack.c.l.b16 %v120
  %v1173 = vunpack.c.l.b16 %v121
  %v1174 = vunpack.c.l.b16 %v122
  %v1175 = vunpack.c.l.b16 %v123
  %v1176 = vunpack.c.l.b16 %v124
  %v1177 = vunpack.c.l.b16 %v125
  %v1178 = vunpack.c.l.b16 %v126
  %v1179 = vunpack.c.l.b16 %v127
  %v1180 = vunpack.c.l.b16 %v128
  %v1181 = vunpack.c.l.b16 %v129
  %v1182 = vunpack.c.l.b16 %v130
  %v1183 = vunpack.c.l.b16 %v131
  %v1184 = vunpack.c.l.b16 %v132
  %v1185 = vunpack.c.l.b16 %v133
  %v1186 = vunpack.c.l.b16 %v134
  %v1187 = vunpack.c.l.b16 %v135
  %v1188 = vunpack.c.l.b16 %v136
  %v1189 = vunpack.c.l.b16 %v137
  %v1190 = vunpack.c.l.b16 %v138
  %v1191 = vunpack.c.l.b16 %v139
  %v1192 = vunpack.c.l.b16 %v140
  %v1193 = vunpack.c.l.b16 %v141
  %v1194 = vunpack.c.l.b16 %v142
  %v1195 = vunpack.c.l.b16 %v143
  %v1196 = vunpack.c.l.b16 %v144
  %v1197 = vunpack.c.l.b16 %v145
  %v1198 = vunpack.c.l.b16 %v146
  %v1199 = vunpack.c.l.b16 %v147
  %v1200 = vunpack.c.l.b16 %v148
  %v1201 = vunpack.c.l.b16 %v149
  %v1202 = vunpack.c.l.b16 %v150
  %v1203 = vunpack.c.l.b16 %v151
  %v1204 = vunpack.c.l.b16 %v152
  %v1205 = vunpack.c.l.b16 %v153
  %v1206 = vunpack.c.l.b16 %v154
  %v1207 = vunpack.c.l.b16 %v155
  %v1208 = vunpack.c.l.b16 %v156
  %v1209 = vunpack.c.l.b16 %v157
  %v1210 = vunpack.c.l.b16 %v158
  %v1211 = vunpack.c.l.b16 %v159
  %v1212 = vunpack.c.l.b16 %v160
  %v1213 = vunpack.c.l.b16 %v161
  %v1214 = vunpack.c.l.b16 %v162
  %v1215 = vunpack.c.l.b16 %v163
  %v1216 = vunpack.c.l.b16 %v164
  %v1217 = vunpack.c.l.b16 %v165
  %v1218 = vunpack.c.l.b16 %v166
  %v1219 = vunpack.c.l.b16 %v167
  %v1220 = vunpack.c.l.b16 %v168
  %v1221 = vunpack.c.l.b16 %v169
  %v1222 = vunpack.c.l.b16 %v170
  %v1223 = vunpack.c.l.b16 %v171
  %v1224 = vunpack.c.l.b16 %v172
  %v1225 = vunpack.c.l.b16 %v173
  %v1226 = vunpack.c.l.b16 %v174
  %v1227 = vunpack.c.l.b16 %v175
  %v1228 = vunpack.c.l.b16 %v176
  %v1229 = vunpack.c.l.b16 %v177
  %v1230 = vunpack.c.l.b16 %v178
  %v1231 = vunpack.c.l.b16 %v179
  %v1232 = vunpack.c.l.b16 %v180
  %v1233 = vunpack.c.l.b16 %v181
  %v1234 = vunpack.c.l.b16 %v182
  %v1235 = vunpack.c.l.b16 %v183
  %v1236 = vunpack.c.l.b16 %v184
  %v1237 = vunpack.c.l.b16 %v185
  %v1238 = vunpack.c.l.b16 %v186
  %v1239 = vunpack.c.l.b16 %v187
  %v1240 = vunpack.c.l.b16 %v188
  %v1241 = vunpack.c.l.b16 %v189
  %v1242 = vunpack.c.l.b16 %v190
  %v1243 = vunpack.c.l.b16 %v191
  %v1244 = vunpack.c.l.b16 %v192
  %v1245 = vunpack.c.l.b16 %v193
  %v1246 = vunpack.c.l.b16 %v194
  %v1247 = vunpack.c.l.b16 %v195
  %v1248 = vunpack.c.l.b16 %v196
  %v1249 = vunpack.c.l.b16 %v197
  %v1250 = vunpack.c.l.b16 %v198
  %v1251 = vunpack.c.l.b16 %v199
  %v1252 = vunpack.c.l.b16 %v200
  %v1253 = vunpack.c.l.b16 %v201
  %v1254 = vunpack.c.l.b16 %v202
  %v1255 = vunpack.c.l.b16 %v203
  %v1256 = vunpack.c.l.b16 %v204
  %v1257 = vunpack.c.l.b16 %v205
  %v1258 = vunpack.c.l.b16 %v206
  %v1259 = vunpack.c.l.b16 %v207
  %v1260 = vunpack.c.l.b16 %v208
  %v1261 = vunpack.c.l.b16 %v209
  %v1262 = vunpack.c.l.b16 %v210
  %v1263 = vunpack.c.l.b16 %v211
  %v1264 = vunpack.c.l.b16 %v212
  %v1265 = vunpack.c.l.b16 %v213
  %v1266 = vunpack.c.l.b16 %v214
  %v1267 = vunpack.c.l.b16 %v215
  %v1268 = vunpack.c.l.b16 %v216
  %v1269 = vunpack.c.l.b16 %v217
  %v1270 = vunpack.c.l.b16 %v218
  %v1271 = vunpack.c.l.b16 %v219
  %v1272 = vunpack.c.l.b16 %v220
  %v1273 = vunpack.c.l.b16 %v221
  %v1274 = vunpack.c.l.b16 %v222
  %v1275 = vunpack.c.l.b16 %v223
  %v1276 = vunpack.c.l.b16 %v224
  %v1277 = vunpack.c.l.b16 %v225
  %v1278 = vunpack.c.l.b16 %v226
  %v1279 = vunpack.c.l.b16 %v227
  %v1280 = vunpack.c.l.b16 %v228
  %v1281 = vunpack.c.l.b16 %v229
  %v1282 = vunpack.c.l.b16 %v230
  %v1283 = vunpack.c.l.b16 %v231
  %v1284 = vunpack.c.l.b16 %v232
  %v1285 = vunpack.c.l.b16 %v233
  %v1286 = vunpack.c.l.b16 %v234
  %v1287 = vunpack.c.l.b16 %v235
  %v1288 = vunpack.c.l.b16 %v236
  %v1289 = vunpack.c.l.b16 %v237
  %v1290 = vunpack.c.l.b16 %v238
  %v1291 = vunpack.c.l.b16 %v239
  %v1292 = vunpack.c.l.b16 %v240
  %v1293 = vunpack.c.l.b16 %v241
  %v1294 = vunpack.c.l.b16 %v242
  %v1295 = vunpack.c.l.b16 %v243
  %v1296 = vunpack.c.l.b16 %v244
  %v1297 = vunpack.c.l.b16 %v245
  %v1298 = vunpack.c.l.b16 %v246
  %v1299 = vunpack.c.l.b16 %v247
  %v1300 = vunpack.c.l.b16 %v248
  %v1301 = vunpack.c.l.b16 %v249
  %v1302 = vunpack.c.l.b16 %v250
  %v1303 = vunpack.c.l.b16 %v251
  %v1304 = vunpack.c.l.b16 %v252
  %v1305 = vunpack.c.l.b16 %v253
  %v1306 = vunpack.c.l.b16 %v254
  %v1307 = vunpack.c.l.b16 %v255
  %v1308 = vunpack.c.l.b16 %v256
  %v1309 = vunpack.c.l.b16 %v257
  %v1310 = vunpack.c.l.b16 %v258
  %v1311 = vunpack.c.l.b16 %v259
  %v1312 = vunpack.c.l.b16 %v260
  %v1313 = vunpack.c.l.b16 %v261
  %v1314 = vunpack.c.l.b16 %v262
  %v1315 = vunpack.c.l.b16 %v263
  %v1316 = vunpack.c.l.b16 %v264
  %v1317 = vunpack.c.l.b16 %v265
  %v1318 = vunpack.c.l.b16 %v266
  %v1319 = vunpack.c.l.b16 %v267
  %v1320 = vunpack.c.l.b16 %v268
  %v1321 = vunpack.c.l.b16 %v269
  %v1322 = vunpack.c.l.b16 %v270
  %v1323 = vunpack.c.l.b16 %v271
  %v1324 = vunpack.c.l.b16 %v272
  %v1325 = vunpack.c.l.b16 %v273
  %v1326 = vunpack.c.l.b16 %v274
  %v1327 = vunpack.c.l.b16 %v275
  %v1328 = vunpack.c.l.b16 %v276
  %v1329 = vunpack.c.l.b16 %v277
  %v1330 = vunpack.c.l.b16 %v278
  %v1331 = vunpack.c.l.b16 %v279
  %v1332 = vunpack.c.l.b16 %v280
  %v1333 = vunpack.c.l.b16 %v281
  %v1334 = vunpack.c.l.b16 %v282
  %v1335 = vunpack.c.l.b16 %v283
  %v1336 = vunpack.c.l.b16 %v284
  %v1337 = vunpack.c.l.b16 %v285
  %v1338 = vunpack.c.l.b16 %v286
  %v1339 = vunpack.c.l.b16 %v287
  %v1340 = vunpack.c.l.b16 %v288
  %v1341 = vunpack.c.l.b16 %v289
  %v1342 = vunpack.c.l.b16 %v290
  %v1343 = vunpack.c.l.b16 %v291
  %v1344 = vunpack.c.l.b16 %v292
  %v1345 = vunpack.c.l.b16 %v293
  %v1346 = vunpack.c.l.b16 %v294
  %v1347 = vunpack.c.l.b16 %v295
  %v1348 = vunpack.c.l.b16 %v296
  %v1349 = vunpack.c.l.b16 %v297
  %v1350 = vunpack.c.l.b16 %v298
  %v1351 = vunpack.c.l.b16 %v299
  %v1352 = vunpack.c.l.b16 %v300
  %v1353 = vunpack.c.l.b16 %v301
  %v1354 = vunpack.c.l.b16 %v302
  %v1355 = vunpack.c.l.b16 %v303
  %v1356 = vunpack.c.l.b16 %v304
  %v1357 = vunpack.c.l.b16 %v305
  %v1358 = vunpack.c.l.b16 %v306
  %v1359 = vunpack.c.l.b16 %v307
  %v1360 = vunpack.c.l.b16 %v308
  %v1361 = vunpack.c.l.b16 %v309
  %v1362 = vunpack.c.l.b16 %v310
  %v1363 = vunpack.c.l.b16 %v311
  %v1364 = vunpack.c.l.b16 %v312
  %v1365 = vunpack.c.l.b16 %v313
  %v1366 = vunpack.c.l.b16 %v314
  %v1367 = vunpack.c.l.b16 %v315
  %v1368 = vunpack.c.l.b16 %v316
  %v1369 = vunpack.c.l.b16 %v317
  %v1370 = vunpack.c.l.b16 %v318
  %v1371 = vunpack.c.l.b16 %v319
  %v1372 = vunpack.c.l.b16 %v320
  %v1373 = vunpack.c.l.b16 %v321
  %v1374 = vunpack.c.l.b16 %v322
  %v1375 = vunpack.c.l.b16 %v323
  %v1376 = vunpack.c.l.b16 %v324
  %v1377 = vunpack.c.l.b16 %v325
  %v1378 = vunpack.c.l.b16 %v326
  %v1379 = vunpack.c.l.b16 %v327
  %v1380 = vunpack.c.l.b16 %v328
  %v1381 = vunpack.c.l.b16 %v329
  %v1382 = vunpack.c.l.b16 %v330
  %v1383 = vunpack.c.l.b16 %v331
  %v1384 = vunpack.c.l.b16 %v332
  %v1385 = vunpack.c.l.b16 %v333
  %v1386 = vunpack.c.l.b16 %v334
  %v1387 = vunpack.c.l.b16 %v335
  %v1388 = vunpack.c.l.b16 %v336
  %v1389 = vunpack.c.l.b16 %v337
  %v1390 = vunpack.c.l.b16 %v338
  %v1391 = vunpack.c.l.b16 %v339
  %v1392 = vunpack.c.l.b16 %v340
  %v1393 = vunpack.c.l.b16 %v341
  %v1394 = vunpack.c.l.b16 %v342
  %v1395 = vunpack.c.l.b16 %v343
  %v1396 = vunpack.c.l.b16 %v344
  %v1397 = vunpack.c.l.b16 %v345
  %v1398 = vunpack.c.l.b16 %v346
  %v1399 = vunpack.c.l.b16 %v347
  %v1400 = vunpack.c.l.b16 %v348
  %v1401 = vunpack.c.l.b16 %v349
  %v1402 = vunpack.c.l.b16 %v350
  %v1403 = vunpack.c.l.b16 %v351
  %v1404 = vunpack.c.l.b16 %v352
  %v1405 = vunpack.c.l.b16 %v353
  %v1406 = vunpack.c.l.b16 %v354
  %v1407 = vunpack.c.l.b16 %v355
  %v1408 = vunpack.c.l.b16 %v356
  %v1409 = vunpack.c.l.b16 %v357
  %v1410 = vunpack.c.l.b16 %v358
  %v1411 = vunpack.c.l.b16 %v359
  %v1412 = vunpack.c.l.b16 %v360
  %v1413 = vunpack.c.l.b16 %v361
  %v1414 = vunpack.c.l.b16 %v362
  %v1415 = vunpack.c.l.b16 %v363
  %v1416 = vunpack.c.l.b16 %v364
  %v1417 = vunpack.c.l.b16 %v365
  %v1418 = vunpack.c.l.b16 %v366
  %v1419 = vunpack.c.l.b16 %v367
  %v1420 = vunpack.c.l.b16 %v368
  %v1421 = vunpack.c.l.b16 %v369
  %v1422 = vunpack.c.l.b16 %v370
  %v1423 = vunpack.c.l.b16 %v371
  %v1424 = vunpack.c.l.b16 %v372
  %v1425 = vunpack.c.l.b16 %v373
  %v1426 = vunpack.c.l.b16 %v374
  %v1427 = vunpack.c.l.b16 %v375
  %v1428 = vunpack.c.l.b16 %v376
  %v1429 = vunpack.c.l.b16 %v377
  %v1430 = vunpack.c.l.b16 %v378
  %v1431 = vunpack.c.l.b16 %v379
  %v1432 = vunpack.c.l.b16 %v380
  %v1433 = vunpack.c.l.b16 %v381
  %v1434 = vunpack.c.l.b16 %v382
  %v1435 = vunpack.c.l.b16 %v383
  %v1436 = vunpack.c.l.b16 %v384
  %v1437 = vunpack.c.l.b16 %v385
  %v1438 = vunpack.c.l.b16 %v386
  %v1439 = vunpack.c.l.b16 %v387
  %v1440 = vunpack.c.l.b16 %v388
  %v1441 = vunpack.c.l.b16 %v389
  %v1442 = vunpack.c.l.b16 %v390
  %v1443 = vunpack.c.l.b16 %v391
  %v1444 = vunpack.c.l.b16 %v392
  %v1445 = vunpack.c.l.b16 %v393
  %v1446 = vunpack.c.l.b16 %v394
  %v1447 = vunpack.c.l.b16 %v395
  %v1448 = vunpack.c.l.b16 %v396
  %v1449 = vunpack.c.l.b16 %v397
  %v1450 = vunpack.c.l.b16 %v398
  %v1451 = vunpack.c.l.b16 %v399
  %v1452 = vunpack.c.l.b16 %v400
  %v1453 = vunpack.c.l.b16 %v401
  %v1454 = vunpack.c.l.b16 %v402
  %v1455 = vunpack.c.l.b16 %v403
  %v1456 = vunpack.c.l.b16 %v404
  %v1457 = vunpack.c.l.b16 %v405
  %v1458 = vunpack.c.l.b16 %v406
  %v1459 = vunpack.c.l.b16 %v407
  %v1460 = vunpack.c.l.b16 %v408
  %v1461 = vunpack.c.l.b16 %v409
  %v1462 = vunpack.c.l.b16 %v410
  %v1463 = vunpack.c.l.b16 %v411
  %v1464 = vunpack.c.l.b16 %v412
  %v1465 = vunpack.c.l.b16 %v413
  %v1466 = vunpack.c.l.b16 %v414
  %v1467 = vunpack.c.l.b16 %v415
  %v1468 = vunpack.c.l.b16 %v416
  %v1469 = vunpack.c.l.b16 %v417
  %v1470 = vunpack.c.l.b16 %v418
  %v1471 = vunpack.c.l.b16 %v419
  %v1472 = vunpack.c.l.b16 %v420
  %v1473 = vunpack.c.l.b16 %v421
  %v1474 = vunpack.c.l.b16 %v422
  %v1475 = vunpack.c.l.b16 %v423
  %v1476 = vunpack.c.l.b16 %v424
  %v1477 = vunpack.c.l.b16 %v425
  %v1478 = vunpack.c.l.b16 %v426
  %v1479 = vunpack.c.l.b16 %v427
  %v1480 = vunpack.c.l.b16 %v428
  %v1481 = vunpack.c.l.b16 %v429
  %v1482 = vunpack.c.l.b16 %v430
  %v1483 = vunpack.c.l.b16 %v431
  %v1484 = vunpack.c.l.b16 %v432
  %v1485 = vunpack.c.l.b16 %v433
  %v1486 = vunpack.c.l.b16 %v434
  %v1487 = vunpack.c.l.b16 %v435
  %v1488 = vunpack.c.l.b16 %v436
  %v1489 = vunpack.c.l.b16 %v437
  %v1490 = vunpack.c.l.b16 %v438
  %v1491 = vunpack.c.l.b16 %v439
  %v1492 = vunpack.c.l.b16 %v440
  %v1493 = vunpack.c.l.b16 %v441
  %v1494 = vunpack.c.l.b16 %v442
  %v1495 = vunpack.c.l.b16 %v443
  %v1496 = vunpack.c.l.b16 %v444
  %v1497 = vunpack.c.l.b16 %v445
  %v1498 = vunpack.c.l.b16 %v446
  %v1499 = vunpack.c.l.b16 %v447
  %v1500 = vunpack.c.l.b16 %v448
  %v1501 = vunpack.c.l.b16 %v449
  %v1502 = vunpack.c.l.b16 %v450
  %v1503 = vunpack.c.l.b16 %v451
  %v1504 = vunpack.c.l.b16 %v452
  %v1505 = vunpack.c.l.b16 %v453
  %v1506 = vunpack.c.l.b16 %v454
  %v1507 = vunpack.c.l.b16 %v455
  %v1508 = vunpack.c.l.b16 %v456
  %v1509 = vunpack.c.l.b16 %v457
  %v1510 = vunpack.c.l.b16 %v458
  %v1511 = vunpack.c.l.b16 %v459
  %v1512 = vunpack.c.l.b16 %v460
  %v1513 = vunpack.c.l.b16 %v461
  %v1514 = vunpack.c.l.b16 %v462
  %v1515 = vunpack.c.l.b16 %v463
  %v1516 = vunpack.c.l.b16 %v464
  %v1517 = vunpack.c.l.b16 %v465
  %v1518 = vunpack.c.l.b16 %v466
  %v1519 = vunpack.c.l.b16 %v467
  %v1520 = vunpack.c.l.b16 %v468
  %v1521 = vunpack.c.l.b16 %v469
  %v1522 = vpack.c.b16 %v1123, %v1122
  %v1523 = vpack.c.b16 %v1125, %v1124
  %v1524 = vpack.c.b16 %v1127, %v1126
  %v1525 = vpack.c.b16 %v1129, %v1128
  %v1526 = vpack.c.b16 %v1131, %v1130
  %v1527 = vpack.c.b16 %v1133, %v1132
  %v1528 = vpack.c.b16 %v1135, %v1134
  %v1529 = vpack.c.b16 %v1137, %v1136
  %v1530 = vpack.c.b16 %v1139, %v1138
  %v1531 = vpack.c.b16 %v1141, %v1140
  %v1532 = vpack.c.b16 %v1143, %v1142
  %v1533 = vpack.c.b16 %v1145, %v1144
  %v1534 = vpack.c.b16 %v1147, %v1146
  %v1535 = vpack.c.b16 %v1149, %v1148
  %v1536 = vpack.c.b16 %v1151, %v1150
  %v1537 = vpack.c.b16 %v1153, %v1152
  %v1538 = vpack.c.b16 %v1155, %v1154
  %v1539 = vpack.c.b16 %v1157, %v1156
  %v1540 = vpack.c.b16 %v1159, %v1158
  %v1541 = vpack.c.b16 %v1161, %v1160
  %v1542 = vpack.c.b16 %v1163, %v1162
  %v1543 = vpack.c.b16 %v1165, %v1164
  %v1544 = vpack.c.b16 %v1167, %v1166
  %v1545 = vpack.c.b16 %v1169, %v1168
  %v1546 = vpack.c.b16 %v1171, %v1170
  %v1547 = vpack.c.b16 %v1173, %v1172
  %v1548 = vpack.c.b16 %v1175, %v1174
  %v1549 = vpack.c.b16 %v1177, %v1176
  %v1550 = vpack.c.b16 %v1179, %v1178
  %v1551 = vpack.c.b16 %v1181, %v1180
  %v1552 = vpack.c.b16 %v1183, %v1182
  %v1553 = vpack.c.b16 %v1185, %v1184
  %v1554 = vpack.c.b16 %v1187, %v1186
  %v1555 = vpack.c.b16 %v1189, %v1188
  %v1556 = vpack.c.b16 %v1191, %v1190
  %v1557 = vpack.c.b16 %v1193, %v1192
  %v1558 = vpack.c.b16 %v1195, %v1194
  %v1559 = vpack.c.b16 %v1197, %v1196
  %v1560 = vpack.c.b16 %v1199, %v1198
  %v1561 = vpack.c.b16 %v1201, %v1200
  %v1562 = vpack.c.b16 %v1203, %v1202
  %v1563 = vpack.c.b16 %v1205, %v1204
  %v1564 = vpack.c.b16 %v1207, %v1206
  %v1565 = vpack.c.b16 %v1209, %v1208
  %v1566 = vpack.c.b16 %v1211, %v1210
  %v1567 = vpack.c.b16 %v1213, %v1212
  %v1568 = vpack.c.b16 %v1215, %v1214
  %v1569 = vpack.c.b16 %v1217, %v1216
  %v1570 = vpack.c.b16 %v1219, %v1218
  %v1571 = vpack.c.b16 %v1221, %v1220
  %v1572 = vpack.c.b16 %v1223, %v1222
  %v1573 = vpack.c.b16 %v1225, %v1224
  %v1574 = vpack.c.b16 %v1227, %v1226
  %v1575 = vpack.c.b16 %v1229, %v1228
  %v1576 = vpack.c.b16 %v1231, %v1230
  %v1577 = vpack.c.b16 %v1233, %v1232
  %v1578 = vpack.c.b16 %v1235, %v1234
  %v1579 = vpack.c.b16 %v1237, %v1236
  %v1580 = vpack.c.b16 %v1239, %v1238
  %v1581 = vpack.c.b16 %v1241, %v1240
  %v1582 = vpack.c.b16 %v1243, %v1242
  %v1583 = vpack.c.b16 %v1245, %v1244
  %v1584 = vpack.c.b16 %v1247, %v1246
  %v1585 = vpack.c.b16 %v1249, %v1248
  %v1586 = vpack.c.b16 %v1251, %v1250
  %v1587 = vpack.c.b16 %v1253, %v1252
  %v1588 = vpack.c.b16 %v1255, %v1254
  %v1589 = vpack.c.b16 %v1257, %v1256
  %v1590 = vpack.c.b16 %v1259, %v1258
  %v1591 = vpack.c.b16 %v1261, %v1260
  %v1592 = vpack.c.b16 %v1263, %v1262
  %v1593 = vpack.c.b16 %v1265, %v1264
  %v1594 = vpack.c.b16 %v1267, %v1266
  %v1595 = vpack.c.b16 %v1269, %v1268
  %v1596 = vpack.c.b16 %v1271, %v1270
  %v1597 = vpack.c.b16 %v1273, %v1272
  %v1598 = vpack.c.b16 %v1275, %v1274
  %v1599 = vpack.c.b16 %v1277, %v1276
  %v1600 = vpack.c.b16 %v1279, %v1278
  %v1601 = vpack.c.b16 %v1281, %v1280
  %v1602 = vpack.c.b16 %v1283, %v1282
  %v1603 = vpack.c.b16 %v1285, %v1284
  %v1604 = vpack.c.b16 %v1287, %v1286
  %v1605 = vpack.c.b16 %v1289, %v1288
  %v1606 = vpack.c.b16 %v1291, %v1290
  %v1607 = vpack.c.b16 %v1293, %v1292
  %v1608 = vpack.c.b16 %v1295, %v1294
  %v1609 = vpack.c.b16 %v1297, %v1296
  %v1610 = vpack.c.b16 %v1299, %v1298
  %v1611 = vpack.c.b16 %v1301, %v1300
  %v1612 = vpack.c.b16 %v1303, %v1302
  %v1613 = vpack.c.b16 %v1305, %v1304
  %v1614 = vpack.c.b16 %v1307, %v1306
  %v1615 = vpack.c.b16 %v1309, %v1308
  %v1616 = vpack.c.b16 %v1311, %v1310
  %v1617 = vpack.c.b16 %v1313, %v1312
  %v1618 = vpack.c.b16 %v1315, %v1314
  %v1619 = vpack.c.b16 %v1317, %v1316
  %v1620 = vpack.c.b16 %v1319, %v1318
  %v1621 = vpack.c.b16 %v1321, %v1320
  %v1622 = vpack.c.b16 %v1323, %v1322
  %v1623 = vpack.c.b16 %v1325, %v1324
  %v1624 = vpack.c.b16 %v1327, %v1326
  %v1625 = vpack.c.b16 %v1329, %v1328
  %v1626 = vpack.c.b16 %v1331, %v1330
  %v1627 = vpack.c.b16 %v1333, %v1332
  %v1628 = vpack.c.b16 %v1335, %v1334
  %v1629 = vpack.c.b16 %v1337, %v1336
  %v1630 = vpack.c.b16 %v1339, %v1338
  %v1631 = vpack.c.b16 %v1341, %v1340
  %v1632 = vpack.c.b16 %v1343, %v1342
  %v1633 = vpack.c.b16 %v1345, %v1344
  %v1634 = vpack.c.b16 %v1347, %v1346
  %v1635 = vpack.c.b16 %v1349, %v1348
  %v1636 = vpack.c.b16 %v1351, %v1350
  %v1637 = vpack.c.b16 %v1353, %v1352
  %v1638 = vpack.c.b16 %v1355, %v1354
  %v1639 = vpack.c.b16 %v1357, %v1356
  %v1640 = vpack.c.b16 %v1359, %v1358
  %v1641 = vpack.c.b16 %v1361, %v1360
  %v1642 = vpack.c.b16 %v1363, %v1362
  %v1643 = vpack.c.b16 %v1365, %v1364
  %v1644 = vpack.c.b16 %v1367, %v1366
  %v1645 = vpack.c.b16 %v1369, %v1368
  %v1646 = vpack.c.b16 %v1371, %v1370
  %v1647 = vpack.c.b16 %v1373, %v1372
  %v1648 = vpack.c.b16 %v1375, %v1374
  %v1649 = vpack.c.b16 %v1377, %v1376
  %v1650 = vpack.c.b16 %v1379, %v1378
  %v1651 = vpack.c.b16 %v1381, %v1380
  %v1652 = vpack.c.b16 %v1383, %v1382
  %v1653 = vpack.c.b16 %v1385, %v1384
  %v1654 = vpack.c.b16 %v1387, %v1386
  %v1655 = vpack.c.b16 %v1389, %v1388
  %v1656 = vpack.c.b16 %v1391, %v1390
  %v1657 = vpack.c.b16 %v1393, %v1392
  %v1658 = vpack.c.b16 %v1395, %v1394
  %v1659 = vpack.c.b16 %v1397, %v1396
  %v1660 = vpack.c.b16 %v1399, %v1398
  %v1661 = vpack.c.b16 %v1401, %v1400
  %v1662 = vpack.c.b16 %v1403, %v1402
  %v1663 = vpack.c.b16 %v1405, %v1404
  %v1664 = vpack.c.b16 %v1407, %v1406
  %v1665 = vpack.c.b16 %v1409, %v1408
  %v1666 = vpack.c.b16 %v1411, %v1410
  %v1667 = vpack.c.b16 %v1413, %v1412
  %v1668 = vpack.c.b16 %v1415, %v1414
  %v1669 = vpack.c.b16 %v1417, %v1416
  %v1670 = vpack.c.b16 %v1419, %v1418
  %v1671 = vpack.c.b16 %v1421, %v1420
  %v1672 = vpack.c.b16 %v1423, %v1422
  %v1673 = vpack.c.b16 %v1425, %v1424
  %v1674 = vpack.c.b16 %v1427, %v1426
  %v1675 = vpack.c.b16 %v1429, %v1428
  %v1676 = vpack.c.b16 %v1431, %v1430
  %v1677 = vpack.c.b16 %v1433, %v1432
  %v1678 = vpack.c.b16 %v1435, %v1434
  %v1679 = vpack.c.b16 %v1437, %v1436
  %v1680 = vpack.c.b16 %v1439, %v1438
  %v1681 = vpack.c.b16 %v1441, %v1440
  %v1682 = vpack.c.b16 %v1443, %v1442
  %v1683 = vpack.c.b16 %v1445, %v1444
  %v1684 = vpack.c.b16 %v1447, %v1446
  %v1685 = vpack.c.b16 %v1449, %v1448
  %v1686 = vpack.c.b16 %v1451, %v1450
  %v1687 = vpack.c.b16 %v1453, %v1452
  %v1688 = vpack.c.b16 %v1455, %v1454
  %v1689 = vpack.c.b16 %v1457, %v1456
  %v1690 = vpack.c.b16 %v1459, %v1458
  %v1691 = vpack.c.b16 %v1461, %v1460
  %v1692 = vpack.c.b16 %v1463, %v1462
  %v1693 = vpack.c.b16 %v1465, %v1464
  %v1694 = vpack.c.b16 %v1467, %v1466
  %v1695 = vpack.c.b16 %v1469, %v1468
  %v1696 = vpack.c.b16 %v1471, %v1470
  %v1697 = vpack.c.b16 %v1473, %v1472
  %v1698 = vpack.c.b16 %v1475, %v1474
  %v1699 = vpack.c.b16 %v1477, %v1476
  %v1700 = vpack.c.b16 %v1479, %v1478
  %v1701 = vpack.c.b16 %v1481, %v1480
  %v1702 = vpack.c.b16 %v1483, %v1482
  %v1703 = vpack.c.b16 %v1485, %v1484
  %v1704 = vpack.c.b16 %v1487, %v1486
  %v1705 = vpack.c.b16 %v1489, %v1488
  %v1706 = vpack.c.b16 %v1491, %v1490
  %v1707 = vpack.c.b16 %v1493, %v1492
  %v1708 = vpack.c.b16 %v1495, %v1494
  %v1709 = vpack.c.b16 %v1497, %v1496
  %v1710 = vpack.c.b16 %v1499, %v1498
  %v1711 = vpack.c.b16 %v1501, %v1500
  %v1712 = vpack.c.b16 %v1503, %v1502
  %v1713 = vpack.c.b16 %v1505, %v1504
  %v1714 = vpack.c.b16 %v1507, %v1506
  %v1715 = vpack.c.b16 %v1509, %v1508
  %v1716 = vpack.c.b16 %v1511, %v1510
  %v1717 = vpack.c.b16 %v1513, %v1512
  %v1718 = vpack.c.b16 %v1515, %v1514
  %v1719 = vpack.c.b16 %v1517, %v1516
  %v1720 = vpack.c.b16 %v1519, %v1518
  %v1721 = vpack.c.b16 %v1521, %v1520
  %1922 = vmatprep.subr.bf16.mxu0 0
  %1923 = vmatpush1.bf16.msra.mxu0 %v1529
  %1924 = vmatprep.subr.bf16.mxu0 0
  %1925 = vmatpush1.bf16.msra.mxu0 %v1528
  %1926 = vmatprep.subr.bf16.mxu0 0
  %1927 = vmatpush1.bf16.msra.mxu0 %v1527
  %1928 = vmatprep.subr.bf16.mxu0 0
  %1929 = vmatpush1.bf16.msra.mxu0 %v1526
  %1930 = vmatprep.subr.bf16.mxu0 0
  %1931 = vmatpush1.bf16.msra.mxu0 %v1525
  %1932 = vmatprep.subr.bf16.mxu0 0
  %1933 = vmatpush1.bf16.msra.mxu0 %v1524
  %1934 = vmatprep.subr.bf16.mxu0 0
  %1935 = vmatpush1.bf16.msra.mxu0 %v1523
  %1936 = vmatprep.subr.bf16.mxu0 0
  %1937 = vmatpush1.bf16.msra.mxu0 %v1522
  %1938 = vmatprep.subr.bf16.mxu0 0
  %1939 = vmatpush2.bf16.msra.mxu0 %v1537
  %1940 = vmatprep.subr.bf16.mxu0 0
  %1941 = vmatpush2.bf16.msra.mxu0 %v1536
  %1942 = vmatprep.subr.bf16.mxu0 0
  %1943 = vmatpush2.bf16.msra.mxu0 %v1535
  %1944 = vmatprep.subr.bf16.mxu0 0
  %1945 = vmatpush2.bf16.msra.mxu0 %v1534
  %1946 = vmatprep.subr.bf16.mxu0 0
  %1947 = vmatpush2.bf16.msra.mxu0 %v1533
  %1948 = vmatprep.subr.bf16.mxu0 0
  %1949 = vmatpush2.bf16.msra.mxu0 %v1532
  %1950 = vmatprep.subr.bf16.mxu0 0
  %1951 = vmatpush2.bf16.msra.mxu0 %v1531
  %1952 = vmatprep.subr.bf16.mxu0 0
  %1953 = vmatpush2.bf16.msra.mxu0 %v1530
  %1954 = vmatprep.mubr.bf16.mxu0 %v623
  %1955 = vmatmul.mubr.bf16.gmra.mxu0 %v622
  %v1956 = vpop.f32.mrf.mxu0
  %v1957 = vadd.f32 0.0, %v1956
  %v1958 = vpop.f32.mrf.mxu0
  %v1959 = vpop.f32.mrf.mxu0
  %v1960 = vadd.f32 0.0, %v1959
  %v1961 = vpop.f32.mrf.mxu0
  %1962 = vmatprep.mubr.bf16.mxu0 %v648
  %1963 = vmatmul.mubr.bf16.gmra.mxu0 %v647
  %v1964 = vpop.f32.mrf.mxu0
  %v1965 = vadd.f32 0.0, %v1964
  %v1966 = vpop.f32.mrf.mxu0
  %v1967 = vpop.f32.mrf.mxu0
  %v1968 = vadd.f32 0.0, %v1967
  %v1969 = vpop.f32.mrf.mxu0
  %1970 = vdwg.mxu0
  %1971 = vmatprep.subr.bf16.mxu0 0
  %1972 = vmatpush1.bf16.msra.mxu0 %v1545
  %1973 = vmatprep.subr.bf16.mxu0 0
  %1974 = vmatpush1.bf16.msra.mxu0 %v1544
  %1975 = vmatprep.subr.bf16.mxu0 0
  %1976 = vmatpush1.bf16.msra.mxu0 %v1543
  %1977 = vmatprep.subr.bf16.mxu0 0
  %1978 = vmatpush1.bf16.msra.mxu0 %v1542
  %1979 = vmatprep.subr.bf16.mxu0 0
  %1980 = vmatpush1.bf16.msra.mxu0 %v1541
  %1981 = vmatprep.subr.bf16.mxu0 0
  %1982 = vmatpush1.bf16.msra.mxu0 %v1540
  %1983 = vmatprep.subr.bf16.mxu0 0
  %1984 = vmatpush1.bf16.msra.mxu0 %v1539
  %1985 = vmatprep.subr.bf16.mxu0 0
  %1986 = vmatpush1.bf16.msra.mxu0 %v1538
  %1987 = vmatprep.subr.bf16.mxu0 0
  %1988 = vmatpush2.bf16.msra.mxu0 %v1553
  %1989 = vmatprep.subr.bf16.mxu0 0
  %1990 = vmatpush2.bf16.msra.mxu0 %v1552
  %1991 = vmatprep.subr.bf16.mxu0 0
  %1992 = vmatpush2.bf16.msra.mxu0 %v1551
  %1993 = vmatprep.subr.bf16.mxu0 0
  %1994 = vmatpush2.bf16.msra.mxu0 %v1550
  %1995 = vmatprep.subr.bf16.mxu0 0
  %1996 = vmatpush2.bf16.msra.mxu0 %v1549
  %1997 = vmatprep.subr.bf16.mxu0 0
  %1998 = vmatpush2.bf16.msra.mxu0 %v1548
  %1999 = vmatprep.subr.bf16.mxu0 0
  %2000 = vmatpush2.bf16.msra.mxu0 %v1547
  %2001 = vmatprep.subr.bf16.mxu0 0
  %2002 = vmatpush2.bf16.msra.mxu0 %v1546
  %2003 = vmatprep.mubr.bf16.mxu0 %v625
  %2004 = vmatmul.mubr.bf16.gmra.mxu0 %v624
  %v2005 = vpop.f32.mrf.mxu0
  %v2006 = vadd.f32 %v1957, %v2005
  %v2007 = vpop.f32.mrf.mxu0
  %v2008 = vpop.f32.mrf.mxu0
  %v2009 = vadd.f32 %v1960, %v2008
  %v2010 = vpop.f32.mrf.mxu0
  %2011 = vmatprep.mubr.bf16.mxu0 %v650
  %2012 = vmatmul.mubr.bf16.gmra.mxu0 %v649
  %v2013 = vpop.f32.mrf.mxu0
  %v2014 = vadd.f32 %v1965, %v2013
  %v2015 = vpop.f32.mrf.mxu0
  %v2016 = vpop.f32.mrf.mxu0
  %v2017 = vadd.f32 %v1968, %v2016
  %v2018 = vpop.f32.mrf.mxu0
  %2019 = vdwg.mxu0
  %2020 = vmatprep.subr.bf16.mxu0 0
  %2021 = vmatpush1.bf16.msra.mxu0 %v1561
  %2022 = vmatprep.subr.bf16.mxu0 0
  %2023 = vmatpush1.bf16.msra.mxu0 %v1560
  %2024 = vmatprep.subr.bf16.mxu0 0
  %2025 = vmatpush1.bf16.msra.mxu0 %v1559
  %2026 = vmatprep.subr.bf16.mxu0 0
  %2027 = vmatpush1.bf16.msra.mxu0 %v1558
  %2028 = vmatprep.subr.bf16.mxu0 0
  %2029 = vmatpush1.bf16.msra.mxu0 %v1557
  %2030 = vmatprep.subr.bf16.mxu0 0
  %2031 = vmatpush1.bf16.msra.mxu0 %v1556
  %2032 = vmatprep.subr.bf16.mxu0 0
  %2033 = vmatpush1.bf16.msra.mxu0 %v1555
  %2034 = vmatprep.subr.bf16.mxu0 0
  %2035 = vmatpush1.bf16.msra.mxu0 %v1554
  %2036 = vmatprep.subr.bf16.mxu0 0
  %2037 = vmatpush2.bf16.msra.mxu0 %v1569
  %2038 = vmatprep.subr.bf16.mxu0 0
  %2039 = vmatpush2.bf16.msra.mxu0 %v1568
  %2040 = vmatprep.subr.bf16.mxu0 0
  %2041 = vmatpush2.bf16.msra.mxu0 %v1567
  %2042 = vmatprep.subr.bf16.mxu0 0
  %2043 = vmatpush2.bf16.msra.mxu0 %v1566
  %2044 = vmatprep.subr.bf16.mxu0 0
  %2045 = vmatpush2.bf16.msra.mxu0 %v1565
  %2046 = vmatprep.subr.bf16.mxu0 0
  %2047 = vmatpush2.bf16.msra.mxu0 %v1564
  %2048 = vmatprep.subr.bf16.mxu0 0
  %2049 = vmatpush2.bf16.msra.mxu0 %v1563
  %2050 = vmatprep.subr.bf16.mxu0 0
  %2051 = vmatpush2.bf16.msra.mxu0 %v1562
  %2052 = vmatprep.mubr.bf16.mxu0 %v627
  %2053 = vmatmul.mubr.bf16.gmra.mxu0 %v626
  %v2054 = vpop.f32.mrf.mxu0
  %v2055 = vadd.f32 %v2006, %v2054
  %v2056 = vpop.f32.mrf.mxu0
  %v2057 = vpop.f32.mrf.mxu0
  %v2058 = vadd.f32 %v2009, %v2057
  %v2059 = vpop.f32.mrf.mxu0
  %2060 = vmatprep.mubr.bf16.mxu0 %v652
  %2061 = vmatmul.mubr.bf16.gmra.mxu0 %v651
  %v2062 = vpop.f32.mrf.mxu0
  %v2063 = vadd.f32 %v2014, %v2062
  %v2064 = vpop.f32.mrf.mxu0
  %v2065 = vpop.f32.mrf.mxu0
  %v2066 = vadd.f32 %v2017, %v2065
  %v2067 = vpop.f32.mrf.mxu0
  %2068 = vdwg.mxu0
  %2069 = vmatprep.subr.bf16.mxu0 0
  %2070 = vmatpush1.bf16.msra.mxu0 %v1577
  %2071 = vmatprep.subr.bf16.mxu0 0
  %2072 = vmatpush1.bf16.msra.mxu0 %v1576
  %2073 = vmatprep.subr.bf16.mxu0 0
  %2074 = vmatpush1.bf16.msra.mxu0 %v1575
  %2075 = vmatprep.subr.bf16.mxu0 0
  %2076 = vmatpush1.bf16.msra.mxu0 %v1574
  %2077 = vmatprep.subr.bf16.mxu0 0
  %2078 = vmatpush1.bf16.msra.mxu0 %v1573
  %2079 = vmatprep.subr.bf16.mxu0 0
  %2080 = vmatpush1.bf16.msra.mxu0 %v1572
  %2081 = vmatprep.subr.bf16.mxu0 0
  %2082 = vmatpush1.bf16.msra.mxu0 %v1571
  %2083 = vmatprep.subr.bf16.mxu0 0
  %2084 = vmatpush1.bf16.msra.mxu0 %v1570
  %2085 = vmatprep.subr.bf16.mxu0 0
  %2086 = vmatpush2.bf16.msra.mxu0 %v1585
  %2087 = vmatprep.subr.bf16.mxu0 0
  %2088 = vmatpush2.bf16.msra.mxu0 %v1584
  %2089 = vmatprep.subr.bf16.mxu0 0
  %2090 = vmatpush2.bf16.msra.mxu0 %v1583
  %2091 = vmatprep.subr.bf16.mxu0 0
  %2092 = vmatpush2.bf16.msra.mxu0 %v1582
  %2093 = vmatprep.subr.bf16.mxu0 0
  %2094 = vmatpush2.bf16.msra.mxu0 %v1581
  %2095 = vmatprep.subr.bf16.mxu0 0
  %2096 = vmatpush2.bf16.msra.mxu0 %v1580
  %2097 = vmatprep.subr.bf16.mxu0 0
  %2098 = vmatpush2.bf16.msra.mxu0 %v1579
  %2099 = vmatprep.subr.bf16.mxu0 0
  %2100 = vmatpush2.bf16.msra.mxu0 %v1578
  %2101 = vmatprep.mubr.bf16.mxu0 %v629
  %2102 = vmatmul.mubr.bf16.gmra.mxu0 %v628
  %v2103 = vpop.f32.mrf.mxu0
  %v2104 = vadd.f32 %v2055, %v2103
  %v2105 = vpop.f32.mrf.mxu0
  %v2106 = vpop.f32.mrf.mxu0
  %v2107 = vadd.f32 %v2058, %v2106
  %v2108 = vpop.f32.mrf.mxu0
  %2109 = vmatprep.mubr.bf16.mxu0 %v654
  %2110 = vmatmul.mubr.bf16.gmra.mxu0 %v653
  %v2111 = vpop.f32.mrf.mxu0
  %v2112 = vadd.f32 %v2063, %v2111
  %v2113 = vpop.f32.mrf.mxu0
  %v2114 = vpop.f32.mrf.mxu0
  %v2115 = vadd.f32 %v2066, %v2114
  %v2116 = vpop.f32.mrf.mxu0
  %2117 = vdwg.mxu0
  %2118 = vmatprep.subr.bf16.mxu0 0
  %2119 = vmatpush1.bf16.msra.mxu0 %v1593
  %2120 = vmatprep.subr.bf16.mxu0 0
  %2121 = vmatpush1.bf16.msra.mxu0 %v1592
  %2122 = vmatprep.subr.bf16.mxu0 0
  %2123 = vmatpush1.bf16.msra.mxu0 %v1591
  %2124 = vmatprep.subr.bf16.mxu0 0
  %2125 = vmatpush1.bf16.msra.mxu0 %v1590
  %2126 = vmatprep.subr.bf16.mxu0 0
  %2127 = vmatpush1.bf16.msra.mxu0 %v1589
  %2128 = vmatprep.subr.bf16.mxu0 0
  %2129 = vmatpush1.bf16.msra.mxu0 %v1588
  %2130 = vmatprep.subr.bf16.mxu0 0
  %2131 = vmatpush1.bf16.msra.mxu0 %v1587
  %2132 = vmatprep.subr.bf16.mxu0 0
  %2133 = vmatpush1.bf16.msra.mxu0 %v1586
  %2134 = vmatprep.subr.bf16.mxu0 0
  %2135 = vmatpush2.bf16.msra.mxu0 %v1601
  %2136 = vmatprep.subr.bf16.mxu0 0
  %2137 = vmatpush2.bf16.msra.mxu0 %v1600
  %2138 = vmatprep.subr.bf16.mxu0 0
  %2139 = vmatpush2.bf16.msra.mxu0 %v1599
  %2140 = vmatprep.subr.bf16.mxu0 0
  %2141 = vmatpush2.bf16.msra.mxu0 %v1598
  %2142 = vmatprep.subr.bf16.mxu0 0
  %2143 = vmatpush2.bf16.msra.mxu0 %v1597
  %2144 = vmatprep.subr.bf16.mxu0 0
  %2145 = vmatpush2.bf16.msra.mxu0 %v1596
  %2146 = vmatprep.subr.bf16.mxu0 0
  %2147 = vmatpush2.bf16.msra.mxu0 %v1595
  %2148 = vmatprep.subr.bf16.mxu0 0
  %2149 = vmatpush2.bf16.msra.mxu0 %v1594
  %2150 = vmatprep.mubr.bf16.mxu0 %v631
  %2151 = vmatmul.mubr.bf16.gmra.mxu0 %v630
  %v2152 = vpop.f32.mrf.mxu0
  %v2153 = vadd.f32 %v2104, %v2152
  %v2154 = vpop.f32.mrf.mxu0
  %v2155 = vpop.f32.mrf.mxu0
  %v2156 = vadd.f32 %v2107, %v2155
  %v2157 = vpop.f32.mrf.mxu0
  %2158 = vmatprep.mubr.bf16.mxu0 %v656
  %2159 = vmatmul.mubr.bf16.gmra.mxu0 %v655
  %v2160 = vpop.f32.mrf.mxu0
  %v2161 = vadd.f32 %v2112, %v2160
  %v2162 = vpop.f32.mrf.mxu0
  %v2163 = vpop.f32.mrf.mxu0
  %v2164 = vadd.f32 %v2115, %v2163
  %v2165 = vpop.f32.mrf.mxu0
  %2166 = vdwg.mxu0
  %2167 = vmatprep.subr.bf16.mxu0 0
  %2168 = vmatpush1.bf16.msra.mxu0 %v1609
  %2169 = vmatprep.subr.bf16.mxu0 0
  %2170 = vmatpush1.bf16.msra.mxu0 %v1608
  %2171 = vmatprep.subr.bf16.mxu0 0
  %2172 = vmatpush1.bf16.msra.mxu0 %v1607
  %2173 = vmatprep.subr.bf16.mxu0 0
  %2174 = vmatpush1.bf16.msra.mxu0 %v1606
  %2175 = vmatprep.subr.bf16.mxu0 0
  %2176 = vmatpush1.bf16.msra.mxu0 %v1605
  %2177 = vmatprep.subr.bf16.mxu0 0
  %2178 = vmatpush1.bf16.msra.mxu0 %v1604
  %2179 = vmatprep.subr.bf16.mxu0 0
  %2180 = vmatpush1.bf16.msra.mxu0 %v1603
  %2181 = vmatprep.subr.bf16.mxu0 0
  %2182 = vmatpush1.bf16.msra.mxu0 %v1602
  %2183 = vmatprep.subr.bf16.mxu0 0
  %2184 = vmatpush2.bf16.msra.mxu0 %v1617
  %2185 = vmatprep.subr.bf16.mxu0 0
  %2186 = vmatpush2.bf16.msra.mxu0 %v1616
  %2187 = vmatprep.subr.bf16.mxu0 0
  %2188 = vmatpush2.bf16.msra.mxu0 %v1615
  %2189 = vmatprep.subr.bf16.mxu0 0
  %2190 = vmatpush2.bf16.msra.mxu0 %v1614
  %2191 = vmatprep.subr.bf16.mxu0 0
  %2192 = vmatpush2.bf16.msra.mxu0 %v1613
  %2193 = vmatprep.subr.bf16.mxu0 0
  %2194 = vmatpush2.bf16.msra.mxu0 %v1612
  %2195 = vmatprep.subr.bf16.mxu0 0
  %2196 = vmatpush2.bf16.msra.mxu0 %v1611
  %2197 = vmatprep.subr.bf16.mxu0 0
  %2198 = vmatpush2.bf16.msra.mxu0 %v1610
  %2199 = vmatprep.mubr.bf16.mxu0 %v633
  %2200 = vmatmul.mubr.bf16.gmra.mxu0 %v632
  %v2201 = vpop.f32.mrf.mxu0
  %v2202 = vadd.f32 %v2153, %v2201
  %v2203 = vpop.f32.mrf.mxu0
  %v2204 = vpop.f32.mrf.mxu0
  %v2205 = vadd.f32 %v2156, %v2204
  %v2206 = vpop.f32.mrf.mxu0
  %2207 = vmatprep.mubr.bf16.mxu0 %v658
  %2208 = vmatmul.mubr.bf16.gmra.mxu0 %v657
  %v2209 = vpop.f32.mrf.mxu0
  %v2210 = vadd.f32 %v2161, %v2209
  %v2211 = vpop.f32.mrf.mxu0
  %v2212 = vpop.f32.mrf.mxu0
  %v2213 = vadd.f32 %v2164, %v2212
  %v2214 = vpop.f32.mrf.mxu0
  %2215 = vdwg.mxu0
  %2216 = vmatprep.subr.bf16.mxu0 0
  %2217 = vmatpush1.bf16.msra.mxu0 %v1625
  %2218 = vmatprep.subr.bf16.mxu0 0
  %2219 = vmatpush1.bf16.msra.mxu0 %v1624
  %2220 = vmatprep.subr.bf16.mxu0 0
  %2221 = vmatpush1.bf16.msra.mxu0 %v1623
  %2222 = vmatprep.subr.bf16.mxu0 0
  %2223 = vmatpush1.bf16.msra.mxu0 %v1622
  %2224 = vmatprep.subr.bf16.mxu0 0
  %2225 = vmatpush1.bf16.msra.mxu0 %v1621
  %2226 = vmatprep.subr.bf16.mxu0 0
  %2227 = vmatpush1.bf16.msra.mxu0 %v1620
  %2228 = vmatprep.subr.bf16.mxu0 0
  %2229 = vmatpush1.bf16.msra.mxu0 %v1619
  %2230 = vmatprep.subr.bf16.mxu0 0
  %2231 = vmatpush1.bf16.msra.mxu0 %v1618
  %2232 = vmatprep.subr.bf16.mxu0 0
  %2233 = vmatpush2.bf16.msra.mxu0 %v1633
  %2234 = vmatprep.subr.bf16.mxu0 0
  %2235 = vmatpush2.bf16.msra.mxu0 %v1632
  %2236 = vmatprep.subr.bf16.mxu0 0
  %2237 = vmatpush2.bf16.msra.mxu0 %v1631
  %2238 = vmatprep.subr.bf16.mxu0 0
  %2239 = vmatpush2.bf16.msra.mxu0 %v1630
  %2240 = vmatprep.subr.bf16.mxu0 0
  %2241 = vmatpush2.bf16.msra.mxu0 %v1629
  %2242 = vmatprep.subr.bf16.mxu0 0
  %2243 = vmatpush2.bf16.msra.mxu0 %v1628
  %2244 = vmatprep.subr.bf16.mxu0 0
  %2245 = vmatpush2.bf16.msra.mxu0 %v1627
  %2246 = vmatprep.subr.bf16.mxu0 0
  %2247 = vmatpush2.bf16.msra.mxu0 %v1626
  %2248 = vmatprep.mubr.bf16.mxu0 %v635
  %2249 = vmatmul.mubr.bf16.gmra.mxu0 %v634
  %v2250 = vpop.f32.mrf.mxu0
  %v2251 = vadd.f32 %v2202, %v2250
  %v2252 = vpop.f32.mrf.mxu0
  %v2253 = vpop.f32.mrf.mxu0
  %v2254 = vadd.f32 %v2205, %v2253
  %v2255 = vpop.f32.mrf.mxu0
  %2256 = vmatprep.mubr.bf16.mxu0 %v660
  %2257 = vmatmul.mubr.bf16.gmra.mxu0 %v659
  %v2258 = vpop.f32.mrf.mxu0
  %v2259 = vadd.f32 %v2210, %v2258
  %v2260 = vpop.f32.mrf.mxu0
  %v2261 = vpop.f32.mrf.mxu0
  %v2262 = vadd.f32 %v2213, %v2261
  %v2263 = vpop.f32.mrf.mxu0
  %2264 = vdwg.mxu0
  %2265 = vmatprep.subr.bf16.mxu0 0
  %2266 = vmatpush1.bf16.msra.mxu0 %v1641
  %2267 = vmatprep.subr.bf16.mxu0 0
  %2268 = vmatpush1.bf16.msra.mxu0 %v1640
  %2269 = vmatprep.subr.bf16.mxu0 0
  %2270 = vmatpush1.bf16.msra.mxu0 %v1639
  %2271 = vmatprep.subr.bf16.mxu0 0
  %2272 = vmatpush1.bf16.msra.mxu0 %v1638
  %2273 = vmatprep.subr.bf16.mxu0 0
  %2274 = vmatpush1.bf16.msra.mxu0 %v1637
  %2275 = vmatprep.subr.bf16.mxu0 0
  %2276 = vmatpush1.bf16.msra.mxu0 %v1636
  %2277 = vmatprep.subr.bf16.mxu0 0
  %2278 = vmatpush1.bf16.msra.mxu0 %v1635
  %2279 = vmatprep.subr.bf16.mxu0 0
  %2280 = vmatpush1.bf16.msra.mxu0 %v1634
  %2281 = vmatprep.subr.bf16.mxu0 0
  %2282 = vmatpush2.bf16.msra.mxu0 %v1649
  %2283 = vmatprep.subr.bf16.mxu0 0
  %2284 = vmatpush2.bf16.msra.mxu0 %v1648
  %2285 = vmatprep.subr.bf16.mxu0 0
  %2286 = vmatpush2.bf16.msra.mxu0 %v1647
  %2287 = vmatprep.subr.bf16.mxu0 0
  %2288 = vmatpush2.bf16.msra.mxu0 %v1646
  %2289 = vmatprep.subr.bf16.mxu0 0
  %2290 = vmatpush2.bf16.msra.mxu0 %v1645
  %2291 = vmatprep.subr.bf16.mxu0 0
  %2292 = vmatpush2.bf16.msra.mxu0 %v1644
  %2293 = vmatprep.subr.bf16.mxu0 0
  %2294 = vmatpush2.bf16.msra.mxu0 %v1643
  %2295 = vmatprep.subr.bf16.mxu0 0
  %2296 = vmatpush2.bf16.msra.mxu0 %v1642
  %2297 = vmatprep.mubr.bf16.mxu0 %v637
  %2298 = vmatmul.mubr.bf16.gmra.mxu0 %v636
  %v2299 = vpop.f32.mrf.mxu0
  %v2300 = vadd.f32 %v2251, %v2299
  %v2301 = vpop.f32.mrf.mxu0
  %v2302 = vpop.f32.mrf.mxu0
  %v2303 = vadd.f32 %v2254, %v2302
  %v2304 = vpop.f32.mrf.mxu0
  %2305 = vmatprep.mubr.bf16.mxu0 %v662
  %2306 = vmatmul.mubr.bf16.gmra.mxu0 %v661
  %v2307 = vpop.f32.mrf.mxu0
  %v2308 = vadd.f32 %v2259, %v2307
  %v2309 = vpop.f32.mrf.mxu0
  %v2310 = vpop.f32.mrf.mxu0
  %v2311 = vadd.f32 %v2262, %v2310
  %v2312 = vpop.f32.mrf.mxu0
  %2313 = vdwg.mxu0
  %2314 = vmatprep.subr.bf16.mxu0 0
  %2315 = vmatpush1.bf16.msra.mxu0 %v1657
  %2316 = vmatprep.subr.bf16.mxu0 0
  %2317 = vmatpush1.bf16.msra.mxu0 %v1656
  %2318 = vmatprep.subr.bf16.mxu0 0
  %2319 = vmatpush1.bf16.msra.mxu0 %v1655
  %2320 = vmatprep.subr.bf16.mxu0 0
  %2321 = vmatpush1.bf16.msra.mxu0 %v1654
  %2322 = vmatprep.subr.bf16.mxu0 0
  %2323 = vmatpush1.bf16.msra.mxu0 %v1653
  %2324 = vmatprep.subr.bf16.mxu0 0
  %2325 = vmatpush1.bf16.msra.mxu0 %v1652
  %2326 = vmatprep.subr.bf16.mxu0 0
  %2327 = vmatpush1.bf16.msra.mxu0 %v1651
  %2328 = vmatprep.subr.bf16.mxu0 0
  %2329 = vmatpush1.bf16.msra.mxu0 %v1650
  %2330 = vmatprep.subr.bf16.mxu0 0
  %2331 = vmatpush2.bf16.msra.mxu0 %v1665
  %2332 = vmatprep.subr.bf16.mxu0 0
  %2333 = vmatpush2.bf16.msra.mxu0 %v1664
  %2334 = vmatprep.subr.bf16.mxu0 0
  %2335 = vmatpush2.bf16.msra.mxu0 %v1663
  %2336 = vmatprep.subr.bf16.mxu0 0
  %2337 = vmatpush2.bf16.msra.mxu0 %v1662
  %2338 = vmatprep.subr.bf16.mxu0 0
  %2339 = vmatpush2.bf16.msra.mxu0 %v1661
  %2340 = vmatprep.subr.bf16.mxu0 0
  %2341 = vmatpush2.bf16.msra.mxu0 %v1660
  %2342 = vmatprep.subr.bf16.mxu0 0
  %2343 = vmatpush2.bf16.msra.mxu0 %v1659
  %2344 = vmatprep.subr.bf16.mxu0 0
  %2345 = vmatpush2.bf16.msra.mxu0 %v1658
  %2346 = vmatprep.mubr.bf16.mxu0 %v639
  %2347 = vmatmul.mubr.bf16.gmra.mxu0 %v638
  %v2348 = vpop.f32.mrf.mxu0
  %v2349 = vadd.f32 %v2300, %v2348
  %v2350 = vpop.f32.mrf.mxu0
  %v2351 = vpop.f32.mrf.mxu0
  %v2352 = vadd.f32 %v2303, %v2351
  %v2353 = vpop.f32.mrf.mxu0
  %2354 = vmatprep.mubr.bf16.mxu0 %v664
  %2355 = vmatmul.mubr.bf16.gmra.mxu0 %v663
  %v2356 = vpop.f32.mrf.mxu0
  %v2357 = vadd.f32 %v2308, %v2356
  %v2358 = vpop.f32.mrf.mxu0
  %v2359 = vpop.f32.mrf.mxu0
  %v2360 = vadd.f32 %v2311, %v2359
  %v2361 = vpop.f32.mrf.mxu0
  %2362 = vdwg.mxu0
  %2363 = vmatprep.subr.bf16.mxu0 0
  %2364 = vmatpush1.bf16.msra.mxu0 %v1673
  %2365 = vmatprep.subr.bf16.mxu0 0
  %2366 = vmatpush1.bf16.msra.mxu0 %v1672
  %2367 = vmatprep.subr.bf16.mxu0 0
  %2368 = vmatpush1.bf16.msra.mxu0 %v1671
  %2369 = vmatprep.subr.bf16.mxu0 0
  %2370 = vmatpush1.bf16.msra.mxu0 %v1670
  %2371 = vmatprep.subr.bf16.mxu0 0
  %2372 = vmatpush1.bf16.msra.mxu0 %v1669
  %2373 = vmatprep.subr.bf16.mxu0 0
  %2374 = vmatpush1.bf16.msra.mxu0 %v1668
  %2375 = vmatprep.subr.bf16.mxu0 0
  %2376 = vmatpush1.bf16.msra.mxu0 %v1667
  %2377 = vmatprep.subr.bf16.mxu0 0
  %2378 = vmatpush1.bf16.msra.mxu0 %v1666
  %2379 = vmatprep.subr.bf16.mxu0 0
  %2380 = vmatpush2.bf16.msra.mxu0 %v1681
  %2381 = vmatprep.subr.bf16.mxu0 0
  %2382 = vmatpush2.bf16.msra.mxu0 %v1680
  %2383 = vmatprep.subr.bf16.mxu0 0
  %2384 = vmatpush2.bf16.msra.mxu0 %v1679
  %2385 = vmatprep.subr.bf16.mxu0 0
  %2386 = vmatpush2.bf16.msra.mxu0 %v1678
  %2387 = vmatprep.subr.bf16.mxu0 0
  %2388 = vmatpush2.bf16.msra.mxu0 %v1677
  %2389 = vmatprep.subr.bf16.mxu0 0
  %2390 = vmatpush2.bf16.msra.mxu0 %v1676
  %2391 = vmatprep.subr.bf16.mxu0 0
  %2392 = vmatpush2.bf16.msra.mxu0 %v1675
  %2393 = vmatprep.subr.bf16.mxu0 0
  %2394 = vmatpush2.bf16.msra.mxu0 %v1674
  %2395 = vmatprep.mubr.bf16.mxu0 %v641
  %2396 = vmatmul.mubr.bf16.gmra.mxu0 %v640
  %v2397 = vpop.f32.mrf.mxu0
  %v2398 = vadd.f32 %v2349, %v2397
  %v2399 = vpop.f32.mrf.mxu0
  %v2400 = vpop.f32.mrf.mxu0
  %v2401 = vadd.f32 %v2352, %v2400
  %v2402 = vpop.f32.mrf.mxu0
  %2403 = vmatprep.mubr.bf16.mxu0 %v666
  %2404 = vmatmul.mubr.bf16.gmra.mxu0 %v665
  %v2405 = vpop.f32.mrf.mxu0
  %v2406 = vadd.f32 %v2357, %v2405
  %v2407 = vpop.f32.mrf.mxu0
  %v2408 = vpop.f32.mrf.mxu0
  %v2409 = vadd.f32 %v2360, %v2408
  %v2410 = vpop.f32.mrf.mxu0
  %2411 = vdwg.mxu0
  %2412 = vmatprep.subr.bf16.mxu0 0
  %2413 = vmatpush1.bf16.msra.mxu0 %v1689
  %2414 = vmatprep.subr.bf16.mxu0 0
  %2415 = vmatpush1.bf16.msra.mxu0 %v1688
  %2416 = vmatprep.subr.bf16.mxu0 0
  %2417 = vmatpush1.bf16.msra.mxu0 %v1687
  %2418 = vmatprep.subr.bf16.mxu0 0
  %2419 = vmatpush1.bf16.msra.mxu0 %v1686
  %2420 = vmatprep.subr.bf16.mxu0 0
  %2421 = vmatpush1.bf16.msra.mxu0 %v1685
  %2422 = vmatprep.subr.bf16.mxu0 0
  %2423 = vmatpush1.bf16.msra.mxu0 %v1684
  %2424 = vmatprep.subr.bf16.mxu0 0
  %2425 = vmatpush1.bf16.msra.mxu0 %v1683
  %2426 = vmatprep.subr.bf16.mxu0 0
  %2427 = vmatpush1.bf16.msra.mxu0 %v1682
  %2428 = vmatprep.subr.bf16.mxu0 0
  %2429 = vmatpush2.bf16.msra.mxu0 %v1697
  %2430 = vmatprep.subr.bf16.mxu0 0
  %2431 = vmatpush2.bf16.msra.mxu0 %v1696
  %2432 = vmatprep.subr.bf16.mxu0 0
  %2433 = vmatpush2.bf16.msra.mxu0 %v1695
  %2434 = vmatprep.subr.bf16.mxu0 0
  %2435 = vmatpush2.bf16.msra.mxu0 %v1694
  %2436 = vmatprep.subr.bf16.mxu0 0
  %2437 = vmatpush2.bf16.msra.mxu0 %v1693
  %2438 = vmatprep.subr.bf16.mxu0 0
  %2439 = vmatpush2.bf16.msra.mxu0 %v1692
  %2440 = vmatprep.subr.bf16.mxu0 0
  %2441 = vmatpush2.bf16.msra.mxu0 %v1691
  %2442 = vmatprep.subr.bf16.mxu0 0
  %2443 = vmatpush2.bf16.msra.mxu0 %v1690
  %2444 = vmatprep.mubr.bf16.mxu0 %v643
  %2445 = vmatmul.mubr.bf16.gmra.mxu0 %v642
  %v2446 = vpop.f32.mrf.mxu0
  %v2447 = vadd.f32 %v2398, %v2446
  %v2448 = vpop.f32.mrf.mxu0
  %v2449 = vpop.f32.mrf.mxu0
  %v2450 = vadd.f32 %v2401, %v2449
  %v2451 = vpop.f32.mrf.mxu0
  %2452 = vmatprep.mubr.bf16.mxu0 %v668
  %2453 = vmatmul.mubr.bf16.gmra.mxu0 %v667
  %v2454 = vpop.f32.mrf.mxu0
  %v2455 = vadd.f32 %v2406, %v2454
  %v2456 = vpop.f32.mrf.mxu0
  %v2457 = vpop.f32.mrf.mxu0
  %v2458 = vadd.f32 %v2409, %v2457
  %v2459 = vpop.f32.mrf.mxu0
  %2460 = vdwg.mxu0
  %2461 = vmatprep.subr.bf16.mxu0 0
  %2462 = vmatpush1.bf16.msra.mxu0 %v1705
  %2463 = vmatprep.subr.bf16.mxu0 0
  %2464 = vmatpush1.bf16.msra.mxu0 %v1704
  %2465 = vmatprep.subr.bf16.mxu0 0
  %2466 = vmatpush1.bf16.msra.mxu0 %v1703
  %2467 = vmatprep.subr.bf16.mxu0 0
  %2468 = vmatpush1.bf16.msra.mxu0 %v1702
  %2469 = vmatprep.subr.bf16.mxu0 0
  %2470 = vmatpush1.bf16.msra.mxu0 %v1701
  %2471 = vmatprep.subr.bf16.mxu0 0
  %2472 = vmatpush1.bf16.msra.mxu0 %v1700
  %2473 = vmatprep.subr.bf16.mxu0 0
  %2474 = vmatpush1.bf16.msra.mxu0 %v1699
  %2475 = vmatprep.subr.bf16.mxu0 0
  %2476 = vmatpush1.bf16.msra.mxu0 %v1698
  %2477 = vmatprep.subr.bf16.mxu0 0
  %2478 = vmatpush2.bf16.msra.mxu0 %v1713
  %2479 = vmatprep.subr.bf16.mxu0 0
  %2480 = vmatpush2.bf16.msra.mxu0 %v1712
  %2481 = vmatprep.subr.bf16.mxu0 0
  %2482 = vmatpush2.bf16.msra.mxu0 %v1711
  %2483 = vmatprep.subr.bf16.mxu0 0
  %2484 = vmatpush2.bf16.msra.mxu0 %v1710
  %2485 = vmatprep.subr.bf16.mxu0 0
  %2486 = vmatpush2.bf16.msra.mxu0 %v1709
  %2487 = vmatprep.subr.bf16.mxu0 0
  %2488 = vmatpush2.bf16.msra.mxu0 %v1708
  %2489 = vmatprep.subr.bf16.mxu0 0
  %2490 = vmatpush2.bf16.msra.mxu0 %v1707
  %2491 = vmatprep.subr.bf16.mxu0 0
  %2492 = vmatpush2.bf16.msra.mxu0 %v1706
  %2493 = vmatprep.mubr.bf16.mxu0 %v645
  %2494 = vmatmul.mubr.bf16.gmra.mxu0 %v644
  %v2495 = vpop.f32.mrf.mxu0
  %v2496 = vadd.f32 %v2447, %v2495
  %v2497 = vpop.f32.mrf.mxu0
  %v2498 = vpop.f32.mrf.mxu0
  %v2499 = vadd.f32 %v2450, %v2498
  %v2500 = vpop.f32.mrf.mxu0
  %2501 = vmatprep.mubr.bf16.mxu0 %v670
  %2502 = vmatmul.mubr.bf16.gmra.mxu0 %v669
  %v2503 = vpop.f32.mrf.mxu0
  %v2504 = vadd.f32 %v2455, %v2503
  %v2505 = vpop.f32.mrf.mxu0
  %v2506 = vpop.f32.mrf.mxu0
  %v2507 = vadd.f32 %v2458, %v2506
  %v2508 = vpop.f32.mrf.mxu0
  %2509 = vdwg.mxu0
  %2510 = vmatprep.subr.bf16.mxu0 0
  %2511 = vmatpush1.bf16.msra.mxu0 %v1721
  %2512 = vmatprep.subr.bf16.mxu0 0
  %2513 = vmatpush1.bf16.msra.mxu0 %v1720
  %2514 = vmatprep.subr.bf16.mxu0 0
  %2515 = vmatpush1.bf16.msra.mxu0 %v1719
  %2516 = vmatprep.subr.bf16.mxu0 0
  %2517 = vmatpush1.bf16.msra.mxu0 %v1718
  %2518 = vmatprep.subr.bf16.mxu0 0
  %2519 = vmatpush1.bf16.msra.mxu0 %v1717
  %2520 = vmatprep.subr.bf16.mxu0 0
  %2521 = vmatpush1.bf16.msra.mxu0 %v1716
  %2522 = vmatprep.subr.bf16.mxu0 0
  %2523 = vmatpush1.bf16.msra.mxu0 %v1715
  %2524 = vmatprep.subr.bf16.mxu0 0
  %2525 = vmatpush1.bf16.msra.mxu0 %v1714
  %2526 = vmatprep.subr.bf16.mxu0 0
  %2527 = vmatpush2.bf16.msra.mxu0 0
  %2528 = vmatprep.subr.bf16.mxu0 0
  %2529 = vmatpush2.bf16.msra.mxu0 0
  %2530 = vmatprep.subr.bf16.mxu0 0
  %2531 = vmatpush2.bf16.msra.mxu0 0
  %2532 = vmatprep.subr.bf16.mxu0 0
  %2533 = vmatpush2.bf16.msra.mxu0 0
  %2534 = vmatprep.subr.bf16.mxu0 0
  %2535 = vmatpush2.bf16.msra.mxu0 0
  %2536 = vmatprep.subr.bf16.mxu0 0
  %2537 = vmatpush2.bf16.msra.mxu0 0
  %2538 = vmatprep.subr.bf16.mxu0 0
  %2539 = vmatpush2.bf16.msra.mxu0 0
  %2540 = vmatprep.subr.bf16.mxu0 0
  %2541 = vmatpush2.bf16.msra.mxu0 0
  %2542 = vmatprep.mubr.bf16.mxu0 0
  %2543 = vmatmul.mubr.bf16.gmra.mxu0 %v646
  %v2544 = vpop.f32.mrf.mxu0
  %v2545 = vadd.f32 %v2496, %v2544
  %v2546 = vpop.f32.mrf.mxu0
  %v2547 = vpop.f32.mrf.mxu0
  %v2548 = vadd.f32 %v2499, %v2547
  %v2549 = vpop.f32.mrf.mxu0
  %2550 = vmatprep.mubr.bf16.mxu0 0
  %2551 = vmatmul.mubr.bf16.gmra.mxu0 %v671
  %v2552 = vpop.f32.mrf.mxu0
  %v2553 = vadd.f32 %v2504, %v2552
  %v2554 = vpop.f32.mrf.mxu0
  %v2555 = vpop.f32.mrf.mxu0
  %v2556 = vadd.f32 %v2507, %v2555
  %v2557 = vpop.f32.mrf.mxu0
  %2558 = vdwg.mxu0
  %v2559 = vadd.f32 %v2545, %v2548
  %v2560 = vadd.f32 %v2559, %v2553
  %v2561 = vadd.f32 %v2560, %v2556
  %v2562 = vrot.slane %v2561, 4
  %v2563 = vadd.f32 %v2561, %v2562
  %v2564 = vrot.slane %v2563, 2
  %v2565 = vadd.f32 %v2563, %v2564
  %v2566 = vrot.slane %v2565, 1
  %v2567 = vadd.f32 %v2565, %v2566
  %v2568 = vmul.f32 %v2567, 0.03125
  %v2569 = vmul.f32 %v2545, %v2545
  %v2570 = vmul.f32 %v2548, %v2548
  %v2571 = vmul.f32 %v2553, %v2553
  %v2572 = vmul.f32 %v2556, %v2556
  %v2573 = vadd.f32 %v2569, %v2570
  %v2574 = vadd.f32 %v2573, %v2571
  %v2575 = vadd.f32 %v2574, %v2572
  %v2576 = vrot.slane %v2575, 4
  %v2577 = vadd.f32 %v2575, %v2576
  %v2578 = vrot.slane %v2577, 2
  %v2579 = vadd.f32 %v2577, %v2578
  %v2580 = vrot.slane %v2579, 1
  %v2581 = vadd.f32 %v2579, %v2580
  %v2582 = vmul.f32 %v2581, 0.03125
  %v2583 = vmul.f32 %v2568, %v2568
  %v2584 = vsub.f32 %v2582, %v2583
  %v2585 = vmax.f32 %v2584, 0.0
  %v2586 = vld [vmem:[%s2] sm:$0x1]
  %v2587 = vadd.f32 %v2585, 1e-05
  %v2588 = vrsqrt.pop %v2587
  %v2589 = vmul.f32 %v2586, %v2588
  %v2590 = vld [vmem:[%s3] sm:$0x1]
  %v2591 = vmul.f32 %v2568, %v2589
  %v2592 = vsub.f32 %v2590, %v2591
  %v2594 = vlaneseq
  %v2595 = vshrl.u32 %v2594, 7
  %v2596 = vsub.s32 0, %v2595
  %v2597 = vrot.slane %v2589, %v2596
  %v2599 = vmul.f32 %v2545, %v2597
  %v2600 = vmul.f32 %v2548, %v2597
  %v2601 = vmul.f32 %v2553, %v2597
  %v2602 = vmul.f32 %v2556, %v2597
  %v2604 = vlaneseq
  %v2605 = vshrl.u32 %v2604, 7
  %v2606 = vsub.s32 0, %v2605
  %v2607 = vrot.slane %v2592, %v2606
  %v2609 = vadd.f32 %v2599, %v2607
  %v2610 = vadd.f32 %v2600, %v2607
  %v2611 = vadd.f32 %v2601, %v2607
  %v2612 = vadd.f32 %v2602, %v2607
  %vm2613 = vcmp.gt.f32.partialorder %v2609, 0.0
  %vm2614 = vcmp.gt.f32.partialorder %v2610, 0.0
  %vm2615 = vcmp.gt.f32.partialorder %v2611, 0.0
  %vm2616 = vcmp.gt.f32.partialorder %v2612, 0.0
  %v2617 = vmul.f32 %v2609, 0.2
  %v2618 = vmul.f32 %v2610, 0.2
  %v2619 = vmul.f32 %v2611, 0.2
  %v2620 = vmul.f32 %v2612, 0.2
  %v2621 = vsel %vm2613, %v2609, %v2617
  %v2622 = vsel %vm2614, %v2610, %v2618
  %v2623 = vsel %vm2615, %v2611, %v2619
  %v2624 = vsel %vm2616, %v2612, %v2620
  %v2625 = vpack.c.bf16 %v2622, %v2621
  %v2626 = vpack.c.bf16 %v2624, %v2623
  %v2629 = vunpack.c.l.b16 %v2625
  %v2630 = vunpack.c.h.b16 %v2625
  %v2631 = vunpack.c.l.b16 %v2626
  %v2632 = vunpack.c.h.b16 %v2626
  %v2633 = vpack.c.b16 %v2629, %v2629
  %v2634 = vpack.c.b16 %v2630, %v2630
  %v2635 = vpack.c.b16 %v2631, %v2631
  %v2636 = vpack.c.b16 %v2632, %v2632
  %2641 = vst [vmem:[%s4] sm:$0xf] %v2633
  %2642 = vst [vmem:[%s4 + $0x4] sm:$0xf] %v2634
  %2643 = vst [vmem:[%s4 + $0x8] sm:$0xf] %v2635
  %2644 = vst [vmem:[%s4 + $0xc] sm:$0xf] %v2636
  // Predicated region
  $region18: #{discriminator_forward.5} parent=0 // pred_check
    _
  $region19: #{discriminator_forward.5} parent=0 // pred_check_branch
    %2646 = sbr.rel (0) target = $region21
  $region20: #{discriminator_forward.5} parent=0 // pred_region
    _
  $region21: #{discriminator_forward.5} parent=0 // pred_fallthru
    _
  // Predicated region
  $region22: #{discriminator_forward.5} parent=0 // pred_check
    _
  $region23: #{discriminator_forward.5} parent=0 // pred_check_branch
    %2648 = sbr.rel (0) target = $region25
  $region24: #{discriminator_forward.5} parent=0 // pred_region
    _
  $region25: #{discriminator_forward.5} parent=0 // pred_fallthru
    _

// kernel: discriminator_forward.6
$region0: #{discriminator_forward.6}
  #allocation0 [shape = 'u32[]', space=smem, size = 0x4, offset = 0x4, fixed_abs, tag = 'smem constant byte address 0x4 - core index']
  #allocation1 [shape = 'u32[144,128]{1,0:T(1,128)}', space=vmem, size = 0x12000, scoped, tag = 'internal scratch']
  %s0 = inlined_call_operand.vmem [shape: bf16[8,3200], index: 0, kind: input, shape index: {}]
  %s1 = inlined_call_operand.vmem [shape: bf16[3200,128], index: 1, kind: input, shape index: {}]
  %s2 = inlined_call_operand.vmem [shape: f32[1,128], index: 2, kind: input, shape index: {}]
  %s3 = inlined_call_operand.vmem [shape: f32[1,128], index: 3, kind: input, shape index: {}]
  %s4 = inlined_call_operand.vmem [shape: bf16[8,128], index: 4, kind: output, shape index: {}]
  %s5 = sld [smem:[#allocation0]]
  $region26: #{discriminator_forward.6} parent=0
    _
  %s7 = ssub.s32 1, %s5
  %s8 = scalar_select 0, %s7, %s5
  // Predicated region
  $region2: #{discriminator_forward.6} parent=0 // pred_check
    _
  $region3: #{discriminator_forward.6} parent=0 // pred_check_branch
    %10 = sbr.rel (0) target = $region5
  $region4: #{discriminator_forward.6} parent=0 // pred_region
    _
  $region5: #{discriminator_forward.6} parent=0 // pred_fallthru
    _
  // Predicated region
  $region6: #{discriminator_forward.6} parent=0 // pred_check
    _
  $region7: #{discriminator_forward.6} parent=0 // pred_check_branch
    %12 = sbr.rel (0) target = $region9
  $region8: #{discriminator_forward.6} parent=0 // pred_region
    _
  $region9: #{discriminator_forward.6} parent=0 // pred_fallthru
    _
  // Predicated region
  $region10: #{discriminator_forward.6} parent=0 // pred_check
    _
  $region11: #{discriminator_forward.6} parent=0 // pred_check_branch
    %14 = sbr.rel (0) target = $region13
  $region12: #{discriminator_forward.6} parent=0 // pred_region
    _
  $region13: #{discriminator_forward.6} parent=0 // pred_fallthru
    _
  // Predicated region
  $region14: #{discriminator_forward.6} parent=0 // pred_check
    _
  $region15: #{discriminator_forward.6} parent=0 // pred_check_branch
    %16 = sbr.rel (0) target = $region17
  $region16: #{discriminator_forward.6} parent=0 // pred_region
    _
  $region17: #{discriminator_forward.6} parent=0 // pred_fallthru
    _
  %v18 = vld [vmem:[%s0] sm:$0xff]
  %v19 = vld [vmem:[%s0 + $0x8] sm:$0xff]
  %v20 = vld [vmem:[%s0 + $0x10] sm:$0xff]
  %v21 = vld [vmem:[%s0 + $0x18] sm:$0xff]
  %v22 = vld [vmem:[%s0 + $0x20] sm:$0xff]
  %v23 = vld [vmem:[%s0 + $0x28] sm:$0xff]
  %v24 = vld [vmem:[%s0 + $0x30] sm:$0xff]
  %v25 = vld [vmem:[%s0 + $0x38] sm:$0xff]
  %v26 = vld [vmem:[%s0 + $0x40] sm:$0xff]
  %v27 = vld [vmem:[%s0 + $0x48] sm:$0xff]
  %v28 = vld [vmem:[%s0 + $0x50] sm:$0xff]
  %v29 = vld [vmem:[%s0 + $0x58] sm:$0xff]
  %v30 = vld [vmem:[%s0 + $0x60] sm:$0xf]
  %v31 = vld [vmem:[%s1] sm:$0xf]
  %v32 = vld [vmem:[%s1 + $0x4] sm:$0xf]
  %v33 = vld [vmem:[%s1 + $0x8] sm:$0xf]
  %v34 = vld [vmem:[%s1 + $0xc] sm:$0xf]
  %v35 = vld [vmem:[%s1 + $0x10] sm:$0xf]
  %v36 = vld [vmem:[%s1 + $0x14] sm:$0xf]
  %v37 = vld [vmem:[%s1 + $0x18] sm:$0xf]
  %v38 = vld [vmem:[%s1 + $0x1c] sm:$0xf]
  %v39 = vld [vmem:[%s1 + $0x20] sm:$0xf]
  %v40 = vld [vmem:[%s1 + $0x24] sm:$0xf]
  %v41 = vld [vmem:[%s1 + $0x28] sm:$0xf]
  %v42 = vld [vmem:[%s1 + $0x2c] sm:$0xf]
  %v43 = vld [vmem:[%s1 + $0x30] sm:$0xf]
  %v44 = vld [vmem:[%s1 + $0x34] sm:$0xf]
  %v45 = vld [vmem:[%s1 + $0x38] sm:$0xf]
  %v46 = vld [vmem:[%s1 + $0x3c] sm:$0xf]
  %v47 = vld [vmem:[%s1 + $0x40] sm:$0xf]
  %v48 = vld [vmem:[%s1 + $0x44] sm:$0xf]
  %v49 = vld [vmem:[%s1 + $0x48] sm:$0xf]
  %v50 = vld [vmem:[%s1 + $0x4c] sm:$0xf]
  %v51 = vld [vmem:[%s1 + $0x50] sm:$0xf]
  %v52 = vld [vmem:[%s1 + $0x54] sm:$0xf]
  %v53 = vld [vmem:[%s1 + $0x58] sm:$0xf]
  %v54 = vld [vmem:[%s1 + $0x5c] sm:$0xf]
  %v55 = vld [vmem:[%s1 + $0x60] sm:$0xf]
  %v56 = vld [vmem:[%s1 + $0x64] sm:$0xf]
  %v57 = vld [vmem:[%s1 + $0x68] sm:$0xf]
  %v58 = vld [vmem:[%s1 + $0x6c] sm:$0xf]
  %v59 = vld [vmem:[%s1 + $0x70] sm:$0xf]
  %v60 = vld [vmem:[%s1 + $0x74] sm:$0xf]
  %v61 = vld [vmem:[%s1 + $0x78] sm:$0xf]
  %v62 = vld [vmem:[%s1 + $0x7c] sm:$0xf]
  %v63 = vld [vmem:[%s1 + $0x80] sm:$0xf]
  %v64 = vld [vmem:[%s1 + $0x84] sm:$0xf]
  %v65 = vld [vmem:[%s1 + $0x88] sm:$0xf]
  %v66 = vld [vmem:[%s1 + $0x8c] sm:$0xf]
  %v67 = vld [vmem:[%s1 + $0x90] sm:$0xf]
  %v68 = vld [vmem:[%s1 + $0x94] sm:$0xf]
  %v69 = vld [vmem:[%s1 + $0x98] sm:$0xf]
  %v70 = vld [vmem:[%s1 + $0x9c] sm:$0xf]
  %v71 = vld [vmem:[%s1 + $0xa0] sm:$0xf]
  %v72 = vld [vmem:[%s1 + $0xa4] sm:$0xf]
  %v73 = vld [vmem:[%s1 + $0xa8] sm:$0xf]
  %v74 = vld [vmem:[%s1 + $0xac] sm:$0xf]
  %v75 = vld [vmem:[%s1 + $0xb0] sm:$0xf]
  %v76 = vld [vmem:[%s1 + $0xb4] sm:$0xf]
  %v77 = vld [vmem:[%s1 + $0xb8] sm:$0xf]
  %v78 = vld [vmem:[%s1 + $0xbc] sm:$0xf]
  %v79 = vld [vmem:[%s1 + $0xc0] sm:$0xf]
  %v80 = vld [vmem:[%s1 + $0xc4] sm:$0xf]
  %v81 = vld [vmem:[%s1 + $0xc8] sm:$0xf]
  %v82 = vld [vmem:[%s1 + $0xcc] sm:$0xf]
  %v83 = vld [vmem:[%s1 + $0xd0] sm:$0xf]
  %v84 = vld [vmem:[%s1 + $0xd4] sm:$0xf]
  %v85 = vld [vmem:[%s1 + $0xd8] sm:$0xf]
  %v86 = vld [vmem:[%s1 + $0xdc] sm:$0xf]
  %v87 = vld [vmem:[%s1 + $0xe0] sm:$0xf]
  %v88 = vld [vmem:[%s1 + $0xe4] sm:$0xf]
  %v89 = vld [vmem:[%s1 + $0xe8] sm:$0xf]
  %v90 = vld [vmem:[%s1 + $0xec] sm:$0xf]
  %v91 = vld [vmem:[%s1 + $0xf0] sm:$0xf]
  %v92 = vld [vmem:[%s1 + $0xf4] sm:$0xf]
  %v93 = vld [vmem:[%s1 + $0xf8] sm:$0xf]
  %v94 = vld [vmem:[%s1 + $0xfc] sm:$0xf]
  %v95 = vld [vmem:[%s1 + $0x100] sm:$0xf]
  %v96 = vld [vmem:[%s1 + $0x104] sm:$0xf]
  %v97 = vld [vmem:[%s1 + $0x108] sm:$0xf]
  %v98 = vld [vmem:[%s1 + $0x10c] sm:$0xf]
  %v99 = vld [vmem:[%s1 + $0x110] sm:$0xf]
  %v100 = vld [vmem:[%s1 + $0x114] sm:$0xf]
  %v101 = vld [vmem:[%s1 + $0x118] sm:$0xf]
  %v102 = vld [vmem:[%s1 + $0x11c] sm:$0xf]
  %v103 = vld [vmem:[%s1 + $0x120] sm:$0xf]
  %v104 = vld [vmem:[%s1 + $0x124] sm:$0xf]
  %v105 = vld [vmem:[%s1 + $0x128] sm:$0xf]
  %v106 = vld [vmem:[%s1 + $0x12c] sm:$0xf]
  %v107 = vld [vmem:[%s1 + $0x130] sm:$0xf]
  %v108 = vld [vmem:[%s1 + $0x134] sm:$0xf]
  %v109 = vld [vmem:[%s1 + $0x138] sm:$0xf]
  %v110 = vld [vmem:[%s1 + $0x13c] sm:$0xf]
  %v111 = vld [vmem:[%s1 + $0x140] sm:$0xf]
  %v112 = vld [vmem:[%s1 + $0x144] sm:$0xf]
  %v113 = vld [vmem:[%s1 + $0x148] sm:$0xf]
  %v114 = vld [vmem:[%s1 + $0x14c] sm:$0xf]
  %v115 = vld [vmem:[%s1 + $0x150] sm:$0xf]
  %v116 = vld [vmem:[%s1 + $0x154] sm:$0xf]
  %v117 = vld [vmem:[%s1 + $0x158] sm:$0xf]
  %v118 = vld [vmem:[%s1 + $0x15c] sm:$0xf]
  %v119 = vld [vmem:[%s1 + $0x160] sm:$0xf]
  %v120 = vld [vmem:[%s1 + $0x164] sm:$0xf]
  %v121 = vld [vmem:[%s1 + $0x168] sm:$0xf]
  %v122 = vld [vmem:[%s1 + $0x16c] sm:$0xf]
  %v123 = vld [vmem:[%s1 + $0x170] sm:$0xf]
  %v124 = vld [vmem:[%s1 + $0x174] sm:$0xf]
  %v125 = vld [vmem:[%s1 + $0x178] sm:$0xf]
  %v126 = vld [vmem:[%s1 + $0x17c] sm:$0xf]
  %v127 = vld [vmem:[%s1 + $0x180] sm:$0xf]
  %v128 = vld [vmem:[%s1 + $0x184] sm:$0xf]
  %v129 = vld [vmem:[%s1 + $0x188] sm:$0xf]
  %v130 = vld [vmem:[%s1 + $0x18c] sm:$0xf]
  %v131 = vld [vmem:[%s1 + $0x190] sm:$0xf]
  %v132 = vld [vmem:[%s1 + $0x194] sm:$0xf]
  %v133 = vld [vmem:[%s1 + $0x198] sm:$0xf]
  %v134 = vld [vmem:[%s1 + $0x19c] sm:$0xf]
  %v135 = vld [vmem:[%s1 + $0x1a0] sm:$0xf]
  %v136 = vld [vmem:[%s1 + $0x1a4] sm:$0xf]
  %v137 = vld [vmem:[%s1 + $0x1a8] sm:$0xf]
  %v138 = vld [vmem:[%s1 + $0x1ac] sm:$0xf]
  %v139 = vld [vmem:[%s1 + $0x1b0] sm:$0xf]
  %v140 = vld [vmem:[%s1 + $0x1b4] sm:$0xf]
  %v141 = vld [vmem:[%s1 + $0x1b8] sm:$0xf]
  %v142 = vld [vmem:[%s1 + $0x1bc] sm:$0xf]
  %v143 = vld [vmem:[%s1 + $0x1c0] sm:$0xf]
  %v144 = vld [vmem:[%s1 + $0x1c4] sm:$0xf]
  %v145 = vld [vmem:[%s1 + $0x1c8] sm:$0xf]
  %v146 = vld [vmem:[%s1 + $0x1cc] sm:$0xf]
  %v147 = vld [vmem:[%s1 + $0x1d0] sm:$0xf]
  %v148 = vld [vmem:[%s1 + $0x1d4] sm:$0xf]
  %v149 = vld [vmem:[%s1 + $0x1d8] sm:$0xf]
  %v150 = vld [vmem:[%s1 + $0x1dc] sm:$0xf]
  %v151 = vld [vmem:[%s1 + $0x1e0] sm:$0xf]
  %v152 = vld [vmem:[%s1 + $0x1e4] sm:$0xf]
  %v153 = vld [vmem:[%s1 + $0x1e8] sm:$0xf]
  %v154 = vld [vmem:[%s1 + $0x1ec] sm:$0xf]
  %v155 = vld [vmem:[%s1 + $0x1f0] sm:$0xf]
  %v156 = vld [vmem:[%s1 + $0x1f4] sm:$0xf]
  %v157 = vld [vmem:[%s1 + $0x1f8] sm:$0xf]
  %v158 = vld [vmem:[%s1 + $0x1fc] sm:$0xf]
  %v159 = vld [vmem:[%s1 + $0x200] sm:$0xf]
  %v160 = vld [vmem:[%s1 + $0x204] sm:$0xf]
  %v161 = vld [vmem:[%s1 + $0x208] sm:$0xf]
  %v162 = vld [vmem:[%s1 + $0x20c] sm:$0xf]
  %v163 = vld [vmem:[%s1 + $0x210] sm:$0xf]
  %v164 = vld [vmem:[%s1 + $0x214] sm:$0xf]
  %v165 = vld [vmem:[%s1 + $0x218] sm:$0xf]
  %v166 = vld [vmem:[%s1 + $0x21c] sm:$0xf]
  %v167 = vld [vmem:[%s1 + $0x220] sm:$0xf]
  %v168 = vld [vmem:[%s1 + $0x224] sm:$0xf]
  %v169 = vld [vmem:[%s1 + $0x228] sm:$0xf]
  %v170 = vld [vmem:[%s1 + $0x22c] sm:$0xf]
  %v171 = vld [vmem:[%s1 + $0x230] sm:$0xf]
  %v172 = vld [vmem:[%s1 + $0x234] sm:$0xf]
  %v173 = vld [vmem:[%s1 + $0x238] sm:$0xf]
  %v174 = vld [vmem:[%s1 + $0x23c] sm:$0xf]
  %v175 = vld [vmem:[%s1 + $0x240] sm:$0xf]
  %v176 = vld [vmem:[%s1 + $0x244] sm:$0xf]
  %v177 = vld [vmem:[%s1 + $0x248] sm:$0xf]
  %v178 = vld [vmem:[%s1 + $0x24c] sm:$0xf]
  %v179 = vld [vmem:[%s1 + $0x250] sm:$0xf]
  %v180 = vld [vmem:[%s1 + $0x254] sm:$0xf]
  %v181 = vld [vmem:[%s1 + $0x258] sm:$0xf]
  %v182 = vld [vmem:[%s1 + $0x25c] sm:$0xf]
  %v183 = vld [vmem:[%s1 + $0x260] sm:$0xf]
  %v184 = vld [vmem:[%s1 + $0x264] sm:$0xf]
  %v185 = vld [vmem:[%s1 + $0x268] sm:$0xf]
  %v186 = vld [vmem:[%s1 + $0x26c] sm:$0xf]
  %v187 = vld [vmem:[%s1 + $0x270] sm:$0xf]
  %v188 = vld [vmem:[%s1 + $0x274] sm:$0xf]
  %v189 = vld [vmem:[%s1 + $0x278] sm:$0xf]
  %v190 = vld [vmem:[%s1 + $0x27c] sm:$0xf]
  %v191 = vld [vmem:[%s1 + $0x280] sm:$0xf]
  %v192 = vld [vmem:[%s1 + $0x284] sm:$0xf]
  %v193 = vld [vmem:[%s1 + $0x288] sm:$0xf]
  %v194 = vld [vmem:[%s1 + $0x28c] sm:$0xf]
  %v195 = vld [vmem:[%s1 + $0x290] sm:$0xf]
  %v196 = vld [vmem:[%s1 + $0x294] sm:$0xf]
  %v197 = vld [vmem:[%s1 + $0x298] sm:$0xf]
  %v198 = vld [vmem:[%s1 + $0x29c] sm:$0xf]
  %v199 = vld [vmem:[%s1 + $0x2a0] sm:$0xf]
  %v200 = vld [vmem:[%s1 + $0x2a4] sm:$0xf]
  %v201 = vld [vmem:[%s1 + $0x2a8] sm:$0xf]
  %v202 = vld [vmem:[%s1 + $0x2ac] sm:$0xf]
  %v203 = vld [vmem:[%s1 + $0x2b0] sm:$0xf]
  %v204 = vld [vmem:[%s1 + $0x2b4] sm:$0xf]
  %v205 = vld [vmem:[%s1 + $0x2b8] sm:$0xf]
  %v206 = vld [vmem:[%s1 + $0x2bc] sm:$0xf]
  %v207 = vld [vmem:[%s1 + $0x2c0] sm:$0xf]
  %v208 = vld [vmem:[%s1 + $0x2c4] sm:$0xf]
  %v209 = vld [vmem:[%s1 + $0x2c8] sm:$0xf]
  %v210 = vld [vmem:[%s1 + $0x2cc] sm:$0xf]
  %v211 = vld [vmem:[%s1 + $0x2d0] sm:$0xf]
  %v212 = vld [vmem:[%s1 + $0x2d4] sm:$0xf]
  %v213 = vld [vmem:[%s1 + $0x2d8] sm:$0xf]
  %v214 = vld [vmem:[%s1 + $0x2dc] sm:$0xf]
  %v215 = vld [vmem:[%s1 + $0x2e0] sm:$0xf]
  %v216 = vld [vmem:[%s1 + $0x2e4] sm:$0xf]
  %v217 = vld [vmem:[%s1 + $0x2e8] sm:$0xf]
  %v218 = vld [vmem:[%s1 + $0x2ec] sm:$0xf]
  %v219 = vld [vmem:[%s1 + $0x2f0] sm:$0xf]
  %v220 = vld [vmem:[%s1 + $0x2f4] sm:$0xf]
  %v221 = vld [vmem:[%s1 + $0x2f8] sm:$0xf]
  %v222 = vld [vmem:[%s1 + $0x2fc] sm:$0xf]
  %v223 = vld [vmem:[%s1 + $0x300] sm:$0xf]
  %v224 = vld [vmem:[%s1 + $0x304] sm:$0xf]
  %v225 = vld [vmem:[%s1 + $0x308] sm:$0xf]
  %v226 = vld [vmem:[%s1 + $0x30c] sm:$0xf]
  %v227 = vld [vmem:[%s1 + $0x310] sm:$0xf]
  %v228 = vld [vmem:[%s1 + $0x314] sm:$0xf]
  %v229 = vld [vmem:[%s1 + $0x318] sm:$0xf]
  %v230 = vld [vmem:[%s1 + $0x31c] sm:$0xf]
  %v231 = vld [vmem:[%s1 + $0x320] sm:$0xf]
  %v232 = vld [vmem:[%s1 + $0x324] sm:$0xf]
  %v233 = vld [vmem:[%s1 + $0x328] sm:$0xf]
  %v234 = vld [vmem:[%s1 + $0x32c] sm:$0xf]
  %v235 = vld [vmem:[%s1 + $0x330] sm:$0xf]
  %v236 = vld [vmem:[%s1 + $0x334] sm:$0xf]
  %v237 = vld [vmem:[%s1 + $0x338] sm:$0xf]
  %v238 = vld [vmem:[%s1 + $0x33c] sm:$0xf]
  %v239 = vld [vmem:[%s1 + $0x340] sm:$0xf]
  %v240 = vld [vmem:[%s1 + $0x344] sm:$0xf]
  %v241 = vld [vmem:[%s1 + $0x348] sm:$0xf]
  %v242 = vld [vmem:[%s1 + $0x34c] sm:$0xf]
  %v243 = vld [vmem:[%s1 + $0x350] sm:$0xf]
  %v244 = vld [vmem:[%s1 + $0x354] sm:$0xf]
  %v245 = vld [vmem:[%s1 + $0x358] sm:$0xf]
  %v246 = vld [vmem:[%s1 + $0x35c] sm:$0xf]
  %v247 = vld [vmem:[%s1 + $0x360] sm:$0xf]
  %v248 = vld [vmem:[%s1 + $0x364] sm:$0xf]
  %v249 = vld [vmem:[%s1 + $0x368] sm:$0xf]
  %v250 = vld [vmem:[%s1 + $0x36c] sm:$0xf]
  %v251 = vld [vmem:[%s1 + $0x370] sm:$0xf]
  %v252 = vld [vmem:[%s1 + $0x374] sm:$0xf]
  %v253 = vld [vmem:[%s1 + $0x378] sm:$0xf]
  %v254 = vld [vmem:[%s1 + $0x37c] sm:$0xf]
  %v255 = vld [vmem:[%s1 + $0x380] sm:$0xf]
  %v256 = vld [vmem:[%s1 + $0x384] sm:$0xf]
  %v257 = vld [vmem:[%s1 + $0x388] sm:$0xf]
  %v258 = vld [vmem:[%s1 + $0x38c] sm:$0xf]
  %v259 = vld [vmem:[%s1 + $0x390] sm:$0xf]
  %v260 = vld [vmem:[%s1 + $0x394] sm:$0xf]
  %v261 = vld [vmem:[%s1 + $0x398] sm:$0xf]
  %v262 = vld [vmem:[%s1 + $0x39c] sm:$0xf]
  %v263 = vld [vmem:[%s1 + $0x3a0] sm:$0xf]
  %v264 = vld [vmem:[%s1 + $0x3a4] sm:$0xf]
  %v265 = vld [vmem:[%s1 + $0x3a8] sm:$0xf]
  %v266 = vld [vmem:[%s1 + $0x3ac] sm:$0xf]
  %v267 = vld [vmem:[%s1 + $0x3b0] sm:$0xf]
  %v268 = vld [vmem:[%s1 + $0x3b4] sm:$0xf]
  %v269 = vld [vmem:[%s1 + $0x3b8] sm:$0xf]
  %v270 = vld [vmem:[%s1 + $0x3bc] sm:$0xf]
  %v271 = vld [vmem:[%s1 + $0x3c0] sm:$0xf]
  %v272 = vld [vmem:[%s1 + $0x3c4] sm:$0xf]
  %v273 = vld [vmem:[%s1 + $0x3c8] sm:$0xf]
  %v274 = vld [vmem:[%s1 + $0x3cc] sm:$0xf]
  %v275 = vld [vmem:[%s1 + $0x3d0] sm:$0xf]
  %v276 = vld [vmem:[%s1 + $0x3d4] sm:$0xf]
  %v277 = vld [vmem:[%s1 + $0x3d8] sm:$0xf]
  %v278 = vld [vmem:[%s1 + $0x3dc] sm:$0xf]
  %v279 = vld [vmem:[%s1 + $0x3e0] sm:$0xf]
  %v280 = vld [vmem:[%s1 + $0x3e4] sm:$0xf]
  %v281 = vld [vmem:[%s1 + $0x3e8] sm:$0xf]
  %v282 = vld [vmem:[%s1 + $0x3ec] sm:$0xf]
  %v283 = vld [vmem:[%s1 + $0x3f0] sm:$0xf]
  %v284 = vld [vmem:[%s1 + $0x3f4] sm:$0xf]
  %v285 = vld [vmem:[%s1 + $0x3f8] sm:$0xf]
  %v286 = vld [vmem:[%s1 + $0x3fc] sm:$0xf]
  %v287 = vld [vmem:[%s1 + $0x400] sm:$0xf]
  %v288 = vld [vmem:[%s1 + $0x404] sm:$0xf]
  %v289 = vld [vmem:[%s1 + $0x408] sm:$0xf]
  %v290 = vld [vmem:[%s1 + $0x40c] sm:$0xf]
  %v291 = vld [vmem:[%s1 + $0x410] sm:$0xf]
  %v292 = vld [vmem:[%s1 + $0x414] sm:$0xf]
  %v293 = vld [vmem:[%s1 + $0x418] sm:$0xf]
  %v294 = vld [vmem:[%s1 + $0x41c] sm:$0xf]
  %v295 = vld [vmem:[%s1 + $0x420] sm:$0xf]
  %v296 = vld [vmem:[%s1 + $0x424] sm:$0xf]
  %v297 = vld [vmem:[%s1 + $0x428] sm:$0xf]
  %v298 = vld [vmem:[%s1 + $0x42c] sm:$0xf]
  %v299 = vld [vmem:[%s1 + $0x430] sm:$0xf]
  %v300 = vld [vmem:[%s1 + $0x434] sm:$0xf]
  %v301 = vld [vmem:[%s1 + $0x438] sm:$0xf]
  %v302 = vld [vmem:[%s1 + $0x43c] sm:$0xf]
  %v303 = vld [vmem:[%s1 + $0x440] sm:$0xf]
  %v304 = vld [vmem:[%s1 + $0x444] sm:$0xf]
  %v305 = vld [vmem:[%s1 + $0x448] sm:$0xf]
  %v306 = vld [vmem:[%s1 + $0x44c] sm:$0xf]
  %v307 = vld [vmem:[%s1 + $0x450] sm:$0xf]
  %v308 = vld [vmem:[%s1 + $0x454] sm:$0xf]
  %v309 = vld [vmem:[%s1 + $0x458] sm:$0xf]
  %v310 = vld [vmem:[%s1 + $0x45c] sm:$0xf]
  %v311 = vld [vmem:[%s1 + $0x460] sm:$0xf]
  %v312 = vld [vmem:[%s1 + $0x464] sm:$0xf]
  %v313 = vld [vmem:[%s1 + $0x468] sm:$0xf]
  %v314 = vld [vmem:[%s1 + $0x46c] sm:$0xf]
  %v315 = vld [vmem:[%s1 + $0x470] sm:$0xf]
  %v316 = vld [vmem:[%s1 + $0x474] sm:$0xf]
  %v317 = vld [vmem:[%s1 + $0x478] sm:$0xf]
  %v318 = vld [vmem:[%s1 + $0x47c] sm:$0xf]
  %v319 = vld [vmem:[%s1 + $0x480] sm:$0xf]
  %v320 = vld [vmem:[%s1 + $0x484] sm:$0xf]
  %v321 = vld [vmem:[%s1 + $0x488] sm:$0xf]
  %v322 = vld [vmem:[%s1 + $0x48c] sm:$0xf]
  %v323 = vld [vmem:[%s1 + $0x490] sm:$0xf]
  %v324 = vld [vmem:[%s1 + $0x494] sm:$0xf]
  %v325 = vld [vmem:[%s1 + $0x498] sm:$0xf]
  %v326 = vld [vmem:[%s1 + $0x49c] sm:$0xf]
  %v327 = vld [vmem:[%s1 + $0x4a0] sm:$0xf]
  %v328 = vld [vmem:[%s1 + $0x4a4] sm:$0xf]
  %v329 = vld [vmem:[%s1 + $0x4a8] sm:$0xf]
  %v330 = vld [vmem:[%s1 + $0x4ac] sm:$0xf]
  %v331 = vld [vmem:[%s1 + $0x4b0] sm:$0xf]
  %v332 = vld [vmem:[%s1 + $0x4b4] sm:$0xf]
  %v333 = vld [vmem:[%s1 + $0x4b8] sm:$0xf]
  %v334 = vld [vmem:[%s1 + $0x4bc] sm:$0xf]
  %v335 = vld [vmem:[%s1 + $0x4c0] sm:$0xf]
  %v336 = vld [vmem:[%s1 + $0x4c4] sm:$0xf]
  %v337 = vld [vmem:[%s1 + $0x4c8] sm:$0xf]
  %v338 = vld [vmem:[%s1 + $0x4cc] sm:$0xf]
  %v339 = vld [vmem:[%s1 + $0x4d0] sm:$0xf]
  %v340 = vld [vmem:[%s1 + $0x4d4] sm:$0xf]
  %v341 = vld [vmem:[%s1 + $0x4d8] sm:$0xf]
  %v342 = vld [vmem:[%s1 + $0x4dc] sm:$0xf]
  %v343 = vld [vmem:[%s1 + $0x4e0] sm:$0xf]
  %v344 = vld [vmem:[%s1 + $0x4e4] sm:$0xf]
  %v345 = vld [vmem:[%s1 + $0x4e8] sm:$0xf]
  %v346 = vld [vmem:[%s1 + $0x4ec] sm:$0xf]
  %v347 = vld [vmem:[%s1 + $0x4f0] sm:$0xf]
  %v348 = vld [vmem:[%s1 + $0x4f4] sm:$0xf]
  %v349 = vld [vmem:[%s1 + $0x4f8] sm:$0xf]
  %v350 = vld [vmem:[%s1 + $0x4fc] sm:$0xf]
  %v351 = vld [vmem:[%s1 + $0x500] sm:$0xf]
  %v352 = vld [vmem:[%s1 + $0x504] sm:$0xf]
  %v353 = vld [vmem:[%s1 + $0x508] sm:$0xf]
  %v354 = vld [vmem:[%s1 + $0x50c] sm:$0xf]
  %v355 = vld [vmem:[%s1 + $0x510] sm:$0xf]
  %v356 = vld [vmem:[%s1 + $0x514] sm:$0xf]
  %v357 = vld [vmem:[%s1 + $0x518] sm:$0xf]
  %v358 = vld [vmem:[%s1 + $0x51c] sm:$0xf]
  %v359 = vld [vmem:[%s1 + $0x520] sm:$0xf]
  %v360 = vld [vmem:[%s1 + $0x524] sm:$0xf]
  %v361 = vld [vmem:[%s1 + $0x528] sm:$0xf]
  %v362 = vld [vmem:[%s1 + $0x52c] sm:$0xf]
  %v363 = vld [vmem:[%s1 + $0x530] sm:$0xf]
  %v364 = vld [vmem:[%s1 + $0x534] sm:$0xf]
  %v365 = vld [vmem:[%s1 + $0x538] sm:$0xf]
  %v366 = vld [vmem:[%s1 + $0x53c] sm:$0xf]
  %v367 = vld [vmem:[%s1 + $0x540] sm:$0xf]
  %v368 = vld [vmem:[%s1 + $0x544] sm:$0xf]
  %v369 = vld [vmem:[%s1 + $0x548] sm:$0xf]
  %v370 = vld [vmem:[%s1 + $0x54c] sm:$0xf]
  %v371 = vld [vmem:[%s1 + $0x550] sm:$0xf]
  %v372 = vld [vmem:[%s1 + $0x554] sm:$0xf]
  %v373 = vld [vmem:[%s1 + $0x558] sm:$0xf]
  %v374 = vld [vmem:[%s1 + $0x55c] sm:$0xf]
  %v375 = vld [vmem:[%s1 + $0x560] sm:$0xf]
  %v376 = vld [vmem:[%s1 + $0x564] sm:$0xf]
  %v377 = vld [vmem:[%s1 + $0x568] sm:$0xf]
  %v378 = vld [vmem:[%s1 + $0x56c] sm:$0xf]
  %v379 = vld [vmem:[%s1 + $0x570] sm:$0xf]
  %v380 = vld [vmem:[%s1 + $0x574] sm:$0xf]
  %v381 = vld [vmem:[%s1 + $0x578] sm:$0xf]
  %v382 = vld [vmem:[%s1 + $0x57c] sm:$0xf]
  %v383 = vld [vmem:[%s1 + $0x580] sm:$0xf]
  %v384 = vld [vmem:[%s1 + $0x584] sm:$0xf]
  %v385 = vld [vmem:[%s1 + $0x588] sm:$0xf]
  %v386 = vld [vmem:[%s1 + $0x58c] sm:$0xf]
  %v387 = vld [vmem:[%s1 + $0x590] sm:$0xf]
  %v388 = vld [vmem:[%s1 + $0x594] sm:$0xf]
  %v389 = vld [vmem:[%s1 + $0x598] sm:$0xf]
  %v390 = vld [vmem:[%s1 + $0x59c] sm:$0xf]
  %v391 = vld [vmem:[%s1 + $0x5a0] sm:$0xf]
  %v392 = vld [vmem:[%s1 + $0x5a4] sm:$0xf]
  %v393 = vld [vmem:[%s1 + $0x5a8] sm:$0xf]
  %v394 = vld [vmem:[%s1 + $0x5ac] sm:$0xf]
  %v395 = vld [vmem:[%s1 + $0x5b0] sm:$0xf]
  %v396 = vld [vmem:[%s1 + $0x5b4] sm:$0xf]
  %v397 = vld [vmem:[%s1 + $0x5b8] sm:$0xf]
  %v398 = vld [vmem:[%s1 + $0x5bc] sm:$0xf]
  %v399 = vld [vmem:[%s1 + $0x5c0] sm:$0xf]
  %v400 = vld [vmem:[%s1 + $0x5c4] sm:$0xf]
  %v401 = vld [vmem:[%s1 + $0x5c8] sm:$0xf]
  %v402 = vld [vmem:[%s1 + $0x5cc] sm:$0xf]
  %v403 = vld [vmem:[%s1 + $0x5d0] sm:$0xf]
  %v404 = vld [vmem:[%s1 + $0x5d4] sm:$0xf]
  %v405 = vld [vmem:[%s1 + $0x5d8] sm:$0xf]
  %v406 = vld [vmem:[%s1 + $0x5dc] sm:$0xf]
  %v407 = vld [vmem:[%s1 + $0x5e0] sm:$0xf]
  %v408 = vld [vmem:[%s1 + $0x5e4] sm:$0xf]
  %v409 = vld [vmem:[%s1 + $0x5e8] sm:$0xf]
  %v410 = vld [vmem:[%s1 + $0x5ec] sm:$0xf]
  %v411 = vld [vmem:[%s1 + $0x5f0] sm:$0xf]
  %v412 = vld [vmem:[%s1 + $0x5f4] sm:$0xf]
  %v413 = vld [vmem:[%s1 + $0x5f8] sm:$0xf]
  %v414 = vld [vmem:[%s1 + $0x5fc] sm:$0xf]
  %v415 = vld [vmem:[%s1 + $0x600] sm:$0xf]
  %v416 = vld [vmem:[%s1 + $0x604] sm:$0xf]
  %v417 = vld [vmem:[%s1 + $0x608] sm:$0xf]
  %v418 = vld [vmem:[%s1 + $0x60c] sm:$0xf]
  %v419 = vld [vmem:[%s1 + $0x610] sm:$0xf]
  %v420 = vld [vmem:[%s1 + $0x614] sm:$0xf]
  %v421 = vld [vmem:[%s1 + $0x618] sm:$0xf]
  %v422 = vld [vmem:[%s1 + $0x61c] sm:$0xf]
  %v423 = vld [vmem:[%s1 + $0x620] sm:$0xf]
  %v424 = vld [vmem:[%s1 + $0x624] sm:$0xf]
  %v425 = vld [vmem:[%s1 + $0x628] sm:$0xf]
  %v426 = vld [vmem:[%s1 + $0x62c] sm:$0xf]
  %v427 = vld [vmem:[%s1 + $0x630] sm:$0xf]
  %v428 = vld [vmem:[%s1 + $0x634] sm:$0xf]
  %v429 = vld [vmem:[%s1 + $0x638] sm:$0xf]
  %v430 = vld [vmem:[%s1 + $0x63c] sm:$0xf]
  %v444 = vunpack.c.l.b16 %v18
  %v445 = vunpack.c.h.b16 %v18
  %v446 = vunpack.c.l.b16 %v19
  %v447 = vunpack.c.h.b16 %v19
  %v448 = vunpack.c.l.b16 %v20
  %v449 = vunpack.c.h.b16 %v20
  %v450 = vunpack.c.l.b16 %v21
  %v451 = vunpack.c.h.b16 %v21
  %v452 = vunpack.c.l.b16 %v22
  %v453 = vunpack.c.h.b16 %v22
  %v454 = vunpack.c.l.b16 %v23
  %v455 = vunpack.c.h.b16 %v23
  %v456 = vunpack.c.l.b16 %v24
  %v457 = vunpack.c.h.b16 %v24
  %v458 = vunpack.c.l.b16 %v25
  %v459 = vunpack.c.h.b16 %v25
  %v460 = vunpack.c.l.b16 %v26
  %v461 = vunpack.c.h.b16 %v26
  %v462 = vunpack.c.l.b16 %v27
  %v463 = vunpack.c.h.b16 %v27
  %v464 = vunpack.c.l.b16 %v28
  %v465 = vunpack.c.h.b16 %v28
  %v466 = vunpack.c.l.b16 %v29
  %v467 = vunpack.c.h.b16 %v29
  %v468 = vunpack.c.l.b16 %v30
  %v469 = vpack.c.b16 %v444, %v444
  %v470 = vpack.c.b16 %v445, %v445
  %v471 = vpack.c.b16 %v446, %v446
  %v472 = vpack.c.b16 %v447, %v447
  %v473 = vpack.c.b16 %v448, %v448
  %v474 = vpack.c.b16 %v449, %v449
  %v475 = vpack.c.b16 %v450, %v450
  %v476 = vpack.c.b16 %v451, %v451
  %v477 = vpack.c.b16 %v452, %v452
  %v478 = vpack.c.b16 %v453, %v453
  %v479 = vpack.c.b16 %v454, %v454
  %v480 = vpack.c.b16 %v455, %v455
  %v481 = vpack.c.b16 %v456, %v456
  %v482 = vpack.c.b16 %v457, %v457
  %v483 = vpack.c.b16 %v458, %v458
  %v484 = vpack.c.b16 %v459, %v459
  %v485 = vpack.c.b16 %v460, %v460
  %v486 = vpack.c.b16 %v461, %v461
  %v487 = vpack.c.b16 %v462, %v462
  %v488 = vpack.c.b16 %v463, %v463
  %v489 = vpack.c.b16 %v464, %v464
  %v490 = vpack.c.b16 %v465, %v465
  %v491 = vpack.c.b16 %v466, %v466
  %v492 = vpack.c.b16 %v467, %v467
  %v493 = vpack.c.b16 %v468, %v468
  %v919 = vunpack.c.l.b16 %v31
  %v920 = vunpack.c.l.b16 %v32
  %v921 = vunpack.c.l.b16 %v33
  %v922 = vunpack.c.l.b16 %v34
  %v923 = vunpack.c.l.b16 %v35
  %v924 = vunpack.c.l.b16 %v36
  %v925 = vunpack.c.l.b16 %v37
  %v926 = vunpack.c.l.b16 %v38
  %v927 = vunpack.c.l.b16 %v39
  %v928 = vunpack.c.l.b16 %v40
  %v929 = vunpack.c.l.b16 %v41
  %v930 = vunpack.c.l.b16 %v42
  %v931 = vunpack.c.l.b16 %v43
  %v932 = vunpack.c.l.b16 %v44
  %v933 = vunpack.c.l.b16 %v45
  %v934 = vunpack.c.l.b16 %v46
  %v935 = vunpack.c.l.b16 %v47
  %v936 = vunpack.c.l.b16 %v48
  %v937 = vunpack.c.l.b16 %v49
  %v938 = vunpack.c.l.b16 %v50
  %v939 = vunpack.c.l.b16 %v51
  %v940 = vunpack.c.l.b16 %v52
  %v941 = vunpack.c.l.b16 %v53
  %v942 = vunpack.c.l.b16 %v54
  %v943 = vunpack.c.l.b16 %v55
  %v944 = vunpack.c.l.b16 %v56
  %v945 = vunpack.c.l.b16 %v57
  %v946 = vunpack.c.l.b16 %v58
  %v947 = vunpack.c.l.b16 %v59
  %v948 = vunpack.c.l.b16 %v60
  %v949 = vunpack.c.l.b16 %v61
  %v950 = vunpack.c.l.b16 %v62
  %v951 = vunpack.c.l.b16 %v63
  %v952 = vunpack.c.l.b16 %v64
  %v953 = vunpack.c.l.b16 %v65
  %v954 = vunpack.c.l.b16 %v66
  %v955 = vunpack.c.l.b16 %v67
  %v956 = vunpack.c.l.b16 %v68
  %v957 = vunpack.c.l.b16 %v69
  %v958 = vunpack.c.l.b16 %v70
  %v959 = vunpack.c.l.b16 %v71
  %v960 = vunpack.c.l.b16 %v72
  %v961 = vunpack.c.l.b16 %v73
  %v962 = vunpack.c.l.b16 %v74
  %v963 = vunpack.c.l.b16 %v75
  %v964 = vunpack.c.l.b16 %v76
  %v965 = vunpack.c.l.b16 %v77
  %v966 = vunpack.c.l.b16 %v78
  %v967 = vunpack.c.l.b16 %v79
  %v968 = vunpack.c.l.b16 %v80
  %v969 = vunpack.c.l.b16 %v81
  %v970 = vunpack.c.l.b16 %v82
  %v971 = vunpack.c.l.b16 %v83
  %v972 = vunpack.c.l.b16 %v84
  %v973 = vunpack.c.l.b16 %v85
  %v974 = vunpack.c.l.b16 %v86
  %v975 = vunpack.c.l.b16 %v87
  %v976 = vunpack.c.l.b16 %v88
  %v977 = vunpack.c.l.b16 %v89
  %v978 = vunpack.c.l.b16 %v90
  %v979 = vunpack.c.l.b16 %v91
  %v980 = vunpack.c.l.b16 %v92
  %v981 = vunpack.c.l.b16 %v93
  %v982 = vunpack.c.l.b16 %v94
  %v983 = vunpack.c.l.b16 %v95
  %v984 = vunpack.c.l.b16 %v96
  %v985 = vunpack.c.l.b16 %v97
  %v986 = vunpack.c.l.b16 %v98
  %v987 = vunpack.c.l.b16 %v99
  %v988 = vunpack.c.l.b16 %v100
  %v989 = vunpack.c.l.b16 %v101
  %v990 = vunpack.c.l.b16 %v102
  %v991 = vunpack.c.l.b16 %v103
  %v992 = vunpack.c.l.b16 %v104
  %v993 = vunpack.c.l.b16 %v105
  %v994 = vunpack.c.l.b16 %v106
  %v995 = vunpack.c.l.b16 %v107
  %v996 = vunpack.c.l.b16 %v108
  %v997 = vunpack.c.l.b16 %v109
  %v998 = vunpack.c.l.b16 %v110
  %v999 = vunpack.c.l.b16 %v111
  %v1000 = vunpack.c.l.b16 %v112
  %v1001 = vunpack.c.l.b16 %v113
  %v1002 = vunpack.c.l.b16 %v114
  %v1003 = vunpack.c.l.b16 %v115
  %v1004 = vunpack.c.l.b16 %v116
  %v1005 = vunpack.c.l.b16 %v117
  %v1006 = vunpack.c.l.b16 %v118
  %v1007 = vunpack.c.l.b16 %v119
  %v1008 = vunpack.c.l.b16 %v120
  %v1009 = vunpack.c.l.b16 %v121
  %v1010 = vunpack.c.l.b16 %v122
  %v1011 = vunpack.c.l.b16 %v123
  %v1012 = vunpack.c.l.b16 %v124
  %v1013 = vunpack.c.l.b16 %v125
  %v1014 = vunpack.c.l.b16 %v126
  %v1015 = vunpack.c.l.b16 %v127
  %v1016 = vunpack.c.l.b16 %v128
  %v1017 = vunpack.c.l.b16 %v129
  %v1018 = vunpack.c.l.b16 %v130
  %v1019 = vunpack.c.l.b16 %v131
  %v1020 = vunpack.c.l.b16 %v132
  %v1021 = vunpack.c.l.b16 %v133
  %v1022 = vunpack.c.l.b16 %v134
  %v1023 = vunpack.c.l.b16 %v135
  %v1024 = vunpack.c.l.b16 %v136
  %v1025 = vunpack.c.l.b16 %v137
  %v1026 = vunpack.c.l.b16 %v138
  %v1027 = vunpack.c.l.b16 %v139
  %v1028 = vunpack.c.l.b16 %v140
  %v1029 = vunpack.c.l.b16 %v141
  %v1030 = vunpack.c.l.b16 %v142
  %v1031 = vunpack.c.l.b16 %v143
  %v1032 = vunpack.c.l.b16 %v144
  %v1033 = vunpack.c.l.b16 %v145
  %v1034 = vunpack.c.l.b16 %v146
  %v1035 = vunpack.c.l.b16 %v147
  %v1036 = vunpack.c.l.b16 %v148
  %v1037 = vunpack.c.l.b16 %v149
  %v1038 = vunpack.c.l.b16 %v150
  %v1039 = vunpack.c.l.b16 %v151
  %v1040 = vunpack.c.l.b16 %v152
  %v1041 = vunpack.c.l.b16 %v153
  %v1042 = vunpack.c.l.b16 %v154
  %v1043 = vunpack.c.l.b16 %v155
  %v1044 = vunpack.c.l.b16 %v156
  %v1045 = vunpack.c.l.b16 %v157
  %v1046 = vunpack.c.l.b16 %v158
  %v1047 = vunpack.c.l.b16 %v159
  %v1048 = vunpack.c.l.b16 %v160
  %v1049 = vunpack.c.l.b16 %v161
  %v1050 = vunpack.c.l.b16 %v162
  %v1051 = vunpack.c.l.b16 %v163
  %v1052 = vunpack.c.l.b16 %v164
  %v1053 = vunpack.c.l.b16 %v165
  %v1054 = vunpack.c.l.b16 %v166
  %v1055 = vunpack.c.l.b16 %v167
  %v1056 = vunpack.c.l.b16 %v168
  %v1057 = vunpack.c.l.b16 %v169
  %v1058 = vunpack.c.l.b16 %v170
  %v1059 = vunpack.c.l.b16 %v171
  %v1060 = vunpack.c.l.b16 %v172
  %v1061 = vunpack.c.l.b16 %v173
  %v1062 = vunpack.c.l.b16 %v174
  %v1063 = vunpack.c.l.b16 %v175
  %v1064 = vunpack.c.l.b16 %v176
  %v1065 = vunpack.c.l.b16 %v177
  %v1066 = vunpack.c.l.b16 %v178
  %v1067 = vunpack.c.l.b16 %v179
  %v1068 = vunpack.c.l.b16 %v180
  %v1069 = vunpack.c.l.b16 %v181
  %v1070 = vunpack.c.l.b16 %v182
  %v1071 = vunpack.c.l.b16 %v183
  %v1072 = vunpack.c.l.b16 %v184
  %v1073 = vunpack.c.l.b16 %v185
  %v1074 = vunpack.c.l.b16 %v186
  %v1075 = vunpack.c.l.b16 %v187
  %v1076 = vunpack.c.l.b16 %v188
  %v1077 = vunpack.c.l.b16 %v189
  %v1078 = vunpack.c.l.b16 %v190
  %v1079 = vunpack.c.l.b16 %v191
  %v1080 = vunpack.c.l.b16 %v192
  %v1081 = vunpack.c.l.b16 %v193
  %v1082 = vunpack.c.l.b16 %v194
  %v1083 = vunpack.c.l.b16 %v195
  %v1084 = vunpack.c.l.b16 %v196
  %v1085 = vunpack.c.l.b16 %v197
  %v1086 = vunpack.c.l.b16 %v198
  %v1087 = vunpack.c.l.b16 %v199
  %v1088 = vunpack.c.l.b16 %v200
  %v1089 = vunpack.c.l.b16 %v201
  %v1090 = vunpack.c.l.b16 %v202
  %v1091 = vunpack.c.l.b16 %v203
  %v1092 = vunpack.c.l.b16 %v204
  %v1093 = vunpack.c.l.b16 %v205
  %v1094 = vunpack.c.l.b16 %v206
  %v1095 = vunpack.c.l.b16 %v207
  %v1096 = vunpack.c.l.b16 %v208
  %v1097 = vunpack.c.l.b16 %v209
  %v1098 = vunpack.c.l.b16 %v210
  %v1099 = vunpack.c.l.b16 %v211
  %v1100 = vunpack.c.l.b16 %v212
  %v1101 = vunpack.c.l.b16 %v213
  %v1102 = vunpack.c.l.b16 %v214
  %v1103 = vunpack.c.l.b16 %v215
  %v1104 = vunpack.c.l.b16 %v216
  %v1105 = vunpack.c.l.b16 %v217
  %v1106 = vunpack.c.l.b16 %v218
  %v1107 = vunpack.c.l.b16 %v219
  %v1108 = vunpack.c.l.b16 %v220
  %v1109 = vunpack.c.l.b16 %v221
  %v1110 = vunpack.c.l.b16 %v222
  %v1111 = vunpack.c.l.b16 %v223
  %v1112 = vunpack.c.l.b16 %v224
  %v1113 = vunpack.c.l.b16 %v225
  %v1114 = vunpack.c.l.b16 %v226
  %v1115 = vunpack.c.l.b16 %v227
  %v1116 = vunpack.c.l.b16 %v228
  %v1117 = vunpack.c.l.b16 %v229
  %v1118 = vunpack.c.l.b16 %v230
  %v1119 = vunpack.c.l.b16 %v231
  %v1120 = vunpack.c.l.b16 %v232
  %v1121 = vunpack.c.l.b16 %v233
  %v1122 = vunpack.c.l.b16 %v234
  %v1123 = vunpack.c.l.b16 %v235
  %v1124 = vunpack.c.l.b16 %v236
  %v1125 = vunpack.c.l.b16 %v237
  %v1126 = vunpack.c.l.b16 %v238
  %v1127 = vunpack.c.l.b16 %v239
  %v1128 = vunpack.c.l.b16 %v240
  %v1129 = vunpack.c.l.b16 %v241
  %v1130 = vunpack.c.l.b16 %v242
  %v1131 = vunpack.c.l.b16 %v243
  %v1132 = vunpack.c.l.b16 %v244
  %v1133 = vunpack.c.l.b16 %v245
  %v1134 = vunpack.c.l.b16 %v246
  %v1135 = vunpack.c.l.b16 %v247
  %v1136 = vunpack.c.l.b16 %v248
  %v1137 = vunpack.c.l.b16 %v249
  %v1138 = vunpack.c.l.b16 %v250
  %v1139 = vunpack.c.l.b16 %v251
  %v1140 = vunpack.c.l.b16 %v252
  %v1141 = vunpack.c.l.b16 %v253
  %v1142 = vunpack.c.l.b16 %v254
  %v1143 = vunpack.c.l.b16 %v255
  %v1144 = vunpack.c.l.b16 %v256
  %v1145 = vunpack.c.l.b16 %v257
  %v1146 = vunpack.c.l.b16 %v258
  %v1147 = vunpack.c.l.b16 %v259
  %v1148 = vunpack.c.l.b16 %v260
  %v1149 = vunpack.c.l.b16 %v261
  %v1150 = vunpack.c.l.b16 %v262
  %v1151 = vunpack.c.l.b16 %v263
  %v1152 = vunpack.c.l.b16 %v264
  %v1153 = vunpack.c.l.b16 %v265
  %v1154 = vunpack.c.l.b16 %v266
  %v1155 = vunpack.c.l.b16 %v267
  %v1156 = vunpack.c.l.b16 %v268
  %v1157 = vunpack.c.l.b16 %v269
  %v1158 = vunpack.c.l.b16 %v270
  %v1159 = vunpack.c.l.b16 %v271
  %v1160 = vunpack.c.l.b16 %v272
  %v1161 = vunpack.c.l.b16 %v273
  %v1162 = vunpack.c.l.b16 %v274
  %v1163 = vunpack.c.l.b16 %v275
  %v1164 = vunpack.c.l.b16 %v276
  %v1165 = vunpack.c.l.b16 %v277
  %v1166 = vunpack.c.l.b16 %v278
  %v1167 = vunpack.c.l.b16 %v279
  %v1168 = vunpack.c.l.b16 %v280
  %v1169 = vunpack.c.l.b16 %v281
  %v1170 = vunpack.c.l.b16 %v282
  %v1171 = vunpack.c.l.b16 %v283
  %v1172 = vunpack.c.l.b16 %v284
  %v1173 = vunpack.c.l.b16 %v285
  %v1174 = vunpack.c.l.b16 %v286
  %v1175 = vunpack.c.l.b16 %v287
  %v1176 = vunpack.c.l.b16 %v288
  %v1177 = vunpack.c.l.b16 %v289
  %v1178 = vunpack.c.l.b16 %v290
  %v1179 = vunpack.c.l.b16 %v291
  %v1180 = vunpack.c.l.b16 %v292
  %v1181 = vunpack.c.l.b16 %v293
  %v1182 = vunpack.c.l.b16 %v294
  %v1183 = vunpack.c.l.b16 %v295
  %v1184 = vunpack.c.l.b16 %v296
  %v1185 = vunpack.c.l.b16 %v297
  %v1186 = vunpack.c.l.b16 %v298
  %v1187 = vunpack.c.l.b16 %v299
  %v1188 = vunpack.c.l.b16 %v300
  %v1189 = vunpack.c.l.b16 %v301
  %v1190 = vunpack.c.l.b16 %v302
  %v1191 = vunpack.c.l.b16 %v303
  %v1192 = vunpack.c.l.b16 %v304
  %v1193 = vunpack.c.l.b16 %v305
  %v1194 = vunpack.c.l.b16 %v306
  %v1195 = vunpack.c.l.b16 %v307
  %v1196 = vunpack.c.l.b16 %v308
  %v1197 = vunpack.c.l.b16 %v309
  %v1198 = vunpack.c.l.b16 %v310
  %v1199 = vunpack.c.l.b16 %v311
  %v1200 = vunpack.c.l.b16 %v312
  %v1201 = vunpack.c.l.b16 %v313
  %v1202 = vunpack.c.l.b16 %v314
  %v1203 = vunpack.c.l.b16 %v315
  %v1204 = vunpack.c.l.b16 %v316
  %v1205 = vunpack.c.l.b16 %v317
  %v1206 = vunpack.c.l.b16 %v318
  %v1207 = vunpack.c.l.b16 %v319
  %v1208 = vunpack.c.l.b16 %v320
  %v1209 = vunpack.c.l.b16 %v321
  %v1210 = vunpack.c.l.b16 %v322
  %v1211 = vunpack.c.l.b16 %v323
  %v1212 = vunpack.c.l.b16 %v324
  %v1213 = vunpack.c.l.b16 %v325
  %v1214 = vunpack.c.l.b16 %v326
  %v1215 = vunpack.c.l.b16 %v327
  %v1216 = vunpack.c.l.b16 %v328
  %v1217 = vunpack.c.l.b16 %v329
  %v1218 = vunpack.c.l.b16 %v330
  %v1219 = vunpack.c.l.b16 %v331
  %v1220 = vunpack.c.l.b16 %v332
  %v1221 = vunpack.c.l.b16 %v333
  %v1222 = vunpack.c.l.b16 %v334
  %v1223 = vunpack.c.l.b16 %v335
  %v1224 = vunpack.c.l.b16 %v336
  %v1225 = vunpack.c.l.b16 %v337
  %v1226 = vunpack.c.l.b16 %v338
  %v1227 = vunpack.c.l.b16 %v339
  %v1228 = vunpack.c.l.b16 %v340
  %v1229 = vunpack.c.l.b16 %v341
  %v1230 = vunpack.c.l.b16 %v342
  %v1231 = vunpack.c.l.b16 %v343
  %v1232 = vunpack.c.l.b16 %v344
  %v1233 = vunpack.c.l.b16 %v345
  %v1234 = vunpack.c.l.b16 %v346
  %v1235 = vunpack.c.l.b16 %v347
  %v1236 = vunpack.c.l.b16 %v348
  %v1237 = vunpack.c.l.b16 %v349
  %v1238 = vunpack.c.l.b16 %v350
  %v1239 = vunpack.c.l.b16 %v351
  %v1240 = vunpack.c.l.b16 %v352
  %v1241 = vunpack.c.l.b16 %v353
  %v1242 = vunpack.c.l.b16 %v354
  %v1243 = vunpack.c.l.b16 %v355
  %v1244 = vunpack.c.l.b16 %v356
  %v1245 = vunpack.c.l.b16 %v357
  %v1246 = vunpack.c.l.b16 %v358
  %v1247 = vunpack.c.l.b16 %v359
  %v1248 = vunpack.c.l.b16 %v360
  %v1249 = vunpack.c.l.b16 %v361
  %v1250 = vunpack.c.l.b16 %v362
  %v1251 = vunpack.c.l.b16 %v363
  %v1252 = vunpack.c.l.b16 %v364
  %v1253 = vunpack.c.l.b16 %v365
  %v1254 = vunpack.c.l.b16 %v366
  %v1255 = vunpack.c.l.b16 %v367
  %v1256 = vunpack.c.l.b16 %v368
  %v1257 = vunpack.c.l.b16 %v369
  %v1258 = vunpack.c.l.b16 %v370
  %v1259 = vunpack.c.l.b16 %v371
  %v1260 = vunpack.c.l.b16 %v372
  %v1261 = vunpack.c.l.b16 %v373
  %v1262 = vunpack.c.l.b16 %v374
  %v1263 = vunpack.c.l.b16 %v375
  %v1264 = vunpack.c.l.b16 %v376
  %v1265 = vunpack.c.l.b16 %v377
  %v1266 = vunpack.c.l.b16 %v378
  %v1267 = vunpack.c.l.b16 %v379
  %v1268 = vunpack.c.l.b16 %v380
  %v1269 = vunpack.c.l.b16 %v381
  %v1270 = vunpack.c.l.b16 %v382
  %v1271 = vunpack.c.l.b16 %v383
  %v1272 = vunpack.c.l.b16 %v384
  %v1273 = vunpack.c.l.b16 %v385
  %v1274 = vunpack.c.l.b16 %v386
  %v1275 = vunpack.c.l.b16 %v387
  %v1276 = vunpack.c.l.b16 %v388
  %v1277 = vunpack.c.l.b16 %v389
  %v1278 = vunpack.c.l.b16 %v390
  %v1279 = vunpack.c.l.b16 %v391
  %v1280 = vunpack.c.l.b16 %v392
  %v1281 = vunpack.c.l.b16 %v393
  %v1282 = vunpack.c.l.b16 %v394
  %v1283 = vunpack.c.l.b16 %v395
  %v1284 = vunpack.c.l.b16 %v396
  %v1285 = vunpack.c.l.b16 %v397
  %v1286 = vunpack.c.l.b16 %v398
  %v1287 = vunpack.c.l.b16 %v399
  %v1288 = vunpack.c.l.b16 %v400
  %v1289 = vunpack.c.l.b16 %v401
  %v1290 = vunpack.c.l.b16 %v402
  %v1291 = vunpack.c.l.b16 %v403
  %v1292 = vunpack.c.l.b16 %v404
  %v1293 = vunpack.c.l.b16 %v405
  %v1294 = vunpack.c.l.b16 %v406
  %v1295 = vunpack.c.l.b16 %v407
  %v1296 = vunpack.c.l.b16 %v408
  %v1297 = vunpack.c.l.b16 %v409
  %v1298 = vunpack.c.l.b16 %v410
  %v1299 = vunpack.c.l.b16 %v411
  %v1300 = vunpack.c.l.b16 %v412
  %v1301 = vunpack.c.l.b16 %v413
  %v1302 = vunpack.c.l.b16 %v414
  %v1303 = vunpack.c.l.b16 %v415
  %v1304 = vunpack.c.l.b16 %v416
  %v1305 = vunpack.c.l.b16 %v417
  %v1306 = vunpack.c.l.b16 %v418
  %v1307 = vunpack.c.l.b16 %v419
  %v1308 = vunpack.c.l.b16 %v420
  %v1309 = vunpack.c.l.b16 %v421
  %v1310 = vunpack.c.l.b16 %v422
  %v1311 = vunpack.c.l.b16 %v423
  %v1312 = vunpack.c.l.b16 %v424
  %v1313 = vunpack.c.l.b16 %v425
  %v1314 = vunpack.c.l.b16 %v426
  %v1315 = vunpack.c.l.b16 %v427
  %v1316 = vunpack.c.l.b16 %v428
  %v1317 = vunpack.c.l.b16 %v429
  %v1318 = vunpack.c.l.b16 %v430
  %v1319 = vpack.c.b16 %v920, %v919
  %v1320 = vpack.c.b16 %v922, %v921
  %v1321 = vpack.c.b16 %v924, %v923
  %v1322 = vpack.c.b16 %v926, %v925
  %v1323 = vpack.c.b16 %v928, %v927
  %v1324 = vpack.c.b16 %v930, %v929
  %v1325 = vpack.c.b16 %v932, %v931
  %v1326 = vpack.c.b16 %v934, %v933
  %v1327 = vpack.c.b16 %v936, %v935
  %v1328 = vpack.c.b16 %v938, %v937
  %v1329 = vpack.c.b16 %v940, %v939
  %v1330 = vpack.c.b16 %v942, %v941
  %v1331 = vpack.c.b16 %v944, %v943
  %v1332 = vpack.c.b16 %v946, %v945
  %v1333 = vpack.c.b16 %v948, %v947
  %v1334 = vpack.c.b16 %v950, %v949
  %v1335 = vpack.c.b16 %v952, %v951
  %v1336 = vpack.c.b16 %v954, %v953
  %v1337 = vpack.c.b16 %v956, %v955
  %v1338 = vpack.c.b16 %v958, %v957
  %v1339 = vpack.c.b16 %v960, %v959
  %v1340 = vpack.c.b16 %v962, %v961
  %v1341 = vpack.c.b16 %v964, %v963
  %v1342 = vpack.c.b16 %v966, %v965
  %v1343 = vpack.c.b16 %v968, %v967
  %v1344 = vpack.c.b16 %v970, %v969
  %v1345 = vpack.c.b16 %v972, %v971
  %v1346 = vpack.c.b16 %v974, %v973
  %v1347 = vpack.c.b16 %v976, %v975
  %v1348 = vpack.c.b16 %v978, %v977
  %v1349 = vpack.c.b16 %v980, %v979
  %v1350 = vpack.c.b16 %v982, %v981
  %v1351 = vpack.c.b16 %v984, %v983
  %v1352 = vpack.c.b16 %v986, %v985
  %v1353 = vpack.c.b16 %v988, %v987
  %v1354 = vpack.c.b16 %v990, %v989
  %v1355 = vpack.c.b16 %v992, %v991
  %v1356 = vpack.c.b16 %v994, %v993
  %v1357 = vpack.c.b16 %v996, %v995
  %v1358 = vpack.c.b16 %v998, %v997
  %v1359 = vpack.c.b16 %v1000, %v999
  %v1360 = vpack.c.b16 %v1002, %v1001
  %v1361 = vpack.c.b16 %v1004, %v1003
  %v1362 = vpack.c.b16 %v1006, %v1005
  %v1363 = vpack.c.b16 %v1008, %v1007
  %v1364 = vpack.c.b16 %v1010, %v1009
  %v1365 = vpack.c.b16 %v1012, %v1011
  %v1366 = vpack.c.b16 %v1014, %v1013
  %v1367 = vpack.c.b16 %v1016, %v1015
  %v1368 = vpack.c.b16 %v1018, %v1017
  %v1369 = vpack.c.b16 %v1020, %v1019
  %v1370 = vpack.c.b16 %v1022, %v1021
  %v1371 = vpack.c.b16 %v1024, %v1023
  %v1372 = vpack.c.b16 %v1026, %v1025
  %v1373 = vpack.c.b16 %v1028, %v1027
  %v1374 = vpack.c.b16 %v1030, %v1029
  %v1375 = vpack.c.b16 %v1032, %v1031
  %v1376 = vpack.c.b16 %v1034, %v1033
  %v1377 = vpack.c.b16 %v1036, %v1035
  %v1378 = vpack.c.b16 %v1038, %v1037
  %v1379 = vpack.c.b16 %v1040, %v1039
  %v1380 = vpack.c.b16 %v1042, %v1041
  %v1381 = vpack.c.b16 %v1044, %v1043
  %v1382 = vpack.c.b16 %v1046, %v1045
  %v1383 = vpack.c.b16 %v1048, %v1047
  %v1384 = vpack.c.b16 %v1050, %v1049
  %v1385 = vpack.c.b16 %v1052, %v1051
  %v1386 = vpack.c.b16 %v1054, %v1053
  %v1387 = vpack.c.b16 %v1056, %v1055
  %v1388 = vpack.c.b16 %v1058, %v1057
  %v1389 = vpack.c.b16 %v1060, %v1059
  %v1390 = vpack.c.b16 %v1062, %v1061
  %v1391 = vpack.c.b16 %v1064, %v1063
  %v1392 = vpack.c.b16 %v1066, %v1065
  %v1393 = vpack.c.b16 %v1068, %v1067
  %v1394 = vpack.c.b16 %v1070, %v1069
  %v1395 = vpack.c.b16 %v1072, %v1071
  %v1396 = vpack.c.b16 %v1074, %v1073
  %v1397 = vpack.c.b16 %v1076, %v1075
  %v1398 = vpack.c.b16 %v1078, %v1077
  %v1399 = vpack.c.b16 %v1080, %v1079
  %v1400 = vpack.c.b16 %v1082, %v1081
  %v1401 = vpack.c.b16 %v1084, %v1083
  %v1402 = vpack.c.b16 %v1086, %v1085
  %v1403 = vpack.c.b16 %v1088, %v1087
  %v1404 = vpack.c.b16 %v1090, %v1089
  %v1405 = vpack.c.b16 %v1092, %v1091
  %v1406 = vpack.c.b16 %v1094, %v1093
  %v1407 = vpack.c.b16 %v1096, %v1095
  %v1408 = vpack.c.b16 %v1098, %v1097
  %v1409 = vpack.c.b16 %v1100, %v1099
  %v1410 = vpack.c.b16 %v1102, %v1101
  %v1411 = vpack.c.b16 %v1104, %v1103
  %v1412 = vpack.c.b16 %v1106, %v1105
  %v1413 = vpack.c.b16 %v1108, %v1107
  %v1414 = vpack.c.b16 %v1110, %v1109
  %v1415 = vpack.c.b16 %v1112, %v1111
  %v1416 = vpack.c.b16 %v1114, %v1113
  %v1417 = vpack.c.b16 %v1116, %v1115
  %v1418 = vpack.c.b16 %v1118, %v1117
  %v1419 = vpack.c.b16 %v1120, %v1119
  %v1420 = vpack.c.b16 %v1122, %v1121
  %v1421 = vpack.c.b16 %v1124, %v1123
  %v1422 = vpack.c.b16 %v1126, %v1125
  %v1423 = vpack.c.b16 %v1128, %v1127
  %v1424 = vpack.c.b16 %v1130, %v1129
  %v1425 = vpack.c.b16 %v1132, %v1131
  %v1426 = vpack.c.b16 %v1134, %v1133
  %v1427 = vpack.c.b16 %v1136, %v1135
  %v1428 = vpack.c.b16 %v1138, %v1137
  %v1429 = vpack.c.b16 %v1140, %v1139
  %v1430 = vpack.c.b16 %v1142, %v1141
  %v1431 = vpack.c.b16 %v1144, %v1143
  %v1432 = vpack.c.b16 %v1146, %v1145
  %v1433 = vpack.c.b16 %v1148, %v1147
  %v1434 = vpack.c.b16 %v1150, %v1149
  %v1435 = vpack.c.b16 %v1152, %v1151
  %v1436 = vpack.c.b16 %v1154, %v1153
  %v1437 = vpack.c.b16 %v1156, %v1155
  %v1438 = vpack.c.b16 %v1158, %v1157
  %v1439 = vpack.c.b16 %v1160, %v1159
  %v1440 = vpack.c.b16 %v1162, %v1161
  %v1441 = vpack.c.b16 %v1164, %v1163
  %v1442 = vpack.c.b16 %v1166, %v1165
  %v1443 = vpack.c.b16 %v1168, %v1167
  %v1444 = vpack.c.b16 %v1170, %v1169
  %v1445 = vpack.c.b16 %v1172, %v1171
  %v1446 = vpack.c.b16 %v1174, %v1173
  %v1447 = vpack.c.b16 %v1176, %v1175
  %v1448 = vpack.c.b16 %v1178, %v1177
  %v1449 = vpack.c.b16 %v1180, %v1179
  %v1450 = vpack.c.b16 %v1182, %v1181
  %v1451 = vpack.c.b16 %v1184, %v1183
  %v1452 = vpack.c.b16 %v1186, %v1185
  %v1453 = vpack.c.b16 %v1188, %v1187
  %v1454 = vpack.c.b16 %v1190, %v1189
  %v1455 = vpack.c.b16 %v1192, %v1191
  %v1456 = vpack.c.b16 %v1194, %v1193
  %v1457 = vpack.c.b16 %v1196, %v1195
  %v1458 = vpack.c.b16 %v1198, %v1197
  %v1459 = vpack.c.b16 %v1200, %v1199
  %v1460 = vpack.c.b16 %v1202, %v1201
  %v1461 = vpack.c.b16 %v1204, %v1203
  %v1462 = vpack.c.b16 %v1206, %v1205
  %v1463 = vpack.c.b16 %v1208, %v1207
  %v1464 = vpack.c.b16 %v1210, %v1209
  %v1465 = vpack.c.b16 %v1212, %v1211
  %v1466 = vpack.c.b16 %v1214, %v1213
  %v1467 = vpack.c.b16 %v1216, %v1215
  %v1468 = vpack.c.b16 %v1218, %v1217
  %v1469 = vpack.c.b16 %v1220, %v1219
  %v1470 = vpack.c.b16 %v1222, %v1221
  %v1471 = vpack.c.b16 %v1224, %v1223
  %v1472 = vpack.c.b16 %v1226, %v1225
  %v1473 = vpack.c.b16 %v1228, %v1227
  %v1474 = vpack.c.b16 %v1230, %v1229
  %v1475 = vpack.c.b16 %v1232, %v1231
  %v1476 = vpack.c.b16 %v1234, %v1233
  %v1477 = vpack.c.b16 %v1236, %v1235
  %v1478 = vpack.c.b16 %v1238, %v1237
  %v1479 = vpack.c.b16 %v1240, %v1239
  %v1480 = vpack.c.b16 %v1242, %v1241
  %v1481 = vpack.c.b16 %v1244, %v1243
  %v1482 = vpack.c.b16 %v1246, %v1245
  %v1483 = vpack.c.b16 %v1248, %v1247
  %v1484 = vpack.c.b16 %v1250, %v1249
  %v1485 = vpack.c.b16 %v1252, %v1251
  %v1486 = vpack.c.b16 %v1254, %v1253
  %v1487 = vpack.c.b16 %v1256, %v1255
  %v1488 = vpack.c.b16 %v1258, %v1257
  %v1489 = vpack.c.b16 %v1260, %v1259
  %v1490 = vpack.c.b16 %v1262, %v1261
  %v1491 = vpack.c.b16 %v1264, %v1263
  %v1492 = vpack.c.b16 %v1266, %v1265
  %v1493 = vpack.c.b16 %v1268, %v1267
  %v1494 = vpack.c.b16 %v1270, %v1269
  %v1495 = vpack.c.b16 %v1272, %v1271
  %v1496 = vpack.c.b16 %v1274, %v1273
  %v1497 = vpack.c.b16 %v1276, %v1275
  %v1498 = vpack.c.b16 %v1278, %v1277
  %v1499 = vpack.c.b16 %v1280, %v1279
  %v1500 = vpack.c.b16 %v1282, %v1281
  %v1501 = vpack.c.b16 %v1284, %v1283
  %v1502 = vpack.c.b16 %v1286, %v1285
  %v1503 = vpack.c.b16 %v1288, %v1287
  %v1504 = vpack.c.b16 %v1290, %v1289
  %v1505 = vpack.c.b16 %v1292, %v1291
  %v1506 = vpack.c.b16 %v1294, %v1293
  %v1507 = vpack.c.b16 %v1296, %v1295
  %v1508 = vpack.c.b16 %v1298, %v1297
  %v1509 = vpack.c.b16 %v1300, %v1299
  %v1510 = vpack.c.b16 %v1302, %v1301
  %v1511 = vpack.c.b16 %v1304, %v1303
  %v1512 = vpack.c.b16 %v1306, %v1305
  %v1513 = vpack.c.b16 %v1308, %v1307
  %v1514 = vpack.c.b16 %v1310, %v1309
  %v1515 = vpack.c.b16 %v1312, %v1311
  %v1516 = vpack.c.b16 %v1314, %v1313
  %v1517 = vpack.c.b16 %v1316, %v1315
  %v1518 = vpack.c.b16 %v1318, %v1317
  %1719 = vmatprep.subr.bf16.mxu0 0
  %1720 = vmatpush1.bf16.msra.mxu0 %v1326
  %1721 = vmatprep.subr.bf16.mxu0 0
  %1722 = vmatpush1.bf16.msra.mxu0 %v1325
  %1723 = vmatprep.subr.bf16.mxu0 0
  %1724 = vmatpush1.bf16.msra.mxu0 %v1324
  %1725 = vmatprep.subr.bf16.mxu0 0
  %1726 = vmatpush1.bf16.msra.mxu0 %v1323
  %1727 = vmatprep.subr.bf16.mxu0 0
  %1728 = vmatpush1.bf16.msra.mxu0 %v1322
  %1729 = vmatprep.subr.bf16.mxu0 0
  %1730 = vmatpush1.bf16.msra.mxu0 %v1321
  %1731 = vmatprep.subr.bf16.mxu0 0
  %1732 = vmatpush1.bf16.msra.mxu0 %v1320
  %1733 = vmatprep.subr.bf16.mxu0 0
  %1734 = vmatpush1.bf16.msra.mxu0 %v1319
  %1735 = vmatprep.subr.bf16.mxu0 0
  %1736 = vmatpush2.bf16.msra.mxu0 %v1334
  %1737 = vmatprep.subr.bf16.mxu0 0
  %1738 = vmatpush2.bf16.msra.mxu0 %v1333
  %1739 = vmatprep.subr.bf16.mxu0 0
  %1740 = vmatpush2.bf16.msra.mxu0 %v1332
  %1741 = vmatprep.subr.bf16.mxu0 0
  %1742 = vmatpush2.bf16.msra.mxu0 %v1331
  %1743 = vmatprep.subr.bf16.mxu0 0
  %1744 = vmatpush2.bf16.msra.mxu0 %v1330
  %1745 = vmatprep.subr.bf16.mxu0 0
  %1746 = vmatpush2.bf16.msra.mxu0 %v1329
  %1747 = vmatprep.subr.bf16.mxu0 0
  %1748 = vmatpush2.bf16.msra.mxu0 %v1328
  %1749 = vmatprep.subr.bf16.mxu0 0
  %1750 = vmatpush2.bf16.msra.mxu0 %v1327
  %1751 = vmatprep.mubr.bf16.mxu0 %v470
  %1752 = vmatmul.mubr.bf16.gmra.mxu0 %v469
  %v1753 = vpop.f32.mrf.mxu0
  %v1754 = vadd.f32 0.0, %v1753
  %v1755 = vpop.f32.mrf.mxu0
  %v1756 = vpop.f32.mrf.mxu0
  %v1757 = vpop.f32.mrf.mxu0
  %1758 = vdwg.mxu0
  %1759 = vmatprep.subr.bf16.mxu0 0
  %1760 = vmatpush1.bf16.msra.mxu0 %v1342
  %1761 = vmatprep.subr.bf16.mxu0 0
  %1762 = vmatpush1.bf16.msra.mxu0 %v1341
  %1763 = vmatprep.subr.bf16.mxu0 0
  %1764 = vmatpush1.bf16.msra.mxu0 %v1340
  %1765 = vmatprep.subr.bf16.mxu0 0
  %1766 = vmatpush1.bf16.msra.mxu0 %v1339
  %1767 = vmatprep.subr.bf16.mxu0 0
  %1768 = vmatpush1.bf16.msra.mxu0 %v1338
  %1769 = vmatprep.subr.bf16.mxu0 0
  %1770 = vmatpush1.bf16.msra.mxu0 %v1337
  %1771 = vmatprep.subr.bf16.mxu0 0
  %1772 = vmatpush1.bf16.msra.mxu0 %v1336
  %1773 = vmatprep.subr.bf16.mxu0 0
  %1774 = vmatpush1.bf16.msra.mxu0 %v1335
  %1775 = vmatprep.subr.bf16.mxu0 0
  %1776 = vmatpush2.bf16.msra.mxu0 %v1350
  %1777 = vmatprep.subr.bf16.mxu0 0
  %1778 = vmatpush2.bf16.msra.mxu0 %v1349
  %1779 = vmatprep.subr.bf16.mxu0 0
  %1780 = vmatpush2.bf16.msra.mxu0 %v1348
  %1781 = vmatprep.subr.bf16.mxu0 0
  %1782 = vmatpush2.bf16.msra.mxu0 %v1347
  %1783 = vmatprep.subr.bf16.mxu0 0
  %1784 = vmatpush2.bf16.msra.mxu0 %v1346
  %1785 = vmatprep.subr.bf16.mxu0 0
  %1786 = vmatpush2.bf16.msra.mxu0 %v1345
  %1787 = vmatprep.subr.bf16.mxu0 0
  %1788 = vmatpush2.bf16.msra.mxu0 %v1344
  %1789 = vmatprep.subr.bf16.mxu0 0
  %1790 = vmatpush2.bf16.msra.mxu0 %v1343
  %1791 = vmatprep.mubr.bf16.mxu0 %v472
  %1792 = vmatmul.mubr.bf16.gmra.mxu0 %v471
  %v1793 = vpop.f32.mrf.mxu0
  %v1794 = vadd.f32 %v1754, %v1793
  %v1795 = vpop.f32.mrf.mxu0
  %v1796 = vpop.f32.mrf.mxu0
  %v1797 = vpop.f32.mrf.mxu0
  %1798 = vdwg.mxu0
  %1799 = vmatprep.subr.bf16.mxu0 0
  %1800 = vmatpush1.bf16.msra.mxu0 %v1358
  %1801 = vmatprep.subr.bf16.mxu0 0
  %1802 = vmatpush1.bf16.msra.mxu0 %v1357
  %1803 = vmatprep.subr.bf16.mxu0 0
  %1804 = vmatpush1.bf16.msra.mxu0 %v1356
  %1805 = vmatprep.subr.bf16.mxu0 0
  %1806 = vmatpush1.bf16.msra.mxu0 %v1355
  %1807 = vmatprep.subr.bf16.mxu0 0
  %1808 = vmatpush1.bf16.msra.mxu0 %v1354
  %1809 = vmatprep.subr.bf16.mxu0 0
  %1810 = vmatpush1.bf16.msra.mxu0 %v1353
  %1811 = vmatprep.subr.bf16.mxu0 0
  %1812 = vmatpush1.bf16.msra.mxu0 %v1352
  %1813 = vmatprep.subr.bf16.mxu0 0
  %1814 = vmatpush1.bf16.msra.mxu0 %v1351
  %1815 = vmatprep.subr.bf16.mxu0 0
  %1816 = vmatpush2.bf16.msra.mxu0 %v1366
  %1817 = vmatprep.subr.bf16.mxu0 0
  %1818 = vmatpush2.bf16.msra.mxu0 %v1365
  %1819 = vmatprep.subr.bf16.mxu0 0
  %1820 = vmatpush2.bf16.msra.mxu0 %v1364
  %1821 = vmatprep.subr.bf16.mxu0 0
  %1822 = vmatpush2.bf16.msra.mxu0 %v1363
  %1823 = vmatprep.subr.bf16.mxu0 0
  %1824 = vmatpush2.bf16.msra.mxu0 %v1362
  %1825 = vmatprep.subr.bf16.mxu0 0
  %1826 = vmatpush2.bf16.msra.mxu0 %v1361
  %1827 = vmatprep.subr.bf16.mxu0 0
  %1828 = vmatpush2.bf16.msra.mxu0 %v1360
  %1829 = vmatprep.subr.bf16.mxu0 0
  %1830 = vmatpush2.bf16.msra.mxu0 %v1359
  %1831 = vmatprep.mubr.bf16.mxu0 %v474
  %1832 = vmatmul.mubr.bf16.gmra.mxu0 %v473
  %v1833 = vpop.f32.mrf.mxu0
  %v1834 = vadd.f32 %v1794, %v1833
  %v1835 = vpop.f32.mrf.mxu0
  %v1836 = vpop.f32.mrf.mxu0
  %v1837 = vpop.f32.mrf.mxu0
  %1838 = vdwg.mxu0
  %1839 = vmatprep.subr.bf16.mxu0 0
  %1840 = vmatpush1.bf16.msra.mxu0 %v1374
  %1841 = vmatprep.subr.bf16.mxu0 0
  %1842 = vmatpush1.bf16.msra.mxu0 %v1373
  %1843 = vmatprep.subr.bf16.mxu0 0
  %1844 = vmatpush1.bf16.msra.mxu0 %v1372
  %1845 = vmatprep.subr.bf16.mxu0 0
  %1846 = vmatpush1.bf16.msra.mxu0 %v1371
  %1847 = vmatprep.subr.bf16.mxu0 0
  %1848 = vmatpush1.bf16.msra.mxu0 %v1370
  %1849 = vmatprep.subr.bf16.mxu0 0
  %1850 = vmatpush1.bf16.msra.mxu0 %v1369
  %1851 = vmatprep.subr.bf16.mxu0 0
  %1852 = vmatpush1.bf16.msra.mxu0 %v1368
  %1853 = vmatprep.subr.bf16.mxu0 0
  %1854 = vmatpush1.bf16.msra.mxu0 %v1367
  %1855 = vmatprep.subr.bf16.mxu0 0
  %1856 = vmatpush2.bf16.msra.mxu0 %v1382
  %1857 = vmatprep.subr.bf16.mxu0 0
  %1858 = vmatpush2.bf16.msra.mxu0 %v1381
  %1859 = vmatprep.subr.bf16.mxu0 0
  %1860 = vmatpush2.bf16.msra.mxu0 %v1380
  %1861 = vmatprep.subr.bf16.mxu0 0
  %1862 = vmatpush2.bf16.msra.mxu0 %v1379
  %1863 = vmatprep.subr.bf16.mxu0 0
  %1864 = vmatpush2.bf16.msra.mxu0 %v1378
  %1865 = vmatprep.subr.bf16.mxu0 0
  %1866 = vmatpush2.bf16.msra.mxu0 %v1377
  %1867 = vmatprep.subr.bf16.mxu0 0
  %1868 = vmatpush2.bf16.msra.mxu0 %v1376
  %1869 = vmatprep.subr.bf16.mxu0 0
  %1870 = vmatpush2.bf16.msra.mxu0 %v1375
  %1871 = vmatprep.mubr.bf16.mxu0 %v476
  %1872 = vmatmul.mubr.bf16.gmra.mxu0 %v475
  %v1873 = vpop.f32.mrf.mxu0
  %v1874 = vadd.f32 %v1834, %v1873
  %v1875 = vpop.f32.mrf.mxu0
  %v1876 = vpop.f32.mrf.mxu0
  %v1877 = vpop.f32.mrf.mxu0
  %1878 = vdwg.mxu0
  %1879 = vmatprep.subr.bf16.mxu0 0
  %1880 = vmatpush1.bf16.msra.mxu0 %v1390
  %1881 = vmatprep.subr.bf16.mxu0 0
  %1882 = vmatpush1.bf16.msra.mxu0 %v1389
  %1883 = vmatprep.subr.bf16.mxu0 0
  %1884 = vmatpush1.bf16.msra.mxu0 %v1388
  %1885 = vmatprep.subr.bf16.mxu0 0
  %1886 = vmatpush1.bf16.msra.mxu0 %v1387
  %1887 = vmatprep.subr.bf16.mxu0 0
  %1888 = vmatpush1.bf16.msra.mxu0 %v1386
  %1889 = vmatprep.subr.bf16.mxu0 0
  %1890 = vmatpush1.bf16.msra.mxu0 %v1385
  %1891 = vmatprep.subr.bf16.mxu0 0
  %1892 = vmatpush1.bf16.msra.mxu0 %v1384
  %1893 = vmatprep.subr.bf16.mxu0 0
  %1894 = vmatpush1.bf16.msra.mxu0 %v1383
  %1895 = vmatprep.subr.bf16.mxu0 0
  %1896 = vmatpush2.bf16.msra.mxu0 %v1398
  %1897 = vmatprep.subr.bf16.mxu0 0
  %1898 = vmatpush2.bf16.msra.mxu0 %v1397
  %1899 = vmatprep.subr.bf16.mxu0 0
  %1900 = vmatpush2.bf16.msra.mxu0 %v1396
  %1901 = vmatprep.subr.bf16.mxu0 0
  %1902 = vmatpush2.bf16.msra.mxu0 %v1395
  %1903 = vmatprep.subr.bf16.mxu0 0
  %1904 = vmatpush2.bf16.msra.mxu0 %v1394
  %1905 = vmatprep.subr.bf16.mxu0 0
  %1906 = vmatpush2.bf16.msra.mxu0 %v1393
  %1907 = vmatprep.subr.bf16.mxu0 0
  %1908 = vmatpush2.bf16.msra.mxu0 %v1392
  %1909 = vmatprep.subr.bf16.mxu0 0
  %1910 = vmatpush2.bf16.msra.mxu0 %v1391
  %1911 = vmatprep.mubr.bf16.mxu0 %v478
  %1912 = vmatmul.mubr.bf16.gmra.mxu0 %v477
  %v1913 = vpop.f32.mrf.mxu0
  %v1914 = vadd.f32 %v1874, %v1913
  %v1915 = vpop.f32.mrf.mxu0
  %v1916 = vpop.f32.mrf.mxu0
  %v1917 = vpop.f32.mrf.mxu0
  %1918 = vdwg.mxu0
  %1919 = vmatprep.subr.bf16.mxu0 0
  %1920 = vmatpush1.bf16.msra.mxu0 %v1406
  %1921 = vmatprep.subr.bf16.mxu0 0
  %1922 = vmatpush1.bf16.msra.mxu0 %v1405
  %1923 = vmatprep.subr.bf16.mxu0 0
  %1924 = vmatpush1.bf16.msra.mxu0 %v1404
  %1925 = vmatprep.subr.bf16.mxu0 0
  %1926 = vmatpush1.bf16.msra.mxu0 %v1403
  %1927 = vmatprep.subr.bf16.mxu0 0
  %1928 = vmatpush1.bf16.msra.mxu0 %v1402
  %1929 = vmatprep.subr.bf16.mxu0 0
  %1930 = vmatpush1.bf16.msra.mxu0 %v1401
  %1931 = vmatprep.subr.bf16.mxu0 0
  %1932 = vmatpush1.bf16.msra.mxu0 %v1400
  %1933 = vmatprep.subr.bf16.mxu0 0
  %1934 = vmatpush1.bf16.msra.mxu0 %v1399
  %1935 = vmatprep.subr.bf16.mxu0 0
  %1936 = vmatpush2.bf16.msra.mxu0 %v1414
  %1937 = vmatprep.subr.bf16.mxu0 0
  %1938 = vmatpush2.bf16.msra.mxu0 %v1413
  %1939 = vmatprep.subr.bf16.mxu0 0
  %1940 = vmatpush2.bf16.msra.mxu0 %v1412
  %1941 = vmatprep.subr.bf16.mxu0 0
  %1942 = vmatpush2.bf16.msra.mxu0 %v1411
  %1943 = vmatprep.subr.bf16.mxu0 0
  %1944 = vmatpush2.bf16.msra.mxu0 %v1410
  %1945 = vmatprep.subr.bf16.mxu0 0
  %1946 = vmatpush2.bf16.msra.mxu0 %v1409
  %1947 = vmatprep.subr.bf16.mxu0 0
  %1948 = vmatpush2.bf16.msra.mxu0 %v1408
  %1949 = vmatprep.subr.bf16.mxu0 0
  %1950 = vmatpush2.bf16.msra.mxu0 %v1407
  %1951 = vmatprep.mubr.bf16.mxu0 %v480
  %1952 = vmatmul.mubr.bf16.gmra.mxu0 %v479
  %v1953 = vpop.f32.mrf.mxu0
  %v1954 = vadd.f32 %v1914, %v1953
  %v1955 = vpop.f32.mrf.mxu0
  %v1956 = vpop.f32.mrf.mxu0
  %v1957 = vpop.f32.mrf.mxu0
  %1958 = vdwg.mxu0
  %1959 = vmatprep.subr.bf16.mxu0 0
  %1960 = vmatpush1.bf16.msra.mxu0 %v1422
  %1961 = vmatprep.subr.bf16.mxu0 0
  %1962 = vmatpush1.bf16.msra.mxu0 %v1421
  %1963 = vmatprep.subr.bf16.mxu0 0
  %1964 = vmatpush1.bf16.msra.mxu0 %v1420
  %1965 = vmatprep.subr.bf16.mxu0 0
  %1966 = vmatpush1.bf16.msra.mxu0 %v1419
  %1967 = vmatprep.subr.bf16.mxu0 0
  %1968 = vmatpush1.bf16.msra.mxu0 %v1418
  %1969 = vmatprep.subr.bf16.mxu0 0
  %1970 = vmatpush1.bf16.msra.mxu0 %v1417
  %1971 = vmatprep.subr.bf16.mxu0 0
  %1972 = vmatpush1.bf16.msra.mxu0 %v1416
  %1973 = vmatprep.subr.bf16.mxu0 0
  %1974 = vmatpush1.bf16.msra.mxu0 %v1415
  %1975 = vmatprep.subr.bf16.mxu0 0
  %1976 = vmatpush2.bf16.msra.mxu0 %v1430
  %1977 = vmatprep.subr.bf16.mxu0 0
  %1978 = vmatpush2.bf16.msra.mxu0 %v1429
  %1979 = vmatprep.subr.bf16.mxu0 0
  %1980 = vmatpush2.bf16.msra.mxu0 %v1428
  %1981 = vmatprep.subr.bf16.mxu0 0
  %1982 = vmatpush2.bf16.msra.mxu0 %v1427
  %1983 = vmatprep.subr.bf16.mxu0 0
  %1984 = vmatpush2.bf16.msra.mxu0 %v1426
  %1985 = vmatprep.subr.bf16.mxu0 0
  %1986 = vmatpush2.bf16.msra.mxu0 %v1425
  %1987 = vmatprep.subr.bf16.mxu0 0
  %1988 = vmatpush2.bf16.msra.mxu0 %v1424
  %1989 = vmatprep.subr.bf16.mxu0 0
  %1990 = vmatpush2.bf16.msra.mxu0 %v1423
  %1991 = vmatprep.mubr.bf16.mxu0 %v482
  %1992 = vmatmul.mubr.bf16.gmra.mxu0 %v481
  %v1993 = vpop.f32.mrf.mxu0
  %v1994 = vadd.f32 %v1954, %v1993
  %v1995 = vpop.f32.mrf.mxu0
  %v1996 = vpop.f32.mrf.mxu0
  %v1997 = vpop.f32.mrf.mxu0
  %1998 = vdwg.mxu0
  %1999 = vmatprep.subr.bf16.mxu0 0
  %2000 = vmatpush1.bf16.msra.mxu0 %v1438
  %2001 = vmatprep.subr.bf16.mxu0 0
  %2002 = vmatpush1.bf16.msra.mxu0 %v1437
  %2003 = vmatprep.subr.bf16.mxu0 0
  %2004 = vmatpush1.bf16.msra.mxu0 %v1436
  %2005 = vmatprep.subr.bf16.mxu0 0
  %2006 = vmatpush1.bf16.msra.mxu0 %v1435
  %2007 = vmatprep.subr.bf16.mxu0 0
  %2008 = vmatpush1.bf16.msra.mxu0 %v1434
  %2009 = vmatprep.subr.bf16.mxu0 0
  %2010 = vmatpush1.bf16.msra.mxu0 %v1433
  %2011 = vmatprep.subr.bf16.mxu0 0
  %2012 = vmatpush1.bf16.msra.mxu0 %v1432
  %2013 = vmatprep.subr.bf16.mxu0 0
  %2014 = vmatpush1.bf16.msra.mxu0 %v1431
  %2015 = vmatprep.subr.bf16.mxu0 0
  %2016 = vmatpush2.bf16.msra.mxu0 %v1446
  %2017 = vmatprep.subr.bf16.mxu0 0
  %2018 = vmatpush2.bf16.msra.mxu0 %v1445
  %2019 = vmatprep.subr.bf16.mxu0 0
  %2020 = vmatpush2.bf16.msra.mxu0 %v1444
  %2021 = vmatprep.subr.bf16.mxu0 0
  %2022 = vmatpush2.bf16.msra.mxu0 %v1443
  %2023 = vmatprep.subr.bf16.mxu0 0
  %2024 = vmatpush2.bf16.msra.mxu0 %v1442
  %2025 = vmatprep.subr.bf16.mxu0 0
  %2026 = vmatpush2.bf16.msra.mxu0 %v1441
  %2027 = vmatprep.subr.bf16.mxu0 0
  %2028 = vmatpush2.bf16.msra.mxu0 %v1440
  %2029 = vmatprep.subr.bf16.mxu0 0
  %2030 = vmatpush2.bf16.msra.mxu0 %v1439
  %2031 = vmatprep.mubr.bf16.mxu0 %v484
  %2032 = vmatmul.mubr.bf16.gmra.mxu0 %v483
  %v2033 = vpop.f32.mrf.mxu0
  %v2034 = vadd.f32 %v1994, %v2033
  %v2035 = vpop.f32.mrf.mxu0
  %v2036 = vpop.f32.mrf.mxu0
  %v2037 = vpop.f32.mrf.mxu0
  %2038 = vdwg.mxu0
  %2039 = vmatprep.subr.bf16.mxu0 0
  %2040 = vmatpush1.bf16.msra.mxu0 %v1454
  %2041 = vmatprep.subr.bf16.mxu0 0
  %2042 = vmatpush1.bf16.msra.mxu0 %v1453
  %2043 = vmatprep.subr.bf16.mxu0 0
  %2044 = vmatpush1.bf16.msra.mxu0 %v1452
  %2045 = vmatprep.subr.bf16.mxu0 0
  %2046 = vmatpush1.bf16.msra.mxu0 %v1451
  %2047 = vmatprep.subr.bf16.mxu0 0
  %2048 = vmatpush1.bf16.msra.mxu0 %v1450
  %2049 = vmatprep.subr.bf16.mxu0 0
  %2050 = vmatpush1.bf16.msra.mxu0 %v1449
  %2051 = vmatprep.subr.bf16.mxu0 0
  %2052 = vmatpush1.bf16.msra.mxu0 %v1448
  %2053 = vmatprep.subr.bf16.mxu0 0
  %2054 = vmatpush1.bf16.msra.mxu0 %v1447
  %2055 = vmatprep.subr.bf16.mxu0 0
  %2056 = vmatpush2.bf16.msra.mxu0 %v1462
  %2057 = vmatprep.subr.bf16.mxu0 0
  %2058 = vmatpush2.bf16.msra.mxu0 %v1461
  %2059 = vmatprep.subr.bf16.mxu0 0
  %2060 = vmatpush2.bf16.msra.mxu0 %v1460
  %2061 = vmatprep.subr.bf16.mxu0 0
  %2062 = vmatpush2.bf16.msra.mxu0 %v1459
  %2063 = vmatprep.subr.bf16.mxu0 0
  %2064 = vmatpush2.bf16.msra.mxu0 %v1458
  %2065 = vmatprep.subr.bf16.mxu0 0
  %2066 = vmatpush2.bf16.msra.mxu0 %v1457
  %2067 = vmatprep.subr.bf16.mxu0 0
  %2068 = vmatpush2.bf16.msra.mxu0 %v1456
  %2069 = vmatprep.subr.bf16.mxu0 0
  %2070 = vmatpush2.bf16.msra.mxu0 %v1455
  %2071 = vmatprep.mubr.bf16.mxu0 %v486
  %2072 = vmatmul.mubr.bf16.gmra.mxu0 %v485
  %v2073 = vpop.f32.mrf.mxu0
  %v2074 = vadd.f32 %v2034, %v2073
  %v2075 = vpop.f32.mrf.mxu0
  %v2076 = vpop.f32.mrf.mxu0
  %v2077 = vpop.f32.mrf.mxu0
  %2078 = vdwg.mxu0
  %2079 = vmatprep.subr.bf16.mxu0 0
  %2080 = vmatpush1.bf16.msra.mxu0 %v1470
  %2081 = vmatprep.subr.bf16.mxu0 0
  %2082 = vmatpush1.bf16.msra.mxu0 %v1469
  %2083 = vmatprep.subr.bf16.mxu0 0
  %2084 = vmatpush1.bf16.msra.mxu0 %v1468
  %2085 = vmatprep.subr.bf16.mxu0 0
  %2086 = vmatpush1.bf16.msra.mxu0 %v1467
  %2087 = vmatprep.subr.bf16.mxu0 0
  %2088 = vmatpush1.bf16.msra.mxu0 %v1466
  %2089 = vmatprep.subr.bf16.mxu0 0
  %2090 = vmatpush1.bf16.msra.mxu0 %v1465
  %2091 = vmatprep.subr.bf16.mxu0 0
  %2092 = vmatpush1.bf16.msra.mxu0 %v1464
  %2093 = vmatprep.subr.bf16.mxu0 0
  %2094 = vmatpush1.bf16.msra.mxu0 %v1463
  %2095 = vmatprep.subr.bf16.mxu0 0
  %2096 = vmatpush2.bf16.msra.mxu0 %v1478
  %2097 = vmatprep.subr.bf16.mxu0 0
  %2098 = vmatpush2.bf16.msra.mxu0 %v1477
  %2099 = vmatprep.subr.bf16.mxu0 0
  %2100 = vmatpush2.bf16.msra.mxu0 %v1476
  %2101 = vmatprep.subr.bf16.mxu0 0
  %2102 = vmatpush2.bf16.msra.mxu0 %v1475
  %2103 = vmatprep.subr.bf16.mxu0 0
  %2104 = vmatpush2.bf16.msra.mxu0 %v1474
  %2105 = vmatprep.subr.bf16.mxu0 0
  %2106 = vmatpush2.bf16.msra.mxu0 %v1473
  %2107 = vmatprep.subr.bf16.mxu0 0
  %2108 = vmatpush2.bf16.msra.mxu0 %v1472
  %2109 = vmatprep.subr.bf16.mxu0 0
  %2110 = vmatpush2.bf16.msra.mxu0 %v1471
  %2111 = vmatprep.mubr.bf16.mxu0 %v488
  %2112 = vmatmul.mubr.bf16.gmra.mxu0 %v487
  %v2113 = vpop.f32.mrf.mxu0
  %v2114 = vadd.f32 %v2074, %v2113
  %v2115 = vpop.f32.mrf.mxu0
  %v2116 = vpop.f32.mrf.mxu0
  %v2117 = vpop.f32.mrf.mxu0
  %2118 = vdwg.mxu0
  %2119 = vmatprep.subr.bf16.mxu0 0
  %2120 = vmatpush1.bf16.msra.mxu0 %v1486
  %2121 = vmatprep.subr.bf16.mxu0 0
  %2122 = vmatpush1.bf16.msra.mxu0 %v1485
  %2123 = vmatprep.subr.bf16.mxu0 0
  %2124 = vmatpush1.bf16.msra.mxu0 %v1484
  %2125 = vmatprep.subr.bf16.mxu0 0
  %2126 = vmatpush1.bf16.msra.mxu0 %v1483
  %2127 = vmatprep.subr.bf16.mxu0 0
  %2128 = vmatpush1.bf16.msra.mxu0 %v1482
  %2129 = vmatprep.subr.bf16.mxu0 0
  %2130 = vmatpush1.bf16.msra.mxu0 %v1481
  %2131 = vmatprep.subr.bf16.mxu0 0
  %2132 = vmatpush1.bf16.msra.mxu0 %v1480
  %2133 = vmatprep.subr.bf16.mxu0 0
  %2134 = vmatpush1.bf16.msra.mxu0 %v1479
  %2135 = vmatprep.subr.bf16.mxu0 0
  %2136 = vmatpush2.bf16.msra.mxu0 %v1494
  %2137 = vmatprep.subr.bf16.mxu0 0
  %2138 = vmatpush2.bf16.msra.mxu0 %v1493
  %2139 = vmatprep.subr.bf16.mxu0 0
  %2140 = vmatpush2.bf16.msra.mxu0 %v1492
  %2141 = vmatprep.subr.bf16.mxu0 0
  %2142 = vmatpush2.bf16.msra.mxu0 %v1491
  %2143 = vmatprep.subr.bf16.mxu0 0
  %2144 = vmatpush2.bf16.msra.mxu0 %v1490
  %2145 = vmatprep.subr.bf16.mxu0 0
  %2146 = vmatpush2.bf16.msra.mxu0 %v1489
  %2147 = vmatprep.subr.bf16.mxu0 0
  %2148 = vmatpush2.bf16.msra.mxu0 %v1488
  %2149 = vmatprep.subr.bf16.mxu0 0
  %2150 = vmatpush2.bf16.msra.mxu0 %v1487
  %2151 = vmatprep.mubr.bf16.mxu0 %v490
  %2152 = vmatmul.mubr.bf16.gmra.mxu0 %v489
  %v2153 = vpop.f32.mrf.mxu0
  %v2154 = vadd.f32 %v2114, %v2153
  %v2155 = vpop.f32.mrf.mxu0
  %v2156 = vpop.f32.mrf.mxu0
  %v2157 = vpop.f32.mrf.mxu0
  %2158 = vdwg.mxu0
  %2159 = vmatprep.subr.bf16.mxu0 0
  %2160 = vmatpush1.bf16.msra.mxu0 %v1502
  %2161 = vmatprep.subr.bf16.mxu0 0
  %2162 = vmatpush1.bf16.msra.mxu0 %v1501
  %2163 = vmatprep.subr.bf16.mxu0 0
  %2164 = vmatpush1.bf16.msra.mxu0 %v1500
  %2165 = vmatprep.subr.bf16.mxu0 0
  %2166 = vmatpush1.bf16.msra.mxu0 %v1499
  %2167 = vmatprep.subr.bf16.mxu0 0
  %2168 = vmatpush1.bf16.msra.mxu0 %v1498
  %2169 = vmatprep.subr.bf16.mxu0 0
  %2170 = vmatpush1.bf16.msra.mxu0 %v1497
  %2171 = vmatprep.subr.bf16.mxu0 0
  %2172 = vmatpush1.bf16.msra.mxu0 %v1496
  %2173 = vmatprep.subr.bf16.mxu0 0
  %2174 = vmatpush1.bf16.msra.mxu0 %v1495
  %2175 = vmatprep.subr.bf16.mxu0 0
  %2176 = vmatpush2.bf16.msra.mxu0 %v1510
  %2177 = vmatprep.subr.bf16.mxu0 0
  %2178 = vmatpush2.bf16.msra.mxu0 %v1509
  %2179 = vmatprep.subr.bf16.mxu0 0
  %2180 = vmatpush2.bf16.msra.mxu0 %v1508
  %2181 = vmatprep.subr.bf16.mxu0 0
  %2182 = vmatpush2.bf16.msra.mxu0 %v1507
  %2183 = vmatprep.subr.bf16.mxu0 0
  %2184 = vmatpush2.bf16.msra.mxu0 %v1506
  %2185 = vmatprep.subr.bf16.mxu0 0
  %2186 = vmatpush2.bf16.msra.mxu0 %v1505
  %2187 = vmatprep.subr.bf16.mxu0 0
  %2188 = vmatpush2.bf16.msra.mxu0 %v1504
  %2189 = vmatprep.subr.bf16.mxu0 0
  %2190 = vmatpush2.bf16.msra.mxu0 %v1503
  %2191 = vmatprep.mubr.bf16.mxu0 %v492
  %2192 = vmatmul.mubr.bf16.gmra.mxu0 %v491
  %v2193 = vpop.f32.mrf.mxu0
  %v2194 = vadd.f32 %v2154, %v2193
  %v2195 = vpop.f32.mrf.mxu0
  %v2196 = vpop.f32.mrf.mxu0
  %v2197 = vpop.f32.mrf.mxu0
  %2198 = vdwg.mxu0
  %2199 = vmatprep.subr.bf16.mxu0 0
  %2200 = vmatpush1.bf16.msra.mxu0 %v1518
  %2201 = vmatprep.subr.bf16.mxu0 0
  %2202 = vmatpush1.bf16.msra.mxu0 %v1517
  %2203 = vmatprep.subr.bf16.mxu0 0
  %2204 = vmatpush1.bf16.msra.mxu0 %v1516
  %2205 = vmatprep.subr.bf16.mxu0 0
  %2206 = vmatpush1.bf16.msra.mxu0 %v1515
  %2207 = vmatprep.subr.bf16.mxu0 0
  %2208 = vmatpush1.bf16.msra.mxu0 %v1514
  %2209 = vmatprep.subr.bf16.mxu0 0
  %2210 = vmatpush1.bf16.msra.mxu0 %v1513
  %2211 = vmatprep.subr.bf16.mxu0 0
  %2212 = vmatpush1.bf16.msra.mxu0 %v1512
  %2213 = vmatprep.subr.bf16.mxu0 0
  %2214 = vmatpush1.bf16.msra.mxu0 %v1511
  %2215 = vmatprep.subr.bf16.mxu0 0
  %2216 = vmatpush2.bf16.msra.mxu0 0
  %2217 = vmatprep.subr.bf16.mxu0 0
  %2218 = vmatpush2.bf16.msra.mxu0 0
  %2219 = vmatprep.subr.bf16.mxu0 0
  %2220 = vmatpush2.bf16.msra.mxu0 0
  %2221 = vmatprep.subr.bf16.mxu0 0
  %2222 = vmatpush2.bf16.msra.mxu0 0
  %2223 = vmatprep.subr.bf16.mxu0 0
  %2224 = vmatpush2.bf16.msra.mxu0 0
  %2225 = vmatprep.subr.bf16.mxu0 0
  %2226 = vmatpush2.bf16.msra.mxu0 0
  %2227 = vmatprep.subr.bf16.mxu0 0
  %2228 = vmatpush2.bf16.msra.mxu0 0
  %2229 = vmatprep.subr.bf16.mxu0 0
  %2230 = vmatpush2.bf16.msra.mxu0 0
  %2231 = vmatprep.mubr.bf16.mxu0 0
  %2232 = vmatmul.mubr.bf16.gmra.mxu0 %v493
  %v2233 = vpop.f32.mrf.mxu0
  %v2234 = vadd.f32 %v2194, %v2233
  %v2235 = vpop.f32.mrf.mxu0
  %v2236 = vpop.f32.mrf.mxu0
  %v2237 = vpop.f32.mrf.mxu0
  %2238 = vdwg.mxu0
  %v2239 = vrot.slane %v2234, 4
  %v2240 = vadd.f32 %v2234, %v2239
  %v2241 = vrot.slane %v2240, 2
  %v2242 = vadd.f32 %v2240, %v2241
  %v2243 = vrot.slane %v2242, 1
  %v2244 = vadd.f32 %v2242, %v2243
  %v2245 = vmul.f32 %v2244, 0.125
  %v2246 = vmul.f32 %v2234, %v2234
  %v2247 = vrot.slane %v2246, 4
  %v2248 = vadd.f32 %v2246, %v2247
  %v2249 = vrot.slane %v2248, 2
  %v2250 = vadd.f32 %v2248, %v2249
  %v2251 = vrot.slane %v2250, 1
  %v2252 = vadd.f32 %v2250, %v2251
  %v2253 = vmul.f32 %v2252, 0.125
  %v2254 = vmul.f32 %v2245, %v2245
  %v2255 = vsub.f32 %v2253, %v2254
  %v2256 = vmax.f32 %v2255, 0.0
  %v2257 = vld [vmem:[%s2] sm:$0x1]
  %v2258 = vadd.f32 %v2256, 1e-05
  %v2259 = vrsqrt.pop %v2258
  %v2260 = vmul.f32 %v2257, %v2259
  %v2261 = vld [vmem:[%s3] sm:$0x1]
  %v2262 = vmul.f32 %v2245, %v2260
  %v2263 = vsub.f32 %v2261, %v2262
  %v2265 = vlaneseq
  %v2266 = vshrl.u32 %v2265, 7
  %v2267 = vsub.s32 0, %v2266
  %v2268 = vrot.slane %v2260, %v2267
  %v2270 = vmul.f32 %v2234, %v2268
  %v2272 = vlaneseq
  %v2273 = vshrl.u32 %v2272, 7
  %v2274 = vsub.s32 0, %v2273
  %v2275 = vrot.slane %v2263, %v2274
  %v2277 = vadd.f32 %v2270, %v2275
  %vm2278 = vcmp.gt.f32.partialorder %v2277, 0.0
  %v2279 = vmul.f32 %v2277, 0.2
  %v2280 = vsel %vm2278, %v2277, %v2279
  %v2281 = vpack.c.bf16 %v2280, %v2280
  %2282 = vst [vmem:[%s4] sm:$0xf] %v2281
  // Predicated region
  $region18: #{discriminator_forward.6} parent=0 // pred_check
    _
  $region19: #{discriminator_forward.6} parent=0 // pred_check_branch
    %2284 = sbr.rel (0) target = $region21
  $region20: #{discriminator_forward.6} parent=0 // pred_region
    _
  $region21: #{discriminator_forward.6} parent=0 // pred_fallthru
    _
  // Predicated region
  $region22: #{discriminator_forward.6} parent=0 // pred_check
    _
  $region23: #{discriminator_forward.6} parent=0 // pred_check_branch
    %2286 = sbr.rel (0) target = $region25
  $region24: #{discriminator_forward.6} parent=0 // pred_region
    _
  $region25: #{discriminator_forward.6} parent=0 // pred_fallthru
    _

// kernel: discriminator_forward.7
$region0: #{discriminator_forward.7}
  #allocation0 [shape = 'u32[]', space=smem, size = 0x4, offset = 0x4, fixed_abs, tag = 'smem constant byte address 0x4 - core index']
  #allocation1 [shape = 'u32[144,128]{1,0:T(1,128)}', space=vmem, size = 0x12000, scoped, tag = 'internal scratch']
  #allocation2 [shape = 'f32[1,1]{1,0:T(1,128)S(1)}', space=vmem, size = 0x200, scoped, tag = 'scoped memory for discriminator_forward.7']
  %s0 = inlined_call_operand.vmem [shape: bf16[2,3200], index: 0, kind: input, shape index: {}]
  %s1 = inlined_call_operand.vmem [shape: bf16[3200,128], index: 1, kind: input, shape index: {}]
  %s2 = inlined_call_operand.vmem [shape: f32[1,128], index: 2, kind: input, shape index: {}]
  %s3 = inlined_call_operand.vmem [shape: f32[1,128], index: 3, kind: input, shape index: {}]
  %s4 = inlined_call_operand.vmem [shape: f32[2,128], index: 4, kind: input, shape index: {}]
  %s5 = inlined_call_operand.<no memory space> [shape: f32[1,1], index: 5, kind: input, shape index: {}]
  %s6 = inlined_call_operand.vmem [shape: f32[2,1], index: 6, kind: output, shape index: {}]
  %s7 = sld [smem:[#allocation0]]
  $region34: #{discriminator_forward.7} parent=0
    _
  %s9 = ssub.s32 1, %s7
  %s10 = scalar_select 0, %s9, %s7
  %v11 = vstv %s5
  %12 = vst [vmem:[#allocation2] sm:$0x1] %v11
  // Predicated region
  $region2: #{discriminator_forward.7} parent=0 // pred_check
    _
  $region3: #{discriminator_forward.7} parent=0 // pred_check_branch
    %14 = sbr.rel (0) target = $region5
  $region4: #{discriminator_forward.7} parent=0 // pred_region
    _
  $region5: #{discriminator_forward.7} parent=0 // pred_fallthru
    _
  // Predicated region
  $region6: #{discriminator_forward.7} parent=0 // pred_check
    _
  $region7: #{discriminator_forward.7} parent=0 // pred_check_branch
    %16 = sbr.rel (0) target = $region9
  $region8: #{discriminator_forward.7} parent=0 // pred_region
    _
  $region9: #{discriminator_forward.7} parent=0 // pred_fallthru
    _
  // Predicated region
  $region10: #{discriminator_forward.7} parent=0 // pred_check
    _
  $region11: #{discriminator_forward.7} parent=0 // pred_check_branch
    %18 = sbr.rel (0) target = $region13
  $region12: #{discriminator_forward.7} parent=0 // pred_region
    _
  $region13: #{discriminator_forward.7} parent=0 // pred_fallthru
    _
  // Predicated region
  $region14: #{discriminator_forward.7} parent=0 // pred_check
    _
  $region15: #{discriminator_forward.7} parent=0 // pred_check_branch
    %20 = sbr.rel (0) target = $region17
  $region16: #{discriminator_forward.7} parent=0 // pred_region
    _
  $region17: #{discriminator_forward.7} parent=0 // pred_fallthru
    _
  // Predicated region
  $region18: #{discriminator_forward.7} parent=0 // pred_check
    _
  $region19: #{discriminator_forward.7} parent=0 // pred_check_branch
    %22 = sbr.rel (0) target = $region21
  $region20: #{discriminator_forward.7} parent=0 // pred_region
    _
  $region21: #{discriminator_forward.7} parent=0 // pred_fallthru
    _
  // Predicated region
  $region22: #{discriminator_forward.7} parent=0 // pred_check
    _
  $region23: #{discriminator_forward.7} parent=0 // pred_check_branch
    %24 = sbr.rel (0) target = $region25
  $region24: #{discriminator_forward.7} parent=0 // pred_region
    _
  $region25: #{discriminator_forward.7} parent=0 // pred_fallthru
    _
  %v26 = vld [vmem:[%s0] sm:$0xff]
  %v27 = vld [vmem:[%s0 + $0x8] sm:$0xff]
  %v28 = vld [vmem:[%s0 + $0x10] sm:$0xff]
  %v29 = vld [vmem:[%s0 + $0x18] sm:$0x1]
  %v30 = vld [vmem:[%s1] sm:$0xf]
  %v31 = vld [vmem:[%s1 + $0x4] sm:$0xf]
  %v32 = vld [vmem:[%s1 + $0x8] sm:$0xf]
  %v33 = vld [vmem:[%s1 + $0xc] sm:$0xf]
  %v34 = vld [vmem:[%s1 + $0x10] sm:$0xf]
  %v35 = vld [vmem:[%s1 + $0x14] sm:$0xf]
  %v36 = vld [vmem:[%s1 + $0x18] sm:$0xf]
  %v37 = vld [vmem:[%s1 + $0x1c] sm:$0xf]
  %v38 = vld [vmem:[%s1 + $0x20] sm:$0xf]
  %v39 = vld [vmem:[%s1 + $0x24] sm:$0xf]
  %v40 = vld [vmem:[%s1 + $0x28] sm:$0xf]
  %v41 = vld [vmem:[%s1 + $0x2c] sm:$0xf]
  %v42 = vld [vmem:[%s1 + $0x30] sm:$0xf]
  %v43 = vld [vmem:[%s1 + $0x34] sm:$0xf]
  %v44 = vld [vmem:[%s1 + $0x38] sm:$0xf]
  %v45 = vld [vmem:[%s1 + $0x3c] sm:$0xf]
  %v46 = vld [vmem:[%s1 + $0x40] sm:$0xf]
  %v47 = vld [vmem:[%s1 + $0x44] sm:$0xf]
  %v48 = vld [vmem:[%s1 + $0x48] sm:$0xf]
  %v49 = vld [vmem:[%s1 + $0x4c] sm:$0xf]
  %v50 = vld [vmem:[%s1 + $0x50] sm:$0xf]
  %v51 = vld [vmem:[%s1 + $0x54] sm:$0xf]
  %v52 = vld [vmem:[%s1 + $0x58] sm:$0xf]
  %v53 = vld [vmem:[%s1 + $0x5c] sm:$0xf]
  %v54 = vld [vmem:[%s1 + $0x60] sm:$0xf]
  %v55 = vld [vmem:[%s1 + $0x64] sm:$0xf]
  %v56 = vld [vmem:[%s1 + $0x68] sm:$0xf]
  %v57 = vld [vmem:[%s1 + $0x6c] sm:$0xf]
  %v58 = vld [vmem:[%s1 + $0x70] sm:$0xf]
  %v59 = vld [vmem:[%s1 + $0x74] sm:$0xf]
  %v60 = vld [vmem:[%s1 + $0x78] sm:$0xf]
  %v61 = vld [vmem:[%s1 + $0x7c] sm:$0xf]
  %v62 = vld [vmem:[%s1 + $0x80] sm:$0xf]
  %v63 = vld [vmem:[%s1 + $0x84] sm:$0xf]
  %v64 = vld [vmem:[%s1 + $0x88] sm:$0xf]
  %v65 = vld [vmem:[%s1 + $0x8c] sm:$0xf]
  %v66 = vld [vmem:[%s1 + $0x90] sm:$0xf]
  %v67 = vld [vmem:[%s1 + $0x94] sm:$0xf]
  %v68 = vld [vmem:[%s1 + $0x98] sm:$0xf]
  %v69 = vld [vmem:[%s1 + $0x9c] sm:$0xf]
  %v70 = vld [vmem:[%s1 + $0xa0] sm:$0xf]
  %v71 = vld [vmem:[%s1 + $0xa4] sm:$0xf]
  %v72 = vld [vmem:[%s1 + $0xa8] sm:$0xf]
  %v73 = vld [vmem:[%s1 + $0xac] sm:$0xf]
  %v74 = vld [vmem:[%s1 + $0xb0] sm:$0xf]
  %v75 = vld [vmem:[%s1 + $0xb4] sm:$0xf]
  %v76 = vld [vmem:[%s1 + $0xb8] sm:$0xf]
  %v77 = vld [vmem:[%s1 + $0xbc] sm:$0xf]
  %v78 = vld [vmem:[%s1 + $0xc0] sm:$0xf]
  %v79 = vld [vmem:[%s1 + $0xc4] sm:$0xf]
  %v80 = vld [vmem:[%s1 + $0xc8] sm:$0xf]
  %v81 = vld [vmem:[%s1 + $0xcc] sm:$0xf]
  %v82 = vld [vmem:[%s1 + $0xd0] sm:$0xf]
  %v83 = vld [vmem:[%s1 + $0xd4] sm:$0xf]
  %v84 = vld [vmem:[%s1 + $0xd8] sm:$0xf]
  %v85 = vld [vmem:[%s1 + $0xdc] sm:$0xf]
  %v86 = vld [vmem:[%s1 + $0xe0] sm:$0xf]
  %v87 = vld [vmem:[%s1 + $0xe4] sm:$0xf]
  %v88 = vld [vmem:[%s1 + $0xe8] sm:$0xf]
  %v89 = vld [vmem:[%s1 + $0xec] sm:$0xf]
  %v90 = vld [vmem:[%s1 + $0xf0] sm:$0xf]
  %v91 = vld [vmem:[%s1 + $0xf4] sm:$0xf]
  %v92 = vld [vmem:[%s1 + $0xf8] sm:$0xf]
  %v93 = vld [vmem:[%s1 + $0xfc] sm:$0xf]
  %v94 = vld [vmem:[%s1 + $0x100] sm:$0xf]
  %v95 = vld [vmem:[%s1 + $0x104] sm:$0xf]
  %v96 = vld [vmem:[%s1 + $0x108] sm:$0xf]
  %v97 = vld [vmem:[%s1 + $0x10c] sm:$0xf]
  %v98 = vld [vmem:[%s1 + $0x110] sm:$0xf]
  %v99 = vld [vmem:[%s1 + $0x114] sm:$0xf]
  %v100 = vld [vmem:[%s1 + $0x118] sm:$0xf]
  %v101 = vld [vmem:[%s1 + $0x11c] sm:$0xf]
  %v102 = vld [vmem:[%s1 + $0x120] sm:$0xf]
  %v103 = vld [vmem:[%s1 + $0x124] sm:$0xf]
  %v104 = vld [vmem:[%s1 + $0x128] sm:$0xf]
  %v105 = vld [vmem:[%s1 + $0x12c] sm:$0xf]
  %v106 = vld [vmem:[%s1 + $0x130] sm:$0xf]
  %v107 = vld [vmem:[%s1 + $0x134] sm:$0xf]
  %v108 = vld [vmem:[%s1 + $0x138] sm:$0xf]
  %v109 = vld [vmem:[%s1 + $0x13c] sm:$0xf]
  %v110 = vld [vmem:[%s1 + $0x140] sm:$0xf]
  %v111 = vld [vmem:[%s1 + $0x144] sm:$0xf]
  %v112 = vld [vmem:[%s1 + $0x148] sm:$0xf]
  %v113 = vld [vmem:[%s1 + $0x14c] sm:$0xf]
  %v114 = vld [vmem:[%s1 + $0x150] sm:$0xf]
  %v115 = vld [vmem:[%s1 + $0x154] sm:$0xf]
  %v116 = vld [vmem:[%s1 + $0x158] sm:$0xf]
  %v117 = vld [vmem:[%s1 + $0x15c] sm:$0xf]
  %v118 = vld [vmem:[%s1 + $0x160] sm:$0xf]
  %v119 = vld [vmem:[%s1 + $0x164] sm:$0xf]
  %v120 = vld [vmem:[%s1 + $0x168] sm:$0xf]
  %v121 = vld [vmem:[%s1 + $0x16c] sm:$0xf]
  %v122 = vld [vmem:[%s1 + $0x170] sm:$0xf]
  %v123 = vld [vmem:[%s1 + $0x174] sm:$0xf]
  %v124 = vld [vmem:[%s1 + $0x178] sm:$0xf]
  %v125 = vld [vmem:[%s1 + $0x17c] sm:$0xf]
  %v126 = vld [vmem:[%s1 + $0x180] sm:$0xf]
  %v127 = vld [vmem:[%s1 + $0x184] sm:$0xf]
  %v128 = vld [vmem:[%s1 + $0x188] sm:$0xf]
  %v129 = vld [vmem:[%s1 + $0x18c] sm:$0xf]
  %v130 = vld [vmem:[%s1 + $0x190] sm:$0xf]
  %v131 = vld [vmem:[%s1 + $0x194] sm:$0xf]
  %v132 = vld [vmem:[%s1 + $0x198] sm:$0xf]
  %v133 = vld [vmem:[%s1 + $0x19c] sm:$0xf]
  %v134 = vld [vmem:[%s1 + $0x1a0] sm:$0xf]
  %v135 = vld [vmem:[%s1 + $0x1a4] sm:$0xf]
  %v136 = vld [vmem:[%s1 + $0x1a8] sm:$0xf]
  %v137 = vld [vmem:[%s1 + $0x1ac] sm:$0xf]
  %v138 = vld [vmem:[%s1 + $0x1b0] sm:$0xf]
  %v139 = vld [vmem:[%s1 + $0x1b4] sm:$0xf]
  %v140 = vld [vmem:[%s1 + $0x1b8] sm:$0xf]
  %v141 = vld [vmem:[%s1 + $0x1bc] sm:$0xf]
  %v142 = vld [vmem:[%s1 + $0x1c0] sm:$0xf]
  %v143 = vld [vmem:[%s1 + $0x1c4] sm:$0xf]
  %v144 = vld [vmem:[%s1 + $0x1c8] sm:$0xf]
  %v145 = vld [vmem:[%s1 + $0x1cc] sm:$0xf]
  %v146 = vld [vmem:[%s1 + $0x1d0] sm:$0xf]
  %v147 = vld [vmem:[%s1 + $0x1d4] sm:$0xf]
  %v148 = vld [vmem:[%s1 + $0x1d8] sm:$0xf]
  %v149 = vld [vmem:[%s1 + $0x1dc] sm:$0xf]
  %v150 = vld [vmem:[%s1 + $0x1e0] sm:$0xf]
  %v151 = vld [vmem:[%s1 + $0x1e4] sm:$0xf]
  %v152 = vld [vmem:[%s1 + $0x1e8] sm:$0xf]
  %v153 = vld [vmem:[%s1 + $0x1ec] sm:$0xf]
  %v154 = vld [vmem:[%s1 + $0x1f0] sm:$0xf]
  %v155 = vld [vmem:[%s1 + $0x1f4] sm:$0xf]
  %v156 = vld [vmem:[%s1 + $0x1f8] sm:$0xf]
  %v157 = vld [vmem:[%s1 + $0x1fc] sm:$0xf]
  %v158 = vld [vmem:[%s1 + $0x200] sm:$0xf]
  %v159 = vld [vmem:[%s1 + $0x204] sm:$0xf]
  %v160 = vld [vmem:[%s1 + $0x208] sm:$0xf]
  %v161 = vld [vmem:[%s1 + $0x20c] sm:$0xf]
  %v162 = vld [vmem:[%s1 + $0x210] sm:$0xf]
  %v163 = vld [vmem:[%s1 + $0x214] sm:$0xf]
  %v164 = vld [vmem:[%s1 + $0x218] sm:$0xf]
  %v165 = vld [vmem:[%s1 + $0x21c] sm:$0xf]
  %v166 = vld [vmem:[%s1 + $0x220] sm:$0xf]
  %v167 = vld [vmem:[%s1 + $0x224] sm:$0xf]
  %v168 = vld [vmem:[%s1 + $0x228] sm:$0xf]
  %v169 = vld [vmem:[%s1 + $0x22c] sm:$0xf]
  %v170 = vld [vmem:[%s1 + $0x230] sm:$0xf]
  %v171 = vld [vmem:[%s1 + $0x234] sm:$0xf]
  %v172 = vld [vmem:[%s1 + $0x238] sm:$0xf]
  %v173 = vld [vmem:[%s1 + $0x23c] sm:$0xf]
  %v174 = vld [vmem:[%s1 + $0x240] sm:$0xf]
  %v175 = vld [vmem:[%s1 + $0x244] sm:$0xf]
  %v176 = vld [vmem:[%s1 + $0x248] sm:$0xf]
  %v177 = vld [vmem:[%s1 + $0x24c] sm:$0xf]
  %v178 = vld [vmem:[%s1 + $0x250] sm:$0xf]
  %v179 = vld [vmem:[%s1 + $0x254] sm:$0xf]
  %v180 = vld [vmem:[%s1 + $0x258] sm:$0xf]
  %v181 = vld [vmem:[%s1 + $0x25c] sm:$0xf]
  %v182 = vld [vmem:[%s1 + $0x260] sm:$0xf]
  %v183 = vld [vmem:[%s1 + $0x264] sm:$0xf]
  %v184 = vld [vmem:[%s1 + $0x268] sm:$0xf]
  %v185 = vld [vmem:[%s1 + $0x26c] sm:$0xf]
  %v186 = vld [vmem:[%s1 + $0x270] sm:$0xf]
  %v187 = vld [vmem:[%s1 + $0x274] sm:$0xf]
  %v188 = vld [vmem:[%s1 + $0x278] sm:$0xf]
  %v189 = vld [vmem:[%s1 + $0x27c] sm:$0xf]
  %v190 = vld [vmem:[%s1 + $0x280] sm:$0xf]
  %v191 = vld [vmem:[%s1 + $0x284] sm:$0xf]
  %v192 = vld [vmem:[%s1 + $0x288] sm:$0xf]
  %v193 = vld [vmem:[%s1 + $0x28c] sm:$0xf]
  %v194 = vld [vmem:[%s1 + $0x290] sm:$0xf]
  %v195 = vld [vmem:[%s1 + $0x294] sm:$0xf]
  %v196 = vld [vmem:[%s1 + $0x298] sm:$0xf]
  %v197 = vld [vmem:[%s1 + $0x29c] sm:$0xf]
  %v198 = vld [vmem:[%s1 + $0x2a0] sm:$0xf]
  %v199 = vld [vmem:[%s1 + $0x2a4] sm:$0xf]
  %v200 = vld [vmem:[%s1 + $0x2a8] sm:$0xf]
  %v201 = vld [vmem:[%s1 + $0x2ac] sm:$0xf]
  %v202 = vld [vmem:[%s1 + $0x2b0] sm:$0xf]
  %v203 = vld [vmem:[%s1 + $0x2b4] sm:$0xf]
  %v204 = vld [vmem:[%s1 + $0x2b8] sm:$0xf]
  %v205 = vld [vmem:[%s1 + $0x2bc] sm:$0xf]
  %v206 = vld [vmem:[%s1 + $0x2c0] sm:$0xf]
  %v207 = vld [vmem:[%s1 + $0x2c4] sm:$0xf]
  %v208 = vld [vmem:[%s1 + $0x2c8] sm:$0xf]
  %v209 = vld [vmem:[%s1 + $0x2cc] sm:$0xf]
  %v210 = vld [vmem:[%s1 + $0x2d0] sm:$0xf]
  %v211 = vld [vmem:[%s1 + $0x2d4] sm:$0xf]
  %v212 = vld [vmem:[%s1 + $0x2d8] sm:$0xf]
  %v213 = vld [vmem:[%s1 + $0x2dc] sm:$0xf]
  %v214 = vld [vmem:[%s1 + $0x2e0] sm:$0xf]
  %v215 = vld [vmem:[%s1 + $0x2e4] sm:$0xf]
  %v216 = vld [vmem:[%s1 + $0x2e8] sm:$0xf]
  %v217 = vld [vmem:[%s1 + $0x2ec] sm:$0xf]
  %v218 = vld [vmem:[%s1 + $0x2f0] sm:$0xf]
  %v219 = vld [vmem:[%s1 + $0x2f4] sm:$0xf]
  %v220 = vld [vmem:[%s1 + $0x2f8] sm:$0xf]
  %v221 = vld [vmem:[%s1 + $0x2fc] sm:$0xf]
  %v222 = vld [vmem:[%s1 + $0x300] sm:$0xf]
  %v223 = vld [vmem:[%s1 + $0x304] sm:$0xf]
  %v224 = vld [vmem:[%s1 + $0x308] sm:$0xf]
  %v225 = vld [vmem:[%s1 + $0x30c] sm:$0xf]
  %v226 = vld [vmem:[%s1 + $0x310] sm:$0xf]
  %v227 = vld [vmem:[%s1 + $0x314] sm:$0xf]
  %v228 = vld [vmem:[%s1 + $0x318] sm:$0xf]
  %v229 = vld [vmem:[%s1 + $0x31c] sm:$0xf]
  %v230 = vld [vmem:[%s1 + $0x320] sm:$0xf]
  %v231 = vld [vmem:[%s1 + $0x324] sm:$0xf]
  %v232 = vld [vmem:[%s1 + $0x328] sm:$0xf]
  %v233 = vld [vmem:[%s1 + $0x32c] sm:$0xf]
  %v234 = vld [vmem:[%s1 + $0x330] sm:$0xf]
  %v235 = vld [vmem:[%s1 + $0x334] sm:$0xf]
  %v236 = vld [vmem:[%s1 + $0x338] sm:$0xf]
  %v237 = vld [vmem:[%s1 + $0x33c] sm:$0xf]
  %v238 = vld [vmem:[%s1 + $0x340] sm:$0xf]
  %v239 = vld [vmem:[%s1 + $0x344] sm:$0xf]
  %v240 = vld [vmem:[%s1 + $0x348] sm:$0xf]
  %v241 = vld [vmem:[%s1 + $0x34c] sm:$0xf]
  %v242 = vld [vmem:[%s1 + $0x350] sm:$0xf]
  %v243 = vld [vmem:[%s1 + $0x354] sm:$0xf]
  %v244 = vld [vmem:[%s1 + $0x358] sm:$0xf]
  %v245 = vld [vmem:[%s1 + $0x35c] sm:$0xf]
  %v246 = vld [vmem:[%s1 + $0x360] sm:$0xf]
  %v247 = vld [vmem:[%s1 + $0x364] sm:$0xf]
  %v248 = vld [vmem:[%s1 + $0x368] sm:$0xf]
  %v249 = vld [vmem:[%s1 + $0x36c] sm:$0xf]
  %v250 = vld [vmem:[%s1 + $0x370] sm:$0xf]
  %v251 = vld [vmem:[%s1 + $0x374] sm:$0xf]
  %v252 = vld [vmem:[%s1 + $0x378] sm:$0xf]
  %v253 = vld [vmem:[%s1 + $0x37c] sm:$0xf]
  %v254 = vld [vmem:[%s1 + $0x380] sm:$0xf]
  %v255 = vld [vmem:[%s1 + $0x384] sm:$0xf]
  %v256 = vld [vmem:[%s1 + $0x388] sm:$0xf]
  %v257 = vld [vmem:[%s1 + $0x38c] sm:$0xf]
  %v258 = vld [vmem:[%s1 + $0x390] sm:$0xf]
  %v259 = vld [vmem:[%s1 + $0x394] sm:$0xf]
  %v260 = vld [vmem:[%s1 + $0x398] sm:$0xf]
  %v261 = vld [vmem:[%s1 + $0x39c] sm:$0xf]
  %v262 = vld [vmem:[%s1 + $0x3a0] sm:$0xf]
  %v263 = vld [vmem:[%s1 + $0x3a4] sm:$0xf]
  %v264 = vld [vmem:[%s1 + $0x3a8] sm:$0xf]
  %v265 = vld [vmem:[%s1 + $0x3ac] sm:$0xf]
  %v266 = vld [vmem:[%s1 + $0x3b0] sm:$0xf]
  %v267 = vld [vmem:[%s1 + $0x3b4] sm:$0xf]
  %v268 = vld [vmem:[%s1 + $0x3b8] sm:$0xf]
  %v269 = vld [vmem:[%s1 + $0x3bc] sm:$0xf]
  %v270 = vld [vmem:[%s1 + $0x3c0] sm:$0xf]
  %v271 = vld [vmem:[%s1 + $0x3c4] sm:$0xf]
  %v272 = vld [vmem:[%s1 + $0x3c8] sm:$0xf]
  %v273 = vld [vmem:[%s1 + $0x3cc] sm:$0xf]
  %v274 = vld [vmem:[%s1 + $0x3d0] sm:$0xf]
  %v275 = vld [vmem:[%s1 + $0x3d4] sm:$0xf]
  %v276 = vld [vmem:[%s1 + $0x3d8] sm:$0xf]
  %v277 = vld [vmem:[%s1 + $0x3dc] sm:$0xf]
  %v278 = vld [vmem:[%s1 + $0x3e0] sm:$0xf]
  %v279 = vld [vmem:[%s1 + $0x3e4] sm:$0xf]
  %v280 = vld [vmem:[%s1 + $0x3e8] sm:$0xf]
  %v281 = vld [vmem:[%s1 + $0x3ec] sm:$0xf]
  %v282 = vld [vmem:[%s1 + $0x3f0] sm:$0xf]
  %v283 = vld [vmem:[%s1 + $0x3f4] sm:$0xf]
  %v284 = vld [vmem:[%s1 + $0x3f8] sm:$0xf]
  %v285 = vld [vmem:[%s1 + $0x3fc] sm:$0xf]
  %v286 = vld [vmem:[%s1 + $0x400] sm:$0xf]
  %v287 = vld [vmem:[%s1 + $0x404] sm:$0xf]
  %v288 = vld [vmem:[%s1 + $0x408] sm:$0xf]
  %v289 = vld [vmem:[%s1 + $0x40c] sm:$0xf]
  %v290 = vld [vmem:[%s1 + $0x410] sm:$0xf]
  %v291 = vld [vmem:[%s1 + $0x414] sm:$0xf]
  %v292 = vld [vmem:[%s1 + $0x418] sm:$0xf]
  %v293 = vld [vmem:[%s1 + $0x41c] sm:$0xf]
  %v294 = vld [vmem:[%s1 + $0x420] sm:$0xf]
  %v295 = vld [vmem:[%s1 + $0x424] sm:$0xf]
  %v296 = vld [vmem:[%s1 + $0x428] sm:$0xf]
  %v297 = vld [vmem:[%s1 + $0x42c] sm:$0xf]
  %v298 = vld [vmem:[%s1 + $0x430] sm:$0xf]
  %v299 = vld [vmem:[%s1 + $0x434] sm:$0xf]
  %v300 = vld [vmem:[%s1 + $0x438] sm:$0xf]
  %v301 = vld [vmem:[%s1 + $0x43c] sm:$0xf]
  %v302 = vld [vmem:[%s1 + $0x440] sm:$0xf]
  %v303 = vld [vmem:[%s1 + $0x444] sm:$0xf]
  %v304 = vld [vmem:[%s1 + $0x448] sm:$0xf]
  %v305 = vld [vmem:[%s1 + $0x44c] sm:$0xf]
  %v306 = vld [vmem:[%s1 + $0x450] sm:$0xf]
  %v307 = vld [vmem:[%s1 + $0x454] sm:$0xf]
  %v308 = vld [vmem:[%s1 + $0x458] sm:$0xf]
  %v309 = vld [vmem:[%s1 + $0x45c] sm:$0xf]
  %v310 = vld [vmem:[%s1 + $0x460] sm:$0xf]
  %v311 = vld [vmem:[%s1 + $0x464] sm:$0xf]
  %v312 = vld [vmem:[%s1 + $0x468] sm:$0xf]
  %v313 = vld [vmem:[%s1 + $0x46c] sm:$0xf]
  %v314 = vld [vmem:[%s1 + $0x470] sm:$0xf]
  %v315 = vld [vmem:[%s1 + $0x474] sm:$0xf]
  %v316 = vld [vmem:[%s1 + $0x478] sm:$0xf]
  %v317 = vld [vmem:[%s1 + $0x47c] sm:$0xf]
  %v318 = vld [vmem:[%s1 + $0x480] sm:$0xf]
  %v319 = vld [vmem:[%s1 + $0x484] sm:$0xf]
  %v320 = vld [vmem:[%s1 + $0x488] sm:$0xf]
  %v321 = vld [vmem:[%s1 + $0x48c] sm:$0xf]
  %v322 = vld [vmem:[%s1 + $0x490] sm:$0xf]
  %v323 = vld [vmem:[%s1 + $0x494] sm:$0xf]
  %v324 = vld [vmem:[%s1 + $0x498] sm:$0xf]
  %v325 = vld [vmem:[%s1 + $0x49c] sm:$0xf]
  %v326 = vld [vmem:[%s1 + $0x4a0] sm:$0xf]
  %v327 = vld [vmem:[%s1 + $0x4a4] sm:$0xf]
  %v328 = vld [vmem:[%s1 + $0x4a8] sm:$0xf]
  %v329 = vld [vmem:[%s1 + $0x4ac] sm:$0xf]
  %v330 = vld [vmem:[%s1 + $0x4b0] sm:$0xf]
  %v331 = vld [vmem:[%s1 + $0x4b4] sm:$0xf]
  %v332 = vld [vmem:[%s1 + $0x4b8] sm:$0xf]
  %v333 = vld [vmem:[%s1 + $0x4bc] sm:$0xf]
  %v334 = vld [vmem:[%s1 + $0x4c0] sm:$0xf]
  %v335 = vld [vmem:[%s1 + $0x4c4] sm:$0xf]
  %v336 = vld [vmem:[%s1 + $0x4c8] sm:$0xf]
  %v337 = vld [vmem:[%s1 + $0x4cc] sm:$0xf]
  %v338 = vld [vmem:[%s1 + $0x4d0] sm:$0xf]
  %v339 = vld [vmem:[%s1 + $0x4d4] sm:$0xf]
  %v340 = vld [vmem:[%s1 + $0x4d8] sm:$0xf]
  %v341 = vld [vmem:[%s1 + $0x4dc] sm:$0xf]
  %v342 = vld [vmem:[%s1 + $0x4e0] sm:$0xf]
  %v343 = vld [vmem:[%s1 + $0x4e4] sm:$0xf]
  %v344 = vld [vmem:[%s1 + $0x4e8] sm:$0xf]
  %v345 = vld [vmem:[%s1 + $0x4ec] sm:$0xf]
  %v346 = vld [vmem:[%s1 + $0x4f0] sm:$0xf]
  %v347 = vld [vmem:[%s1 + $0x4f4] sm:$0xf]
  %v348 = vld [vmem:[%s1 + $0x4f8] sm:$0xf]
  %v349 = vld [vmem:[%s1 + $0x4fc] sm:$0xf]
  %v350 = vld [vmem:[%s1 + $0x500] sm:$0xf]
  %v351 = vld [vmem:[%s1 + $0x504] sm:$0xf]
  %v352 = vld [vmem:[%s1 + $0x508] sm:$0xf]
  %v353 = vld [vmem:[%s1 + $0x50c] sm:$0xf]
  %v354 = vld [vmem:[%s1 + $0x510] sm:$0xf]
  %v355 = vld [vmem:[%s1 + $0x514] sm:$0xf]
  %v356 = vld [vmem:[%s1 + $0x518] sm:$0xf]
  %v357 = vld [vmem:[%s1 + $0x51c] sm:$0xf]
  %v358 = vld [vmem:[%s1 + $0x520] sm:$0xf]
  %v359 = vld [vmem:[%s1 + $0x524] sm:$0xf]
  %v360 = vld [vmem:[%s1 + $0x528] sm:$0xf]
  %v361 = vld [vmem:[%s1 + $0x52c] sm:$0xf]
  %v362 = vld [vmem:[%s1 + $0x530] sm:$0xf]
  %v363 = vld [vmem:[%s1 + $0x534] sm:$0xf]
  %v364 = vld [vmem:[%s1 + $0x538] sm:$0xf]
  %v365 = vld [vmem:[%s1 + $0x53c] sm:$0xf]
  %v366 = vld [vmem:[%s1 + $0x540] sm:$0xf]
  %v367 = vld [vmem:[%s1 + $0x544] sm:$0xf]
  %v368 = vld [vmem:[%s1 + $0x548] sm:$0xf]
  %v369 = vld [vmem:[%s1 + $0x54c] sm:$0xf]
  %v370 = vld [vmem:[%s1 + $0x550] sm:$0xf]
  %v371 = vld [vmem:[%s1 + $0x554] sm:$0xf]
  %v372 = vld [vmem:[%s1 + $0x558] sm:$0xf]
  %v373 = vld [vmem:[%s1 + $0x55c] sm:$0xf]
  %v374 = vld [vmem:[%s1 + $0x560] sm:$0xf]
  %v375 = vld [vmem:[%s1 + $0x564] sm:$0xf]
  %v376 = vld [vmem:[%s1 + $0x568] sm:$0xf]
  %v377 = vld [vmem:[%s1 + $0x56c] sm:$0xf]
  %v378 = vld [vmem:[%s1 + $0x570] sm:$0xf]
  %v379 = vld [vmem:[%s1 + $0x574] sm:$0xf]
  %v380 = vld [vmem:[%s1 + $0x578] sm:$0xf]
  %v381 = vld [vmem:[%s1 + $0x57c] sm:$0xf]
  %v382 = vld [vmem:[%s1 + $0x580] sm:$0xf]
  %v383 = vld [vmem:[%s1 + $0x584] sm:$0xf]
  %v384 = vld [vmem:[%s1 + $0x588] sm:$0xf]
  %v385 = vld [vmem:[%s1 + $0x58c] sm:$0xf]
  %v386 = vld [vmem:[%s1 + $0x590] sm:$0xf]
  %v387 = vld [vmem:[%s1 + $0x594] sm:$0xf]
  %v388 = vld [vmem:[%s1 + $0x598] sm:$0xf]
  %v389 = vld [vmem:[%s1 + $0x59c] sm:$0xf]
  %v390 = vld [vmem:[%s1 + $0x5a0] sm:$0xf]
  %v391 = vld [vmem:[%s1 + $0x5a4] sm:$0xf]
  %v392 = vld [vmem:[%s1 + $0x5a8] sm:$0xf]
  %v393 = vld [vmem:[%s1 + $0x5ac] sm:$0xf]
  %v394 = vld [vmem:[%s1 + $0x5b0] sm:$0xf]
  %v395 = vld [vmem:[%s1 + $0x5b4] sm:$0xf]
  %v396 = vld [vmem:[%s1 + $0x5b8] sm:$0xf]
  %v397 = vld [vmem:[%s1 + $0x5bc] sm:$0xf]
  %v398 = vld [vmem:[%s1 + $0x5c0] sm:$0xf]
  %v399 = vld [vmem:[%s1 + $0x5c4] sm:$0xf]
  %v400 = vld [vmem:[%s1 + $0x5c8] sm:$0xf]
  %v401 = vld [vmem:[%s1 + $0x5cc] sm:$0xf]
  %v402 = vld [vmem:[%s1 + $0x5d0] sm:$0xf]
  %v403 = vld [vmem:[%s1 + $0x5d4] sm:$0xf]
  %v404 = vld [vmem:[%s1 + $0x5d8] sm:$0xf]
  %v405 = vld [vmem:[%s1 + $0x5dc] sm:$0xf]
  %v406 = vld [vmem:[%s1 + $0x5e0] sm:$0xf]
  %v407 = vld [vmem:[%s1 + $0x5e4] sm:$0xf]
  %v408 = vld [vmem:[%s1 + $0x5e8] sm:$0xf]
  %v409 = vld [vmem:[%s1 + $0x5ec] sm:$0xf]
  %v410 = vld [vmem:[%s1 + $0x5f0] sm:$0xf]
  %v411 = vld [vmem:[%s1 + $0x5f4] sm:$0xf]
  %v412 = vld [vmem:[%s1 + $0x5f8] sm:$0xf]
  %v413 = vld [vmem:[%s1 + $0x5fc] sm:$0xf]
  %v414 = vld [vmem:[%s1 + $0x600] sm:$0xf]
  %v415 = vld [vmem:[%s1 + $0x604] sm:$0xf]
  %v416 = vld [vmem:[%s1 + $0x608] sm:$0xf]
  %v417 = vld [vmem:[%s1 + $0x60c] sm:$0xf]
  %v418 = vld [vmem:[%s1 + $0x610] sm:$0xf]
  %v419 = vld [vmem:[%s1 + $0x614] sm:$0xf]
  %v420 = vld [vmem:[%s1 + $0x618] sm:$0xf]
  %v421 = vld [vmem:[%s1 + $0x61c] sm:$0xf]
  %v422 = vld [vmem:[%s1 + $0x620] sm:$0xf]
  %v423 = vld [vmem:[%s1 + $0x624] sm:$0xf]
  %v424 = vld [vmem:[%s1 + $0x628] sm:$0xf]
  %v425 = vld [vmem:[%s1 + $0x62c] sm:$0xf]
  %v426 = vld [vmem:[%s1 + $0x630] sm:$0xf]
  %v427 = vld [vmem:[%s1 + $0x634] sm:$0xf]
  %v428 = vld [vmem:[%s1 + $0x638] sm:$0xf]
  %v429 = vld [vmem:[%s1 + $0x63c] sm:$0xf]
  %v434 = vcombine.high %v26, %v26
  %v436 = vunpack.c.l.s4 1966171168
  %v437 = vunpack.c.0.s8 %v436
  %v438 = vlaneseq
  %v439 = vshrl.u32 %v438, 7
  %v440 = vsub.s32 %v437, %v439
  %v441 = vrot.slane %v26, %v440
  %v443 = vunpack.c.l.s4 1966171168
  %v444 = vunpack.c.0.s8 %v443
  %v445 = vlaneseq
  %v446 = vshrl.u32 %v445, 7
  %v447 = vsub.s32 %v444, %v446
  %v448 = vrot.slane %v434, %v447
  %v449 = vcombine.high %v441, %v441
  %v450 = vcombine.high %v448, %v448
  %v452 = vunpack.c.l.s4 1966171168
  %v453 = vunpack.c.0.s8 %v452
  %v454 = vlaneseq
  %v455 = vshrl.u32 %v454, 7
  %v456 = vsub.s32 %v453, %v455
  %v457 = vrot.slane %v441, %v456
  %v459 = vunpack.c.l.s4 1966171168
  %v460 = vunpack.c.0.s8 %v459
  %v461 = vlaneseq
  %v462 = vshrl.u32 %v461, 7
  %v463 = vsub.s32 %v460, %v462
  %v464 = vrot.slane %v448, %v463
  %v466 = vunpack.c.l.s4 1966171168
  %v467 = vunpack.c.0.s8 %v466
  %v468 = vlaneseq
  %v469 = vshrl.u32 %v468, 7
  %v470 = vsub.s32 %v467, %v469
  %v471 = vrot.slane %v449, %v470
  %v473 = vunpack.c.l.s4 1966171168
  %v474 = vunpack.c.0.s8 %v473
  %v475 = vlaneseq
  %v476 = vshrl.u32 %v475, 7
  %v477 = vsub.s32 %v474, %v476
  %v478 = vrot.slane %v450, %v477
  %v479 = vcombine.high %v457, %v457
  %v480 = vcombine.high %v464, %v464
  %v481 = vcombine.high %v471, %v471
  %v482 = vcombine.high %v478, %v478
  %v483 = vcombine.high %v27, %v27
  %v485 = vunpack.c.l.s4 1966171168
  %v486 = vunpack.c.0.s8 %v485
  %v487 = vlaneseq
  %v488 = vshrl.u32 %v487, 7
  %v489 = vsub.s32 %v486, %v488
  %v490 = vrot.slane %v27, %v489
  %v492 = vunpack.c.l.s4 1966171168
  %v493 = vunpack.c.0.s8 %v492
  %v494 = vlaneseq
  %v495 = vshrl.u32 %v494, 7
  %v496 = vsub.s32 %v493, %v495
  %v497 = vrot.slane %v483, %v496
  %v498 = vcombine.high %v490, %v490
  %v499 = vcombine.high %v497, %v497
  %v501 = vunpack.c.l.s4 1966171168
  %v502 = vunpack.c.0.s8 %v501
  %v503 = vlaneseq
  %v504 = vshrl.u32 %v503, 7
  %v505 = vsub.s32 %v502, %v504
  %v506 = vrot.slane %v490, %v505
  %v508 = vunpack.c.l.s4 1966171168
  %v509 = vunpack.c.0.s8 %v508
  %v510 = vlaneseq
  %v511 = vshrl.u32 %v510, 7
  %v512 = vsub.s32 %v509, %v511
  %v513 = vrot.slane %v497, %v512
  %v515 = vunpack.c.l.s4 1966171168
  %v516 = vunpack.c.0.s8 %v515
  %v517 = vlaneseq
  %v518 = vshrl.u32 %v517, 7
  %v519 = vsub.s32 %v516, %v518
  %v520 = vrot.slane %v498, %v519
  %v522 = vunpack.c.l.s4 1966171168
  %v523 = vunpack.c.0.s8 %v522
  %v524 = vlaneseq
  %v525 = vshrl.u32 %v524, 7
  %v526 = vsub.s32 %v523, %v525
  %v527 = vrot.slane %v499, %v526
  %v528 = vcombine.high %v506, %v506
  %v529 = vcombine.high %v513, %v513
  %v530 = vcombine.high %v520, %v520
  %v531 = vcombine.high %v527, %v527
  %v532 = vcombine.high %v28, %v28
  %v534 = vunpack.c.l.s4 1966171168
  %v535 = vunpack.c.0.s8 %v534
  %v536 = vlaneseq
  %v537 = vshrl.u32 %v536, 7
  %v538 = vsub.s32 %v535, %v537
  %v539 = vrot.slane %v28, %v538
  %v541 = vunpack.c.l.s4 1966171168
  %v542 = vunpack.c.0.s8 %v541
  %v543 = vlaneseq
  %v544 = vshrl.u32 %v543, 7
  %v545 = vsub.s32 %v542, %v544
  %v546 = vrot.slane %v532, %v545
  %v547 = vcombine.high %v539, %v539
  %v548 = vcombine.high %v546, %v546
  %v550 = vunpack.c.l.s4 1966171168
  %v551 = vunpack.c.0.s8 %v550
  %v552 = vlaneseq
  %v553 = vshrl.u32 %v552, 7
  %v554 = vsub.s32 %v551, %v553
  %v555 = vrot.slane %v539, %v554
  %v557 = vunpack.c.l.s4 1966171168
  %v558 = vunpack.c.0.s8 %v557
  %v559 = vlaneseq
  %v560 = vshrl.u32 %v559, 7
  %v561 = vsub.s32 %v558, %v560
  %v562 = vrot.slane %v546, %v561
  %v564 = vunpack.c.l.s4 1966171168
  %v565 = vunpack.c.0.s8 %v564
  %v566 = vlaneseq
  %v567 = vshrl.u32 %v566, 7
  %v568 = vsub.s32 %v565, %v567
  %v569 = vrot.slane %v547, %v568
  %v571 = vunpack.c.l.s4 1966171168
  %v572 = vunpack.c.0.s8 %v571
  %v573 = vlaneseq
  %v574 = vshrl.u32 %v573, 7
  %v575 = vsub.s32 %v572, %v574
  %v576 = vrot.slane %v548, %v575
  %v577 = vcombine.high %v555, %v555
  %v578 = vcombine.high %v562, %v562
  %v579 = vcombine.high %v569, %v569
  %v580 = vcombine.high %v576, %v576
  %v582 = vunpack.c.l.s4 1966171168
  %v583 = vunpack.c.0.s8 %v582
  %v584 = vlaneseq
  %v585 = vshrl.u32 %v584, 7
  %v586 = vsub.s32 %v583, %v585
  %v587 = vrot.slane %v29, %v586
  %v589 = vunpack.c.l.s4 1966171168
  %v590 = vunpack.c.0.s8 %v589
  %v591 = vlaneseq
  %v592 = vshrl.u32 %v591, 7
  %v593 = vsub.s32 %v590, %v592
  %v594 = vrot.slane %v587, %v593
  %v1020 = vunpack.c.l.b16 %v30
  %v1021 = vunpack.c.l.b16 %v31
  %v1022 = vunpack.c.l.b16 %v32
  %v1023 = vunpack.c.l.b16 %v33
  %v1024 = vunpack.c.l.b16 %v34
  %v1025 = vunpack.c.l.b16 %v35
  %v1026 = vunpack.c.l.b16 %v36
  %v1027 = vunpack.c.l.b16 %v37
  %v1028 = vunpack.c.l.b16 %v38
  %v1029 = vunpack.c.l.b16 %v39
  %v1030 = vunpack.c.l.b16 %v40
  %v1031 = vunpack.c.l.b16 %v41
  %v1032 = vunpack.c.l.b16 %v42
  %v1033 = vunpack.c.l.b16 %v43
  %v1034 = vunpack.c.l.b16 %v44
  %v1035 = vunpack.c.l.b16 %v45
  %v1036 = vunpack.c.l.b16 %v46
  %v1037 = vunpack.c.l.b16 %v47
  %v1038 = vunpack.c.l.b16 %v48
  %v1039 = vunpack.c.l.b16 %v49
  %v1040 = vunpack.c.l.b16 %v50
  %v1041 = vunpack.c.l.b16 %v51
  %v1042 = vunpack.c.l.b16 %v52
  %v1043 = vunpack.c.l.b16 %v53
  %v1044 = vunpack.c.l.b16 %v54
  %v1045 = vunpack.c.l.b16 %v55
  %v1046 = vunpack.c.l.b16 %v56
  %v1047 = vunpack.c.l.b16 %v57
  %v1048 = vunpack.c.l.b16 %v58
  %v1049 = vunpack.c.l.b16 %v59
  %v1050 = vunpack.c.l.b16 %v60
  %v1051 = vunpack.c.l.b16 %v61
  %v1052 = vunpack.c.l.b16 %v62
  %v1053 = vunpack.c.l.b16 %v63
  %v1054 = vunpack.c.l.b16 %v64
  %v1055 = vunpack.c.l.b16 %v65
  %v1056 = vunpack.c.l.b16 %v66
  %v1057 = vunpack.c.l.b16 %v67
  %v1058 = vunpack.c.l.b16 %v68
  %v1059 = vunpack.c.l.b16 %v69
  %v1060 = vunpack.c.l.b16 %v70
  %v1061 = vunpack.c.l.b16 %v71
  %v1062 = vunpack.c.l.b16 %v72
  %v1063 = vunpack.c.l.b16 %v73
  %v1064 = vunpack.c.l.b16 %v74
  %v1065 = vunpack.c.l.b16 %v75
  %v1066 = vunpack.c.l.b16 %v76
  %v1067 = vunpack.c.l.b16 %v77
  %v1068 = vunpack.c.l.b16 %v78
  %v1069 = vunpack.c.l.b16 %v79
  %v1070 = vunpack.c.l.b16 %v80
  %v1071 = vunpack.c.l.b16 %v81
  %v1072 = vunpack.c.l.b16 %v82
  %v1073 = vunpack.c.l.b16 %v83
  %v1074 = vunpack.c.l.b16 %v84
  %v1075 = vunpack.c.l.b16 %v85
  %v1076 = vunpack.c.l.b16 %v86
  %v1077 = vunpack.c.l.b16 %v87
  %v1078 = vunpack.c.l.b16 %v88
  %v1079 = vunpack.c.l.b16 %v89
  %v1080 = vunpack.c.l.b16 %v90
  %v1081 = vunpack.c.l.b16 %v91
  %v1082 = vunpack.c.l.b16 %v92
  %v1083 = vunpack.c.l.b16 %v93
  %v1084 = vunpack.c.l.b16 %v94
  %v1085 = vunpack.c.l.b16 %v95
  %v1086 = vunpack.c.l.b16 %v96
  %v1087 = vunpack.c.l.b16 %v97
  %v1088 = vunpack.c.l.b16 %v98
  %v1089 = vunpack.c.l.b16 %v99
  %v1090 = vunpack.c.l.b16 %v100
  %v1091 = vunpack.c.l.b16 %v101
  %v1092 = vunpack.c.l.b16 %v102
  %v1093 = vunpack.c.l.b16 %v103
  %v1094 = vunpack.c.l.b16 %v104
  %v1095 = vunpack.c.l.b16 %v105
  %v1096 = vunpack.c.l.b16 %v106
  %v1097 = vunpack.c.l.b16 %v107
  %v1098 = vunpack.c.l.b16 %v108
  %v1099 = vunpack.c.l.b16 %v109
  %v1100 = vunpack.c.l.b16 %v110
  %v1101 = vunpack.c.l.b16 %v111
  %v1102 = vunpack.c.l.b16 %v112
  %v1103 = vunpack.c.l.b16 %v113
  %v1104 = vunpack.c.l.b16 %v114
  %v1105 = vunpack.c.l.b16 %v115
  %v1106 = vunpack.c.l.b16 %v116
  %v1107 = vunpack.c.l.b16 %v117
  %v1108 = vunpack.c.l.b16 %v118
  %v1109 = vunpack.c.l.b16 %v119
  %v1110 = vunpack.c.l.b16 %v120
  %v1111 = vunpack.c.l.b16 %v121
  %v1112 = vunpack.c.l.b16 %v122
  %v1113 = vunpack.c.l.b16 %v123
  %v1114 = vunpack.c.l.b16 %v124
  %v1115 = vunpack.c.l.b16 %v125
  %v1116 = vunpack.c.l.b16 %v126
  %v1117 = vunpack.c.l.b16 %v127
  %v1118 = vunpack.c.l.b16 %v128
  %v1119 = vunpack.c.l.b16 %v129
  %v1120 = vunpack.c.l.b16 %v130
  %v1121 = vunpack.c.l.b16 %v131
  %v1122 = vunpack.c.l.b16 %v132
  %v1123 = vunpack.c.l.b16 %v133
  %v1124 = vunpack.c.l.b16 %v134
  %v1125 = vunpack.c.l.b16 %v135
  %v1126 = vunpack.c.l.b16 %v136
  %v1127 = vunpack.c.l.b16 %v137
  %v1128 = vunpack.c.l.b16 %v138
  %v1129 = vunpack.c.l.b16 %v139
  %v1130 = vunpack.c.l.b16 %v140
  %v1131 = vunpack.c.l.b16 %v141
  %v1132 = vunpack.c.l.b16 %v142
  %v1133 = vunpack.c.l.b16 %v143
  %v1134 = vunpack.c.l.b16 %v144
  %v1135 = vunpack.c.l.b16 %v145
  %v1136 = vunpack.c.l.b16 %v146
  %v1137 = vunpack.c.l.b16 %v147
  %v1138 = vunpack.c.l.b16 %v148
  %v1139 = vunpack.c.l.b16 %v149
  %v1140 = vunpack.c.l.b16 %v150
  %v1141 = vunpack.c.l.b16 %v151
  %v1142 = vunpack.c.l.b16 %v152
  %v1143 = vunpack.c.l.b16 %v153
  %v1144 = vunpack.c.l.b16 %v154
  %v1145 = vunpack.c.l.b16 %v155
  %v1146 = vunpack.c.l.b16 %v156
  %v1147 = vunpack.c.l.b16 %v157
  %v1148 = vunpack.c.l.b16 %v158
  %v1149 = vunpack.c.l.b16 %v159
  %v1150 = vunpack.c.l.b16 %v160
  %v1151 = vunpack.c.l.b16 %v161
  %v1152 = vunpack.c.l.b16 %v162
  %v1153 = vunpack.c.l.b16 %v163
  %v1154 = vunpack.c.l.b16 %v164
  %v1155 = vunpack.c.l.b16 %v165
  %v1156 = vunpack.c.l.b16 %v166
  %v1157 = vunpack.c.l.b16 %v167
  %v1158 = vunpack.c.l.b16 %v168
  %v1159 = vunpack.c.l.b16 %v169
  %v1160 = vunpack.c.l.b16 %v170
  %v1161 = vunpack.c.l.b16 %v171
  %v1162 = vunpack.c.l.b16 %v172
  %v1163 = vunpack.c.l.b16 %v173
  %v1164 = vunpack.c.l.b16 %v174
  %v1165 = vunpack.c.l.b16 %v175
  %v1166 = vunpack.c.l.b16 %v176
  %v1167 = vunpack.c.l.b16 %v177
  %v1168 = vunpack.c.l.b16 %v178
  %v1169 = vunpack.c.l.b16 %v179
  %v1170 = vunpack.c.l.b16 %v180
  %v1171 = vunpack.c.l.b16 %v181
  %v1172 = vunpack.c.l.b16 %v182
  %v1173 = vunpack.c.l.b16 %v183
  %v1174 = vunpack.c.l.b16 %v184
  %v1175 = vunpack.c.l.b16 %v185
  %v1176 = vunpack.c.l.b16 %v186
  %v1177 = vunpack.c.l.b16 %v187
  %v1178 = vunpack.c.l.b16 %v188
  %v1179 = vunpack.c.l.b16 %v189
  %v1180 = vunpack.c.l.b16 %v190
  %v1181 = vunpack.c.l.b16 %v191
  %v1182 = vunpack.c.l.b16 %v192
  %v1183 = vunpack.c.l.b16 %v193
  %v1184 = vunpack.c.l.b16 %v194
  %v1185 = vunpack.c.l.b16 %v195
  %v1186 = vunpack.c.l.b16 %v196
  %v1187 = vunpack.c.l.b16 %v197
  %v1188 = vunpack.c.l.b16 %v198
  %v1189 = vunpack.c.l.b16 %v199
  %v1190 = vunpack.c.l.b16 %v200
  %v1191 = vunpack.c.l.b16 %v201
  %v1192 = vunpack.c.l.b16 %v202
  %v1193 = vunpack.c.l.b16 %v203
  %v1194 = vunpack.c.l.b16 %v204
  %v1195 = vunpack.c.l.b16 %v205
  %v1196 = vunpack.c.l.b16 %v206
  %v1197 = vunpack.c.l.b16 %v207
  %v1198 = vunpack.c.l.b16 %v208
  %v1199 = vunpack.c.l.b16 %v209
  %v1200 = vunpack.c.l.b16 %v210
  %v1201 = vunpack.c.l.b16 %v211
  %v1202 = vunpack.c.l.b16 %v212
  %v1203 = vunpack.c.l.b16 %v213
  %v1204 = vunpack.c.l.b16 %v214
  %v1205 = vunpack.c.l.b16 %v215
  %v1206 = vunpack.c.l.b16 %v216
  %v1207 = vunpack.c.l.b16 %v217
  %v1208 = vunpack.c.l.b16 %v218
  %v1209 = vunpack.c.l.b16 %v219
  %v1210 = vunpack.c.l.b16 %v220
  %v1211 = vunpack.c.l.b16 %v221
  %v1212 = vunpack.c.l.b16 %v222
  %v1213 = vunpack.c.l.b16 %v223
  %v1214 = vunpack.c.l.b16 %v224
  %v1215 = vunpack.c.l.b16 %v225
  %v1216 = vunpack.c.l.b16 %v226
  %v1217 = vunpack.c.l.b16 %v227
  %v1218 = vunpack.c.l.b16 %v228
  %v1219 = vunpack.c.l.b16 %v229
  %v1220 = vunpack.c.l.b16 %v230
  %v1221 = vunpack.c.l.b16 %v231
  %v1222 = vunpack.c.l.b16 %v232
  %v1223 = vunpack.c.l.b16 %v233
  %v1224 = vunpack.c.l.b16 %v234
  %v1225 = vunpack.c.l.b16 %v235
  %v1226 = vunpack.c.l.b16 %v236
  %v1227 = vunpack.c.l.b16 %v237
  %v1228 = vunpack.c.l.b16 %v238
  %v1229 = vunpack.c.l.b16 %v239
  %v1230 = vunpack.c.l.b16 %v240
  %v1231 = vunpack.c.l.b16 %v241
  %v1232 = vunpack.c.l.b16 %v242
  %v1233 = vunpack.c.l.b16 %v243
  %v1234 = vunpack.c.l.b16 %v244
  %v1235 = vunpack.c.l.b16 %v245
  %v1236 = vunpack.c.l.b16 %v246
  %v1237 = vunpack.c.l.b16 %v247
  %v1238 = vunpack.c.l.b16 %v248
  %v1239 = vunpack.c.l.b16 %v249
  %v1240 = vunpack.c.l.b16 %v250
  %v1241 = vunpack.c.l.b16 %v251
  %v1242 = vunpack.c.l.b16 %v252
  %v1243 = vunpack.c.l.b16 %v253
  %v1244 = vunpack.c.l.b16 %v254
  %v1245 = vunpack.c.l.b16 %v255
  %v1246 = vunpack.c.l.b16 %v256
  %v1247 = vunpack.c.l.b16 %v257
  %v1248 = vunpack.c.l.b16 %v258
  %v1249 = vunpack.c.l.b16 %v259
  %v1250 = vunpack.c.l.b16 %v260
  %v1251 = vunpack.c.l.b16 %v261
  %v1252 = vunpack.c.l.b16 %v262
  %v1253 = vunpack.c.l.b16 %v263
  %v1254 = vunpack.c.l.b16 %v264
  %v1255 = vunpack.c.l.b16 %v265
  %v1256 = vunpack.c.l.b16 %v266
  %v1257 = vunpack.c.l.b16 %v267
  %v1258 = vunpack.c.l.b16 %v268
  %v1259 = vunpack.c.l.b16 %v269
  %v1260 = vunpack.c.l.b16 %v270
  %v1261 = vunpack.c.l.b16 %v271
  %v1262 = vunpack.c.l.b16 %v272
  %v1263 = vunpack.c.l.b16 %v273
  %v1264 = vunpack.c.l.b16 %v274
  %v1265 = vunpack.c.l.b16 %v275
  %v1266 = vunpack.c.l.b16 %v276
  %v1267 = vunpack.c.l.b16 %v277
  %v1268 = vunpack.c.l.b16 %v278
  %v1269 = vunpack.c.l.b16 %v279
  %v1270 = vunpack.c.l.b16 %v280
  %v1271 = vunpack.c.l.b16 %v281
  %v1272 = vunpack.c.l.b16 %v282
  %v1273 = vunpack.c.l.b16 %v283
  %v1274 = vunpack.c.l.b16 %v284
  %v1275 = vunpack.c.l.b16 %v285
  %v1276 = vunpack.c.l.b16 %v286
  %v1277 = vunpack.c.l.b16 %v287
  %v1278 = vunpack.c.l.b16 %v288
  %v1279 = vunpack.c.l.b16 %v289
  %v1280 = vunpack.c.l.b16 %v290
  %v1281 = vunpack.c.l.b16 %v291
  %v1282 = vunpack.c.l.b16 %v292
  %v1283 = vunpack.c.l.b16 %v293
  %v1284 = vunpack.c.l.b16 %v294
  %v1285 = vunpack.c.l.b16 %v295
  %v1286 = vunpack.c.l.b16 %v296
  %v1287 = vunpack.c.l.b16 %v297
  %v1288 = vunpack.c.l.b16 %v298
  %v1289 = vunpack.c.l.b16 %v299
  %v1290 = vunpack.c.l.b16 %v300
  %v1291 = vunpack.c.l.b16 %v301
  %v1292 = vunpack.c.l.b16 %v302
  %v1293 = vunpack.c.l.b16 %v303
  %v1294 = vunpack.c.l.b16 %v304
  %v1295 = vunpack.c.l.b16 %v305
  %v1296 = vunpack.c.l.b16 %v306
  %v1297 = vunpack.c.l.b16 %v307
  %v1298 = vunpack.c.l.b16 %v308
  %v1299 = vunpack.c.l.b16 %v309
  %v1300 = vunpack.c.l.b16 %v310
  %v1301 = vunpack.c.l.b16 %v311
  %v1302 = vunpack.c.l.b16 %v312
  %v1303 = vunpack.c.l.b16 %v313
  %v1304 = vunpack.c.l.b16 %v314
  %v1305 = vunpack.c.l.b16 %v315
  %v1306 = vunpack.c.l.b16 %v316
  %v1307 = vunpack.c.l.b16 %v317
  %v1308 = vunpack.c.l.b16 %v318
  %v1309 = vunpack.c.l.b16 %v319
  %v1310 = vunpack.c.l.b16 %v320
  %v1311 = vunpack.c.l.b16 %v321
  %v1312 = vunpack.c.l.b16 %v322
  %v1313 = vunpack.c.l.b16 %v323
  %v1314 = vunpack.c.l.b16 %v324
  %v1315 = vunpack.c.l.b16 %v325
  %v1316 = vunpack.c.l.b16 %v326
  %v1317 = vunpack.c.l.b16 %v327
  %v1318 = vunpack.c.l.b16 %v328
  %v1319 = vunpack.c.l.b16 %v329
  %v1320 = vunpack.c.l.b16 %v330
  %v1321 = vunpack.c.l.b16 %v331
  %v1322 = vunpack.c.l.b16 %v332
  %v1323 = vunpack.c.l.b16 %v333
  %v1324 = vunpack.c.l.b16 %v334
  %v1325 = vunpack.c.l.b16 %v335
  %v1326 = vunpack.c.l.b16 %v336
  %v1327 = vunpack.c.l.b16 %v337
  %v1328 = vunpack.c.l.b16 %v338
  %v1329 = vunpack.c.l.b16 %v339
  %v1330 = vunpack.c.l.b16 %v340
  %v1331 = vunpack.c.l.b16 %v341
  %v1332 = vunpack.c.l.b16 %v342
  %v1333 = vunpack.c.l.b16 %v343
  %v1334 = vunpack.c.l.b16 %v344
  %v1335 = vunpack.c.l.b16 %v345
  %v1336 = vunpack.c.l.b16 %v346
  %v1337 = vunpack.c.l.b16 %v347
  %v1338 = vunpack.c.l.b16 %v348
  %v1339 = vunpack.c.l.b16 %v349
  %v1340 = vunpack.c.l.b16 %v350
  %v1341 = vunpack.c.l.b16 %v351
  %v1342 = vunpack.c.l.b16 %v352
  %v1343 = vunpack.c.l.b16 %v353
  %v1344 = vunpack.c.l.b16 %v354
  %v1345 = vunpack.c.l.b16 %v355
  %v1346 = vunpack.c.l.b16 %v356
  %v1347 = vunpack.c.l.b16 %v357
  %v1348 = vunpack.c.l.b16 %v358
  %v1349 = vunpack.c.l.b16 %v359
  %v1350 = vunpack.c.l.b16 %v360
  %v1351 = vunpack.c.l.b16 %v361
  %v1352 = vunpack.c.l.b16 %v362
  %v1353 = vunpack.c.l.b16 %v363
  %v1354 = vunpack.c.l.b16 %v364
  %v1355 = vunpack.c.l.b16 %v365
  %v1356 = vunpack.c.l.b16 %v366
  %v1357 = vunpack.c.l.b16 %v367
  %v1358 = vunpack.c.l.b16 %v368
  %v1359 = vunpack.c.l.b16 %v369
  %v1360 = vunpack.c.l.b16 %v370
  %v1361 = vunpack.c.l.b16 %v371
  %v1362 = vunpack.c.l.b16 %v372
  %v1363 = vunpack.c.l.b16 %v373
  %v1364 = vunpack.c.l.b16 %v374
  %v1365 = vunpack.c.l.b16 %v375
  %v1366 = vunpack.c.l.b16 %v376
  %v1367 = vunpack.c.l.b16 %v377
  %v1368 = vunpack.c.l.b16 %v378
  %v1369 = vunpack.c.l.b16 %v379
  %v1370 = vunpack.c.l.b16 %v380
  %v1371 = vunpack.c.l.b16 %v381
  %v1372 = vunpack.c.l.b16 %v382
  %v1373 = vunpack.c.l.b16 %v383
  %v1374 = vunpack.c.l.b16 %v384
  %v1375 = vunpack.c.l.b16 %v385
  %v1376 = vunpack.c.l.b16 %v386
  %v1377 = vunpack.c.l.b16 %v387
  %v1378 = vunpack.c.l.b16 %v388
  %v1379 = vunpack.c.l.b16 %v389
  %v1380 = vunpack.c.l.b16 %v390
  %v1381 = vunpack.c.l.b16 %v391
  %v1382 = vunpack.c.l.b16 %v392
  %v1383 = vunpack.c.l.b16 %v393
  %v1384 = vunpack.c.l.b16 %v394
  %v1385 = vunpack.c.l.b16 %v395
  %v1386 = vunpack.c.l.b16 %v396
  %v1387 = vunpack.c.l.b16 %v397
  %v1388 = vunpack.c.l.b16 %v398
  %v1389 = vunpack.c.l.b16 %v399
  %v1390 = vunpack.c.l.b16 %v400
  %v1391 = vunpack.c.l.b16 %v401
  %v1392 = vunpack.c.l.b16 %v402
  %v1393 = vunpack.c.l.b16 %v403
  %v1394 = vunpack.c.l.b16 %v404
  %v1395 = vunpack.c.l.b16 %v405
  %v1396 = vunpack.c.l.b16 %v406
  %v1397 = vunpack.c.l.b16 %v407
  %v1398 = vunpack.c.l.b16 %v408
  %v1399 = vunpack.c.l.b16 %v409
  %v1400 = vunpack.c.l.b16 %v410
  %v1401 = vunpack.c.l.b16 %v411
  %v1402 = vunpack.c.l.b16 %v412
  %v1403 = vunpack.c.l.b16 %v413
  %v1404 = vunpack.c.l.b16 %v414
  %v1405 = vunpack.c.l.b16 %v415
  %v1406 = vunpack.c.l.b16 %v416
  %v1407 = vunpack.c.l.b16 %v417
  %v1408 = vunpack.c.l.b16 %v418
  %v1409 = vunpack.c.l.b16 %v419
  %v1410 = vunpack.c.l.b16 %v420
  %v1411 = vunpack.c.l.b16 %v421
  %v1412 = vunpack.c.l.b16 %v422
  %v1413 = vunpack.c.l.b16 %v423
  %v1414 = vunpack.c.l.b16 %v424
  %v1415 = vunpack.c.l.b16 %v425
  %v1416 = vunpack.c.l.b16 %v426
  %v1417 = vunpack.c.l.b16 %v427
  %v1418 = vunpack.c.l.b16 %v428
  %v1419 = vunpack.c.l.b16 %v429
  %v1420 = vpack.c.b16 %v1021, %v1020
  %v1421 = vpack.c.b16 %v1023, %v1022
  %v1422 = vpack.c.b16 %v1025, %v1024
  %v1423 = vpack.c.b16 %v1027, %v1026
  %v1424 = vpack.c.b16 %v1029, %v1028
  %v1425 = vpack.c.b16 %v1031, %v1030
  %v1426 = vpack.c.b16 %v1033, %v1032
  %v1427 = vpack.c.b16 %v1035, %v1034
  %v1428 = vpack.c.b16 %v1037, %v1036
  %v1429 = vpack.c.b16 %v1039, %v1038
  %v1430 = vpack.c.b16 %v1041, %v1040
  %v1431 = vpack.c.b16 %v1043, %v1042
  %v1432 = vpack.c.b16 %v1045, %v1044
  %v1433 = vpack.c.b16 %v1047, %v1046
  %v1434 = vpack.c.b16 %v1049, %v1048
  %v1435 = vpack.c.b16 %v1051, %v1050
  %v1436 = vpack.c.b16 %v1053, %v1052
  %v1437 = vpack.c.b16 %v1055, %v1054
  %v1438 = vpack.c.b16 %v1057, %v1056
  %v1439 = vpack.c.b16 %v1059, %v1058
  %v1440 = vpack.c.b16 %v1061, %v1060
  %v1441 = vpack.c.b16 %v1063, %v1062
  %v1442 = vpack.c.b16 %v1065, %v1064
  %v1443 = vpack.c.b16 %v1067, %v1066
  %v1444 = vpack.c.b16 %v1069, %v1068
  %v1445 = vpack.c.b16 %v1071, %v1070
  %v1446 = vpack.c.b16 %v1073, %v1072
  %v1447 = vpack.c.b16 %v1075, %v1074
  %v1448 = vpack.c.b16 %v1077, %v1076
  %v1449 = vpack.c.b16 %v1079, %v1078
  %v1450 = vpack.c.b16 %v1081, %v1080
  %v1451 = vpack.c.b16 %v1083, %v1082
  %v1452 = vpack.c.b16 %v1085, %v1084
  %v1453 = vpack.c.b16 %v1087, %v1086
  %v1454 = vpack.c.b16 %v1089, %v1088
  %v1455 = vpack.c.b16 %v1091, %v1090
  %v1456 = vpack.c.b16 %v1093, %v1092
  %v1457 = vpack.c.b16 %v1095, %v1094
  %v1458 = vpack.c.b16 %v1097, %v1096
  %v1459 = vpack.c.b16 %v1099, %v1098
  %v1460 = vpack.c.b16 %v1101, %v1100
  %v1461 = vpack.c.b16 %v1103, %v1102
  %v1462 = vpack.c.b16 %v1105, %v1104
  %v1463 = vpack.c.b16 %v1107, %v1106
  %v1464 = vpack.c.b16 %v1109, %v1108
  %v1465 = vpack.c.b16 %v1111, %v1110
  %v1466 = vpack.c.b16 %v1113, %v1112
  %v1467 = vpack.c.b16 %v1115, %v1114
  %v1468 = vpack.c.b16 %v1117, %v1116
  %v1469 = vpack.c.b16 %v1119, %v1118
  %v1470 = vpack.c.b16 %v1121, %v1120
  %v1471 = vpack.c.b16 %v1123, %v1122
  %v1472 = vpack.c.b16 %v1125, %v1124
  %v1473 = vpack.c.b16 %v1127, %v1126
  %v1474 = vpack.c.b16 %v1129, %v1128
  %v1475 = vpack.c.b16 %v1131, %v1130
  %v1476 = vpack.c.b16 %v1133, %v1132
  %v1477 = vpack.c.b16 %v1135, %v1134
  %v1478 = vpack.c.b16 %v1137, %v1136
  %v1479 = vpack.c.b16 %v1139, %v1138
  %v1480 = vpack.c.b16 %v1141, %v1140
  %v1481 = vpack.c.b16 %v1143, %v1142
  %v1482 = vpack.c.b16 %v1145, %v1144
  %v1483 = vpack.c.b16 %v1147, %v1146
  %v1484 = vpack.c.b16 %v1149, %v1148
  %v1485 = vpack.c.b16 %v1151, %v1150
  %v1486 = vpack.c.b16 %v1153, %v1152
  %v1487 = vpack.c.b16 %v1155, %v1154
  %v1488 = vpack.c.b16 %v1157, %v1156
  %v1489 = vpack.c.b16 %v1159, %v1158
  %v1490 = vpack.c.b16 %v1161, %v1160
  %v1491 = vpack.c.b16 %v1163, %v1162
  %v1492 = vpack.c.b16 %v1165, %v1164
  %v1493 = vpack.c.b16 %v1167, %v1166
  %v1494 = vpack.c.b16 %v1169, %v1168
  %v1495 = vpack.c.b16 %v1171, %v1170
  %v1496 = vpack.c.b16 %v1173, %v1172
  %v1497 = vpack.c.b16 %v1175, %v1174
  %v1498 = vpack.c.b16 %v1177, %v1176
  %v1499 = vpack.c.b16 %v1179, %v1178
  %v1500 = vpack.c.b16 %v1181, %v1180
  %v1501 = vpack.c.b16 %v1183, %v1182
  %v1502 = vpack.c.b16 %v1185, %v1184
  %v1503 = vpack.c.b16 %v1187, %v1186
  %v1504 = vpack.c.b16 %v1189, %v1188
  %v1505 = vpack.c.b16 %v1191, %v1190
  %v1506 = vpack.c.b16 %v1193, %v1192
  %v1507 = vpack.c.b16 %v1195, %v1194
  %v1508 = vpack.c.b16 %v1197, %v1196
  %v1509 = vpack.c.b16 %v1199, %v1198
  %v1510 = vpack.c.b16 %v1201, %v1200
  %v1511 = vpack.c.b16 %v1203, %v1202
  %v1512 = vpack.c.b16 %v1205, %v1204
  %v1513 = vpack.c.b16 %v1207, %v1206
  %v1514 = vpack.c.b16 %v1209, %v1208
  %v1515 = vpack.c.b16 %v1211, %v1210
  %v1516 = vpack.c.b16 %v1213, %v1212
  %v1517 = vpack.c.b16 %v1215, %v1214
  %v1518 = vpack.c.b16 %v1217, %v1216
  %v1519 = vpack.c.b16 %v1219, %v1218
  %v1520 = vpack.c.b16 %v1221, %v1220
  %v1521 = vpack.c.b16 %v1223, %v1222
  %v1522 = vpack.c.b16 %v1225, %v1224
  %v1523 = vpack.c.b16 %v1227, %v1226
  %v1524 = vpack.c.b16 %v1229, %v1228
  %v1525 = vpack.c.b16 %v1231, %v1230
  %v1526 = vpack.c.b16 %v1233, %v1232
  %v1527 = vpack.c.b16 %v1235, %v1234
  %v1528 = vpack.c.b16 %v1237, %v1236
  %v1529 = vpack.c.b16 %v1239, %v1238
  %v1530 = vpack.c.b16 %v1241, %v1240
  %v1531 = vpack.c.b16 %v1243, %v1242
  %v1532 = vpack.c.b16 %v1245, %v1244
  %v1533 = vpack.c.b16 %v1247, %v1246
  %v1534 = vpack.c.b16 %v1249, %v1248
  %v1535 = vpack.c.b16 %v1251, %v1250
  %v1536 = vpack.c.b16 %v1253, %v1252
  %v1537 = vpack.c.b16 %v1255, %v1254
  %v1538 = vpack.c.b16 %v1257, %v1256
  %v1539 = vpack.c.b16 %v1259, %v1258
  %v1540 = vpack.c.b16 %v1261, %v1260
  %v1541 = vpack.c.b16 %v1263, %v1262
  %v1542 = vpack.c.b16 %v1265, %v1264
  %v1543 = vpack.c.b16 %v1267, %v1266
  %v1544 = vpack.c.b16 %v1269, %v1268
  %v1545 = vpack.c.b16 %v1271, %v1270
  %v1546 = vpack.c.b16 %v1273, %v1272
  %v1547 = vpack.c.b16 %v1275, %v1274
  %v1548 = vpack.c.b16 %v1277, %v1276
  %v1549 = vpack.c.b16 %v1279, %v1278
  %v1550 = vpack.c.b16 %v1281, %v1280
  %v1551 = vpack.c.b16 %v1283, %v1282
  %v1552 = vpack.c.b16 %v1285, %v1284
  %v1553 = vpack.c.b16 %v1287, %v1286
  %v1554 = vpack.c.b16 %v1289, %v1288
  %v1555 = vpack.c.b16 %v1291, %v1290
  %v1556 = vpack.c.b16 %v1293, %v1292
  %v1557 = vpack.c.b16 %v1295, %v1294
  %v1558 = vpack.c.b16 %v1297, %v1296
  %v1559 = vpack.c.b16 %v1299, %v1298
  %v1560 = vpack.c.b16 %v1301, %v1300
  %v1561 = vpack.c.b16 %v1303, %v1302
  %v1562 = vpack.c.b16 %v1305, %v1304
  %v1563 = vpack.c.b16 %v1307, %v1306
  %v1564 = vpack.c.b16 %v1309, %v1308
  %v1565 = vpack.c.b16 %v1311, %v1310
  %v1566 = vpack.c.b16 %v1313, %v1312
  %v1567 = vpack.c.b16 %v1315, %v1314
  %v1568 = vpack.c.b16 %v1317, %v1316
  %v1569 = vpack.c.b16 %v1319, %v1318
  %v1570 = vpack.c.b16 %v1321, %v1320
  %v1571 = vpack.c.b16 %v1323, %v1322
  %v1572 = vpack.c.b16 %v1325, %v1324
  %v1573 = vpack.c.b16 %v1327, %v1326
  %v1574 = vpack.c.b16 %v1329, %v1328
  %v1575 = vpack.c.b16 %v1331, %v1330
  %v1576 = vpack.c.b16 %v1333, %v1332
  %v1577 = vpack.c.b16 %v1335, %v1334
  %v1578 = vpack.c.b16 %v1337, %v1336
  %v1579 = vpack.c.b16 %v1339, %v1338
  %v1580 = vpack.c.b16 %v1341, %v1340
  %v1581 = vpack.c.b16 %v1343, %v1342
  %v1582 = vpack.c.b16 %v1345, %v1344
  %v1583 = vpack.c.b16 %v1347, %v1346
  %v1584 = vpack.c.b16 %v1349, %v1348
  %v1585 = vpack.c.b16 %v1351, %v1350
  %v1586 = vpack.c.b16 %v1353, %v1352
  %v1587 = vpack.c.b16 %v1355, %v1354
  %v1588 = vpack.c.b16 %v1357, %v1356
  %v1589 = vpack.c.b16 %v1359, %v1358
  %v1590 = vpack.c.b16 %v1361, %v1360
  %v1591 = vpack.c.b16 %v1363, %v1362
  %v1592 = vpack.c.b16 %v1365, %v1364
  %v1593 = vpack.c.b16 %v1367, %v1366
  %v1594 = vpack.c.b16 %v1369, %v1368
  %v1595 = vpack.c.b16 %v1371, %v1370
  %v1596 = vpack.c.b16 %v1373, %v1372
  %v1597 = vpack.c.b16 %v1375, %v1374
  %v1598 = vpack.c.b16 %v1377, %v1376
  %v1599 = vpack.c.b16 %v1379, %v1378
  %v1600 = vpack.c.b16 %v1381, %v1380
  %v1601 = vpack.c.b16 %v1383, %v1382
  %v1602 = vpack.c.b16 %v1385, %v1384
  %v1603 = vpack.c.b16 %v1387, %v1386
  %v1604 = vpack.c.b16 %v1389, %v1388
  %v1605 = vpack.c.b16 %v1391, %v1390
  %v1606 = vpack.c.b16 %v1393, %v1392
  %v1607 = vpack.c.b16 %v1395, %v1394
  %v1608 = vpack.c.b16 %v1397, %v1396
  %v1609 = vpack.c.b16 %v1399, %v1398
  %v1610 = vpack.c.b16 %v1401, %v1400
  %v1611 = vpack.c.b16 %v1403, %v1402
  %v1612 = vpack.c.b16 %v1405, %v1404
  %v1613 = vpack.c.b16 %v1407, %v1406
  %v1614 = vpack.c.b16 %v1409, %v1408
  %v1615 = vpack.c.b16 %v1411, %v1410
  %v1616 = vpack.c.b16 %v1413, %v1412
  %v1617 = vpack.c.b16 %v1415, %v1414
  %v1618 = vpack.c.b16 %v1417, %v1416
  %v1619 = vpack.c.b16 %v1419, %v1418
  %1820 = vmatprep.subr.bf16.mxu0 0
  %1821 = vmatpush1.bf16.msra.mxu0 %v1427
  %1822 = vmatprep.subr.bf16.mxu0 0
  %1823 = vmatpush1.bf16.msra.mxu0 %v1426
  %1824 = vmatprep.subr.bf16.mxu0 0
  %1825 = vmatpush1.bf16.msra.mxu0 %v1425
  %1826 = vmatprep.subr.bf16.mxu0 0
  %1827 = vmatpush1.bf16.msra.mxu0 %v1424
  %1828 = vmatprep.subr.bf16.mxu0 0
  %1829 = vmatpush1.bf16.msra.mxu0 %v1423
  %1830 = vmatprep.subr.bf16.mxu0 0
  %1831 = vmatpush1.bf16.msra.mxu0 %v1422
  %1832 = vmatprep.subr.bf16.mxu0 0
  %1833 = vmatpush1.bf16.msra.mxu0 %v1421
  %1834 = vmatprep.subr.bf16.mxu0 0
  %1835 = vmatpush1.bf16.msra.mxu0 %v1420
  %1836 = vmatprep.subr.bf16.mxu0 0
  %1837 = vmatpush2.bf16.msra.mxu0 %v1435
  %1838 = vmatprep.subr.bf16.mxu0 0
  %1839 = vmatpush2.bf16.msra.mxu0 %v1434
  %1840 = vmatprep.subr.bf16.mxu0 0
  %1841 = vmatpush2.bf16.msra.mxu0 %v1433
  %1842 = vmatprep.subr.bf16.mxu0 0
  %1843 = vmatpush2.bf16.msra.mxu0 %v1432
  %1844 = vmatprep.subr.bf16.mxu0 0
  %1845 = vmatpush2.bf16.msra.mxu0 %v1431
  %1846 = vmatprep.subr.bf16.mxu0 0
  %1847 = vmatpush2.bf16.msra.mxu0 %v1430
  %1848 = vmatprep.subr.bf16.mxu0 0
  %1849 = vmatpush2.bf16.msra.mxu0 %v1429
  %1850 = vmatprep.subr.bf16.mxu0 0
  %1851 = vmatpush2.bf16.msra.mxu0 %v1428
  %1852 = vmatprep.mubr.bf16.mxu0 %v471
  %1853 = vmatmul.mubr.bf16.gmra.mxu0 %v457
  %v1854 = vpop.f32.mrf.mxu0
  %v1855 = vadd.f32 0.0, %v1854
  %v1856 = vpop.f32.mrf.mxu0
  %v1857 = vpop.f32.mrf.mxu0
  %v1858 = vpop.f32.mrf.mxu0
  %1859 = vdwg.mxu0
  %1860 = vmatprep.subr.bf16.mxu0 0
  %1861 = vmatpush1.bf16.msra.mxu0 %v1443
  %1862 = vmatprep.subr.bf16.mxu0 0
  %1863 = vmatpush1.bf16.msra.mxu0 %v1442
  %1864 = vmatprep.subr.bf16.mxu0 0
  %1865 = vmatpush1.bf16.msra.mxu0 %v1441
  %1866 = vmatprep.subr.bf16.mxu0 0
  %1867 = vmatpush1.bf16.msra.mxu0 %v1440
  %1868 = vmatprep.subr.bf16.mxu0 0
  %1869 = vmatpush1.bf16.msra.mxu0 %v1439
  %1870 = vmatprep.subr.bf16.mxu0 0
  %1871 = vmatpush1.bf16.msra.mxu0 %v1438
  %1872 = vmatprep.subr.bf16.mxu0 0
  %1873 = vmatpush1.bf16.msra.mxu0 %v1437
  %1874 = vmatprep.subr.bf16.mxu0 0
  %1875 = vmatpush1.bf16.msra.mxu0 %v1436
  %1876 = vmatprep.subr.bf16.mxu0 0
  %1877 = vmatpush2.bf16.msra.mxu0 %v1451
  %1878 = vmatprep.subr.bf16.mxu0 0
  %1879 = vmatpush2.bf16.msra.mxu0 %v1450
  %1880 = vmatprep.subr.bf16.mxu0 0
  %1881 = vmatpush2.bf16.msra.mxu0 %v1449
  %1882 = vmatprep.subr.bf16.mxu0 0
  %1883 = vmatpush2.bf16.msra.mxu0 %v1448
  %1884 = vmatprep.subr.bf16.mxu0 0
  %1885 = vmatpush2.bf16.msra.mxu0 %v1447
  %1886 = vmatprep.subr.bf16.mxu0 0
  %1887 = vmatpush2.bf16.msra.mxu0 %v1446
  %1888 = vmatprep.subr.bf16.mxu0 0
  %1889 = vmatpush2.bf16.msra.mxu0 %v1445
  %1890 = vmatprep.subr.bf16.mxu0 0
  %1891 = vmatpush2.bf16.msra.mxu0 %v1444
  %1892 = vmatprep.mubr.bf16.mxu0 %v481
  %1893 = vmatmul.mubr.bf16.gmra.mxu0 %v479
  %v1894 = vpop.f32.mrf.mxu0
  %v1895 = vadd.f32 %v1855, %v1894
  %v1896 = vpop.f32.mrf.mxu0
  %v1897 = vpop.f32.mrf.mxu0
  %v1898 = vpop.f32.mrf.mxu0
  %1899 = vdwg.mxu0
  %1900 = vmatprep.subr.bf16.mxu0 0
  %1901 = vmatpush1.bf16.msra.mxu0 %v1459
  %1902 = vmatprep.subr.bf16.mxu0 0
  %1903 = vmatpush1.bf16.msra.mxu0 %v1458
  %1904 = vmatprep.subr.bf16.mxu0 0
  %1905 = vmatpush1.bf16.msra.mxu0 %v1457
  %1906 = vmatprep.subr.bf16.mxu0 0
  %1907 = vmatpush1.bf16.msra.mxu0 %v1456
  %1908 = vmatprep.subr.bf16.mxu0 0
  %1909 = vmatpush1.bf16.msra.mxu0 %v1455
  %1910 = vmatprep.subr.bf16.mxu0 0
  %1911 = vmatpush1.bf16.msra.mxu0 %v1454
  %1912 = vmatprep.subr.bf16.mxu0 0
  %1913 = vmatpush1.bf16.msra.mxu0 %v1453
  %1914 = vmatprep.subr.bf16.mxu0 0
  %1915 = vmatpush1.bf16.msra.mxu0 %v1452
  %1916 = vmatprep.subr.bf16.mxu0 0
  %1917 = vmatpush2.bf16.msra.mxu0 %v1467
  %1918 = vmatprep.subr.bf16.mxu0 0
  %1919 = vmatpush2.bf16.msra.mxu0 %v1466
  %1920 = vmatprep.subr.bf16.mxu0 0
  %1921 = vmatpush2.bf16.msra.mxu0 %v1465
  %1922 = vmatprep.subr.bf16.mxu0 0
  %1923 = vmatpush2.bf16.msra.mxu0 %v1464
  %1924 = vmatprep.subr.bf16.mxu0 0
  %1925 = vmatpush2.bf16.msra.mxu0 %v1463
  %1926 = vmatprep.subr.bf16.mxu0 0
  %1927 = vmatpush2.bf16.msra.mxu0 %v1462
  %1928 = vmatprep.subr.bf16.mxu0 0
  %1929 = vmatpush2.bf16.msra.mxu0 %v1461
  %1930 = vmatprep.subr.bf16.mxu0 0
  %1931 = vmatpush2.bf16.msra.mxu0 %v1460
  %1932 = vmatprep.mubr.bf16.mxu0 %v478
  %1933 = vmatmul.mubr.bf16.gmra.mxu0 %v464
  %v1934 = vpop.f32.mrf.mxu0
  %v1935 = vadd.f32 %v1895, %v1934
  %v1936 = vpop.f32.mrf.mxu0
  %v1937 = vpop.f32.mrf.mxu0
  %v1938 = vpop.f32.mrf.mxu0
  %1939 = vdwg.mxu0
  %1940 = vmatprep.subr.bf16.mxu0 0
  %1941 = vmatpush1.bf16.msra.mxu0 %v1475
  %1942 = vmatprep.subr.bf16.mxu0 0
  %1943 = vmatpush1.bf16.msra.mxu0 %v1474
  %1944 = vmatprep.subr.bf16.mxu0 0
  %1945 = vmatpush1.bf16.msra.mxu0 %v1473
  %1946 = vmatprep.subr.bf16.mxu0 0
  %1947 = vmatpush1.bf16.msra.mxu0 %v1472
  %1948 = vmatprep.subr.bf16.mxu0 0
  %1949 = vmatpush1.bf16.msra.mxu0 %v1471
  %1950 = vmatprep.subr.bf16.mxu0 0
  %1951 = vmatpush1.bf16.msra.mxu0 %v1470
  %1952 = vmatprep.subr.bf16.mxu0 0
  %1953 = vmatpush1.bf16.msra.mxu0 %v1469
  %1954 = vmatprep.subr.bf16.mxu0 0
  %1955 = vmatpush1.bf16.msra.mxu0 %v1468
  %1956 = vmatprep.subr.bf16.mxu0 0
  %1957 = vmatpush2.bf16.msra.mxu0 %v1483
  %1958 = vmatprep.subr.bf16.mxu0 0
  %1959 = vmatpush2.bf16.msra.mxu0 %v1482
  %1960 = vmatprep.subr.bf16.mxu0 0
  %1961 = vmatpush2.bf16.msra.mxu0 %v1481
  %1962 = vmatprep.subr.bf16.mxu0 0
  %1963 = vmatpush2.bf16.msra.mxu0 %v1480
  %1964 = vmatprep.subr.bf16.mxu0 0
  %1965 = vmatpush2.bf16.msra.mxu0 %v1479
  %1966 = vmatprep.subr.bf16.mxu0 0
  %1967 = vmatpush2.bf16.msra.mxu0 %v1478
  %1968 = vmatprep.subr.bf16.mxu0 0
  %1969 = vmatpush2.bf16.msra.mxu0 %v1477
  %1970 = vmatprep.subr.bf16.mxu0 0
  %1971 = vmatpush2.bf16.msra.mxu0 %v1476
  %1972 = vmatprep.mubr.bf16.mxu0 %v482
  %1973 = vmatmul.mubr.bf16.gmra.mxu0 %v480
  %v1974 = vpop.f32.mrf.mxu0
  %v1975 = vadd.f32 %v1935, %v1974
  %v1976 = vpop.f32.mrf.mxu0
  %v1977 = vpop.f32.mrf.mxu0
  %v1978 = vpop.f32.mrf.mxu0
  %1979 = vdwg.mxu0
  %1980 = vmatprep.subr.bf16.mxu0 0
  %1981 = vmatpush1.bf16.msra.mxu0 %v1491
  %1982 = vmatprep.subr.bf16.mxu0 0
  %1983 = vmatpush1.bf16.msra.mxu0 %v1490
  %1984 = vmatprep.subr.bf16.mxu0 0
  %1985 = vmatpush1.bf16.msra.mxu0 %v1489
  %1986 = vmatprep.subr.bf16.mxu0 0
  %1987 = vmatpush1.bf16.msra.mxu0 %v1488
  %1988 = vmatprep.subr.bf16.mxu0 0
  %1989 = vmatpush1.bf16.msra.mxu0 %v1487
  %1990 = vmatprep.subr.bf16.mxu0 0
  %1991 = vmatpush1.bf16.msra.mxu0 %v1486
  %1992 = vmatprep.subr.bf16.mxu0 0
  %1993 = vmatpush1.bf16.msra.mxu0 %v1485
  %1994 = vmatprep.subr.bf16.mxu0 0
  %1995 = vmatpush1.bf16.msra.mxu0 %v1484
  %1996 = vmatprep.subr.bf16.mxu0 0
  %1997 = vmatpush2.bf16.msra.mxu0 %v1499
  %1998 = vmatprep.subr.bf16.mxu0 0
  %1999 = vmatpush2.bf16.msra.mxu0 %v1498
  %2000 = vmatprep.subr.bf16.mxu0 0
  %2001 = vmatpush2.bf16.msra.mxu0 %v1497
  %2002 = vmatprep.subr.bf16.mxu0 0
  %2003 = vmatpush2.bf16.msra.mxu0 %v1496
  %2004 = vmatprep.subr.bf16.mxu0 0
  %2005 = vmatpush2.bf16.msra.mxu0 %v1495
  %2006 = vmatprep.subr.bf16.mxu0 0
  %2007 = vmatpush2.bf16.msra.mxu0 %v1494
  %2008 = vmatprep.subr.bf16.mxu0 0
  %2009 = vmatpush2.bf16.msra.mxu0 %v1493
  %2010 = vmatprep.subr.bf16.mxu0 0
  %2011 = vmatpush2.bf16.msra.mxu0 %v1492
  %2012 = vmatprep.mubr.bf16.mxu0 %v520
  %2013 = vmatmul.mubr.bf16.gmra.mxu0 %v506
  %v2014 = vpop.f32.mrf.mxu0
  %v2015 = vadd.f32 %v1975, %v2014
  %v2016 = vpop.f32.mrf.mxu0
  %v2017 = vpop.f32.mrf.mxu0
  %v2018 = vpop.f32.mrf.mxu0
  %2019 = vdwg.mxu0
  %2020 = vmatprep.subr.bf16.mxu0 0
  %2021 = vmatpush1.bf16.msra.mxu0 %v1507
  %2022 = vmatprep.subr.bf16.mxu0 0
  %2023 = vmatpush1.bf16.msra.mxu0 %v1506
  %2024 = vmatprep.subr.bf16.mxu0 0
  %2025 = vmatpush1.bf16.msra.mxu0 %v1505
  %2026 = vmatprep.subr.bf16.mxu0 0
  %2027 = vmatpush1.bf16.msra.mxu0 %v1504
  %2028 = vmatprep.subr.bf16.mxu0 0
  %2029 = vmatpush1.bf16.msra.mxu0 %v1503
  %2030 = vmatprep.subr.bf16.mxu0 0
  %2031 = vmatpush1.bf16.msra.mxu0 %v1502
  %2032 = vmatprep.subr.bf16.mxu0 0
  %2033 = vmatpush1.bf16.msra.mxu0 %v1501
  %2034 = vmatprep.subr.bf16.mxu0 0
  %2035 = vmatpush1.bf16.msra.mxu0 %v1500
  %2036 = vmatprep.subr.bf16.mxu0 0
  %2037 = vmatpush2.bf16.msra.mxu0 %v1515
  %2038 = vmatprep.subr.bf16.mxu0 0
  %2039 = vmatpush2.bf16.msra.mxu0 %v1514
  %2040 = vmatprep.subr.bf16.mxu0 0
  %2041 = vmatpush2.bf16.msra.mxu0 %v1513
  %2042 = vmatprep.subr.bf16.mxu0 0
  %2043 = vmatpush2.bf16.msra.mxu0 %v1512
  %2044 = vmatprep.subr.bf16.mxu0 0
  %2045 = vmatpush2.bf16.msra.mxu0 %v1511
  %2046 = vmatprep.subr.bf16.mxu0 0
  %2047 = vmatpush2.bf16.msra.mxu0 %v1510
  %2048 = vmatprep.subr.bf16.mxu0 0
  %2049 = vmatpush2.bf16.msra.mxu0 %v1509
  %2050 = vmatprep.subr.bf16.mxu0 0
  %2051 = vmatpush2.bf16.msra.mxu0 %v1508
  %2052 = vmatprep.mubr.bf16.mxu0 %v530
  %2053 = vmatmul.mubr.bf16.gmra.mxu0 %v528
  %v2054 = vpop.f32.mrf.mxu0
  %v2055 = vadd.f32 %v2015, %v2054
  %v2056 = vpop.f32.mrf.mxu0
  %v2057 = vpop.f32.mrf.mxu0
  %v2058 = vpop.f32.mrf.mxu0
  %2059 = vdwg.mxu0
  %2060 = vmatprep.subr.bf16.mxu0 0
  %2061 = vmatpush1.bf16.msra.mxu0 %v1523
  %2062 = vmatprep.subr.bf16.mxu0 0
  %2063 = vmatpush1.bf16.msra.mxu0 %v1522
  %2064 = vmatprep.subr.bf16.mxu0 0
  %2065 = vmatpush1.bf16.msra.mxu0 %v1521
  %2066 = vmatprep.subr.bf16.mxu0 0
  %2067 = vmatpush1.bf16.msra.mxu0 %v1520
  %2068 = vmatprep.subr.bf16.mxu0 0
  %2069 = vmatpush1.bf16.msra.mxu0 %v1519
  %2070 = vmatprep.subr.bf16.mxu0 0
  %2071 = vmatpush1.bf16.msra.mxu0 %v1518
  %2072 = vmatprep.subr.bf16.mxu0 0
  %2073 = vmatpush1.bf16.msra.mxu0 %v1517
  %2074 = vmatprep.subr.bf16.mxu0 0
  %2075 = vmatpush1.bf16.msra.mxu0 %v1516
  %2076 = vmatprep.subr.bf16.mxu0 0
  %2077 = vmatpush2.bf16.msra.mxu0 %v1531
  %2078 = vmatprep.subr.bf16.mxu0 0
  %2079 = vmatpush2.bf16.msra.mxu0 %v1530
  %2080 = vmatprep.subr.bf16.mxu0 0
  %2081 = vmatpush2.bf16.msra.mxu0 %v1529
  %2082 = vmatprep.subr.bf16.mxu0 0
  %2083 = vmatpush2.bf16.msra.mxu0 %v1528
  %2084 = vmatprep.subr.bf16.mxu0 0
  %2085 = vmatpush2.bf16.msra.mxu0 %v1527
  %2086 = vmatprep.subr.bf16.mxu0 0
  %2087 = vmatpush2.bf16.msra.mxu0 %v1526
  %2088 = vmatprep.subr.bf16.mxu0 0
  %2089 = vmatpush2.bf16.msra.mxu0 %v1525
  %2090 = vmatprep.subr.bf16.mxu0 0
  %2091 = vmatpush2.bf16.msra.mxu0 %v1524
  %2092 = vmatprep.mubr.bf16.mxu0 %v527
  %2093 = vmatmul.mubr.bf16.gmra.mxu0 %v513
  %v2094 = vpop.f32.mrf.mxu0
  %v2095 = vadd.f32 %v2055, %v2094
  %v2096 = vpop.f32.mrf.mxu0
  %v2097 = vpop.f32.mrf.mxu0
  %v2098 = vpop.f32.mrf.mxu0
  %2099 = vdwg.mxu0
  %2100 = vmatprep.subr.bf16.mxu0 0
  %2101 = vmatpush1.bf16.msra.mxu0 %v1539
  %2102 = vmatprep.subr.bf16.mxu0 0
  %2103 = vmatpush1.bf16.msra.mxu0 %v1538
  %2104 = vmatprep.subr.bf16.mxu0 0
  %2105 = vmatpush1.bf16.msra.mxu0 %v1537
  %2106 = vmatprep.subr.bf16.mxu0 0
  %2107 = vmatpush1.bf16.msra.mxu0 %v1536
  %2108 = vmatprep.subr.bf16.mxu0 0
  %2109 = vmatpush1.bf16.msra.mxu0 %v1535
  %2110 = vmatprep.subr.bf16.mxu0 0
  %2111 = vmatpush1.bf16.msra.mxu0 %v1534
  %2112 = vmatprep.subr.bf16.mxu0 0
  %2113 = vmatpush1.bf16.msra.mxu0 %v1533
  %2114 = vmatprep.subr.bf16.mxu0 0
  %2115 = vmatpush1.bf16.msra.mxu0 %v1532
  %2116 = vmatprep.subr.bf16.mxu0 0
  %2117 = vmatpush2.bf16.msra.mxu0 %v1547
  %2118 = vmatprep.subr.bf16.mxu0 0
  %2119 = vmatpush2.bf16.msra.mxu0 %v1546
  %2120 = vmatprep.subr.bf16.mxu0 0
  %2121 = vmatpush2.bf16.msra.mxu0 %v1545
  %2122 = vmatprep.subr.bf16.mxu0 0
  %2123 = vmatpush2.bf16.msra.mxu0 %v1544
  %2124 = vmatprep.subr.bf16.mxu0 0
  %2125 = vmatpush2.bf16.msra.mxu0 %v1543
  %2126 = vmatprep.subr.bf16.mxu0 0
  %2127 = vmatpush2.bf16.msra.mxu0 %v1542
  %2128 = vmatprep.subr.bf16.mxu0 0
  %2129 = vmatpush2.bf16.msra.mxu0 %v1541
  %2130 = vmatprep.subr.bf16.mxu0 0
  %2131 = vmatpush2.bf16.msra.mxu0 %v1540
  %2132 = vmatprep.mubr.bf16.mxu0 %v531
  %2133 = vmatmul.mubr.bf16.gmra.mxu0 %v529
  %v2134 = vpop.f32.mrf.mxu0
  %v2135 = vadd.f32 %v2095, %v2134
  %v2136 = vpop.f32.mrf.mxu0
  %v2137 = vpop.f32.mrf.mxu0
  %v2138 = vpop.f32.mrf.mxu0
  %2139 = vdwg.mxu0
  %2140 = vmatprep.subr.bf16.mxu0 0
  %2141 = vmatpush1.bf16.msra.mxu0 %v1555
  %2142 = vmatprep.subr.bf16.mxu0 0
  %2143 = vmatpush1.bf16.msra.mxu0 %v1554
  %2144 = vmatprep.subr.bf16.mxu0 0
  %2145 = vmatpush1.bf16.msra.mxu0 %v1553
  %2146 = vmatprep.subr.bf16.mxu0 0
  %2147 = vmatpush1.bf16.msra.mxu0 %v1552
  %2148 = vmatprep.subr.bf16.mxu0 0
  %2149 = vmatpush1.bf16.msra.mxu0 %v1551
  %2150 = vmatprep.subr.bf16.mxu0 0
  %2151 = vmatpush1.bf16.msra.mxu0 %v1550
  %2152 = vmatprep.subr.bf16.mxu0 0
  %2153 = vmatpush1.bf16.msra.mxu0 %v1549
  %2154 = vmatprep.subr.bf16.mxu0 0
  %2155 = vmatpush1.bf16.msra.mxu0 %v1548
  %2156 = vmatprep.subr.bf16.mxu0 0
  %2157 = vmatpush2.bf16.msra.mxu0 %v1563
  %2158 = vmatprep.subr.bf16.mxu0 0
  %2159 = vmatpush2.bf16.msra.mxu0 %v1562
  %2160 = vmatprep.subr.bf16.mxu0 0
  %2161 = vmatpush2.bf16.msra.mxu0 %v1561
  %2162 = vmatprep.subr.bf16.mxu0 0
  %2163 = vmatpush2.bf16.msra.mxu0 %v1560
  %2164 = vmatprep.subr.bf16.mxu0 0
  %2165 = vmatpush2.bf16.msra.mxu0 %v1559
  %2166 = vmatprep.subr.bf16.mxu0 0
  %2167 = vmatpush2.bf16.msra.mxu0 %v1558
  %2168 = vmatprep.subr.bf16.mxu0 0
  %2169 = vmatpush2.bf16.msra.mxu0 %v1557
  %2170 = vmatprep.subr.bf16.mxu0 0
  %2171 = vmatpush2.bf16.msra.mxu0 %v1556
  %2172 = vmatprep.mubr.bf16.mxu0 %v569
  %2173 = vmatmul.mubr.bf16.gmra.mxu0 %v555
  %v2174 = vpop.f32.mrf.mxu0
  %v2175 = vadd.f32 %v2135, %v2174
  %v2176 = vpop.f32.mrf.mxu0
  %v2177 = vpop.f32.mrf.mxu0
  %v2178 = vpop.f32.mrf.mxu0
  %2179 = vdwg.mxu0
  %2180 = vmatprep.subr.bf16.mxu0 0
  %2181 = vmatpush1.bf16.msra.mxu0 %v1571
  %2182 = vmatprep.subr.bf16.mxu0 0
  %2183 = vmatpush1.bf16.msra.mxu0 %v1570
  %2184 = vmatprep.subr.bf16.mxu0 0
  %2185 = vmatpush1.bf16.msra.mxu0 %v1569
  %2186 = vmatprep.subr.bf16.mxu0 0
  %2187 = vmatpush1.bf16.msra.mxu0 %v1568
  %2188 = vmatprep.subr.bf16.mxu0 0
  %2189 = vmatpush1.bf16.msra.mxu0 %v1567
  %2190 = vmatprep.subr.bf16.mxu0 0
  %2191 = vmatpush1.bf16.msra.mxu0 %v1566
  %2192 = vmatprep.subr.bf16.mxu0 0
  %2193 = vmatpush1.bf16.msra.mxu0 %v1565
  %2194 = vmatprep.subr.bf16.mxu0 0
  %2195 = vmatpush1.bf16.msra.mxu0 %v1564
  %2196 = vmatprep.subr.bf16.mxu0 0
  %2197 = vmatpush2.bf16.msra.mxu0 %v1579
  %2198 = vmatprep.subr.bf16.mxu0 0
  %2199 = vmatpush2.bf16.msra.mxu0 %v1578
  %2200 = vmatprep.subr.bf16.mxu0 0
  %2201 = vmatpush2.bf16.msra.mxu0 %v1577
  %2202 = vmatprep.subr.bf16.mxu0 0
  %2203 = vmatpush2.bf16.msra.mxu0 %v1576
  %2204 = vmatprep.subr.bf16.mxu0 0
  %2205 = vmatpush2.bf16.msra.mxu0 %v1575
  %2206 = vmatprep.subr.bf16.mxu0 0
  %2207 = vmatpush2.bf16.msra.mxu0 %v1574
  %2208 = vmatprep.subr.bf16.mxu0 0
  %2209 = vmatpush2.bf16.msra.mxu0 %v1573
  %2210 = vmatprep.subr.bf16.mxu0 0
  %2211 = vmatpush2.bf16.msra.mxu0 %v1572
  %2212 = vmatprep.mubr.bf16.mxu0 %v579
  %2213 = vmatmul.mubr.bf16.gmra.mxu0 %v577
  %v2214 = vpop.f32.mrf.mxu0
  %v2215 = vadd.f32 %v2175, %v2214
  %v2216 = vpop.f32.mrf.mxu0
  %v2217 = vpop.f32.mrf.mxu0
  %v2218 = vpop.f32.mrf.mxu0
  %2219 = vdwg.mxu0
  %2220 = vmatprep.subr.bf16.mxu0 0
  %2221 = vmatpush1.bf16.msra.mxu0 %v1587
  %2222 = vmatprep.subr.bf16.mxu0 0
  %2223 = vmatpush1.bf16.msra.mxu0 %v1586
  %2224 = vmatprep.subr.bf16.mxu0 0
  %2225 = vmatpush1.bf16.msra.mxu0 %v1585
  %2226 = vmatprep.subr.bf16.mxu0 0
  %2227 = vmatpush1.bf16.msra.mxu0 %v1584
  %2228 = vmatprep.subr.bf16.mxu0 0
  %2229 = vmatpush1.bf16.msra.mxu0 %v1583
  %2230 = vmatprep.subr.bf16.mxu0 0
  %2231 = vmatpush1.bf16.msra.mxu0 %v1582
  %2232 = vmatprep.subr.bf16.mxu0 0
  %2233 = vmatpush1.bf16.msra.mxu0 %v1581
  %2234 = vmatprep.subr.bf16.mxu0 0
  %2235 = vmatpush1.bf16.msra.mxu0 %v1580
  %2236 = vmatprep.subr.bf16.mxu0 0
  %2237 = vmatpush2.bf16.msra.mxu0 %v1595
  %2238 = vmatprep.subr.bf16.mxu0 0
  %2239 = vmatpush2.bf16.msra.mxu0 %v1594
  %2240 = vmatprep.subr.bf16.mxu0 0
  %2241 = vmatpush2.bf16.msra.mxu0 %v1593
  %2242 = vmatprep.subr.bf16.mxu0 0
  %2243 = vmatpush2.bf16.msra.mxu0 %v1592
  %2244 = vmatprep.subr.bf16.mxu0 0
  %2245 = vmatpush2.bf16.msra.mxu0 %v1591
  %2246 = vmatprep.subr.bf16.mxu0 0
  %2247 = vmatpush2.bf16.msra.mxu0 %v1590
  %2248 = vmatprep.subr.bf16.mxu0 0
  %2249 = vmatpush2.bf16.msra.mxu0 %v1589
  %2250 = vmatprep.subr.bf16.mxu0 0
  %2251 = vmatpush2.bf16.msra.mxu0 %v1588
  %2252 = vmatprep.mubr.bf16.mxu0 %v576
  %2253 = vmatmul.mubr.bf16.gmra.mxu0 %v562
  %v2254 = vpop.f32.mrf.mxu0
  %v2255 = vadd.f32 %v2215, %v2254
  %v2256 = vpop.f32.mrf.mxu0
  %v2257 = vpop.f32.mrf.mxu0
  %v2258 = vpop.f32.mrf.mxu0
  %2259 = vdwg.mxu0
  %2260 = vmatprep.subr.bf16.mxu0 0
  %2261 = vmatpush1.bf16.msra.mxu0 %v1603
  %2262 = vmatprep.subr.bf16.mxu0 0
  %2263 = vmatpush1.bf16.msra.mxu0 %v1602
  %2264 = vmatprep.subr.bf16.mxu0 0
  %2265 = vmatpush1.bf16.msra.mxu0 %v1601
  %2266 = vmatprep.subr.bf16.mxu0 0
  %2267 = vmatpush1.bf16.msra.mxu0 %v1600
  %2268 = vmatprep.subr.bf16.mxu0 0
  %2269 = vmatpush1.bf16.msra.mxu0 %v1599
  %2270 = vmatprep.subr.bf16.mxu0 0
  %2271 = vmatpush1.bf16.msra.mxu0 %v1598
  %2272 = vmatprep.subr.bf16.mxu0 0
  %2273 = vmatpush1.bf16.msra.mxu0 %v1597
  %2274 = vmatprep.subr.bf16.mxu0 0
  %2275 = vmatpush1.bf16.msra.mxu0 %v1596
  %2276 = vmatprep.subr.bf16.mxu0 0
  %2277 = vmatpush2.bf16.msra.mxu0 %v1611
  %2278 = vmatprep.subr.bf16.mxu0 0
  %2279 = vmatpush2.bf16.msra.mxu0 %v1610
  %2280 = vmatprep.subr.bf16.mxu0 0
  %2281 = vmatpush2.bf16.msra.mxu0 %v1609
  %2282 = vmatprep.subr.bf16.mxu0 0
  %2283 = vmatpush2.bf16.msra.mxu0 %v1608
  %2284 = vmatprep.subr.bf16.mxu0 0
  %2285 = vmatpush2.bf16.msra.mxu0 %v1607
  %2286 = vmatprep.subr.bf16.mxu0 0
  %2287 = vmatpush2.bf16.msra.mxu0 %v1606
  %2288 = vmatprep.subr.bf16.mxu0 0
  %2289 = vmatpush2.bf16.msra.mxu0 %v1605
  %2290 = vmatprep.subr.bf16.mxu0 0
  %2291 = vmatpush2.bf16.msra.mxu0 %v1604
  %2292 = vmatprep.mubr.bf16.mxu0 %v580
  %2293 = vmatmul.mubr.bf16.gmra.mxu0 %v578
  %v2294 = vpop.f32.mrf.mxu0
  %v2295 = vadd.f32 %v2255, %v2294
  %v2296 = vpop.f32.mrf.mxu0
  %v2297 = vpop.f32.mrf.mxu0
  %v2298 = vpop.f32.mrf.mxu0
  %2299 = vdwg.mxu0
  %2300 = vmatprep.subr.bf16.mxu0 0
  %2301 = vmatpush1.bf16.msra.mxu0 %v1619
  %2302 = vmatprep.subr.bf16.mxu0 0
  %2303 = vmatpush1.bf16.msra.mxu0 %v1618
  %2304 = vmatprep.subr.bf16.mxu0 0
  %2305 = vmatpush1.bf16.msra.mxu0 %v1617
  %2306 = vmatprep.subr.bf16.mxu0 0
  %2307 = vmatpush1.bf16.msra.mxu0 %v1616
  %2308 = vmatprep.subr.bf16.mxu0 0
  %2309 = vmatpush1.bf16.msra.mxu0 %v1615
  %2310 = vmatprep.subr.bf16.mxu0 0
  %2311 = vmatpush1.bf16.msra.mxu0 %v1614
  %2312 = vmatprep.subr.bf16.mxu0 0
  %2313 = vmatpush1.bf16.msra.mxu0 %v1613
  %2314 = vmatprep.subr.bf16.mxu0 0
  %2315 = vmatpush1.bf16.msra.mxu0 %v1612
  %2316 = vmatprep.subr.bf16.mxu0 0
  %2317 = vmatpush2.bf16.msra.mxu0 0
  %2318 = vmatprep.subr.bf16.mxu0 0
  %2319 = vmatpush2.bf16.msra.mxu0 0
  %2320 = vmatprep.subr.bf16.mxu0 0
  %2321 = vmatpush2.bf16.msra.mxu0 0
  %2322 = vmatprep.subr.bf16.mxu0 0
  %2323 = vmatpush2.bf16.msra.mxu0 0
  %2324 = vmatprep.subr.bf16.mxu0 0
  %2325 = vmatpush2.bf16.msra.mxu0 0
  %2326 = vmatprep.subr.bf16.mxu0 0
  %2327 = vmatpush2.bf16.msra.mxu0 0
  %2328 = vmatprep.subr.bf16.mxu0 0
  %2329 = vmatpush2.bf16.msra.mxu0 0
  %2330 = vmatprep.subr.bf16.mxu0 0
  %2331 = vmatpush2.bf16.msra.mxu0 0
  %2332 = vmatprep.mubr.bf16.mxu0 0
  %2333 = vmatmul.mubr.bf16.gmra.mxu0 %v594
  %v2334 = vpop.f32.mrf.mxu0
  %v2335 = vadd.f32 %v2295, %v2334
  %v2336 = vpop.f32.mrf.mxu0
  %v2337 = vpop.f32.mrf.mxu0
  %v2338 = vpop.f32.mrf.mxu0
  %2339 = vdwg.mxu0
  %vm2340 = vcmask 1041408
  %v2341 = vsel %vm2340, %v2335, 0.0
  %v2342 = vrot.slane %v2341, 4
  %v2343 = vadd.f32 %v2341, %v2342
  %v2344 = vrot.slane %v2343, 2
  %v2345 = vadd.f32 %v2343, %v2344
  %v2346 = vrot.slane %v2345, 1
  %v2347 = vadd.f32 %v2345, %v2346
  %v2348 = vmul.f32 %v2347, 0.5
  %v2349 = vmul.f32 %v2335, %v2335
  %v2350 = vsel %vm2340, %v2349, 0.0
  %v2351 = vrot.slane %v2350, 4
  %v2352 = vadd.f32 %v2350, %v2351
  %v2353 = vrot.slane %v2352, 2
  %v2354 = vadd.f32 %v2352, %v2353
  %v2355 = vrot.slane %v2354, 1
  %v2356 = vadd.f32 %v2354, %v2355
  %v2357 = vmul.f32 %v2356, 0.5
  %v2358 = vmul.f32 %v2348, %v2348
  %v2359 = vsub.f32 %v2357, %v2358
  %v2360 = vmax.f32 %v2359, 0.0
  %v2361 = vld [vmem:[%s2] sm:$0x1]
  %v2362 = vadd.f32 %v2360, 1e-05
  %v2363 = vrsqrt.pop %v2362
  %v2364 = vmul.f32 %v2361, %v2363
  %v2365 = vld [vmem:[%s3] sm:$0x1]
  %v2366 = vmul.f32 %v2348, %v2364
  %v2367 = vsub.f32 %v2365, %v2366
  %v2369 = vlaneseq
  %v2370 = vshrl.u32 %v2369, 7
  %v2371 = vsub.s32 0, %v2370
  %v2372 = vrot.slane %v2364, %v2371
  %v2374 = vmul.f32 %v2335, %v2372
  %v2376 = vlaneseq
  %v2377 = vshrl.u32 %v2376, 7
  %v2378 = vsub.s32 0, %v2377
  %v2379 = vrot.slane %v2367, %v2378
  %v2381 = vadd.f32 %v2374, %v2379
  %vm2382 = vcmp.gt.f32.partialorder %v2381, 0.0
  %v2383 = vmul.f32 %v2381, 0.2
  %v2384 = vsel %vm2382, %v2381, %v2383
  %v2385 = vld [vmem:[%s4] sm:$0x3]
  %v2386 = vmul.f32 %v2384, %v2385
  %v2387 = vsel %vm2340, %v2386, 0.0
  %2388 = vadd.xlane.f32.xlu0 %v2387
  %v2389 = vpop.xlane.xlu0 %2388
  %v2390 = vld [vmem:[#allocation2] sm:$0x1]
  %v2392 = vlaneseq
  %v2393 = vshrl.u32 %v2392, 7
  %v2394 = vsub.s32 0, %v2393
  %v2395 = vrot.slane %v2390, %v2394
  %v2397 = vadd.f32 %v2395, %v2389
  %vm2398 = vcmask 1024
  %2399 = vst.msk [vmem:[%s6] sm:$0x3] %vm2398, %v2397
  // Predicated region
  $region26: #{discriminator_forward.7} parent=0 // pred_check
    _
  $region27: #{discriminator_forward.7} parent=0 // pred_check_branch
    %2401 = sbr.rel (0) target = $region29
  $region28: #{discriminator_forward.7} parent=0 // pred_region
    _
  $region29: #{discriminator_forward.7} parent=0 // pred_fallthru
    _
  // Predicated region
  $region30: #{discriminator_forward.7} parent=0 // pred_check
    _
  $region31: #{discriminator_forward.7} parent=0 // pred_check_branch
    %2403 = sbr.rel (0) target = $region33
  $region32: #{discriminator_forward.7} parent=0 // pred_region
    _
  $region33: #{discriminator_forward.7} parent=0 // pred_fallthru
    _

</llo_original>
